<compile_context>
chip_gen: v7x
topology: tpu7x:2x2x1
jax: 0.10.0
libtpu: 0.0.40
codegen_flags: <defaults>
</compile_context>

<pallas_src>
import functools

import jax
import jax.numpy as jnp
from jax.experimental import pallas as pl
from jax.experimental.pallas import tpu as pltpu

_LANE = 128


def _round_up(n, m):
    return (n + m - 1) // m * m


def _pick_tile(n, cap, mult=1):
    """Largest divisor of n that is <= cap and a multiple of `mult` (else n)."""
    if n <= cap:
        return n
    for d in range(cap, 0, -1):
        if n % d == 0 and d % mult == 0:
            return d
    return n


def _vmem_capacity_bytes():
    # v5e/v6e: 128 MiB per TensorCore, v7x: 64 MiB.  Conservative fallback if
    # the query is unavailable (e.g. interpret mode on CPU).
    try:
        return int(pltpu.get_tpu_info().vmem_capacity_bytes)
    except Exception:  # pragma: no cover
        return 64 * 1024 * 1024


# ============================================================================
# Fully-fused single-kernel fast path (whole working set VMEM-resident).
# ============================================================================
def _fused_kernel(x_ref, w1_ref, b1_ref, g1_ref, bt1_ref,
                  w2_ref, b2_ref, g2_ref, bt2_ref, g3_ref, bt3_ref,
                  o_ref, xp_ref, *, K, stride, pad, H1, W2, eps):
    """x_ref : (N, Hp, W, Cin)        bf16  H-padded NHWC input
       w1_ref: (K, Cin, Cm)           bf16  horizontal conv weights
       w2_ref: (K, Cm, Co)            bf16  vertical conv weights
       b*/g*/bt* : (1, C)             f32   bias / gamma / beta (lane padded)
       o_ref : (N, H1, W2, Co)        f32   final activations (lane padded)
       xp_ref: (N*H1, W+2*pad, Cm)    bf16  VMEM scratch for W padding
    """
    N, Hp, W, Cin = x_ref.shape
    Cm = w1_ref.shape[2]
    Co = w2_ref.shape[2]
    x = x_ref[...]                                          # (N, Hp, W, Cin)
    M1 = N * H1 * W

    # ---- horizontal (K,1) conv: per-tap MXU dots, value-accumulated --------
    acc = None
    for k in range(K):
        if stride == 1:
            tap = jax.lax.slice(x, (0, k, 0, 0), (N, k + H1, W, Cin))
        else:
            # TODO(synk): stride > 1 path is untested by the shipped example.
            tap = jax.lax.slice(x, (0, k, 0, 0),
                                (N, k + (H1 - 1) * stride + 1, W, Cin),
                                (1, stride, 1, 1))
        c = jnp.dot(tap.reshape(M1, Cin), w1_ref[k],
                    preferred_element_type=jnp.float32)
        acc = c if acc is None else acc + c
    y1 = acc + b1_ref[...]                                  # (M1, Cm) f32

    def bn_relu(y, g, bt):
        # Centered batch-statistics BatchNorm (no E[x^2]-E[x]^2 cancellation).
        mean = jnp.mean(y, axis=0, keepdims=True)
        var = jnp.mean((y - mean) * (y - mean), axis=0, keepdims=True)
        scale = g * jax.lax.rsqrt(var + eps)
        return jnp.maximum(y * scale + (bt - scale * mean), 0.0)

    x1 = bn_relu(y1, g1_ref[...], bt1_ref[...])             # f32
    NH = N * H1
    x1 = x1.reshape(NH, W, Cm).astype(jnp.bfloat16)         # bf16 MXU operand

    # ---- vertical (1,K) conv: W padding built in VMEM scratch ---------------
    if pad > 0:
        edge = jnp.zeros((NH, pad, Cm), jnp.bfloat16)
        xp_ref[:, 0:pad, :] = edge
        xp_ref[:, pad + W:pad + W + pad, :] = edge
    xp_ref[:, pad:pad + W, :] = x1
    xp = xp_ref[...]                                        # (NH, W+2p, Cm)

    M2 = NH * W2
    acc2 = None
    for k in range(K):
        if stride == 1:
            tap = jax.lax.slice(xp, (0, k, 0), (NH, k + W2, Cm))
        else:
            tap = jax.lax.slice(xp, (0, k, 0),
                                (NH, k + (W2 - 1) * stride + 1, Cm),
                                (1, stride, 1))
        c = jnp.dot(tap.reshape(M2, Cm), w2_ref[k],
                    preferred_element_type=jnp.float32)
        acc2 = c if acc2 is None else acc2 + c
    y2 = acc2 + b2_ref[...]                                 # (M2, Co) f32

    x2 = bn_relu(y2, g2_ref[...], bt2_ref[...])
    out = bn_relu(x2, g3_ref[...], bt3_ref[...])
    o_ref[...] = out.reshape(N, H1, W2, Co).astype(o_ref.dtype)


# ============================================================================
# Tiled / streaming path (large shapes that do not fit VMEM).
# ============================================================================
def _conv_h_kernel(x_ref, w_ref, b_ref, y_ref, st_ref, *, K, stride, H_out):
    """Pass 1: (K,1) conv + bias; emits pre-BN output + BN1 (sum, sumsq) partials.
       x_ref : (1, Hp, TW, Cin) bf16;  w_ref: (K, Cin, Cm) bf16 resident
       b_ref : (1, Cm) f32;  y_ref: (1, H_out, TW, Cm) bf16; st_ref: (1, 2, Cm) f32
    """
    _, Hp, TW, Cin = x_ref.shape
    Cp = w_ref.shape[2]
    M = H_out * TW
    x = x_ref[0]
    acc = None
    for k in range(K):
        if stride == 1:
            tap = jax.lax.slice(x, (k, 0, 0), (k + H_out, TW, Cin))
        else:
            tap = jax.lax.slice(x, (k, 0, 0),
                                (k + (H_out - 1) * stride + 1, TW, Cin),
                                (stride, 1, 1))
        # Value accumulation: partials stay in vregs / MXU result path (MRB on
        # v7x) instead of round-tripping a VMEM scratch accumulator.
        c = jnp.dot(tap.reshape(M, Cin), w_ref[k],
                    preferred_element_type=jnp.float32)
        acc = c if acc is None else acc + c
    acc = acc + b_ref[...]                                   # (M, Cp) f32
    y_ref[...] = acc.reshape(1, H_out, TW, Cp).astype(y_ref.dtype)
    st_ref[:, 0:1, :] = jnp.sum(acc, axis=0, keepdims=True).reshape(1, 1, Cp)
    st_ref[:, 1:2, :] = jnp.sum(acc * acc, axis=0, keepdims=True).reshape(1, 1, Cp)


def _bn_relu_conv_w_kernel(y1_ref, sc_ref, sh_ref, w_ref, b_ref,
                           y2_ref, st_ref, xp_ref, *, K, stride, pad, W_out):
    """Pass 2: BN1+ReLU (precomputed scale/shift) fused into the (1,K) conv,
       emitting pre-BN output + BN2 (sum, sumsq) partials."""
    _, TH, W, Cm = y1_ref.shape
    Co = w_ref.shape[2]
    x1 = jnp.maximum(
        y1_ref[0].astype(jnp.float32) * sc_ref[...].reshape(1, 1, Cm)
        + sh_ref[...].reshape(1, 1, Cm), 0.0).astype(jnp.bfloat16)

    # W padding built in VMEM scratch.  The zero edges are rewritten every grid
    # step on purpose: scratch is per-TensorCore, so a "first step only" guard
    # would be wrong under megacore grid sharding (and the write is tiny).
    if pad > 0:
        edge = jnp.zeros((TH, pad, Cm), jnp.bfloat16)
        xp_ref[:, 0:pad, :] = edge
        xp_ref[:, pad + W:pad + W + pad, :] = edge
    xp_ref[:, pad:pad + W, :] = x1
    xp = xp_ref[...]

    # Per-tap dots (contraction = Cm = 128): full MXU depth on v5e, simpler and
    # memory-bound-neutral on v6e/v7x (no im2col lane concat needed).
    M = TH * W_out
    acc = None
    for k in range(K):
        if stride == 1:
            tap = jax.lax.slice(xp, (0, k, 0), (TH, k + W_out, Cm))
        else:
            tap = jax.lax.slice(xp, (0, k, 0),
                                (TH, k + (W_out - 1) * stride + 1, Cm),
                                (1, stride, 1))
        c = jnp.dot(tap.reshape(M, Cm), w_ref[k],
                    preferred_element_type=jnp.float32)
        acc = c if acc is None else acc + c
    acc = acc + b_ref[...]
    y2_ref[...] = acc.reshape(1, TH, W_out, Co).astype(y2_ref.dtype)
    st_ref[:, 0:1, :] = jnp.sum(acc, axis=0, keepdims=True).reshape(1, 1, Co)
    st_ref[:, 1:2, :] = jnp.sum(acc * acc, axis=0, keepdims=True).reshape(1, 1, Co)


def _bn_relu_stats_kernel(y_ref, sc_ref, sh_ref, st_ref):
    """Pass 3 (stats only): BN2+ReLU in-register, emit BN3 (sum, sumsq) partials.
       No x2 intermediate is written to HBM."""
    _, TH, Wb, C = y_ref.shape
    z = jnp.maximum(
        y_ref[0].astype(jnp.float32) * sc_ref[...].reshape(1, 1, C)
        + sh_ref[...].reshape(1, 1, C), 0.0).reshape(TH * Wb, C)
    st_ref[:, 0:1, :] = jnp.sum(z, axis=0, keepdims=True).reshape(1, 1, C)
    st_ref[:, 1:2, :] = jnp.sum(z * z, axis=0, keepdims=True).reshape(1, 1, C)


def _bn_relu_bn_relu_kernel(y_ref, sc2_ref, sh2_ref, sc3_ref, sh3_ref, o_ref):
    """Pass 4: recompute BN2+ReLU from y2, apply BN3+ReLU, single output write."""
    _, TH, Wb, C = y_ref.shape
    x2 = jnp.maximum(
        y_ref[0].astype(jnp.float32) * sc2_ref[...].reshape(1, 1, C)
        + sh2_ref[...].reshape(1, 1, C), 0.0)
    z = jnp.maximum(x2 * sc3_ref[...].reshape(1, 1, C)
                    + sh3_ref[...].reshape(1, 1, C), 0.0)
    o_ref[...] = z.reshape(1, TH, Wb, C).astype(o_ref.dtype)


def _fold_stats(st, gamma, beta, count, eps):
    """Tiny wrapper-side reduction: (sum, sumsq) partials -> (scale, shift)."""
    tot = jnp.sum(st.astype(jnp.float32), axis=0)            # (2, C)
    mean = tot[0:1, :] / count
    var = jnp.maximum(tot[1:2, :] / count - mean * mean, 0.0)  # clamp >= 0
    scale = gamma * jax.lax.rsqrt(var + eps)
    shift = beta - scale * mean
    return scale, shift


def _forward_tiled(x_hpad, w1, b1, g1, bt1, w2, b2, g2, bt2, g3, bt3, *,
                   N, Hp, H1, W, W2, K, s, p, Cin, Cm_p, Co_p, eps, vmem_cap):
    vmem_limit = int(min(100 * 1024 * 1024, vmem_cap * 3 // 4))
    blk_budget = max(vmem_limit // 8, 1 << 20)

    # TODO(synk): H-tiling of pass 1 with a (K-1)-row halo (needed only for
    # very large H) is not implemented; pass 1 blocks span full H per W tile.
    tw_cap = max(8, min(W, blk_budget // max(1, H1 * Cm_p * 2 * 2)))
    TW = _pick_tile(W, tw_cap, 8)
    th_cap = max(1, min(H1, blk_budget // max(1, W2 * Co_p * 2 * 2)))
    TH = _pick_tile(H1, th_cap, 1)
    nWb, nHb = W // TW, H1 // TH

    cparams = pltpu.CompilerParams(
        dimension_semantics=("parallel", "parallel"),
        vmem_limit_bytes=vmem_limit)

    # ---- pass 1: (K,1) conv + BN1 stat partials -----------------------------
    y1, st1 = pl.pallas_call(
        functools.partial(_conv_h_kernel, K=K, stride=s, H_out=H1),
        out_shape=(jax.ShapeDtypeStruct((N, H1, W, Cm_p), jnp.bfloat16),
                   jax.ShapeDtypeStruct((N * nWb, 2, Cm_p), jnp.float32)),
        grid_spec=pltpu.PrefetchScalarGridSpec(
            num_scalar_prefetch=0,
            grid=(N, nWb),
            in_specs=[
                pl.BlockSpec((1, Hp, TW, Cin), lambda n, wb: (n, 0, wb, 0)),
                pl.BlockSpec((K, Cin, Cm_p), lambda n, wb: (0, 0, 0)),
                pl.BlockSpec((1, Cm_p), lambda n, wb: (0, 0)),
            ],
            out_specs=(
                pl.BlockSpec((1, H1, TW, Cm_p), lambda n, wb: (n, 0, wb, 0)),
                pl.BlockSpec((1, 2, Cm_p), lambda n, wb: (n * nWb + wb, 0, 0)),
            )),
        compiler_params=cparams,
    )(x_hpad, w1, b1)

    count1 = float(N * H1 * W)
    count2 = float(N * H1 * W2)
    sc1, sh1 = _fold_stats(st1, g1, bt1, count1, eps)        # hoisted stat fold

    # ---- pass 2: BN1+ReLU fused into (1,K) conv + BN2 stat partials ---------
    y2, st2 = pl.pallas_call(
        functools.partial(_bn_relu_conv_w_kernel, K=K, stride=s, pad=p, W_out=W2),
        out_shape=(jax.ShapeDtypeStruct((N, H1, W2, Co_p), jnp.bfloat16),
                   jax.ShapeDtypeStruct((N * nHb, 2, Co_p), jnp.float32)),
        grid_spec=pltpu.PrefetchScalarGridSpec(
            num_scalar_prefetch=0,
            grid=(N, nHb),
            in_specs=[
                pl.BlockSpec((1, TH, W, Cm_p), lambda n, hb: (n, hb, 0, 0)),
                pl.BlockSpec((1, Cm_p), lambda n, hb: (0, 0)),
                pl.BlockSpec((1, Cm_p), lambda n, hb: (0, 0)),
                pl.BlockSpec((K, Cm_p, Co_p), lambda n, hb: (0, 0, 0)),
                pl.BlockSpec((1, Co_p), lambda n, hb: (0, 0)),
            ],
            out_specs=(
                pl.BlockSpec((1, TH, W2, Co_p), lambda n, hb: (n, hb, 0, 0)),
                pl.BlockSpec((1, 2, Co_p), lambda n, hb: (n * nHb + hb, 0, 0)),
            ),
            scratch_shapes=[pltpu.VMEM((TH, W + 2 * p, Cm_p), jnp.bfloat16)]),
        compiler_params=cparams,
    )(y1, sc1, sh1, w2, b2)

    sc2, sh2 = _fold_stats(st2, g2, bt2, count2, eps)

    # ---- pass 3: stats only (x2 intermediate eliminated) --------------------
    st3 = pl.pallas_call(
        _bn_relu_stats_kernel,
        out_shape=jax.ShapeDtypeStruct((N * nHb, 2, Co_p), jnp.float32),
        grid_spec=pltpu.PrefetchScalarGridSpec(
            num_scalar_prefetch=0,
            grid=(N, nHb),
            in_specs=[
                pl.BlockSpec((1, TH, W2, Co_p), lambda n, hb: (n, hb, 0, 0)),
                pl.BlockSpec((1, Co_p), lambda n, hb: (0, 0)),
                pl.BlockSpec((1, Co_p), lambda n, hb: (0, 0)),
            ],
            out_specs=pl.BlockSpec((1, 2, Co_p),
                                   lambda n, hb: (n * nHb + hb, 0, 0))),
        compiler_params=cparams,
    )(y2, sc2, sh2)

    sc3, sh3 = _fold_stats(st3, g3, bt3, count2, eps)

    # ---- pass 4: recompute BN2+ReLU, apply BN3+ReLU, single output write ----
    out_nhwc = pl.pallas_call(
        _bn_relu_bn_relu_kernel,
        out_shape=jax.ShapeDtypeStruct((N, H1, W2, Co_p), jnp.float32),
        grid_spec=pltpu.PrefetchScalarGridSpec(
            num_scalar_prefetch=0,
            grid=(N, nHb),
            in_specs=[
                pl.BlockSpec((1, TH, W2, Co_p), lambda n, hb: (n, hb, 0, 0)),
                pl.BlockSpec((1, Co_p), lambda n, hb: (0, 0)),
                pl.BlockSpec((1, Co_p), lambda n, hb: (0, 0)),
                pl.BlockSpec((1, Co_p), lambda n, hb: (0, 0)),
                pl.BlockSpec((1, Co_p), lambda n, hb: (0, 0)),
            ],
            out_specs=pl.BlockSpec((1, TH, W2, Co_p),
                                   lambda n, hb: (n, hb, 0, 0))),
        compiler_params=cparams,
    )(y2, sc2, sh2, sc3, sh3)
    return out_nhwc


# ============================================================================
# Wrapper
# ============================================================================
def asymmetric_conv_block(x_nchw, params, *, kernel_size, stride, padding,
                          groups=1, eps=1e-5, force_tiled=False):
    assert groups == 1, "TODO(synk): grouped convolution not implemented"
    N, Cin, H, W = x_nchw.shape
    K, s, p = int(kernel_size), int(stride), int(padding)
    Cmid = params["w1"].shape[0]
    Cout = params["w2"].shape[0]
    assert params["w2"].shape[1] == Cmid
    Cm_p = _round_up(Cmid, _LANE)
    Co_p = _round_up(Cout, _LANE)

    H1 = (H + 2 * p - K) // s + 1          # horizontal conv output height
    W2 = (W + 2 * p - K) // s + 1          # vertical conv output width
    Hp = H + 2 * p

    # ---- wrapper glue: layout + parameter packing (tiny / one-time) --------
    x_nhwc = jnp.transpose(x_nchw, (0, 2, 3, 1)).astype(jnp.bfloat16)
    x_hpad = jnp.pad(x_nhwc, ((0, 0), (p, p), (0, 0), (0, 0)))

    w1 = jnp.transpose(params["w1"][:, :, :, 0], (2, 1, 0))          # (K, Cin, Cmid)
    w1 = jnp.pad(w1, ((0, 0), (0, 0), (0, Cm_p - Cmid))).astype(jnp.bfloat16)
    w2 = jnp.transpose(params["w2"][:, :, 0, :], (2, 1, 0))          # (K, Cmid, Cout)
    w2 = jnp.pad(w2, ((0, 0), (0, Cm_p - Cmid), (0, Co_p - Cout))).astype(jnp.bfloat16)

    def vec(v, cp):
        return jnp.pad(v.astype(jnp.float32), (0, cp - v.shape[0])).reshape(1, cp)

    b1, g1, bt1 = (vec(params["b1"], Cm_p), vec(params["g1"], Cm_p),
                   vec(params["beta1"], Cm_p))
    b2, g2, bt2 = (vec(params["b2"], Co_p), vec(params["g2"], Co_p),
                   vec(params["beta2"], Co_p))
    g3, bt3 = vec(params["g3"], Co_p), vec(params["beta3"], Co_p)

    vmem_cap = _vmem_capacity_bytes()

    # ---- fused single-kernel fast path when the working set fits VMEM ------
    est = (N * Hp * W * Cin * 2                     # input
           + N * H1 * W * Cm_p * 8                  # y1 (f32) + x1 (bf16) temps
           + N * H1 * (W + 2 * p) * Cm_p * 2        # padded scratch
           + N * H1 * W2 * Cm_p * 2 * K             # conv2 tap slices
           + N * H1 * W2 * Co_p * 12                # y2 / x2 / out (f32)
           + K * (Cin + Cm_p) * max(Cm_p, Co_p) * 2)  # weights
    if (not force_tiled) and est * 2 <= vmem_cap:
        vmem_limit = int(min(vmem_cap, max(est * 3, 32 * 1024 * 1024)))
        out_nhwc = pl.pallas_call(
            functools.partial(_fused_kernel, K=K, stride=s, pad=p,
                              H1=H1, W2=W2, eps=eps),
            out_shape=jax.ShapeDtypeStruct((N, H1, W2, Co_p), jnp.float32),
            scratch_shapes=[pltpu.VMEM((N * H1, W + 2 * p, Cm_p), jnp.bfloat16)],
            compiler_params=pltpu.CompilerParams(vmem_limit_bytes=vmem_limit),
        )(x_hpad, w1, b1, g1, bt1, w2, b2, g2, bt2, g3, bt3)
    else:
        out_nhwc = _forward_tiled(
            x_hpad, w1, b1, g1, bt1, w2, b2, g2, bt2, g3, bt3,
            N=N, Hp=Hp, H1=H1, W=W, W2=W2, K=K, s=s, p=p, Cin=Cin,
            Cm_p=Cm_p, Co_p=Co_p, eps=eps, vmem_cap=vmem_cap)

    # strip the lane padding on channels, back to NCHW
    # TODO(synk): emit the consumer (NCHW / bf16) layout directly from the final
    #             pass for large shapes to avoid this extra HBM round trip.
    return jnp.transpose(out_nhwc[:, :, :, :Cout], (0, 3, 1, 2))


# ----------------------------------------------------------------------------
# Pure-JAX reference (bf16 conv operands like the kernels, f32 everywhere else)
# ----------------------------------------------------------------------------
def _reference(x, p, *, kernel_size, stride, padding, eps):
    K, s, pd = kernel_size, stride, padding

    def conv(inp, w, b, strides, pads):
        lhs = inp.astype(jnp.bfloat16).astype(jnp.float32)
        rhs = w.astype(jnp.bfloat16).astype(jnp.float32)
        y = jax.lax.conv_general_dilated(
            lhs, rhs, window_strides=strides, padding=pads,
            dimension_numbers=("NCHW", "OIHW", "NCHW"))
        return y + b.reshape(1, -1, 1, 1)

    def bn_relu(y, g, bt):
        mean = y.mean(axis=(0, 2, 3), keepdims=True)
        var = jnp.square(y - mean).mean(axis=(0, 2, 3), keepdims=True)
        z = (y - mean) * jax.lax.rsqrt(var + eps)
        z = z * g.reshape(1, -1, 1, 1) + bt.reshape(1, -1, 1, 1)
        return jnp.maximum(z, 0.0)

    x1 = bn_relu(conv(x, p["w1"], p["b1"], (s, 1), [(pd, pd), (0, 0)]),
                 p["g1"], p["beta1"])
    x2 = bn_relu(conv(x1, p["w2"], p["b2"], (1, s), [(0, 0), (pd, pd)]),
                 p["g2"], p["beta2"])
    return bn_relu(x2, p["g3"], p["beta3"])


if __name__ == "__main__":
    # AsymmetricConvBlock(in_channels=4, middle_channels=6, out_channels=8,
    #                     kernel_size=3, stride=1, padding=1, act_fn='relu')
    N, Cin, H, W = 2, 4, 16, 16
    Cmid, Cout, K, stride, padding = 6, 8, 3, 1, 1

    key = jax.random.PRNGKey(0)
    ks = jax.random.split(key, 11)
    params = {
        "w1": 0.3 * jax.random.normal(ks[0], (Cmid, Cin, K, 1), jnp.float32),
        "b1": 0.1 * jax.random.normal(ks[1], (Cmid,), jnp.float32),
        "g1": 1.0 + 0.1 * jax.random.normal(ks[2], (Cmid,), jnp.float32),
        "beta1": 0.1 * jax.random.normal(ks[3], (Cmid,), jnp.float32),
        "w2": 0.3 * jax.random.normal(ks[4], (Cout, Cmid, 1, K), jnp.float32),
        "b2": 0.1 * jax.random.normal(ks[5], (Cout,), jnp.float32),
        "g2": 1.0 + 0.1 * jax.random.normal(ks[6], (Cout,), jnp.float32),
        "beta2": 0.1 * jax.random.normal(ks[7], (Cout,), jnp.float32),
        "g3": 1.0 + 0.1 * jax.random.normal(ks[8], (Cout,), jnp.float32),
        "beta3": 0.1 * jax.random.normal(ks[9], (Cout,), jnp.float32),
    }
    x = jax.random.normal(ks[10], (N, Cin, H, W), jnp.float32)

    ref = _reference(x, params, kernel_size=K, stride=stride, padding=padding,
                     eps=1e-5)
    H1 = (H + 2 * padding - K) // stride + 1
    W2 = (W + 2 * padding - K) // stride + 1

    # ---- fused fast path (taken automatically at this small shape) ----------
    fwd = jax.jit(functools.partial(asymmetric_conv_block, kernel_size=K,
                                    stride=stride, padding=padding))
    out = jax.block_until_ready(fwd(x, params))
    assert out.shape == (N, Cout, H1, W2), out.shape
    err = float(jnp.max(jnp.abs(out - ref)))
    assert jnp.allclose(out, ref, rtol=2e-2, atol=2e-2), \
        f"fused mismatch, max|d|={err}"

    # ---- also exercise the general tiled / streaming path -------------------
    fwd_tiled = jax.jit(functools.partial(asymmetric_conv_block, kernel_size=K,
                                          stride=stride, padding=padding,
                                          force_tiled=True))
    out_t = jax.block_until_ready(fwd_tiled(x, params))
    assert out_t.shape == (N, Cout, H1, W2), out_t.shape
    err_t = float(jnp.max(jnp.abs(out_t - ref)))
    # Looser bound: the streaming path stores the pre-BN conv outputs in bf16.
    assert jnp.allclose(out_t, ref, rtol=1e-1, atol=1e-1), \
        f"tiled mismatch, max|d|={err_t}"

    print("KERNEL_OK")
</pallas_src>

<mosaic_0001>
module attributes {stable_mosaic.version = 11 : i64} {
  func.func @_fused_kernel(%arg0: memref<2x18x16x4xbf16, #tpu.memory_space<vmem>>, %arg1: memref<3x4x128xbf16, #tpu.memory_space<vmem>>, %arg2: memref<1x128xf32, #tpu.memory_space<vmem>>, %arg3: memref<1x128xf32, #tpu.memory_space<vmem>>, %arg4: memref<1x128xf32, #tpu.memory_space<vmem>>, %arg5: memref<3x128x128xbf16, #tpu.memory_space<vmem>>, %arg6: memref<1x128xf32, #tpu.memory_space<vmem>>, %arg7: memref<1x128xf32, #tpu.memory_space<vmem>>, %arg8: memref<1x128xf32, #tpu.memory_space<vmem>>, %arg9: memref<1x128xf32, #tpu.memory_space<vmem>>, %arg10: memref<1x128xf32, #tpu.memory_space<vmem>>, %arg11: memref<2x16x16x128xf32, #tpu.memory_space<vmem>>, %arg12: memref<32x18x128xbf16, #tpu.memory_space<vmem>>) attributes {dimension_semantics = [], scalar_prefetch = 0 : i64, scratch_operands = 1 : i64, tpu.core_type = #tpu.core_type<tc>} {
    %c0 = arith.constant 0 : index
    %c0_0 = arith.constant 0 : index
    %c0_1 = arith.constant 0 : index
    %c0_2 = arith.constant 0 : index
    %0 = vector.load %arg0[%c0, %c0_0, %c0_1, %c0_2] : memref<2x18x16x4xbf16, #tpu.memory_space<vmem>>, vector<2x18x16x4xbf16>
    %1 = vector.extract_strided_slice %0 {offsets = [0, 0, 0, 0], sizes = [2, 16, 16, 4], strides = [1, 1, 1, 1]} : vector<2x18x16x4xbf16> to vector<2x16x16x4xbf16>
    %2 = vector.shape_cast %1 : vector<2x16x16x4xbf16> to vector<512x4xbf16>
    %c0_3 = arith.constant 0 : index
    %c0_4 = arith.constant 0 : index
    %c0_5 = arith.constant 0 : index
    %3 = vector.load %arg1[%c0_3, %c0_4, %c0_5] : memref<3x4x128xbf16, #tpu.memory_space<vmem>>, vector<1x4x128xbf16>
    %4 = vector.shape_cast %3 : vector<1x4x128xbf16> to vector<4x128xbf16>
    %cst = arith.constant dense<0.000000e+00> : vector<512x128xf32>
    %5 = tpu.matmul %2, %4, %cst {dimension_numbers = #tpu.dot_dimension_numbers<[1], [0], [0], [1], [0, 0, 1, 1], [], []>} : vector<512x4xbf16>, vector<4x128xbf16>, vector<512x128xf32> -> vector<512x128xf32>
    %6 = vector.extract_strided_slice %0 {offsets = [0, 1, 0, 0], sizes = [2, 16, 16, 4], strides = [1, 1, 1, 1]} : vector<2x18x16x4xbf16> to vector<2x16x16x4xbf16>
    %7 = vector.shape_cast %6 : vector<2x16x16x4xbf16> to vector<512x4xbf16>
    %c1 = arith.constant 1 : index
    %c0_6 = arith.constant 0 : index
    %c0_7 = arith.constant 0 : index
    %8 = vector.load %arg1[%c1, %c0_6, %c0_7] : memref<3x4x128xbf16, #tpu.memory_space<vmem>>, vector<1x4x128xbf16>
    %9 = vector.shape_cast %8 : vector<1x4x128xbf16> to vector<4x128xbf16>
    %cst_8 = arith.constant dense<0.000000e+00> : vector<512x128xf32>
    %10 = tpu.matmul %7, %9, %cst_8 {dimension_numbers = #tpu.dot_dimension_numbers<[1], [0], [0], [1], [0, 0, 1, 1], [], []>} : vector<512x4xbf16>, vector<4x128xbf16>, vector<512x128xf32> -> vector<512x128xf32>
    %11 = arith.addf %5, %10 : vector<512x128xf32>
    %12 = vector.extract_strided_slice %0 {offsets = [0, 2, 0, 0], sizes = [2, 16, 16, 4], strides = [1, 1, 1, 1]} : vector<2x18x16x4xbf16> to vector<2x16x16x4xbf16>
    %13 = vector.shape_cast %12 : vector<2x16x16x4xbf16> to vector<512x4xbf16>
    %c2 = arith.constant 2 : index
    %c0_9 = arith.constant 0 : index
    %c0_10 = arith.constant 0 : index
    %14 = vector.load %arg1[%c2, %c0_9, %c0_10] : memref<3x4x128xbf16, #tpu.memory_space<vmem>>, vector<1x4x128xbf16>
    %15 = vector.shape_cast %14 : vector<1x4x128xbf16> to vector<4x128xbf16>
    %cst_11 = arith.constant dense<0.000000e+00> : vector<512x128xf32>
    %16 = tpu.matmul %13, %15, %cst_11 {dimension_numbers = #tpu.dot_dimension_numbers<[1], [0], [0], [1], [0, 0, 1, 1], [], []>} : vector<512x4xbf16>, vector<4x128xbf16>, vector<512x128xf32> -> vector<512x128xf32>
    %17 = arith.addf %11, %16 : vector<512x128xf32>
    %c0_12 = arith.constant 0 : index
    %c0_13 = arith.constant 0 : index
    %18 = vector.load %arg2[%c0_12, %c0_13] : memref<1x128xf32, #tpu.memory_space<vmem>>, vector<1x128xf32>
    %19 = vector.broadcast %18 : vector<1x128xf32> to vector<512x128xf32>
    %20 = arith.addf %17, %19 : vector<512x128xf32>
    %c0_14 = arith.constant 0 : index
    %c0_15 = arith.constant 0 : index
    %21 = vector.load %arg3[%c0_14, %c0_15] : memref<1x128xf32, #tpu.memory_space<vmem>>, vector<1x128xf32>
    %c0_16 = arith.constant 0 : index
    %c0_17 = arith.constant 0 : index
    %22 = vector.load %arg4[%c0_16, %c0_17] : memref<1x128xf32, #tpu.memory_space<vmem>>, vector<1x128xf32>
    %cst_18 = arith.constant dense<0.000000e+00> : vector<128xf32>
    %23 = vector.multi_reduction <add>, %20, %cst_18 [0] : vector<512x128xf32> to vector<128xf32>
    %24 = vector.shape_cast %23 : vector<128xf32> to vector<1x128xf32>
    %cst_19 = arith.constant 5.120000e+02 : f32
    %25 = vector.broadcast %cst_19 : f32 to vector<1x128xf32>
    %26 = arith.divf %24, %25 : vector<1x128xf32>
    %27 = vector.broadcast %26 : vector<1x128xf32> to vector<512x128xf32>
    %28 = arith.subf %20, %27 : vector<512x128xf32>
    %29 = vector.broadcast %26 : vector<1x128xf32> to vector<512x128xf32>
    %30 = arith.subf %20, %29 : vector<512x128xf32>
    %31 = arith.mulf %28, %30 : vector<512x128xf32>
    %cst_20 = arith.constant dense<0.000000e+00> : vector<128xf32>
    %32 = vector.multi_reduction <add>, %31, %cst_20 [0] : vector<512x128xf32> to vector<128xf32>
    %33 = vector.shape_cast %32 : vector<128xf32> to vector<1x128xf32>
    %cst_21 = arith.constant 5.120000e+02 : f32
    %34 = vector.broadcast %cst_21 : f32 to vector<1x128xf32>
    %35 = arith.divf %33, %34 : vector<1x128xf32>
    %cst_22 = arith.constant 9.99999974E-6 : f32
    %36 = vector.broadcast %cst_22 : f32 to vector<1x128xf32>
    %37 = arith.addf %35, %36 : vector<1x128xf32>
    %38 = math.rsqrt %37 : vector<1x128xf32>
    %39 = arith.mulf %21, %38 : vector<1x128xf32>
    %40 = vector.broadcast %39 : vector<1x128xf32> to vector<512x128xf32>
    %41 = arith.mulf %20, %40 : vector<512x128xf32>
    %42 = arith.mulf %39, %26 : vector<1x128xf32>
    %43 = arith.subf %22, %42 : vector<1x128xf32>
    %44 = vector.broadcast %43 : vector<1x128xf32> to vector<512x128xf32>
    %45 = arith.addf %41, %44 : vector<512x128xf32>
    %cst_23 = arith.constant 0.000000e+00 : f32
    %46 = vector.broadcast %cst_23 : f32 to vector<512x128xf32>
    %47 = arith.maximumf %45, %46 : vector<512x128xf32>
    %48 = vector.shape_cast %47 : vector<512x128xf32> to vector<32x16x128xf32>
    %49 = arith.truncf %48 : vector<32x16x128xf32> to vector<32x16x128xbf16>
    %cst_24 = arith.constant 0.000000e+00 : bf16
    %50 = vector.broadcast %cst_24 : bf16 to vector<32x1x128xbf16>
    %c0_25 = arith.constant 0 : index
    %c0_26 = arith.constant 0 : index
    %c0_27 = arith.constant 0 : index
    %51 = vector.load %arg12[%c0_25, %c0_26, %c0_27] : memref<32x18x128xbf16, #tpu.memory_space<vmem>>, vector<32x1x128xbf16>
    tpu.vector_store %arg12[%c0_25, %c0_26, %c0_27], %50 {strides = array<i32>} : memref<32x18x128xbf16, #tpu.memory_space<vmem>>, vector<32x1x128xbf16>,
    %c0_28 = arith.constant 0 : index
    %c17 = arith.constant 17 : index
    %c0_29 = arith.constant 0 : index
    %52 = vector.load %arg12[%c0_28, %c17, %c0_29] : memref<32x18x128xbf16, #tpu.memory_space<vmem>>, vector<32x1x128xbf16>
    tpu.vector_store %arg12[%c0_28, %c17, %c0_29], %50 {strides = array<i32>} : memref<32x18x128xbf16, #tpu.memory_space<vmem>>, vector<32x1x128xbf16>,
    %c0_30 = arith.constant 0 : index
    %c1_31 = arith.constant 1 : index
    %c0_32 = arith.constant 0 : index
    %53 = vector.load %arg12[%c0_30, %c1_31, %c0_32] : memref<32x18x128xbf16, #tpu.memory_space<vmem>>, vector<32x16x128xbf16>
    tpu.vector_store %arg12[%c0_30, %c1_31, %c0_32], %49 {strides = array<i32>} : memref<32x18x128xbf16, #tpu.memory_space<vmem>>, vector<32x16x128xbf16>,
    %c0_33 = arith.constant 0 : index
    %c0_34 = arith.constant 0 : index
    %c0_35 = arith.constant 0 : index
    %54 = vector.load %arg12[%c0_33, %c0_34, %c0_35] : memref<32x18x128xbf16, #tpu.memory_space<vmem>>, vector<32x18x128xbf16>
    %55 = vector.extract_strided_slice %54 {offsets = [0, 0, 0], sizes = [32, 16, 128], strides = [1, 1, 1]} : vector<32x18x128xbf16> to vector<32x16x128xbf16>
    %56 = vector.shape_cast %55 : vector<32x16x128xbf16> to vector<512x128xbf16>
    %c0_36 = arith.constant 0 : index
    %c0_37 = arith.constant 0 : index
    %c0_38 = arith.constant 0 : index
    %57 = vector.load %arg5[%c0_36, %c0_37, %c0_38] : memref<3x128x128xbf16, #tpu.memory_space<vmem>>, vector<1x128x128xbf16>
    %58 = vector.shape_cast %57 : vector<1x128x128xbf16> to vector<128x128xbf16>
    %cst_39 = arith.constant dense<0.000000e+00> : vector<512x128xf32>
    %59 = tpu.matmul %56, %58, %cst_39 {dimension_numbers = #tpu.dot_dimension_numbers<[1], [0], [0], [1], [0, 0, 1, 1], [], []>} : vector<512x128xbf16>, vector<128x128xbf16>, vector<512x128xf32> -> vector<512x128xf32>
    %60 = vector.extract_strided_slice %54 {offsets = [0, 1, 0], sizes = [32, 16, 128], strides = [1, 1, 1]} : vector<32x18x128xbf16> to vector<32x16x128xbf16>
    %61 = vector.shape_cast %60 : vector<32x16x128xbf16> to vector<512x128xbf16>
    %c1_40 = arith.constant 1 : index
    %c0_41 = arith.constant 0 : index
    %c0_42 = arith.constant 0 : index
    %62 = vector.load %arg5[%c1_40, %c0_41, %c0_42] : memref<3x128x128xbf16, #tpu.memory_space<vmem>>, vector<1x128x128xbf16>
    %63 = vector.shape_cast %62 : vector<1x128x128xbf16> to vector<128x128xbf16>
    %cst_43 = arith.constant dense<0.000000e+00> : vector<512x128xf32>
    %64 = tpu.matmul %61, %63, %cst_43 {dimension_numbers = #tpu.dot_dimension_numbers<[1], [0], [0], [1], [0, 0, 1, 1], [], []>} : vector<512x128xbf16>, vector<128x128xbf16>, vector<512x128xf32> -> vector<512x128xf32>
    %65 = arith.addf %59, %64 : vector<512x128xf32>
    %66 = vector.extract_strided_slice %54 {offsets = [0, 2, 0], sizes = [32, 16, 128], strides = [1, 1, 1]} : vector<32x18x128xbf16> to vector<32x16x128xbf16>
    %67 = vector.shape_cast %66 : vector<32x16x128xbf16> to vector<512x128xbf16>
    %c2_44 = arith.constant 2 : index
    %c0_45 = arith.constant 0 : index
    %c0_46 = arith.constant 0 : index
    %68 = vector.load %arg5[%c2_44, %c0_45, %c0_46] : memref<3x128x128xbf16, #tpu.memory_space<vmem>>, vector<1x128x128xbf16>
    %69 = vector.shape_cast %68 : vector<1x128x128xbf16> to vector<128x128xbf16>
    %cst_47 = arith.constant dense<0.000000e+00> : vector<512x128xf32>
    %70 = tpu.matmul %67, %69, %cst_47 {dimension_numbers = #tpu.dot_dimension_numbers<[1], [0], [0], [1], [0, 0, 1, 1], [], []>} : vector<512x128xbf16>, vector<128x128xbf16>, vector<512x128xf32> -> vector<512x128xf32>
    %71 = arith.addf %65, %70 : vector<512x128xf32>
    %c0_48 = arith.constant 0 : index
    %c0_49 = arith.constant 0 : index
    %72 = vector.load %arg6[%c0_48, %c0_49] : memref<1x128xf32, #tpu.memory_space<vmem>>, vector<1x128xf32>
    %73 = vector.broadcast %72 : vector<1x128xf32> to vector<512x128xf32>
    %74 = arith.addf %71, %73 : vector<512x128xf32>
    %c0_50 = arith.constant 0 : index
    %c0_51 = arith.constant 0 : index
    %75 = vector.load %arg7[%c0_50, %c0_51] : memref<1x128xf32, #tpu.memory_space<vmem>>, vector<1x128xf32>
    %c0_52 = arith.constant 0 : index
    %c0_53 = arith.constant 0 : index
    %76 = vector.load %arg8[%c0_52, %c0_53] : memref<1x128xf32, #tpu.memory_space<vmem>>, vector<1x128xf32>
    %cst_54 = arith.constant dense<0.000000e+00> : vector<128xf32>
    %77 = vector.multi_reduction <add>, %74, %cst_54 [0] : vector<512x128xf32> to vector<128xf32>
    %78 = vector.shape_cast %77 : vector<128xf32> to vector<1x128xf32>
    %cst_55 = arith.constant 5.120000e+02 : f32
    %79 = vector.broadcast %cst_55 : f32 to vector<1x128xf32>
    %80 = arith.divf %78, %79 : vector<1x128xf32>
    %81 = vector.broadcast %80 : vector<1x128xf32> to vector<512x128xf32>
    %82 = arith.subf %74, %81 : vector<512x128xf32>
    %83 = vector.broadcast %80 : vector<1x128xf32> to vector<512x128xf32>
    %84 = arith.subf %74, %83 : vector<512x128xf32>
    %85 = arith.mulf %82, %84 : vector<512x128xf32>
    %cst_56 = arith.constant dense<0.000000e+00> : vector<128xf32>
    %86 = vector.multi_reduction <add>, %85, %cst_56 [0] : vector<512x128xf32> to vector<128xf32>
    %87 = vector.shape_cast %86 : vector<128xf32> to vector<1x128xf32>
    %cst_57 = arith.constant 5.120000e+02 : f32
    %88 = vector.broadcast %cst_57 : f32 to vector<1x128xf32>
    %89 = arith.divf %87, %88 : vector<1x128xf32>
    %cst_58 = arith.constant 9.99999974E-6 : f32
    %90 = vector.broadcast %cst_58 : f32 to vector<1x128xf32>
    %91 = arith.addf %89, %90 : vector<1x128xf32>
    %92 = math.rsqrt %91 : vector<1x128xf32>
    %93 = arith.mulf %75, %92 : vector<1x128xf32>
    %94 = vector.broadcast %93 : vector<1x128xf32> to vector<512x128xf32>
    %95 = arith.mulf %74, %94 : vector<512x128xf32>
    %96 = arith.mulf %93, %80 : vector<1x128xf32>
    %97 = arith.subf %76, %96 : vector<1x128xf32>
    %98 = vector.broadcast %97 : vector<1x128xf32> to vector<512x128xf32>
    %99 = arith.addf %95, %98 : vector<512x128xf32>
    %cst_59 = arith.constant 0.000000e+00 : f32
    %100 = vector.broadcast %cst_59 : f32 to vector<512x128xf32>
    %101 = arith.maximumf %99, %100 : vector<512x128xf32>
    %c0_60 = arith.constant 0 : index
    %c0_61 = arith.constant 0 : index
    %102 = vector.load %arg9[%c0_60, %c0_61] : memref<1x128xf32, #tpu.memory_space<vmem>>, vector<1x128xf32>
    %c0_62 = arith.constant 0 : index
    %c0_63 = arith.constant 0 : index
    %103 = vector.load %arg10[%c0_62, %c0_63] : memref<1x128xf32, #tpu.memory_space<vmem>>, vector<1x128xf32>
    %cst_64 = arith.constant dense<0.000000e+00> : vector<128xf32>
    %104 = vector.multi_reduction <add>, %101, %cst_64 [0] : vector<512x128xf32> to vector<128xf32>
    %105 = vector.shape_cast %104 : vector<128xf32> to vector<1x128xf32>
    %cst_65 = arith.constant 5.120000e+02 : f32
    %106 = vector.broadcast %cst_65 : f32 to vector<1x128xf32>
    %107 = arith.divf %105, %106 : vector<1x128xf32>
    %108 = vector.broadcast %107 : vector<1x128xf32> to vector<512x128xf32>
    %109 = arith.subf %101, %108 : vector<512x128xf32>
    %110 = vector.broadcast %107 : vector<1x128xf32> to vector<512x128xf32>
    %111 = arith.subf %101, %110 : vector<512x128xf32>
    %112 = arith.mulf %109, %111 : vector<512x128xf32>
    %cst_66 = arith.constant dense<0.000000e+00> : vector<128xf32>
    %113 = vector.multi_reduction <add>, %112, %cst_66 [0] : vector<512x128xf32> to vector<128xf32>
    %114 = vector.shape_cast %113 : vector<128xf32> to vector<1x128xf32>
    %cst_67 = arith.constant 5.120000e+02 : f32
    %115 = vector.broadcast %cst_67 : f32 to vector<1x128xf32>
    %116 = arith.divf %114, %115 : vector<1x128xf32>
    %cst_68 = arith.constant 9.99999974E-6 : f32
    %117 = vector.broadcast %cst_68 : f32 to vector<1x128xf32>
    %118 = arith.addf %116, %117 : vector<1x128xf32>
    %119 = math.rsqrt %118 : vector<1x128xf32>
    %120 = arith.mulf %102, %119 : vector<1x128xf32>
    %121 = vector.broadcast %120 : vector<1x128xf32> to vector<512x128xf32>
    %122 = arith.mulf %101, %121 : vector<512x128xf32>
    %123 = arith.mulf %120, %107 : vector<1x128xf32>
    %124 = arith.subf %103, %123 : vector<1x128xf32>
    %125 = vector.broadcast %124 : vector<1x128xf32> to vector<512x128xf32>
    %126 = arith.addf %122, %125 : vector<512x128xf32>
    %cst_69 = arith.constant 0.000000e+00 : f32
    %127 = vector.broadcast %cst_69 : f32 to vector<512x128xf32>
    %128 = arith.maximumf %126, %127 : vector<512x128xf32>
    %129 = vector.shape_cast %128 : vector<512x128xf32> to vector<2x16x16x128xf32>
    %c0_70 = arith.constant 0 : index
    %c0_71 = arith.constant 0 : index
    %c0_72 = arith.constant 0 : index
    %c0_73 = arith.constant 0 : index
    %130 = vector.load %arg11[%c0_70, %c0_71, %c0_72, %c0_73] : memref<2x16x16x128xf32, #tpu.memory_space<vmem>>, vector<2x16x16x128xf32>
    tpu.vector_store %arg11[%c0_70, %c0_71, %c0_72, %c0_73], %129 {strides = array<i32>} : memref<2x16x16x128xf32, #tpu.memory_space<vmem>>, vector<2x16x16x128xf32>,
    return
  }
}

</mosaic_0001>

<llo_original>
// kernel: asymmetric_conv_block.1
$region0: #{asymmetric_conv_block.1}
  #allocation0 [shape = 'u32[]', space=smem, size = 0x4, offset = 0x4, fixed_abs, tag = 'smem constant byte address 0x4 - core index']
  #allocation1 [shape = 'u32[144,128]{1,0:T(1,128)}', space=vmem, size = 0x12000, scoped, tag = 'internal scratch']
  #allocation2 [shape = 'bf16[32,18,128]{2,1,0:T(8,128)(2,1)}', space=vmem, size = 0x30000, scoped, tag = 'scratch operand']
  %s0 = inlined_call_operand.vmem [shape: bf16[2,18,16,4], index: 0, kind: input, shape index: {}]
  %s1 = inlined_call_operand.vmem [shape: bf16[3,4,128], index: 1, kind: input, shape index: {}]
  %s2 = inlined_call_operand.vmem [shape: f32[1,128], index: 2, kind: input, shape index: {}]
  %s3 = inlined_call_operand.vmem [shape: f32[1,128], index: 3, kind: input, shape index: {}]
  %s4 = inlined_call_operand.vmem [shape: f32[1,128], index: 4, kind: input, shape index: {}]
  %s5 = inlined_call_operand.vmem [shape: bf16[3,128,128], index: 5, kind: input, shape index: {}]
  %s6 = inlined_call_operand.vmem [shape: f32[1,128], index: 6, kind: input, shape index: {}]
  %s7 = inlined_call_operand.vmem [shape: f32[1,128], index: 7, kind: input, shape index: {}]
  %s8 = inlined_call_operand.vmem [shape: f32[1,128], index: 8, kind: input, shape index: {}]
  %s9 = inlined_call_operand.vmem [shape: f32[1,128], index: 9, kind: input, shape index: {}]
  %s10 = inlined_call_operand.vmem [shape: f32[1,128], index: 10, kind: input, shape index: {}]
  %s11 = inlined_call_operand.vmem [shape: f32[2,16,16,128], index: 11, kind: output, shape index: {}]
  %s12 = sld [smem:[#allocation0]]
  $region54: #{asymmetric_conv_block.1} parent=0
    _
  %s14 = ssub.s32 1, %s12
  %s15 = scalar_select 0, %s14, %s12
  // Predicated region
  $region2: #{asymmetric_conv_block.1} parent=0 // pred_check
    _
  $region3: #{asymmetric_conv_block.1} parent=0 // pred_check_branch
    %17 = sbr.rel (0) target = $region5
  $region4: #{asymmetric_conv_block.1} parent=0 // pred_region
    _
  $region5: #{asymmetric_conv_block.1} parent=0 // pred_fallthru
    _
  // Predicated region
  $region6: #{asymmetric_conv_block.1} parent=0 // pred_check
    _
  $region7: #{asymmetric_conv_block.1} parent=0 // pred_check_branch
    %19 = sbr.rel (0) target = $region9
  $region8: #{asymmetric_conv_block.1} parent=0 // pred_region
    _
  $region9: #{asymmetric_conv_block.1} parent=0 // pred_fallthru
    _
  // Predicated region
  $region10: #{asymmetric_conv_block.1} parent=0 // pred_check
    _
  $region11: #{asymmetric_conv_block.1} parent=0 // pred_check_branch
    %21 = sbr.rel (0) target = $region13
  $region12: #{asymmetric_conv_block.1} parent=0 // pred_region
    _
  $region13: #{asymmetric_conv_block.1} parent=0 // pred_fallthru
    _
  // Predicated region
  $region14: #{asymmetric_conv_block.1} parent=0 // pred_check
    _
  $region15: #{asymmetric_conv_block.1} parent=0 // pred_check_branch
    %23 = sbr.rel (0) target = $region17
  $region16: #{asymmetric_conv_block.1} parent=0 // pred_region
    _
  $region17: #{asymmetric_conv_block.1} parent=0 // pred_fallthru
    _
  // Predicated region
  $region18: #{asymmetric_conv_block.1} parent=0 // pred_check
    _
  $region19: #{asymmetric_conv_block.1} parent=0 // pred_check_branch
    %25 = sbr.rel (0) target = $region21
  $region20: #{asymmetric_conv_block.1} parent=0 // pred_region
    _
  $region21: #{asymmetric_conv_block.1} parent=0 // pred_fallthru
    _
  // Predicated region
  $region22: #{asymmetric_conv_block.1} parent=0 // pred_check
    _
  $region23: #{asymmetric_conv_block.1} parent=0 // pred_check_branch
    %27 = sbr.rel (0) target = $region25
  $region24: #{asymmetric_conv_block.1} parent=0 // pred_region
    _
  $region25: #{asymmetric_conv_block.1} parent=0 // pred_fallthru
    _
  // Predicated region
  $region26: #{asymmetric_conv_block.1} parent=0 // pred_check
    _
  $region27: #{asymmetric_conv_block.1} parent=0 // pred_check_branch
    %29 = sbr.rel (0) target = $region29
  $region28: #{asymmetric_conv_block.1} parent=0 // pred_region
    _
  $region29: #{asymmetric_conv_block.1} parent=0 // pred_fallthru
    _
  // Predicated region
  $region30: #{asymmetric_conv_block.1} parent=0 // pred_check
    _
  $region31: #{asymmetric_conv_block.1} parent=0 // pred_check_branch
    %31 = sbr.rel (0) target = $region33
  $region32: #{asymmetric_conv_block.1} parent=0 // pred_region
    _
  $region33: #{asymmetric_conv_block.1} parent=0 // pred_fallthru
    _
  // Predicated region
  $region34: #{asymmetric_conv_block.1} parent=0 // pred_check
    _
  $region35: #{asymmetric_conv_block.1} parent=0 // pred_check_branch
    %33 = sbr.rel (0) target = $region37
  $region36: #{asymmetric_conv_block.1} parent=0 // pred_region
    _
  $region37: #{asymmetric_conv_block.1} parent=0 // pred_fallthru
    _
  // Predicated region
  $region38: #{asymmetric_conv_block.1} parent=0 // pred_check
    _
  $region39: #{asymmetric_conv_block.1} parent=0 // pred_check_branch
    %35 = sbr.rel (0) target = $region41
  $region40: #{asymmetric_conv_block.1} parent=0 // pred_region
    _
  $region41: #{asymmetric_conv_block.1} parent=0 // pred_fallthru
    _
  // Predicated region
  $region42: #{asymmetric_conv_block.1} parent=0 // pred_check
    _
  $region43: #{asymmetric_conv_block.1} parent=0 // pred_check_branch
    %37 = sbr.rel (0) target = $region45
  $region44: #{asymmetric_conv_block.1} parent=0 // pred_region
    _
  $region45: #{asymmetric_conv_block.1} parent=0 // pred_fallthru
    _
  %v39 = vld [vmem:[%s0] sm:$0xf]
  %v40 = vld [vmem:[%s0 + $0x4] sm:$0xf]
  %v41 = vld [vmem:[%s0 + $0x8] sm:$0xf]
  %v42 = vld [vmem:[%s0 + $0xc] sm:$0xf]
  %v43 = vld [vmem:[%s0 + $0x10] sm:$0xf]
  %v44 = vld [vmem:[%s0 + $0x14] sm:$0xf]
  %v45 = vld [vmem:[%s0 + $0x18] sm:$0xf]
  %v46 = vld [vmem:[%s0 + $0x1c] sm:$0xf]
  %v47 = vld [vmem:[%s0 + $0x20] sm:$0xf]
  %v48 = vld [vmem:[%s0 + $0x24] sm:$0xf]
  %v49 = vld [vmem:[%s0 + $0x28] sm:$0xf]
  %v50 = vld [vmem:[%s0 + $0x2c] sm:$0xf]
  %v51 = vld [vmem:[%s0 + $0x30] sm:$0xf]
  %v52 = vld [vmem:[%s0 + $0x34] sm:$0xf]
  %v53 = vld [vmem:[%s0 + $0x38] sm:$0xf]
  %v54 = vld [vmem:[%s0 + $0x3c] sm:$0xf]
  %v55 = vld [vmem:[%s0 + $0x40] sm:$0xf]
  %v56 = vld [vmem:[%s0 + $0x44] sm:$0xf]
  %v57 = vld [vmem:[%s0 + $0x48] sm:$0xf]
  %v58 = vld [vmem:[%s0 + $0x4c] sm:$0xf]
  %v59 = vld [vmem:[%s0 + $0x50] sm:$0xf]
  %v60 = vld [vmem:[%s0 + $0x54] sm:$0xf]
  %v61 = vld [vmem:[%s0 + $0x58] sm:$0xf]
  %v62 = vld [vmem:[%s0 + $0x5c] sm:$0xf]
  %v63 = vld [vmem:[%s0 + $0x60] sm:$0xf]
  %v64 = vld [vmem:[%s0 + $0x64] sm:$0xf]
  %v65 = vld [vmem:[%s0 + $0x68] sm:$0xf]
  %v66 = vld [vmem:[%s0 + $0x6c] sm:$0xf]
  %v67 = vld [vmem:[%s0 + $0x70] sm:$0xf]
  %v68 = vld [vmem:[%s0 + $0x74] sm:$0xf]
  %v69 = vld [vmem:[%s0 + $0x78] sm:$0xf]
  %v70 = vld [vmem:[%s0 + $0x7c] sm:$0xf]
  %v71 = vld [vmem:[%s0 + $0x80] sm:$0xf]
  %v72 = vld [vmem:[%s0 + $0x84] sm:$0xf]
  %v73 = vld [vmem:[%s0 + $0x88] sm:$0xf]
  %v74 = vld [vmem:[%s0 + $0x8c] sm:$0xf]
  %v75 = vld [vmem:[%s0 + $0x90] sm:$0xf]
  %v76 = vld [vmem:[%s0 + $0x94] sm:$0xf]
  %v77 = vld [vmem:[%s0 + $0x98] sm:$0xf]
  %v78 = vld [vmem:[%s0 + $0x9c] sm:$0xf]
  %v79 = vld [vmem:[%s0 + $0xa0] sm:$0xf]
  %v80 = vld [vmem:[%s0 + $0xa4] sm:$0xf]
  %v81 = vld [vmem:[%s0 + $0xa8] sm:$0xf]
  %v82 = vld [vmem:[%s0 + $0xac] sm:$0xf]
  %v83 = vld [vmem:[%s0 + $0xb0] sm:$0xf]
  %v84 = vld [vmem:[%s0 + $0xb4] sm:$0xf]
  %v85 = vld [vmem:[%s0 + $0xb8] sm:$0xf]
  %v86 = vld [vmem:[%s0 + $0xbc] sm:$0xf]
  %v87 = vld [vmem:[%s0 + $0xc0] sm:$0xf]
  %v88 = vld [vmem:[%s0 + $0xc4] sm:$0xf]
  %v89 = vld [vmem:[%s0 + $0xc8] sm:$0xf]
  %v90 = vld [vmem:[%s0 + $0xcc] sm:$0xf]
  %v91 = vld [vmem:[%s0 + $0xd0] sm:$0xf]
  %v92 = vld [vmem:[%s0 + $0xd4] sm:$0xf]
  %v93 = vld [vmem:[%s0 + $0xd8] sm:$0xf]
  %v94 = vld [vmem:[%s0 + $0xdc] sm:$0xf]
  %v95 = vld [vmem:[%s0 + $0xe0] sm:$0xf]
  %v96 = vld [vmem:[%s0 + $0xe4] sm:$0xf]
  %v97 = vld [vmem:[%s0 + $0xe8] sm:$0xf]
  %v98 = vld [vmem:[%s0 + $0xec] sm:$0xf]
  %v99 = vld [vmem:[%s0 + $0xf0] sm:$0xf]
  %v100 = vld [vmem:[%s0 + $0xf4] sm:$0xf]
  %v101 = vld [vmem:[%s0 + $0xf8] sm:$0xf]
  %v102 = vld [vmem:[%s0 + $0xfc] sm:$0xf]
  %v103 = vld [vmem:[%s0 + $0x100] sm:$0xf]
  %v104 = vld [vmem:[%s0 + $0x104] sm:$0xf]
  %v105 = vld [vmem:[%s0 + $0x108] sm:$0xf]
  %v106 = vld [vmem:[%s0 + $0x10c] sm:$0xf]
  %v107 = vld [vmem:[%s0 + $0x110] sm:$0xf]
  %v108 = vld [vmem:[%s0 + $0x114] sm:$0xf]
  %v109 = vld [vmem:[%s0 + $0x118] sm:$0xf]
  %v110 = vld [vmem:[%s0 + $0x11c] sm:$0xf]
  %v111 = vld [vmem:[%s1] sm:$0x3]
  %s112 = scalar_lea.vmem %s1, 2
  %v113 = vld [vmem:[%s112] sm:$0x3]
  %v178 = vunpack.c.l.b16 %v41
  %v179 = vunpack.c.l.b16 %v42
  %v180 = vunpack.c.l.b16 %v43
  %v181 = vunpack.c.l.b16 %v44
  %v182 = vunpack.c.l.b16 %v45
  %v183 = vunpack.c.l.b16 %v46
  %v184 = vunpack.c.l.b16 %v47
  %v185 = vunpack.c.l.b16 %v48
  %v186 = vunpack.c.l.b16 %v49
  %v187 = vunpack.c.l.b16 %v50
  %v188 = vunpack.c.l.b16 %v51
  %v189 = vunpack.c.l.b16 %v52
  %v190 = vunpack.c.l.b16 %v53
  %v191 = vunpack.c.l.b16 %v54
  %v192 = vunpack.c.l.b16 %v55
  %v193 = vunpack.c.l.b16 %v56
  %v194 = vunpack.c.l.b16 %v57
  %v195 = vunpack.c.l.b16 %v58
  %v196 = vunpack.c.l.b16 %v59
  %v197 = vunpack.c.l.b16 %v60
  %v198 = vunpack.c.l.b16 %v61
  %v199 = vunpack.c.l.b16 %v62
  %v200 = vunpack.c.l.b16 %v63
  %v201 = vunpack.c.l.b16 %v64
  %v202 = vunpack.c.l.b16 %v65
  %v203 = vunpack.c.l.b16 %v66
  %v204 = vunpack.c.l.b16 %v67
  %v205 = vunpack.c.l.b16 %v68
  %v206 = vunpack.c.l.b16 %v69
  %v207 = vunpack.c.l.b16 %v70
  %v208 = vunpack.c.l.b16 %v71
  %v209 = vunpack.c.l.b16 %v72
  %v210 = vunpack.c.l.b16 %v77
  %v211 = vunpack.c.l.b16 %v78
  %v212 = vunpack.c.l.b16 %v79
  %v213 = vunpack.c.l.b16 %v80
  %v214 = vunpack.c.l.b16 %v81
  %v215 = vunpack.c.l.b16 %v82
  %v216 = vunpack.c.l.b16 %v83
  %v217 = vunpack.c.l.b16 %v84
  %v218 = vunpack.c.l.b16 %v85
  %v219 = vunpack.c.l.b16 %v86
  %v220 = vunpack.c.l.b16 %v87
  %v221 = vunpack.c.l.b16 %v88
  %v222 = vunpack.c.l.b16 %v89
  %v223 = vunpack.c.l.b16 %v90
  %v224 = vunpack.c.l.b16 %v91
  %v225 = vunpack.c.l.b16 %v92
  %v226 = vunpack.c.l.b16 %v93
  %v227 = vunpack.c.l.b16 %v94
  %v228 = vunpack.c.l.b16 %v95
  %v229 = vunpack.c.l.b16 %v96
  %v230 = vunpack.c.l.b16 %v97
  %v231 = vunpack.c.l.b16 %v98
  %v232 = vunpack.c.l.b16 %v99
  %v233 = vunpack.c.l.b16 %v100
  %v234 = vunpack.c.l.b16 %v101
  %v235 = vunpack.c.l.b16 %v102
  %v236 = vunpack.c.l.b16 %v103
  %v237 = vunpack.c.l.b16 %v104
  %v238 = vunpack.c.l.b16 %v105
  %v239 = vunpack.c.l.b16 %v106
  %v240 = vunpack.c.l.b16 %v107
  %v241 = vunpack.c.l.b16 %v108
  %v242 = vpack.c.b16 %v179, %v178
  %v243 = vpack.c.b16 %v181, %v180
  %v244 = vpack.c.b16 %v183, %v182
  %v245 = vpack.c.b16 %v185, %v184
  %v246 = vpack.c.b16 %v187, %v186
  %v247 = vpack.c.b16 %v189, %v188
  %v248 = vpack.c.b16 %v191, %v190
  %v249 = vpack.c.b16 %v193, %v192
  %v250 = vpack.c.b16 %v195, %v194
  %v251 = vpack.c.b16 %v197, %v196
  %v252 = vpack.c.b16 %v199, %v198
  %v253 = vpack.c.b16 %v201, %v200
  %v254 = vpack.c.b16 %v203, %v202
  %v255 = vpack.c.b16 %v205, %v204
  %v256 = vpack.c.b16 %v207, %v206
  %v257 = vpack.c.b16 %v209, %v208
  %v258 = vpack.c.b16 %v211, %v210
  %v259 = vpack.c.b16 %v213, %v212
  %v260 = vpack.c.b16 %v215, %v214
  %v261 = vpack.c.b16 %v217, %v216
  %v262 = vpack.c.b16 %v219, %v218
  %v263 = vpack.c.b16 %v221, %v220
  %v264 = vpack.c.b16 %v223, %v222
  %v265 = vpack.c.b16 %v225, %v224
  %v266 = vpack.c.b16 %v227, %v226
  %v267 = vpack.c.b16 %v229, %v228
  %v268 = vpack.c.b16 %v231, %v230
  %v269 = vpack.c.b16 %v233, %v232
  %v270 = vpack.c.b16 %v235, %v234
  %v271 = vpack.c.b16 %v237, %v236
  %v272 = vpack.c.b16 %v239, %v238
  %v273 = vpack.c.b16 %v241, %v240
  %vm274 = vcmask 31744
  %v276 = vsel %vm274, %v242, 0
  %v279 = vsel %vm274, %v243, 0
  %v282 = vsel %vm274, %v244, 0
  %v285 = vsel %vm274, %v245, 0
  %v288 = vsel %vm274, %v246, 0
  %v291 = vsel %vm274, %v247, 0
  %v294 = vsel %vm274, %v248, 0
  %v297 = vsel %vm274, %v249, 0
  %v300 = vsel %vm274, %v250, 0
  %v303 = vsel %vm274, %v251, 0
  %v306 = vsel %vm274, %v252, 0
  %v309 = vsel %vm274, %v253, 0
  %v312 = vsel %vm274, %v254, 0
  %v315 = vsel %vm274, %v255, 0
  %v318 = vsel %vm274, %v256, 0
  %v321 = vsel %vm274, %v257, 0
  %v324 = vsel %vm274, %v258, 0
  %v327 = vsel %vm274, %v259, 0
  %v330 = vsel %vm274, %v260, 0
  %v333 = vsel %vm274, %v261, 0
  %v336 = vsel %vm274, %v262, 0
  %v339 = vsel %vm274, %v263, 0
  %v342 = vsel %vm274, %v264, 0
  %v345 = vsel %vm274, %v265, 0
  %v348 = vsel %vm274, %v266, 0
  %v351 = vsel %vm274, %v267, 0
  %v354 = vsel %vm274, %v268, 0
  %v357 = vsel %vm274, %v269, 0
  %v360 = vsel %vm274, %v270, 0
  %v363 = vsel %vm274, %v271, 0
  %v366 = vsel %vm274, %v272, 0
  %v369 = vsel %vm274, %v273, 0
  %vm371 = vcmask 1041408
  %v373 = vsel %vm371, %v113, 0
  %375 = vmatprep.subr.bf16.mxu0 0
  %376 = vmatpush1.bf16.msra.mxu0 %v373
  %377 = vmatprep.subr.bf16.mxu0 0
  %378 = vmatpush1.bf16.msra.mxu0 0
  %379 = vmatprep.subr.bf16.mxu0 0
  %380 = vmatpush1.bf16.msra.mxu0 0
  %381 = vmatprep.subr.bf16.mxu0 0
  %382 = vmatpush1.bf16.msra.mxu0 0
  %383 = vmatprep.subr.bf16.mxu0 0
  %384 = vmatpush1.bf16.msra.mxu0 0
  %385 = vmatprep.subr.bf16.mxu0 0
  %386 = vmatpush1.bf16.msra.mxu0 0
  %387 = vmatprep.subr.bf16.mxu0 0
  %388 = vmatpush1.bf16.msra.mxu0 0
  %389 = vmatprep.subr.bf16.mxu0 0
  %390 = vmatpush1.bf16.msra.mxu0 0
  %391 = vmatprep.subr.bf16.mxu0 0
  %392 = vmatpush1.bf16.msra.mxu0 0
  %393 = vmatprep.subr.bf16.mxu0 0
  %394 = vmatpush1.bf16.msra.mxu0 0
  %395 = vmatprep.subr.bf16.mxu0 0
  %396 = vmatpush1.bf16.msra.mxu0 0
  %397 = vmatprep.subr.bf16.mxu0 0
  %398 = vmatpush1.bf16.msra.mxu0 0
  %399 = vmatprep.subr.bf16.mxu0 0
  %400 = vmatpush1.bf16.msra.mxu0 0
  %401 = vmatprep.subr.bf16.mxu0 0
  %402 = vmatpush1.bf16.msra.mxu0 0
  %403 = vmatprep.subr.bf16.mxu0 0
  %404 = vmatpush1.bf16.msra.mxu0 0
  %405 = vmatprep.subr.bf16.mxu0 0
  %406 = vmatpush1.bf16.msra.mxu0 0
  %407 = vmatprep.mubr.bf16.mxu0 0
  %408 = vmatmul.mubr.bf16.gmra.mrb[0].mxu0 %v276
  %v409 = vpop.f32.mrb[0].mxu0
  %v410 = vadd.f32 0.0, %v409
  %v411 = vpop.f32.mrb[0].mxu0
  %v412 = vpop.f32.mrb[0].mxu0
  %v413 = vadd.f32 0.0, %v412
  %v414 = vpop.f32.mrb[0].mxu0
  %415 = vmatprep.mubr.bf16.mxu0 0
  %416 = vmatmul.mubr.bf16.gmra.mrb[0].mxu0 %v279
  %v417 = vpop.f32.mrb[0].mxu0
  %v418 = vadd.f32 0.0, %v417
  %v419 = vpop.f32.mrb[0].mxu0
  %v420 = vpop.f32.mrb[0].mxu0
  %v421 = vadd.f32 0.0, %v420
  %v422 = vpop.f32.mrb[0].mxu0
  %423 = vmatprep.mubr.bf16.mxu0 0
  %424 = vmatmul.mubr.bf16.gmra.mrb[0].mxu0 %v282
  %v425 = vpop.f32.mrb[0].mxu0
  %v426 = vadd.f32 0.0, %v425
  %v427 = vpop.f32.mrb[0].mxu0
  %v428 = vpop.f32.mrb[0].mxu0
  %v429 = vadd.f32 0.0, %v428
  %v430 = vpop.f32.mrb[0].mxu0
  %431 = vmatprep.mubr.bf16.mxu0 0
  %432 = vmatmul.mubr.bf16.gmra.mrb[0].mxu0 %v285
  %v433 = vpop.f32.mrb[0].mxu0
  %v434 = vadd.f32 0.0, %v433
  %v435 = vpop.f32.mrb[0].mxu0
  %v436 = vpop.f32.mrb[0].mxu0
  %v437 = vadd.f32 0.0, %v436
  %v438 = vpop.f32.mrb[0].mxu0
  %439 = vmatprep.mubr.bf16.mxu0 0
  %440 = vmatmul.mubr.bf16.gmra.mrb[0].mxu0 %v288
  %v441 = vpop.f32.mrb[0].mxu0
  %v442 = vadd.f32 0.0, %v441
  %v443 = vpop.f32.mrb[0].mxu0
  %v444 = vpop.f32.mrb[0].mxu0
  %v445 = vadd.f32 0.0, %v444
  %v446 = vpop.f32.mrb[0].mxu0
  %447 = vmatprep.mubr.bf16.mxu0 0
  %448 = vmatmul.mubr.bf16.gmra.mrb[0].mxu0 %v291
  %v449 = vpop.f32.mrb[0].mxu0
  %v450 = vadd.f32 0.0, %v449
  %v451 = vpop.f32.mrb[0].mxu0
  %v452 = vpop.f32.mrb[0].mxu0
  %v453 = vadd.f32 0.0, %v452
  %v454 = vpop.f32.mrb[0].mxu0
  %455 = vmatprep.mubr.bf16.mxu0 0
  %456 = vmatmul.mubr.bf16.gmra.mrb[0].mxu0 %v294
  %v457 = vpop.f32.mrb[0].mxu0
  %v458 = vadd.f32 0.0, %v457
  %v459 = vpop.f32.mrb[0].mxu0
  %v460 = vpop.f32.mrb[0].mxu0
  %v461 = vadd.f32 0.0, %v460
  %v462 = vpop.f32.mrb[0].mxu0
  %463 = vmatprep.mubr.bf16.mxu0 0
  %464 = vmatmul.mubr.bf16.gmra.mrb[0].mxu0 %v297
  %v465 = vpop.f32.mrb[0].mxu0
  %v466 = vadd.f32 0.0, %v465
  %v467 = vpop.f32.mrb[0].mxu0
  %v468 = vpop.f32.mrb[0].mxu0
  %v469 = vadd.f32 0.0, %v468
  %v470 = vpop.f32.mrb[0].mxu0
  %471 = vmatprep.mubr.bf16.mxu0 0
  %472 = vmatmul.mubr.bf16.gmra.mrb[0].mxu0 %v300
  %v473 = vpop.f32.mrb[0].mxu0
  %v474 = vadd.f32 0.0, %v473
  %v475 = vpop.f32.mrb[0].mxu0
  %v476 = vpop.f32.mrb[0].mxu0
  %v477 = vadd.f32 0.0, %v476
  %v478 = vpop.f32.mrb[0].mxu0
  %479 = vmatprep.mubr.bf16.mxu0 0
  %480 = vmatmul.mubr.bf16.gmra.mrb[0].mxu0 %v303
  %v481 = vpop.f32.mrb[0].mxu0
  %v482 = vadd.f32 0.0, %v481
  %v483 = vpop.f32.mrb[0].mxu0
  %v484 = vpop.f32.mrb[0].mxu0
  %v485 = vadd.f32 0.0, %v484
  %v486 = vpop.f32.mrb[0].mxu0
  %487 = vmatprep.mubr.bf16.mxu0 0
  %488 = vmatmul.mubr.bf16.gmra.mrb[0].mxu0 %v306
  %v489 = vpop.f32.mrb[0].mxu0
  %v490 = vadd.f32 0.0, %v489
  %v491 = vpop.f32.mrb[0].mxu0
  %v492 = vpop.f32.mrb[0].mxu0
  %v493 = vadd.f32 0.0, %v492
  %v494 = vpop.f32.mrb[0].mxu0
  %495 = vmatprep.mubr.bf16.mxu0 0
  %496 = vmatmul.mubr.bf16.gmra.mrb[0].mxu0 %v309
  %v497 = vpop.f32.mrb[0].mxu0
  %v498 = vadd.f32 0.0, %v497
  %v499 = vpop.f32.mrb[0].mxu0
  %v500 = vpop.f32.mrb[0].mxu0
  %v501 = vadd.f32 0.0, %v500
  %v502 = vpop.f32.mrb[0].mxu0
  %503 = vmatprep.mubr.bf16.mxu0 0
  %504 = vmatmul.mubr.bf16.gmra.mrb[0].mxu0 %v312
  %v505 = vpop.f32.mrb[0].mxu0
  %v506 = vadd.f32 0.0, %v505
  %v507 = vpop.f32.mrb[0].mxu0
  %v508 = vpop.f32.mrb[0].mxu0
  %v509 = vadd.f32 0.0, %v508
  %v510 = vpop.f32.mrb[0].mxu0
  %511 = vmatprep.mubr.bf16.mxu0 0
  %512 = vmatmul.mubr.bf16.gmra.mrb[0].mxu0 %v315
  %v513 = vpop.f32.mrb[0].mxu0
  %v514 = vadd.f32 0.0, %v513
  %v515 = vpop.f32.mrb[0].mxu0
  %v516 = vpop.f32.mrb[0].mxu0
  %v517 = vadd.f32 0.0, %v516
  %v518 = vpop.f32.mrb[0].mxu0
  %519 = vmatprep.mubr.bf16.mxu0 0
  %520 = vmatmul.mubr.bf16.gmra.mrb[0].mxu0 %v318
  %v521 = vpop.f32.mrb[0].mxu0
  %v522 = vadd.f32 0.0, %v521
  %v523 = vpop.f32.mrb[0].mxu0
  %v524 = vpop.f32.mrb[0].mxu0
  %v525 = vadd.f32 0.0, %v524
  %v526 = vpop.f32.mrb[0].mxu0
  %527 = vmatprep.mubr.bf16.mxu0 0
  %528 = vmatmul.mubr.bf16.gmra.mrb[0].mxu0 %v321
  %v529 = vpop.f32.mrb[0].mxu0
  %v530 = vadd.f32 0.0, %v529
  %v531 = vpop.f32.mrb[0].mxu0
  %v532 = vpop.f32.mrb[0].mxu0
  %v533 = vadd.f32 0.0, %v532
  %v534 = vpop.f32.mrb[0].mxu0
  %535 = vmatprep.mubr.bf16.mxu0 0
  %536 = vmatmul.mubr.bf16.gmra.mrb[0].mxu0 %v324
  %v537 = vpop.f32.mrb[0].mxu0
  %v538 = vadd.f32 0.0, %v537
  %v539 = vpop.f32.mrb[0].mxu0
  %v540 = vpop.f32.mrb[0].mxu0
  %v541 = vadd.f32 0.0, %v540
  %v542 = vpop.f32.mrb[0].mxu0
  %543 = vmatprep.mubr.bf16.mxu0 0
  %544 = vmatmul.mubr.bf16.gmra.mrb[0].mxu0 %v327
  %v545 = vpop.f32.mrb[0].mxu0
  %v546 = vadd.f32 0.0, %v545
  %v547 = vpop.f32.mrb[0].mxu0
  %v548 = vpop.f32.mrb[0].mxu0
  %v549 = vadd.f32 0.0, %v548
  %v550 = vpop.f32.mrb[0].mxu0
  %551 = vmatprep.mubr.bf16.mxu0 0
  %552 = vmatmul.mubr.bf16.gmra.mrb[0].mxu0 %v330
  %v553 = vpop.f32.mrb[0].mxu0
  %v554 = vadd.f32 0.0, %v553
  %v555 = vpop.f32.mrb[0].mxu0
  %v556 = vpop.f32.mrb[0].mxu0
  %v557 = vadd.f32 0.0, %v556
  %v558 = vpop.f32.mrb[0].mxu0
  %559 = vmatprep.mubr.bf16.mxu0 0
  %560 = vmatmul.mubr.bf16.gmra.mrb[0].mxu0 %v333
  %v561 = vpop.f32.mrb[0].mxu0
  %v562 = vadd.f32 0.0, %v561
  %v563 = vpop.f32.mrb[0].mxu0
  %v564 = vpop.f32.mrb[0].mxu0
  %v565 = vadd.f32 0.0, %v564
  %v566 = vpop.f32.mrb[0].mxu0
  %567 = vmatprep.mubr.bf16.mxu0 0
  %568 = vmatmul.mubr.bf16.gmra.mrb[0].mxu0 %v336
  %v569 = vpop.f32.mrb[0].mxu0
  %v570 = vadd.f32 0.0, %v569
  %v571 = vpop.f32.mrb[0].mxu0
  %v572 = vpop.f32.mrb[0].mxu0
  %v573 = vadd.f32 0.0, %v572
  %v574 = vpop.f32.mrb[0].mxu0
  %575 = vmatprep.mubr.bf16.mxu0 0
  %576 = vmatmul.mubr.bf16.gmra.mrb[0].mxu0 %v339
  %v577 = vpop.f32.mrb[0].mxu0
  %v578 = vadd.f32 0.0, %v577
  %v579 = vpop.f32.mrb[0].mxu0
  %v580 = vpop.f32.mrb[0].mxu0
  %v581 = vadd.f32 0.0, %v580
  %v582 = vpop.f32.mrb[0].mxu0
  %583 = vmatprep.mubr.bf16.mxu0 0
  %584 = vmatmul.mubr.bf16.gmra.mrb[0].mxu0 %v342
  %v585 = vpop.f32.mrb[0].mxu0
  %v586 = vadd.f32 0.0, %v585
  %v587 = vpop.f32.mrb[0].mxu0
  %v588 = vpop.f32.mrb[0].mxu0
  %v589 = vadd.f32 0.0, %v588
  %v590 = vpop.f32.mrb[0].mxu0
  %591 = vmatprep.mubr.bf16.mxu0 0
  %592 = vmatmul.mubr.bf16.gmra.mrb[0].mxu0 %v345
  %v593 = vpop.f32.mrb[0].mxu0
  %v594 = vadd.f32 0.0, %v593
  %v595 = vpop.f32.mrb[0].mxu0
  %v596 = vpop.f32.mrb[0].mxu0
  %v597 = vadd.f32 0.0, %v596
  %v598 = vpop.f32.mrb[0].mxu0
  %599 = vmatprep.mubr.bf16.mxu0 0
  %600 = vmatmul.mubr.bf16.gmra.mrb[0].mxu0 %v348
  %v601 = vpop.f32.mrb[0].mxu0
  %v602 = vadd.f32 0.0, %v601
  %v603 = vpop.f32.mrb[0].mxu0
  %v604 = vpop.f32.mrb[0].mxu0
  %v605 = vadd.f32 0.0, %v604
  %v606 = vpop.f32.mrb[0].mxu0
  %607 = vmatprep.mubr.bf16.mxu0 0
  %608 = vmatmul.mubr.bf16.gmra.mrb[0].mxu0 %v351
  %v609 = vpop.f32.mrb[0].mxu0
  %v610 = vadd.f32 0.0, %v609
  %v611 = vpop.f32.mrb[0].mxu0
  %v612 = vpop.f32.mrb[0].mxu0
  %v613 = vadd.f32 0.0, %v612
  %v614 = vpop.f32.mrb[0].mxu0
  %615 = vmatprep.mubr.bf16.mxu0 0
  %616 = vmatmul.mubr.bf16.gmra.mrb[0].mxu0 %v354
  %v617 = vpop.f32.mrb[0].mxu0
  %v618 = vadd.f32 0.0, %v617
  %v619 = vpop.f32.mrb[0].mxu0
  %v620 = vpop.f32.mrb[0].mxu0
  %v621 = vadd.f32 0.0, %v620
  %v622 = vpop.f32.mrb[0].mxu0
  %623 = vmatprep.mubr.bf16.mxu0 0
  %624 = vmatmul.mubr.bf16.gmra.mrb[0].mxu0 %v357
  %v625 = vpop.f32.mrb[0].mxu0
  %v626 = vadd.f32 0.0, %v625
  %v627 = vpop.f32.mrb[0].mxu0
  %v628 = vpop.f32.mrb[0].mxu0
  %v629 = vadd.f32 0.0, %v628
  %v630 = vpop.f32.mrb[0].mxu0
  %631 = vmatprep.mubr.bf16.mxu0 0
  %632 = vmatmul.mubr.bf16.gmra.mrb[0].mxu0 %v360
  %v633 = vpop.f32.mrb[0].mxu0
  %v634 = vadd.f32 0.0, %v633
  %v635 = vpop.f32.mrb[0].mxu0
  %v636 = vpop.f32.mrb[0].mxu0
  %v637 = vadd.f32 0.0, %v636
  %v638 = vpop.f32.mrb[0].mxu0
  %639 = vmatprep.mubr.bf16.mxu0 0
  %640 = vmatmul.mubr.bf16.gmra.mrb[0].mxu0 %v363
  %v641 = vpop.f32.mrb[0].mxu0
  %v642 = vadd.f32 0.0, %v641
  %v643 = vpop.f32.mrb[0].mxu0
  %v644 = vpop.f32.mrb[0].mxu0
  %v645 = vadd.f32 0.0, %v644
  %v646 = vpop.f32.mrb[0].mxu0
  %647 = vmatprep.mubr.bf16.mxu0 0
  %648 = vmatmul.mubr.bf16.gmra.mrb[0].mxu0 %v366
  %v649 = vpop.f32.mrb[0].mxu0
  %v650 = vadd.f32 0.0, %v649
  %v651 = vpop.f32.mrb[0].mxu0
  %v652 = vpop.f32.mrb[0].mxu0
  %v653 = vadd.f32 0.0, %v652
  %v654 = vpop.f32.mrb[0].mxu0
  %655 = vmatprep.mubr.bf16.mxu0 0
  %656 = vmatmul.mubr.bf16.gmra.mrb[0].mxu0 %v369
  %v657 = vpop.f32.mrb[0].mxu0
  %v658 = vadd.f32 0.0, %v657
  %v659 = vpop.f32.mrb[0].mxu0
  %v660 = vpop.f32.mrb[0].mxu0
  %v661 = vadd.f32 0.0, %v660
  %v662 = vpop.f32.mrb[0].mxu0
  %663 = vdwg.mxu0
  %v668 = vunpack.c.l.b16 %v39
  %v669 = vunpack.c.l.b16 %v40
  %v670 = vunpack.c.l.b16 %v75
  %v671 = vunpack.c.l.b16 %v76
  %v672 = vpack.c.b16 %v669, %v668
  %v673 = vpack.c.b16 %v671, %v670
  %v675 = vsel %vm274, %v672, 0
  %v678 = vsel %vm274, %v673, 0
  %v681 = vsel %vm371, %v111, 0
  %683 = vmatprep.subr.bf16.mxu0 0
  %684 = vmatpush1.bf16.msra.mxu0 %v681
  %685 = vmatprep.subr.bf16.mxu0 0
  %686 = vmatpush1.bf16.msra.mxu0 0
  %687 = vmatprep.subr.bf16.mxu0 0
  %688 = vmatpush1.bf16.msra.mxu0 0
  %689 = vmatprep.subr.bf16.mxu0 0
  %690 = vmatpush1.bf16.msra.mxu0 0
  %691 = vmatprep.subr.bf16.mxu0 0
  %692 = vmatpush1.bf16.msra.mxu0 0
  %693 = vmatprep.subr.bf16.mxu0 0
  %694 = vmatpush1.bf16.msra.mxu0 0
  %695 = vmatprep.subr.bf16.mxu0 0
  %696 = vmatpush1.bf16.msra.mxu0 0
  %697 = vmatprep.subr.bf16.mxu0 0
  %698 = vmatpush1.bf16.msra.mxu0 0
  %699 = vmatprep.subr.bf16.mxu0 0
  %700 = vmatpush1.bf16.msra.mxu0 0
  %701 = vmatprep.subr.bf16.mxu0 0
  %702 = vmatpush1.bf16.msra.mxu0 0
  %703 = vmatprep.subr.bf16.mxu0 0
  %704 = vmatpush1.bf16.msra.mxu0 0
  %705 = vmatprep.subr.bf16.mxu0 0
  %706 = vmatpush1.bf16.msra.mxu0 0
  %707 = vmatprep.subr.bf16.mxu0 0
  %708 = vmatpush1.bf16.msra.mxu0 0
  %709 = vmatprep.subr.bf16.mxu0 0
  %710 = vmatpush1.bf16.msra.mxu0 0
  %711 = vmatprep.subr.bf16.mxu0 0
  %712 = vmatpush1.bf16.msra.mxu0 0
  %713 = vmatprep.subr.bf16.mxu0 0
  %714 = vmatpush1.bf16.msra.mxu0 0
  %715 = vmatprep.mubr.bf16.mxu0 0
  %716 = vmatmul.mubr.bf16.gmra.mrb[0].mxu0 %v675
  %v717 = vpop.f32.mrb[0].mxu0
  %v718 = vadd.f32 %v410, %v717
  %v719 = vpop.f32.mrb[0].mxu0
  %v720 = vpop.f32.mrb[0].mxu0
  %v721 = vadd.f32 %v413, %v720
  %v722 = vpop.f32.mrb[0].mxu0
  %723 = vmatprep.mubr.bf16.mxu0 0
  %724 = vmatmul.mubr.bf16.gmra.mrb[0].mxu0 %v276
  %v725 = vpop.f32.mrb[0].mxu0
  %v726 = vadd.f32 %v418, %v725
  %v727 = vpop.f32.mrb[0].mxu0
  %v728 = vpop.f32.mrb[0].mxu0
  %v729 = vadd.f32 %v421, %v728
  %v730 = vpop.f32.mrb[0].mxu0
  %731 = vmatprep.mubr.bf16.mxu0 0
  %732 = vmatmul.mubr.bf16.gmra.mrb[0].mxu0 %v279
  %v733 = vpop.f32.mrb[0].mxu0
  %v734 = vadd.f32 %v426, %v733
  %v735 = vpop.f32.mrb[0].mxu0
  %v736 = vpop.f32.mrb[0].mxu0
  %v737 = vadd.f32 %v429, %v736
  %v738 = vpop.f32.mrb[0].mxu0
  %739 = vmatprep.mubr.bf16.mxu0 0
  %740 = vmatmul.mubr.bf16.gmra.mrb[0].mxu0 %v282
  %v741 = vpop.f32.mrb[0].mxu0
  %v742 = vadd.f32 %v434, %v741
  %v743 = vpop.f32.mrb[0].mxu0
  %v744 = vpop.f32.mrb[0].mxu0
  %v745 = vadd.f32 %v437, %v744
  %v746 = vpop.f32.mrb[0].mxu0
  %747 = vmatprep.mubr.bf16.mxu0 0
  %748 = vmatmul.mubr.bf16.gmra.mrb[0].mxu0 %v285
  %v749 = vpop.f32.mrb[0].mxu0
  %v750 = vadd.f32 %v442, %v749
  %v751 = vpop.f32.mrb[0].mxu0
  %v752 = vpop.f32.mrb[0].mxu0
  %v753 = vadd.f32 %v445, %v752
  %v754 = vpop.f32.mrb[0].mxu0
  %755 = vmatprep.mubr.bf16.mxu0 0
  %756 = vmatmul.mubr.bf16.gmra.mrb[0].mxu0 %v288
  %v757 = vpop.f32.mrb[0].mxu0
  %v758 = vadd.f32 %v450, %v757
  %v759 = vpop.f32.mrb[0].mxu0
  %v760 = vpop.f32.mrb[0].mxu0
  %v761 = vadd.f32 %v453, %v760
  %v762 = vpop.f32.mrb[0].mxu0
  %763 = vmatprep.mubr.bf16.mxu0 0
  %764 = vmatmul.mubr.bf16.gmra.mrb[0].mxu0 %v291
  %v765 = vpop.f32.mrb[0].mxu0
  %v766 = vadd.f32 %v458, %v765
  %v767 = vpop.f32.mrb[0].mxu0
  %v768 = vpop.f32.mrb[0].mxu0
  %v769 = vadd.f32 %v461, %v768
  %v770 = vpop.f32.mrb[0].mxu0
  %771 = vmatprep.mubr.bf16.mxu0 0
  %772 = vmatmul.mubr.bf16.gmra.mrb[0].mxu0 %v294
  %v773 = vpop.f32.mrb[0].mxu0
  %v774 = vadd.f32 %v466, %v773
  %v775 = vpop.f32.mrb[0].mxu0
  %v776 = vpop.f32.mrb[0].mxu0
  %v777 = vadd.f32 %v469, %v776
  %v778 = vpop.f32.mrb[0].mxu0
  %779 = vmatprep.mubr.bf16.mxu0 0
  %780 = vmatmul.mubr.bf16.gmra.mrb[0].mxu0 %v297
  %v781 = vpop.f32.mrb[0].mxu0
  %v782 = vadd.f32 %v474, %v781
  %v783 = vpop.f32.mrb[0].mxu0
  %v784 = vpop.f32.mrb[0].mxu0
  %v785 = vadd.f32 %v477, %v784
  %v786 = vpop.f32.mrb[0].mxu0
  %787 = vmatprep.mubr.bf16.mxu0 0
  %788 = vmatmul.mubr.bf16.gmra.mrb[0].mxu0 %v300
  %v789 = vpop.f32.mrb[0].mxu0
  %v790 = vadd.f32 %v482, %v789
  %v791 = vpop.f32.mrb[0].mxu0
  %v792 = vpop.f32.mrb[0].mxu0
  %v793 = vadd.f32 %v485, %v792
  %v794 = vpop.f32.mrb[0].mxu0
  %795 = vmatprep.mubr.bf16.mxu0 0
  %796 = vmatmul.mubr.bf16.gmra.mrb[0].mxu0 %v303
  %v797 = vpop.f32.mrb[0].mxu0
  %v798 = vadd.f32 %v490, %v797
  %v799 = vpop.f32.mrb[0].mxu0
  %v800 = vpop.f32.mrb[0].mxu0
  %v801 = vadd.f32 %v493, %v800
  %v802 = vpop.f32.mrb[0].mxu0
  %803 = vmatprep.mubr.bf16.mxu0 0
  %804 = vmatmul.mubr.bf16.gmra.mrb[0].mxu0 %v306
  %v805 = vpop.f32.mrb[0].mxu0
  %v806 = vadd.f32 %v498, %v805
  %v807 = vpop.f32.mrb[0].mxu0
  %v808 = vpop.f32.mrb[0].mxu0
  %v809 = vadd.f32 %v501, %v808
  %v810 = vpop.f32.mrb[0].mxu0
  %811 = vmatprep.mubr.bf16.mxu0 0
  %812 = vmatmul.mubr.bf16.gmra.mrb[0].mxu0 %v309
  %v813 = vpop.f32.mrb[0].mxu0
  %v814 = vadd.f32 %v506, %v813
  %v815 = vpop.f32.mrb[0].mxu0
  %v816 = vpop.f32.mrb[0].mxu0
  %v817 = vadd.f32 %v509, %v816
  %v818 = vpop.f32.mrb[0].mxu0
  %819 = vmatprep.mubr.bf16.mxu0 0
  %820 = vmatmul.mubr.bf16.gmra.mrb[0].mxu0 %v312
  %v821 = vpop.f32.mrb[0].mxu0
  %v822 = vadd.f32 %v514, %v821
  %v823 = vpop.f32.mrb[0].mxu0
  %v824 = vpop.f32.mrb[0].mxu0
  %v825 = vadd.f32 %v517, %v824
  %v826 = vpop.f32.mrb[0].mxu0
  %827 = vmatprep.mubr.bf16.mxu0 0
  %828 = vmatmul.mubr.bf16.gmra.mrb[0].mxu0 %v315
  %v829 = vpop.f32.mrb[0].mxu0
  %v830 = vadd.f32 %v522, %v829
  %v831 = vpop.f32.mrb[0].mxu0
  %v832 = vpop.f32.mrb[0].mxu0
  %v833 = vadd.f32 %v525, %v832
  %v834 = vpop.f32.mrb[0].mxu0
  %835 = vmatprep.mubr.bf16.mxu0 0
  %836 = vmatmul.mubr.bf16.gmra.mrb[0].mxu0 %v318
  %v837 = vpop.f32.mrb[0].mxu0
  %v838 = vadd.f32 %v530, %v837
  %v839 = vpop.f32.mrb[0].mxu0
  %v840 = vpop.f32.mrb[0].mxu0
  %v841 = vadd.f32 %v533, %v840
  %v842 = vpop.f32.mrb[0].mxu0
  %843 = vmatprep.mubr.bf16.mxu0 0
  %844 = vmatmul.mubr.bf16.gmra.mrb[0].mxu0 %v678
  %v845 = vpop.f32.mrb[0].mxu0
  %v846 = vadd.f32 %v538, %v845
  %v847 = vpop.f32.mrb[0].mxu0
  %v848 = vpop.f32.mrb[0].mxu0
  %v849 = vadd.f32 %v541, %v848
  %v850 = vpop.f32.mrb[0].mxu0
  %851 = vmatprep.mubr.bf16.mxu0 0
  %852 = vmatmul.mubr.bf16.gmra.mrb[0].mxu0 %v324
  %v853 = vpop.f32.mrb[0].mxu0
  %v854 = vadd.f32 %v546, %v853
  %v855 = vpop.f32.mrb[0].mxu0
  %v856 = vpop.f32.mrb[0].mxu0
  %v857 = vadd.f32 %v549, %v856
  %v858 = vpop.f32.mrb[0].mxu0
  %859 = vmatprep.mubr.bf16.mxu0 0
  %860 = vmatmul.mubr.bf16.gmra.mrb[0].mxu0 %v327
  %v861 = vpop.f32.mrb[0].mxu0
  %v862 = vadd.f32 %v554, %v861
  %v863 = vpop.f32.mrb[0].mxu0
  %v864 = vpop.f32.mrb[0].mxu0
  %v865 = vadd.f32 %v557, %v864
  %v866 = vpop.f32.mrb[0].mxu0
  %867 = vmatprep.mubr.bf16.mxu0 0
  %868 = vmatmul.mubr.bf16.gmra.mrb[0].mxu0 %v330
  %v869 = vpop.f32.mrb[0].mxu0
  %v870 = vadd.f32 %v562, %v869
  %v871 = vpop.f32.mrb[0].mxu0
  %v872 = vpop.f32.mrb[0].mxu0
  %v873 = vadd.f32 %v565, %v872
  %v874 = vpop.f32.mrb[0].mxu0
  %875 = vmatprep.mubr.bf16.mxu0 0
  %876 = vmatmul.mubr.bf16.gmra.mrb[0].mxu0 %v333
  %v877 = vpop.f32.mrb[0].mxu0
  %v878 = vadd.f32 %v570, %v877
  %v879 = vpop.f32.mrb[0].mxu0
  %v880 = vpop.f32.mrb[0].mxu0
  %v881 = vadd.f32 %v573, %v880
  %v882 = vpop.f32.mrb[0].mxu0
  %883 = vmatprep.mubr.bf16.mxu0 0
  %884 = vmatmul.mubr.bf16.gmra.mrb[0].mxu0 %v336
  %v885 = vpop.f32.mrb[0].mxu0
  %v886 = vadd.f32 %v578, %v885
  %v887 = vpop.f32.mrb[0].mxu0
  %v888 = vpop.f32.mrb[0].mxu0
  %v889 = vadd.f32 %v581, %v888
  %v890 = vpop.f32.mrb[0].mxu0
  %891 = vmatprep.mubr.bf16.mxu0 0
  %892 = vmatmul.mubr.bf16.gmra.mrb[0].mxu0 %v339
  %v893 = vpop.f32.mrb[0].mxu0
  %v894 = vadd.f32 %v586, %v893
  %v895 = vpop.f32.mrb[0].mxu0
  %v896 = vpop.f32.mrb[0].mxu0
  %v897 = vadd.f32 %v589, %v896
  %v898 = vpop.f32.mrb[0].mxu0
  %899 = vmatprep.mubr.bf16.mxu0 0
  %900 = vmatmul.mubr.bf16.gmra.mrb[0].mxu0 %v342
  %v901 = vpop.f32.mrb[0].mxu0
  %v902 = vadd.f32 %v594, %v901
  %v903 = vpop.f32.mrb[0].mxu0
  %v904 = vpop.f32.mrb[0].mxu0
  %v905 = vadd.f32 %v597, %v904
  %v906 = vpop.f32.mrb[0].mxu0
  %907 = vmatprep.mubr.bf16.mxu0 0
  %908 = vmatmul.mubr.bf16.gmra.mrb[0].mxu0 %v345
  %v909 = vpop.f32.mrb[0].mxu0
  %v910 = vadd.f32 %v602, %v909
  %v911 = vpop.f32.mrb[0].mxu0
  %v912 = vpop.f32.mrb[0].mxu0
  %v913 = vadd.f32 %v605, %v912
  %v914 = vpop.f32.mrb[0].mxu0
  %915 = vmatprep.mubr.bf16.mxu0 0
  %916 = vmatmul.mubr.bf16.gmra.mrb[0].mxu0 %v348
  %v917 = vpop.f32.mrb[0].mxu0
  %v918 = vadd.f32 %v610, %v917
  %v919 = vpop.f32.mrb[0].mxu0
  %v920 = vpop.f32.mrb[0].mxu0
  %v921 = vadd.f32 %v613, %v920
  %v922 = vpop.f32.mrb[0].mxu0
  %923 = vmatprep.mubr.bf16.mxu0 0
  %924 = vmatmul.mubr.bf16.gmra.mrb[0].mxu0 %v351
  %v925 = vpop.f32.mrb[0].mxu0
  %v926 = vadd.f32 %v618, %v925
  %v927 = vpop.f32.mrb[0].mxu0
  %v928 = vpop.f32.mrb[0].mxu0
  %v929 = vadd.f32 %v621, %v928
  %v930 = vpop.f32.mrb[0].mxu0
  %931 = vmatprep.mubr.bf16.mxu0 0
  %932 = vmatmul.mubr.bf16.gmra.mrb[0].mxu0 %v354
  %v933 = vpop.f32.mrb[0].mxu0
  %v934 = vadd.f32 %v626, %v933
  %v935 = vpop.f32.mrb[0].mxu0
  %v936 = vpop.f32.mrb[0].mxu0
  %v937 = vadd.f32 %v629, %v936
  %v938 = vpop.f32.mrb[0].mxu0
  %939 = vmatprep.mubr.bf16.mxu0 0
  %940 = vmatmul.mubr.bf16.gmra.mrb[0].mxu0 %v357
  %v941 = vpop.f32.mrb[0].mxu0
  %v942 = vadd.f32 %v634, %v941
  %v943 = vpop.f32.mrb[0].mxu0
  %v944 = vpop.f32.mrb[0].mxu0
  %v945 = vadd.f32 %v637, %v944
  %v946 = vpop.f32.mrb[0].mxu0
  %947 = vmatprep.mubr.bf16.mxu0 0
  %948 = vmatmul.mubr.bf16.gmra.mrb[0].mxu0 %v360
  %v949 = vpop.f32.mrb[0].mxu0
  %v950 = vadd.f32 %v642, %v949
  %v951 = vpop.f32.mrb[0].mxu0
  %v952 = vpop.f32.mrb[0].mxu0
  %v953 = vadd.f32 %v645, %v952
  %v954 = vpop.f32.mrb[0].mxu0
  %955 = vmatprep.mubr.bf16.mxu0 0
  %956 = vmatmul.mubr.bf16.gmra.mrb[0].mxu0 %v363
  %v957 = vpop.f32.mrb[0].mxu0
  %v958 = vadd.f32 %v650, %v957
  %v959 = vpop.f32.mrb[0].mxu0
  %v960 = vpop.f32.mrb[0].mxu0
  %v961 = vadd.f32 %v653, %v960
  %v962 = vpop.f32.mrb[0].mxu0
  %963 = vmatprep.mubr.bf16.mxu0 0
  %964 = vmatmul.mubr.bf16.gmra.mrb[0].mxu0 %v366
  %v965 = vpop.f32.mrb[0].mxu0
  %v966 = vadd.f32 %v658, %v965
  %v967 = vpop.f32.mrb[0].mxu0
  %v968 = vpop.f32.mrb[0].mxu0
  %v969 = vadd.f32 %v661, %v968
  %v970 = vpop.f32.mrb[0].mxu0
  %971 = vdwg.mxu0
  %s972 = scalar_lea.vmem %s1, 4
  %v973 = vld [vmem:[%s972] sm:$0x3]
  %v978 = vunpack.c.l.b16 %v73
  %v979 = vunpack.c.l.b16 %v74
  %v980 = vunpack.c.l.b16 %v109
  %v981 = vunpack.c.l.b16 %v110
  %v982 = vpack.c.b16 %v979, %v978
  %v983 = vpack.c.b16 %v981, %v980
  %v985 = vsel %vm274, %v982, 0
  %v988 = vsel %vm274, %v983, 0
  %v991 = vsel %vm371, %v973, 0
  %993 = vmatprep.subr.bf16.mxu0 0
  %994 = vmatpush1.bf16.msra.mxu0 %v991
  %995 = vmatprep.subr.bf16.mxu0 0
  %996 = vmatpush1.bf16.msra.mxu0 0
  %997 = vmatprep.subr.bf16.mxu0 0
  %998 = vmatpush1.bf16.msra.mxu0 0
  %999 = vmatprep.subr.bf16.mxu0 0
  %1000 = vmatpush1.bf16.msra.mxu0 0
  %1001 = vmatprep.subr.bf16.mxu0 0
  %1002 = vmatpush1.bf16.msra.mxu0 0
  %1003 = vmatprep.subr.bf16.mxu0 0
  %1004 = vmatpush1.bf16.msra.mxu0 0
  %1005 = vmatprep.subr.bf16.mxu0 0
  %1006 = vmatpush1.bf16.msra.mxu0 0
  %1007 = vmatprep.subr.bf16.mxu0 0
  %1008 = vmatpush1.bf16.msra.mxu0 0
  %1009 = vmatprep.subr.bf16.mxu0 0
  %1010 = vmatpush1.bf16.msra.mxu0 0
  %1011 = vmatprep.subr.bf16.mxu0 0
  %1012 = vmatpush1.bf16.msra.mxu0 0
  %1013 = vmatprep.subr.bf16.mxu0 0
  %1014 = vmatpush1.bf16.msra.mxu0 0
  %1015 = vmatprep.subr.bf16.mxu0 0
  %1016 = vmatpush1.bf16.msra.mxu0 0
  %1017 = vmatprep.subr.bf16.mxu0 0
  %1018 = vmatpush1.bf16.msra.mxu0 0
  %1019 = vmatprep.subr.bf16.mxu0 0
  %1020 = vmatpush1.bf16.msra.mxu0 0
  %1021 = vmatprep.subr.bf16.mxu0 0
  %1022 = vmatpush1.bf16.msra.mxu0 0
  %1023 = vmatprep.subr.bf16.mxu0 0
  %1024 = vmatpush1.bf16.msra.mxu0 0
  %1025 = vmatprep.mubr.bf16.mxu0 0
  %1026 = vmatmul.mubr.bf16.gmra.mrb[0].mxu0 %v279
  %v1027 = vpop.f32.mrb[0].mxu0
  %v1028 = vadd.f32 0.0, %v1027
  %v1029 = vpop.f32.mrb[0].mxu0
  %v1030 = vpop.f32.mrb[0].mxu0
  %v1031 = vadd.f32 0.0, %v1030
  %v1032 = vpop.f32.mrb[0].mxu0
  %1033 = vmatprep.mubr.bf16.mxu0 0
  %1034 = vmatmul.mubr.bf16.gmra.mrb[0].mxu0 %v282
  %v1035 = vpop.f32.mrb[0].mxu0
  %v1036 = vadd.f32 0.0, %v1035
  %v1037 = vpop.f32.mrb[0].mxu0
  %v1038 = vpop.f32.mrb[0].mxu0
  %v1039 = vadd.f32 0.0, %v1038
  %v1040 = vpop.f32.mrb[0].mxu0
  %1041 = vmatprep.mubr.bf16.mxu0 0
  %1042 = vmatmul.mubr.bf16.gmra.mrb[0].mxu0 %v285
  %v1043 = vpop.f32.mrb[0].mxu0
  %v1044 = vadd.f32 0.0, %v1043
  %v1045 = vpop.f32.mrb[0].mxu0
  %v1046 = vpop.f32.mrb[0].mxu0
  %v1047 = vadd.f32 0.0, %v1046
  %v1048 = vpop.f32.mrb[0].mxu0
  %1049 = vmatprep.mubr.bf16.mxu0 0
  %1050 = vmatmul.mubr.bf16.gmra.mrb[0].mxu0 %v288
  %v1051 = vpop.f32.mrb[0].mxu0
  %v1052 = vadd.f32 0.0, %v1051
  %v1053 = vpop.f32.mrb[0].mxu0
  %v1054 = vpop.f32.mrb[0].mxu0
  %v1055 = vadd.f32 0.0, %v1054
  %v1056 = vpop.f32.mrb[0].mxu0
  %1057 = vmatprep.mubr.bf16.mxu0 0
  %1058 = vmatmul.mubr.bf16.gmra.mrb[0].mxu0 %v291
  %v1059 = vpop.f32.mrb[0].mxu0
  %v1060 = vadd.f32 0.0, %v1059
  %v1061 = vpop.f32.mrb[0].mxu0
  %v1062 = vpop.f32.mrb[0].mxu0
  %v1063 = vadd.f32 0.0, %v1062
  %v1064 = vpop.f32.mrb[0].mxu0
  %1065 = vmatprep.mubr.bf16.mxu0 0
  %1066 = vmatmul.mubr.bf16.gmra.mrb[0].mxu0 %v294
  %v1067 = vpop.f32.mrb[0].mxu0
  %v1068 = vadd.f32 0.0, %v1067
  %v1069 = vpop.f32.mrb[0].mxu0
  %v1070 = vpop.f32.mrb[0].mxu0
  %v1071 = vadd.f32 0.0, %v1070
  %v1072 = vpop.f32.mrb[0].mxu0
  %1073 = vmatprep.mubr.bf16.mxu0 0
  %1074 = vmatmul.mubr.bf16.gmra.mrb[0].mxu0 %v297
  %v1075 = vpop.f32.mrb[0].mxu0
  %v1076 = vadd.f32 0.0, %v1075
  %v1077 = vpop.f32.mrb[0].mxu0
  %v1078 = vpop.f32.mrb[0].mxu0
  %v1079 = vadd.f32 0.0, %v1078
  %v1080 = vpop.f32.mrb[0].mxu0
  %1081 = vmatprep.mubr.bf16.mxu0 0
  %1082 = vmatmul.mubr.bf16.gmra.mrb[0].mxu0 %v300
  %v1083 = vpop.f32.mrb[0].mxu0
  %v1084 = vadd.f32 0.0, %v1083
  %v1085 = vpop.f32.mrb[0].mxu0
  %v1086 = vpop.f32.mrb[0].mxu0
  %v1087 = vadd.f32 0.0, %v1086
  %v1088 = vpop.f32.mrb[0].mxu0
  %1089 = vmatprep.mubr.bf16.mxu0 0
  %1090 = vmatmul.mubr.bf16.gmra.mrb[0].mxu0 %v303
  %v1091 = vpop.f32.mrb[0].mxu0
  %v1092 = vadd.f32 0.0, %v1091
  %v1093 = vpop.f32.mrb[0].mxu0
  %v1094 = vpop.f32.mrb[0].mxu0
  %v1095 = vadd.f32 0.0, %v1094
  %v1096 = vpop.f32.mrb[0].mxu0
  %1097 = vmatprep.mubr.bf16.mxu0 0
  %1098 = vmatmul.mubr.bf16.gmra.mrb[0].mxu0 %v306
  %v1099 = vpop.f32.mrb[0].mxu0
  %v1100 = vadd.f32 0.0, %v1099
  %v1101 = vpop.f32.mrb[0].mxu0
  %v1102 = vpop.f32.mrb[0].mxu0
  %v1103 = vadd.f32 0.0, %v1102
  %v1104 = vpop.f32.mrb[0].mxu0
  %1105 = vmatprep.mubr.bf16.mxu0 0
  %1106 = vmatmul.mubr.bf16.gmra.mrb[0].mxu0 %v309
  %v1107 = vpop.f32.mrb[0].mxu0
  %v1108 = vadd.f32 0.0, %v1107
  %v1109 = vpop.f32.mrb[0].mxu0
  %v1110 = vpop.f32.mrb[0].mxu0
  %v1111 = vadd.f32 0.0, %v1110
  %v1112 = vpop.f32.mrb[0].mxu0
  %1113 = vmatprep.mubr.bf16.mxu0 0
  %1114 = vmatmul.mubr.bf16.gmra.mrb[0].mxu0 %v312
  %v1115 = vpop.f32.mrb[0].mxu0
  %v1116 = vadd.f32 0.0, %v1115
  %v1117 = vpop.f32.mrb[0].mxu0
  %v1118 = vpop.f32.mrb[0].mxu0
  %v1119 = vadd.f32 0.0, %v1118
  %v1120 = vpop.f32.mrb[0].mxu0
  %1121 = vmatprep.mubr.bf16.mxu0 0
  %1122 = vmatmul.mubr.bf16.gmra.mrb[0].mxu0 %v315
  %v1123 = vpop.f32.mrb[0].mxu0
  %v1124 = vadd.f32 0.0, %v1123
  %v1125 = vpop.f32.mrb[0].mxu0
  %v1126 = vpop.f32.mrb[0].mxu0
  %v1127 = vadd.f32 0.0, %v1126
  %v1128 = vpop.f32.mrb[0].mxu0
  %1129 = vmatprep.mubr.bf16.mxu0 0
  %1130 = vmatmul.mubr.bf16.gmra.mrb[0].mxu0 %v318
  %v1131 = vpop.f32.mrb[0].mxu0
  %v1132 = vadd.f32 0.0, %v1131
  %v1133 = vpop.f32.mrb[0].mxu0
  %v1134 = vpop.f32.mrb[0].mxu0
  %v1135 = vadd.f32 0.0, %v1134
  %v1136 = vpop.f32.mrb[0].mxu0
  %1137 = vmatprep.mubr.bf16.mxu0 0
  %1138 = vmatmul.mubr.bf16.gmra.mrb[0].mxu0 %v321
  %v1139 = vpop.f32.mrb[0].mxu0
  %v1140 = vadd.f32 0.0, %v1139
  %v1141 = vpop.f32.mrb[0].mxu0
  %v1142 = vpop.f32.mrb[0].mxu0
  %v1143 = vadd.f32 0.0, %v1142
  %v1144 = vpop.f32.mrb[0].mxu0
  %1145 = vmatprep.mubr.bf16.mxu0 0
  %1146 = vmatmul.mubr.bf16.gmra.mrb[0].mxu0 %v985
  %v1147 = vpop.f32.mrb[0].mxu0
  %v1148 = vadd.f32 0.0, %v1147
  %v1149 = vpop.f32.mrb[0].mxu0
  %v1150 = vpop.f32.mrb[0].mxu0
  %v1151 = vadd.f32 0.0, %v1150
  %v1152 = vpop.f32.mrb[0].mxu0
  %1153 = vmatprep.mubr.bf16.mxu0 0
  %1154 = vmatmul.mubr.bf16.gmra.mrb[0].mxu0 %v327
  %v1155 = vpop.f32.mrb[0].mxu0
  %v1156 = vadd.f32 0.0, %v1155
  %v1157 = vpop.f32.mrb[0].mxu0
  %v1158 = vpop.f32.mrb[0].mxu0
  %v1159 = vadd.f32 0.0, %v1158
  %v1160 = vpop.f32.mrb[0].mxu0
  %1161 = vmatprep.mubr.bf16.mxu0 0
  %1162 = vmatmul.mubr.bf16.gmra.mrb[0].mxu0 %v330
  %v1163 = vpop.f32.mrb[0].mxu0
  %v1164 = vadd.f32 0.0, %v1163
  %v1165 = vpop.f32.mrb[0].mxu0
  %v1166 = vpop.f32.mrb[0].mxu0
  %v1167 = vadd.f32 0.0, %v1166
  %v1168 = vpop.f32.mrb[0].mxu0
  %1169 = vmatprep.mubr.bf16.mxu0 0
  %1170 = vmatmul.mubr.bf16.gmra.mrb[0].mxu0 %v333
  %v1171 = vpop.f32.mrb[0].mxu0
  %v1172 = vadd.f32 0.0, %v1171
  %v1173 = vpop.f32.mrb[0].mxu0
  %v1174 = vpop.f32.mrb[0].mxu0
  %v1175 = vadd.f32 0.0, %v1174
  %v1176 = vpop.f32.mrb[0].mxu0
  %1177 = vmatprep.mubr.bf16.mxu0 0
  %1178 = vmatmul.mubr.bf16.gmra.mrb[0].mxu0 %v336
  %v1179 = vpop.f32.mrb[0].mxu0
  %v1180 = vadd.f32 0.0, %v1179
  %v1181 = vpop.f32.mrb[0].mxu0
  %v1182 = vpop.f32.mrb[0].mxu0
  %v1183 = vadd.f32 0.0, %v1182
  %v1184 = vpop.f32.mrb[0].mxu0
  %1185 = vmatprep.mubr.bf16.mxu0 0
  %1186 = vmatmul.mubr.bf16.gmra.mrb[0].mxu0 %v339
  %v1187 = vpop.f32.mrb[0].mxu0
  %v1188 = vadd.f32 0.0, %v1187
  %v1189 = vpop.f32.mrb[0].mxu0
  %v1190 = vpop.f32.mrb[0].mxu0
  %v1191 = vadd.f32 0.0, %v1190
  %v1192 = vpop.f32.mrb[0].mxu0
  %1193 = vmatprep.mubr.bf16.mxu0 0
  %1194 = vmatmul.mubr.bf16.gmra.mrb[0].mxu0 %v342
  %v1195 = vpop.f32.mrb[0].mxu0
  %v1196 = vadd.f32 0.0, %v1195
  %v1197 = vpop.f32.mrb[0].mxu0
  %v1198 = vpop.f32.mrb[0].mxu0
  %v1199 = vadd.f32 0.0, %v1198
  %v1200 = vpop.f32.mrb[0].mxu0
  %1201 = vmatprep.mubr.bf16.mxu0 0
  %1202 = vmatmul.mubr.bf16.gmra.mrb[0].mxu0 %v345
  %v1203 = vpop.f32.mrb[0].mxu0
  %v1204 = vadd.f32 0.0, %v1203
  %v1205 = vpop.f32.mrb[0].mxu0
  %v1206 = vpop.f32.mrb[0].mxu0
  %v1207 = vadd.f32 0.0, %v1206
  %v1208 = vpop.f32.mrb[0].mxu0
  %1209 = vmatprep.mubr.bf16.mxu0 0
  %1210 = vmatmul.mubr.bf16.gmra.mrb[0].mxu0 %v348
  %v1211 = vpop.f32.mrb[0].mxu0
  %v1212 = vadd.f32 0.0, %v1211
  %v1213 = vpop.f32.mrb[0].mxu0
  %v1214 = vpop.f32.mrb[0].mxu0
  %v1215 = vadd.f32 0.0, %v1214
  %v1216 = vpop.f32.mrb[0].mxu0
  %1217 = vmatprep.mubr.bf16.mxu0 0
  %1218 = vmatmul.mubr.bf16.gmra.mrb[0].mxu0 %v351
  %v1219 = vpop.f32.mrb[0].mxu0
  %v1220 = vadd.f32 0.0, %v1219
  %v1221 = vpop.f32.mrb[0].mxu0
  %v1222 = vpop.f32.mrb[0].mxu0
  %v1223 = vadd.f32 0.0, %v1222
  %v1224 = vpop.f32.mrb[0].mxu0
  %1225 = vmatprep.mubr.bf16.mxu0 0
  %1226 = vmatmul.mubr.bf16.gmra.mrb[0].mxu0 %v354
  %v1227 = vpop.f32.mrb[0].mxu0
  %v1228 = vadd.f32 0.0, %v1227
  %v1229 = vpop.f32.mrb[0].mxu0
  %v1230 = vpop.f32.mrb[0].mxu0
  %v1231 = vadd.f32 0.0, %v1230
  %v1232 = vpop.f32.mrb[0].mxu0
  %1233 = vmatprep.mubr.bf16.mxu0 0
  %1234 = vmatmul.mubr.bf16.gmra.mrb[0].mxu0 %v357
  %v1235 = vpop.f32.mrb[0].mxu0
  %v1236 = vadd.f32 0.0, %v1235
  %v1237 = vpop.f32.mrb[0].mxu0
  %v1238 = vpop.f32.mrb[0].mxu0
  %v1239 = vadd.f32 0.0, %v1238
  %v1240 = vpop.f32.mrb[0].mxu0
  %1241 = vmatprep.mubr.bf16.mxu0 0
  %1242 = vmatmul.mubr.bf16.gmra.mrb[0].mxu0 %v360
  %v1243 = vpop.f32.mrb[0].mxu0
  %v1244 = vadd.f32 0.0, %v1243
  %v1245 = vpop.f32.mrb[0].mxu0
  %v1246 = vpop.f32.mrb[0].mxu0
  %v1247 = vadd.f32 0.0, %v1246
  %v1248 = vpop.f32.mrb[0].mxu0
  %1249 = vmatprep.mubr.bf16.mxu0 0
  %1250 = vmatmul.mubr.bf16.gmra.mrb[0].mxu0 %v363
  %v1251 = vpop.f32.mrb[0].mxu0
  %v1252 = vadd.f32 0.0, %v1251
  %v1253 = vpop.f32.mrb[0].mxu0
  %v1254 = vpop.f32.mrb[0].mxu0
  %v1255 = vadd.f32 0.0, %v1254
  %v1256 = vpop.f32.mrb[0].mxu0
  %1257 = vmatprep.mubr.bf16.mxu0 0
  %1258 = vmatmul.mubr.bf16.gmra.mrb[0].mxu0 %v366
  %v1259 = vpop.f32.mrb[0].mxu0
  %v1260 = vadd.f32 0.0, %v1259
  %v1261 = vpop.f32.mrb[0].mxu0
  %v1262 = vpop.f32.mrb[0].mxu0
  %v1263 = vadd.f32 0.0, %v1262
  %v1264 = vpop.f32.mrb[0].mxu0
  %1265 = vmatprep.mubr.bf16.mxu0 0
  %1266 = vmatmul.mubr.bf16.gmra.mrb[0].mxu0 %v369
  %v1267 = vpop.f32.mrb[0].mxu0
  %v1268 = vadd.f32 0.0, %v1267
  %v1269 = vpop.f32.mrb[0].mxu0
  %v1270 = vpop.f32.mrb[0].mxu0
  %v1271 = vadd.f32 0.0, %v1270
  %v1272 = vpop.f32.mrb[0].mxu0
  %1273 = vmatprep.mubr.bf16.mxu0 0
  %1274 = vmatmul.mubr.bf16.gmra.mrb[0].mxu0 %v988
  %v1275 = vpop.f32.mrb[0].mxu0
  %v1276 = vadd.f32 0.0, %v1275
  %v1277 = vpop.f32.mrb[0].mxu0
  %v1278 = vpop.f32.mrb[0].mxu0
  %v1279 = vadd.f32 0.0, %v1278
  %v1280 = vpop.f32.mrb[0].mxu0
  %1281 = vdwg.mxu0
  %v1282 = vadd.f32 %v718, %v1028
  %v1283 = vadd.f32 %v721, %v1031
  %v1284 = vadd.f32 %v726, %v1036
  %v1285 = vadd.f32 %v729, %v1039
  %v1286 = vadd.f32 %v734, %v1044
  %v1287 = vadd.f32 %v737, %v1047
  %v1288 = vadd.f32 %v742, %v1052
  %v1289 = vadd.f32 %v745, %v1055
  %v1290 = vadd.f32 %v750, %v1060
  %v1291 = vadd.f32 %v753, %v1063
  %v1292 = vadd.f32 %v758, %v1068
  %v1293 = vadd.f32 %v761, %v1071
  %v1294 = vadd.f32 %v766, %v1076
  %v1295 = vadd.f32 %v769, %v1079
  %v1296 = vadd.f32 %v774, %v1084
  %v1297 = vadd.f32 %v777, %v1087
  %v1298 = vadd.f32 %v782, %v1092
  %v1299 = vadd.f32 %v785, %v1095
  %v1300 = vadd.f32 %v790, %v1100
  %v1301 = vadd.f32 %v793, %v1103
  %v1302 = vadd.f32 %v798, %v1108
  %v1303 = vadd.f32 %v801, %v1111
  %v1304 = vadd.f32 %v806, %v1116
  %v1305 = vadd.f32 %v809, %v1119
  %v1306 = vadd.f32 %v814, %v1124
  %v1307 = vadd.f32 %v817, %v1127
  %v1308 = vadd.f32 %v822, %v1132
  %v1309 = vadd.f32 %v825, %v1135
  %v1310 = vadd.f32 %v830, %v1140
  %v1311 = vadd.f32 %v833, %v1143
  %v1312 = vadd.f32 %v838, %v1148
  %v1313 = vadd.f32 %v841, %v1151
  %v1314 = vadd.f32 %v846, %v1156
  %v1315 = vadd.f32 %v849, %v1159
  %v1316 = vadd.f32 %v854, %v1164
  %v1317 = vadd.f32 %v857, %v1167
  %v1318 = vadd.f32 %v862, %v1172
  %v1319 = vadd.f32 %v865, %v1175
  %v1320 = vadd.f32 %v870, %v1180
  %v1321 = vadd.f32 %v873, %v1183
  %v1322 = vadd.f32 %v878, %v1188
  %v1323 = vadd.f32 %v881, %v1191
  %v1324 = vadd.f32 %v886, %v1196
  %v1325 = vadd.f32 %v889, %v1199
  %v1326 = vadd.f32 %v894, %v1204
  %v1327 = vadd.f32 %v897, %v1207
  %v1328 = vadd.f32 %v902, %v1212
  %v1329 = vadd.f32 %v905, %v1215
  %v1330 = vadd.f32 %v910, %v1220
  %v1331 = vadd.f32 %v913, %v1223
  %v1332 = vadd.f32 %v918, %v1228
  %v1333 = vadd.f32 %v921, %v1231
  %v1334 = vadd.f32 %v926, %v1236
  %v1335 = vadd.f32 %v929, %v1239
  %v1336 = vadd.f32 %v934, %v1244
  %v1337 = vadd.f32 %v937, %v1247
  %v1338 = vadd.f32 %v942, %v1252
  %v1339 = vadd.f32 %v945, %v1255
  %v1340 = vadd.f32 %v950, %v1260
  %v1341 = vadd.f32 %v953, %v1263
  %v1342 = vadd.f32 %v958, %v1268
  %v1343 = vadd.f32 %v961, %v1271
  %v1344 = vadd.f32 %v966, %v1276
  %v1345 = vadd.f32 %v969, %v1279
  %v1346 = vld [vmem:[%s2] sm:$0x1]
  %v1348 = vlaneseq
  %v1349 = vshrl.u32 %v1348, 7
  %v1350 = vsub.s32 0, %v1349
  %v1351 = vrot.slane %v1346, %v1350
  %v1353 = vadd.f32 %v1282, %v1351
  %v1354 = vadd.f32 %v1283, %v1351
  %v1355 = vadd.f32 %v1284, %v1351
  %v1356 = vadd.f32 %v1285, %v1351
  %v1357 = vadd.f32 %v1286, %v1351
  %v1358 = vadd.f32 %v1287, %v1351
  %v1359 = vadd.f32 %v1288, %v1351
  %v1360 = vadd.f32 %v1289, %v1351
  %v1361 = vadd.f32 %v1290, %v1351
  %v1362 = vadd.f32 %v1291, %v1351
  %v1363 = vadd.f32 %v1292, %v1351
  %v1364 = vadd.f32 %v1293, %v1351
  %v1365 = vadd.f32 %v1294, %v1351
  %v1366 = vadd.f32 %v1295, %v1351
  %v1367 = vadd.f32 %v1296, %v1351
  %v1368 = vadd.f32 %v1297, %v1351
  %v1369 = vadd.f32 %v1298, %v1351
  %v1370 = vadd.f32 %v1299, %v1351
  %v1371 = vadd.f32 %v1300, %v1351
  %v1372 = vadd.f32 %v1301, %v1351
  %v1373 = vadd.f32 %v1302, %v1351
  %v1374 = vadd.f32 %v1303, %v1351
  %v1375 = vadd.f32 %v1304, %v1351
  %v1376 = vadd.f32 %v1305, %v1351
  %v1377 = vadd.f32 %v1306, %v1351
  %v1378 = vadd.f32 %v1307, %v1351
  %v1379 = vadd.f32 %v1308, %v1351
  %v1380 = vadd.f32 %v1309, %v1351
  %v1381 = vadd.f32 %v1310, %v1351
  %v1382 = vadd.f32 %v1311, %v1351
  %v1383 = vadd.f32 %v1312, %v1351
  %v1384 = vadd.f32 %v1313, %v1351
  %v1385 = vadd.f32 %v1314, %v1351
  %v1386 = vadd.f32 %v1315, %v1351
  %v1387 = vadd.f32 %v1316, %v1351
  %v1388 = vadd.f32 %v1317, %v1351
  %v1389 = vadd.f32 %v1318, %v1351
  %v1390 = vadd.f32 %v1319, %v1351
  %v1391 = vadd.f32 %v1320, %v1351
  %v1392 = vadd.f32 %v1321, %v1351
  %v1393 = vadd.f32 %v1322, %v1351
  %v1394 = vadd.f32 %v1323, %v1351
  %v1395 = vadd.f32 %v1324, %v1351
  %v1396 = vadd.f32 %v1325, %v1351
  %v1397 = vadd.f32 %v1326, %v1351
  %v1398 = vadd.f32 %v1327, %v1351
  %v1399 = vadd.f32 %v1328, %v1351
  %v1400 = vadd.f32 %v1329, %v1351
  %v1401 = vadd.f32 %v1330, %v1351
  %v1402 = vadd.f32 %v1331, %v1351
  %v1403 = vadd.f32 %v1332, %v1351
  %v1404 = vadd.f32 %v1333, %v1351
  %v1405 = vadd.f32 %v1334, %v1351
  %v1406 = vadd.f32 %v1335, %v1351
  %v1407 = vadd.f32 %v1336, %v1351
  %v1408 = vadd.f32 %v1337, %v1351
  %v1409 = vadd.f32 %v1338, %v1351
  %v1410 = vadd.f32 %v1339, %v1351
  %v1411 = vadd.f32 %v1340, %v1351
  %v1412 = vadd.f32 %v1341, %v1351
  %v1413 = vadd.f32 %v1342, %v1351
  %v1414 = vadd.f32 %v1343, %v1351
  %v1415 = vadd.f32 %v1344, %v1351
  %v1416 = vadd.f32 %v1345, %v1351
  %v1417 = vld [vmem:[%s3] sm:$0x1]
  %v1418 = vld [vmem:[%s4] sm:$0x1]
  %v1419 = vadd.f32 %v1353, %v1354
  %v1420 = vadd.f32 %v1419, %v1355
  %v1421 = vadd.f32 %v1420, %v1356
  %v1422 = vadd.f32 %v1421, %v1357
  %v1423 = vadd.f32 %v1422, %v1358
  %v1424 = vadd.f32 %v1423, %v1359
  %v1425 = vadd.f32 %v1424, %v1360
  %v1426 = vadd.f32 %v1425, %v1361
  %v1427 = vadd.f32 %v1426, %v1362
  %v1428 = vadd.f32 %v1427, %v1363
  %v1429 = vadd.f32 %v1428, %v1364
  %v1430 = vadd.f32 %v1429, %v1365
  %v1431 = vadd.f32 %v1430, %v1366
  %v1432 = vadd.f32 %v1431, %v1367
  %v1433 = vadd.f32 %v1432, %v1368
  %v1434 = vadd.f32 %v1433, %v1369
  %v1435 = vadd.f32 %v1434, %v1370
  %v1436 = vadd.f32 %v1435, %v1371
  %v1437 = vadd.f32 %v1436, %v1372
  %v1438 = vadd.f32 %v1437, %v1373
  %v1439 = vadd.f32 %v1438, %v1374
  %v1440 = vadd.f32 %v1439, %v1375
  %v1441 = vadd.f32 %v1440, %v1376
  %v1442 = vadd.f32 %v1441, %v1377
  %v1443 = vadd.f32 %v1442, %v1378
  %v1444 = vadd.f32 %v1443, %v1379
  %v1445 = vadd.f32 %v1444, %v1380
  %v1446 = vadd.f32 %v1445, %v1381
  %v1447 = vadd.f32 %v1446, %v1382
  %v1448 = vadd.f32 %v1447, %v1383
  %v1449 = vadd.f32 %v1448, %v1384
  %v1450 = vadd.f32 %v1449, %v1385
  %v1451 = vadd.f32 %v1450, %v1386
  %v1452 = vadd.f32 %v1451, %v1387
  %v1453 = vadd.f32 %v1452, %v1388
  %v1454 = vadd.f32 %v1453, %v1389
  %v1455 = vadd.f32 %v1454, %v1390
  %v1456 = vadd.f32 %v1455, %v1391
  %v1457 = vadd.f32 %v1456, %v1392
  %v1458 = vadd.f32 %v1457, %v1393
  %v1459 = vadd.f32 %v1458, %v1394
  %v1460 = vadd.f32 %v1459, %v1395
  %v1461 = vadd.f32 %v1460, %v1396
  %v1462 = vadd.f32 %v1461, %v1397
  %v1463 = vadd.f32 %v1462, %v1398
  %v1464 = vadd.f32 %v1463, %v1399
  %v1465 = vadd.f32 %v1464, %v1400
  %v1466 = vadd.f32 %v1465, %v1401
  %v1467 = vadd.f32 %v1466, %v1402
  %v1468 = vadd.f32 %v1467, %v1403
  %v1469 = vadd.f32 %v1468, %v1404
  %v1470 = vadd.f32 %v1469, %v1405
  %v1471 = vadd.f32 %v1470, %v1406
  %v1472 = vadd.f32 %v1471, %v1407
  %v1473 = vadd.f32 %v1472, %v1408
  %v1474 = vadd.f32 %v1473, %v1409
  %v1475 = vadd.f32 %v1474, %v1410
  %v1476 = vadd.f32 %v1475, %v1411
  %v1477 = vadd.f32 %v1476, %v1412
  %v1478 = vadd.f32 %v1477, %v1413
  %v1479 = vadd.f32 %v1478, %v1414
  %v1480 = vadd.f32 %v1479, %v1415
  %v1481 = vadd.f32 %v1480, %v1416
  %v1482 = vrot.slane %v1481, 4
  %v1483 = vadd.f32 %v1481, %v1482
  %v1484 = vrot.slane %v1483, 2
  %v1485 = vadd.f32 %v1483, %v1484
  %v1486 = vrot.slane %v1485, 1
  %v1487 = vadd.f32 %v1485, %v1486
  %v1488 = vrcp.pop 512.0
  %v1489 = vmul.f32 %v1487, %v1488
  %v1490 = vsub.f32 %v1353, %v1489
  %v1491 = vsub.f32 %v1354, %v1489
  %v1492 = vsub.f32 %v1355, %v1489
  %v1493 = vsub.f32 %v1356, %v1489
  %v1494 = vsub.f32 %v1357, %v1489
  %v1495 = vsub.f32 %v1358, %v1489
  %v1496 = vsub.f32 %v1359, %v1489
  %v1497 = vsub.f32 %v1360, %v1489
  %v1498 = vsub.f32 %v1361, %v1489
  %v1499 = vsub.f32 %v1362, %v1489
  %v1500 = vsub.f32 %v1363, %v1489
  %v1501 = vsub.f32 %v1364, %v1489
  %v1502 = vsub.f32 %v1365, %v1489
  %v1503 = vsub.f32 %v1366, %v1489
  %v1504 = vsub.f32 %v1367, %v1489
  %v1505 = vsub.f32 %v1368, %v1489
  %v1506 = vsub.f32 %v1369, %v1489
  %v1507 = vsub.f32 %v1370, %v1489
  %v1508 = vsub.f32 %v1371, %v1489
  %v1509 = vsub.f32 %v1372, %v1489
  %v1510 = vsub.f32 %v1373, %v1489
  %v1511 = vsub.f32 %v1374, %v1489
  %v1512 = vsub.f32 %v1375, %v1489
  %v1513 = vsub.f32 %v1376, %v1489
  %v1514 = vsub.f32 %v1377, %v1489
  %v1515 = vsub.f32 %v1378, %v1489
  %v1516 = vsub.f32 %v1379, %v1489
  %v1517 = vsub.f32 %v1380, %v1489
  %v1518 = vsub.f32 %v1381, %v1489
  %v1519 = vsub.f32 %v1382, %v1489
  %v1520 = vsub.f32 %v1383, %v1489
  %v1521 = vsub.f32 %v1384, %v1489
  %v1522 = vsub.f32 %v1385, %v1489
  %v1523 = vsub.f32 %v1386, %v1489
  %v1524 = vsub.f32 %v1387, %v1489
  %v1525 = vsub.f32 %v1388, %v1489
  %v1526 = vsub.f32 %v1389, %v1489
  %v1527 = vsub.f32 %v1390, %v1489
  %v1528 = vsub.f32 %v1391, %v1489
  %v1529 = vsub.f32 %v1392, %v1489
  %v1530 = vsub.f32 %v1393, %v1489
  %v1531 = vsub.f32 %v1394, %v1489
  %v1532 = vsub.f32 %v1395, %v1489
  %v1533 = vsub.f32 %v1396, %v1489
  %v1534 = vsub.f32 %v1397, %v1489
  %v1535 = vsub.f32 %v1398, %v1489
  %v1536 = vsub.f32 %v1399, %v1489
  %v1537 = vsub.f32 %v1400, %v1489
  %v1538 = vsub.f32 %v1401, %v1489
  %v1539 = vsub.f32 %v1402, %v1489
  %v1540 = vsub.f32 %v1403, %v1489
  %v1541 = vsub.f32 %v1404, %v1489
  %v1542 = vsub.f32 %v1405, %v1489
  %v1543 = vsub.f32 %v1406, %v1489
  %v1544 = vsub.f32 %v1407, %v1489
  %v1545 = vsub.f32 %v1408, %v1489
  %v1546 = vsub.f32 %v1409, %v1489
  %v1547 = vsub.f32 %v1410, %v1489
  %v1548 = vsub.f32 %v1411, %v1489
  %v1549 = vsub.f32 %v1412, %v1489
  %v1550 = vsub.f32 %v1413, %v1489
  %v1551 = vsub.f32 %v1414, %v1489
  %v1552 = vsub.f32 %v1415, %v1489
  %v1553 = vsub.f32 %v1416, %v1489
  %v1554 = vmul.f32 %v1490, %v1490
  %v1555 = vmul.f32 %v1491, %v1491
  %v1556 = vmul.f32 %v1492, %v1492
  %v1557 = vmul.f32 %v1493, %v1493
  %v1558 = vmul.f32 %v1494, %v1494
  %v1559 = vmul.f32 %v1495, %v1495
  %v1560 = vmul.f32 %v1496, %v1496
  %v1561 = vmul.f32 %v1497, %v1497
  %v1562 = vmul.f32 %v1498, %v1498
  %v1563 = vmul.f32 %v1499, %v1499
  %v1564 = vmul.f32 %v1500, %v1500
  %v1565 = vmul.f32 %v1501, %v1501
  %v1566 = vmul.f32 %v1502, %v1502
  %v1567 = vmul.f32 %v1503, %v1503
  %v1568 = vmul.f32 %v1504, %v1504
  %v1569 = vmul.f32 %v1505, %v1505
  %v1570 = vmul.f32 %v1506, %v1506
  %v1571 = vmul.f32 %v1507, %v1507
  %v1572 = vmul.f32 %v1508, %v1508
  %v1573 = vmul.f32 %v1509, %v1509
  %v1574 = vmul.f32 %v1510, %v1510
  %v1575 = vmul.f32 %v1511, %v1511
  %v1576 = vmul.f32 %v1512, %v1512
  %v1577 = vmul.f32 %v1513, %v1513
  %v1578 = vmul.f32 %v1514, %v1514
  %v1579 = vmul.f32 %v1515, %v1515
  %v1580 = vmul.f32 %v1516, %v1516
  %v1581 = vmul.f32 %v1517, %v1517
  %v1582 = vmul.f32 %v1518, %v1518
  %v1583 = vmul.f32 %v1519, %v1519
  %v1584 = vmul.f32 %v1520, %v1520
  %v1585 = vmul.f32 %v1521, %v1521
  %v1586 = vmul.f32 %v1522, %v1522
  %v1587 = vmul.f32 %v1523, %v1523
  %v1588 = vmul.f32 %v1524, %v1524
  %v1589 = vmul.f32 %v1525, %v1525
  %v1590 = vmul.f32 %v1526, %v1526
  %v1591 = vmul.f32 %v1527, %v1527
  %v1592 = vmul.f32 %v1528, %v1528
  %v1593 = vmul.f32 %v1529, %v1529
  %v1594 = vmul.f32 %v1530, %v1530
  %v1595 = vmul.f32 %v1531, %v1531
  %v1596 = vmul.f32 %v1532, %v1532
  %v1597 = vmul.f32 %v1533, %v1533
  %v1598 = vmul.f32 %v1534, %v1534
  %v1599 = vmul.f32 %v1535, %v1535
  %v1600 = vmul.f32 %v1536, %v1536
  %v1601 = vmul.f32 %v1537, %v1537
  %v1602 = vmul.f32 %v1538, %v1538
  %v1603 = vmul.f32 %v1539, %v1539
  %v1604 = vmul.f32 %v1540, %v1540
  %v1605 = vmul.f32 %v1541, %v1541
  %v1606 = vmul.f32 %v1542, %v1542
  %v1607 = vmul.f32 %v1543, %v1543
  %v1608 = vmul.f32 %v1544, %v1544
  %v1609 = vmul.f32 %v1545, %v1545
  %v1610 = vmul.f32 %v1546, %v1546
  %v1611 = vmul.f32 %v1547, %v1547
  %v1612 = vmul.f32 %v1548, %v1548
  %v1613 = vmul.f32 %v1549, %v1549
  %v1614 = vmul.f32 %v1550, %v1550
  %v1615 = vmul.f32 %v1551, %v1551
  %v1616 = vmul.f32 %v1552, %v1552
  %v1617 = vmul.f32 %v1553, %v1553
  %v1618 = vadd.f32 %v1554, %v1555
  %v1619 = vadd.f32 %v1618, %v1556
  %v1620 = vadd.f32 %v1619, %v1557
  %v1621 = vadd.f32 %v1620, %v1558
  %v1622 = vadd.f32 %v1621, %v1559
  %v1623 = vadd.f32 %v1622, %v1560
  %v1624 = vadd.f32 %v1623, %v1561
  %v1625 = vadd.f32 %v1624, %v1562
  %v1626 = vadd.f32 %v1625, %v1563
  %v1627 = vadd.f32 %v1626, %v1564
  %v1628 = vadd.f32 %v1627, %v1565
  %v1629 = vadd.f32 %v1628, %v1566
  %v1630 = vadd.f32 %v1629, %v1567
  %v1631 = vadd.f32 %v1630, %v1568
  %v1632 = vadd.f32 %v1631, %v1569
  %v1633 = vadd.f32 %v1632, %v1570
  %v1634 = vadd.f32 %v1633, %v1571
  %v1635 = vadd.f32 %v1634, %v1572
  %v1636 = vadd.f32 %v1635, %v1573
  %v1637 = vadd.f32 %v1636, %v1574
  %v1638 = vadd.f32 %v1637, %v1575
  %v1639 = vadd.f32 %v1638, %v1576
  %v1640 = vadd.f32 %v1639, %v1577
  %v1641 = vadd.f32 %v1640, %v1578
  %v1642 = vadd.f32 %v1641, %v1579
  %v1643 = vadd.f32 %v1642, %v1580
  %v1644 = vadd.f32 %v1643, %v1581
  %v1645 = vadd.f32 %v1644, %v1582
  %v1646 = vadd.f32 %v1645, %v1583
  %v1647 = vadd.f32 %v1646, %v1584
  %v1648 = vadd.f32 %v1647, %v1585
  %v1649 = vadd.f32 %v1648, %v1586
  %v1650 = vadd.f32 %v1649, %v1587
  %v1651 = vadd.f32 %v1650, %v1588
  %v1652 = vadd.f32 %v1651, %v1589
  %v1653 = vadd.f32 %v1652, %v1590
  %v1654 = vadd.f32 %v1653, %v1591
  %v1655 = vadd.f32 %v1654, %v1592
  %v1656 = vadd.f32 %v1655, %v1593
  %v1657 = vadd.f32 %v1656, %v1594
  %v1658 = vadd.f32 %v1657, %v1595
  %v1659 = vadd.f32 %v1658, %v1596
  %v1660 = vadd.f32 %v1659, %v1597
  %v1661 = vadd.f32 %v1660, %v1598
  %v1662 = vadd.f32 %v1661, %v1599
  %v1663 = vadd.f32 %v1662, %v1600
  %v1664 = vadd.f32 %v1663, %v1601
  %v1665 = vadd.f32 %v1664, %v1602
  %v1666 = vadd.f32 %v1665, %v1603
  %v1667 = vadd.f32 %v1666, %v1604
  %v1668 = vadd.f32 %v1667, %v1605
  %v1669 = vadd.f32 %v1668, %v1606
  %v1670 = vadd.f32 %v1669, %v1607
  %v1671 = vadd.f32 %v1670, %v1608
  %v1672 = vadd.f32 %v1671, %v1609
  %v1673 = vadd.f32 %v1672, %v1610
  %v1674 = vadd.f32 %v1673, %v1611
  %v1675 = vadd.f32 %v1674, %v1612
  %v1676 = vadd.f32 %v1675, %v1613
  %v1677 = vadd.f32 %v1676, %v1614
  %v1678 = vadd.f32 %v1677, %v1615
  %v1679 = vadd.f32 %v1678, %v1616
  %v1680 = vadd.f32 %v1679, %v1617
  %v1681 = vrot.slane %v1680, 4
  %v1682 = vadd.f32 %v1680, %v1681
  %v1683 = vrot.slane %v1682, 2
  %v1684 = vadd.f32 %v1682, %v1683
  %v1685 = vrot.slane %v1684, 1
  %v1686 = vadd.f32 %v1684, %v1685
  %v1687 = vmul.f32 %v1686, %v1488
  %v1688 = vadd.f32 %v1687, 1e-05
  %v1689 = vrsqrt.pop %v1688
  %v1690 = vmul.f32 %v1417, %v1689
  %v1692 = vlaneseq
  %v1693 = vshrl.u32 %v1692, 7
  %v1694 = vsub.s32 0, %v1693
  %v1695 = vrot.slane %v1690, %v1694
  %v1697 = vmul.f32 %v1353, %v1695
  %v1698 = vmul.f32 %v1354, %v1695
  %v1699 = vmul.f32 %v1355, %v1695
  %v1700 = vmul.f32 %v1356, %v1695
  %v1701 = vmul.f32 %v1357, %v1695
  %v1702 = vmul.f32 %v1358, %v1695
  %v1703 = vmul.f32 %v1359, %v1695
  %v1704 = vmul.f32 %v1360, %v1695
  %v1705 = vmul.f32 %v1361, %v1695
  %v1706 = vmul.f32 %v1362, %v1695
  %v1707 = vmul.f32 %v1363, %v1695
  %v1708 = vmul.f32 %v1364, %v1695
  %v1709 = vmul.f32 %v1365, %v1695
  %v1710 = vmul.f32 %v1366, %v1695
  %v1711 = vmul.f32 %v1367, %v1695
  %v1712 = vmul.f32 %v1368, %v1695
  %v1713 = vmul.f32 %v1369, %v1695
  %v1714 = vmul.f32 %v1370, %v1695
  %v1715 = vmul.f32 %v1371, %v1695
  %v1716 = vmul.f32 %v1372, %v1695
  %v1717 = vmul.f32 %v1373, %v1695
  %v1718 = vmul.f32 %v1374, %v1695
  %v1719 = vmul.f32 %v1375, %v1695
  %v1720 = vmul.f32 %v1376, %v1695
  %v1721 = vmul.f32 %v1377, %v1695
  %v1722 = vmul.f32 %v1378, %v1695
  %v1723 = vmul.f32 %v1379, %v1695
  %v1724 = vmul.f32 %v1380, %v1695
  %v1725 = vmul.f32 %v1381, %v1695
  %v1726 = vmul.f32 %v1382, %v1695
  %v1727 = vmul.f32 %v1383, %v1695
  %v1728 = vmul.f32 %v1384, %v1695
  %v1729 = vmul.f32 %v1385, %v1695
  %v1730 = vmul.f32 %v1386, %v1695
  %v1731 = vmul.f32 %v1387, %v1695
  %v1732 = vmul.f32 %v1388, %v1695
  %v1733 = vmul.f32 %v1389, %v1695
  %v1734 = vmul.f32 %v1390, %v1695
  %v1735 = vmul.f32 %v1391, %v1695
  %v1736 = vmul.f32 %v1392, %v1695
  %v1737 = vmul.f32 %v1393, %v1695
  %v1738 = vmul.f32 %v1394, %v1695
  %v1739 = vmul.f32 %v1395, %v1695
  %v1740 = vmul.f32 %v1396, %v1695
  %v1741 = vmul.f32 %v1397, %v1695
  %v1742 = vmul.f32 %v1398, %v1695
  %v1743 = vmul.f32 %v1399, %v1695
  %v1744 = vmul.f32 %v1400, %v1695
  %v1745 = vmul.f32 %v1401, %v1695
  %v1746 = vmul.f32 %v1402, %v1695
  %v1747 = vmul.f32 %v1403, %v1695
  %v1748 = vmul.f32 %v1404, %v1695
  %v1749 = vmul.f32 %v1405, %v1695
  %v1750 = vmul.f32 %v1406, %v1695
  %v1751 = vmul.f32 %v1407, %v1695
  %v1752 = vmul.f32 %v1408, %v1695
  %v1753 = vmul.f32 %v1409, %v1695
  %v1754 = vmul.f32 %v1410, %v1695
  %v1755 = vmul.f32 %v1411, %v1695
  %v1756 = vmul.f32 %v1412, %v1695
  %v1757 = vmul.f32 %v1413, %v1695
  %v1758 = vmul.f32 %v1414, %v1695
  %v1759 = vmul.f32 %v1415, %v1695
  %v1760 = vmul.f32 %v1416, %v1695
  %v1761 = vmul.f32 %v1690, %v1489
  %v1762 = vsub.f32 %v1418, %v1761
  %v1764 = vlaneseq
  %v1765 = vshrl.u32 %v1764, 7
  %v1766 = vsub.s32 0, %v1765
  %v1767 = vrot.slane %v1762, %v1766
  %v1769 = vadd.f32 %v1697, %v1767
  %v1770 = vadd.f32 %v1698, %v1767
  %v1771 = vadd.f32 %v1699, %v1767
  %v1772 = vadd.f32 %v1700, %v1767
  %v1773 = vadd.f32 %v1701, %v1767
  %v1774 = vadd.f32 %v1702, %v1767
  %v1775 = vadd.f32 %v1703, %v1767
  %v1776 = vadd.f32 %v1704, %v1767
  %v1777 = vadd.f32 %v1705, %v1767
  %v1778 = vadd.f32 %v1706, %v1767
  %v1779 = vadd.f32 %v1707, %v1767
  %v1780 = vadd.f32 %v1708, %v1767
  %v1781 = vadd.f32 %v1709, %v1767
  %v1782 = vadd.f32 %v1710, %v1767
  %v1783 = vadd.f32 %v1711, %v1767
  %v1784 = vadd.f32 %v1712, %v1767
  %v1785 = vadd.f32 %v1713, %v1767
  %v1786 = vadd.f32 %v1714, %v1767
  %v1787 = vadd.f32 %v1715, %v1767
  %v1788 = vadd.f32 %v1716, %v1767
  %v1789 = vadd.f32 %v1717, %v1767
  %v1790 = vadd.f32 %v1718, %v1767
  %v1791 = vadd.f32 %v1719, %v1767
  %v1792 = vadd.f32 %v1720, %v1767
  %v1793 = vadd.f32 %v1721, %v1767
  %v1794 = vadd.f32 %v1722, %v1767
  %v1795 = vadd.f32 %v1723, %v1767
  %v1796 = vadd.f32 %v1724, %v1767
  %v1797 = vadd.f32 %v1725, %v1767
  %v1798 = vadd.f32 %v1726, %v1767
  %v1799 = vadd.f32 %v1727, %v1767
  %v1800 = vadd.f32 %v1728, %v1767
  %v1801 = vadd.f32 %v1729, %v1767
  %v1802 = vadd.f32 %v1730, %v1767
  %v1803 = vadd.f32 %v1731, %v1767
  %v1804 = vadd.f32 %v1732, %v1767
  %v1805 = vadd.f32 %v1733, %v1767
  %v1806 = vadd.f32 %v1734, %v1767
  %v1807 = vadd.f32 %v1735, %v1767
  %v1808 = vadd.f32 %v1736, %v1767
  %v1809 = vadd.f32 %v1737, %v1767
  %v1810 = vadd.f32 %v1738, %v1767
  %v1811 = vadd.f32 %v1739, %v1767
  %v1812 = vadd.f32 %v1740, %v1767
  %v1813 = vadd.f32 %v1741, %v1767
  %v1814 = vadd.f32 %v1742, %v1767
  %v1815 = vadd.f32 %v1743, %v1767
  %v1816 = vadd.f32 %v1744, %v1767
  %v1817 = vadd.f32 %v1745, %v1767
  %v1818 = vadd.f32 %v1746, %v1767
  %v1819 = vadd.f32 %v1747, %v1767
  %v1820 = vadd.f32 %v1748, %v1767
  %v1821 = vadd.f32 %v1749, %v1767
  %v1822 = vadd.f32 %v1750, %v1767
  %v1823 = vadd.f32 %v1751, %v1767
  %v1824 = vadd.f32 %v1752, %v1767
  %v1825 = vadd.f32 %v1753, %v1767
  %v1826 = vadd.f32 %v1754, %v1767
  %v1827 = vadd.f32 %v1755, %v1767
  %v1828 = vadd.f32 %v1756, %v1767
  %v1829 = vadd.f32 %v1757, %v1767
  %v1830 = vadd.f32 %v1758, %v1767
  %v1831 = vadd.f32 %v1759, %v1767
  %v1832 = vadd.f32 %v1760, %v1767
  %v1833 = vmax.f32 %v1769, 0.0
  %v1834 = vmax.f32 %v1770, 0.0
  %v1835 = vmax.f32 %v1771, 0.0
  %v1836 = vmax.f32 %v1772, 0.0
  %v1837 = vmax.f32 %v1773, 0.0
  %v1838 = vmax.f32 %v1774, 0.0
  %v1839 = vmax.f32 %v1775, 0.0
  %v1840 = vmax.f32 %v1776, 0.0
  %v1841 = vmax.f32 %v1777, 0.0
  %v1842 = vmax.f32 %v1778, 0.0
  %v1843 = vmax.f32 %v1779, 0.0
  %v1844 = vmax.f32 %v1780, 0.0
  %v1845 = vmax.f32 %v1781, 0.0
  %v1846 = vmax.f32 %v1782, 0.0
  %v1847 = vmax.f32 %v1783, 0.0
  %v1848 = vmax.f32 %v1784, 0.0
  %v1849 = vmax.f32 %v1785, 0.0
  %v1850 = vmax.f32 %v1786, 0.0
  %v1851 = vmax.f32 %v1787, 0.0
  %v1852 = vmax.f32 %v1788, 0.0
  %v1853 = vmax.f32 %v1789, 0.0
  %v1854 = vmax.f32 %v1790, 0.0
  %v1855 = vmax.f32 %v1791, 0.0
  %v1856 = vmax.f32 %v1792, 0.0
  %v1857 = vmax.f32 %v1793, 0.0
  %v1858 = vmax.f32 %v1794, 0.0
  %v1859 = vmax.f32 %v1795, 0.0
  %v1860 = vmax.f32 %v1796, 0.0
  %v1861 = vmax.f32 %v1797, 0.0
  %v1862 = vmax.f32 %v1798, 0.0
  %v1863 = vmax.f32 %v1799, 0.0
  %v1864 = vmax.f32 %v1800, 0.0
  %v1865 = vmax.f32 %v1801, 0.0
  %v1866 = vmax.f32 %v1802, 0.0
  %v1867 = vmax.f32 %v1803, 0.0
  %v1868 = vmax.f32 %v1804, 0.0
  %v1869 = vmax.f32 %v1805, 0.0
  %v1870 = vmax.f32 %v1806, 0.0
  %v1871 = vmax.f32 %v1807, 0.0
  %v1872 = vmax.f32 %v1808, 0.0
  %v1873 = vmax.f32 %v1809, 0.0
  %v1874 = vmax.f32 %v1810, 0.0
  %v1875 = vmax.f32 %v1811, 0.0
  %v1876 = vmax.f32 %v1812, 0.0
  %v1877 = vmax.f32 %v1813, 0.0
  %v1878 = vmax.f32 %v1814, 0.0
  %v1879 = vmax.f32 %v1815, 0.0
  %v1880 = vmax.f32 %v1816, 0.0
  %v1881 = vmax.f32 %v1817, 0.0
  %v1882 = vmax.f32 %v1818, 0.0
  %v1883 = vmax.f32 %v1819, 0.0
  %v1884 = vmax.f32 %v1820, 0.0
  %v1885 = vmax.f32 %v1821, 0.0
  %v1886 = vmax.f32 %v1822, 0.0
  %v1887 = vmax.f32 %v1823, 0.0
  %v1888 = vmax.f32 %v1824, 0.0
  %v1889 = vmax.f32 %v1825, 0.0
  %v1890 = vmax.f32 %v1826, 0.0
  %v1891 = vmax.f32 %v1827, 0.0
  %v1892 = vmax.f32 %v1828, 0.0
  %v1893 = vmax.f32 %v1829, 0.0
  %v1894 = vmax.f32 %v1830, 0.0
  %v1895 = vmax.f32 %v1831, 0.0
  %v1896 = vmax.f32 %v1832, 0.0
  %v1897 = vpack.c.bf16 %v1834, %v1833
  %v1898 = vpack.c.bf16 %v1836, %v1835
  %v1899 = vpack.c.bf16 %v1838, %v1837
  %v1900 = vpack.c.bf16 %v1840, %v1839
  %v1901 = vpack.c.bf16 %v1842, %v1841
  %v1902 = vpack.c.bf16 %v1844, %v1843
  %v1903 = vpack.c.bf16 %v1846, %v1845
  %v1904 = vpack.c.bf16 %v1848, %v1847
  %v1905 = vpack.c.bf16 %v1850, %v1849
  %v1906 = vpack.c.bf16 %v1852, %v1851
  %v1907 = vpack.c.bf16 %v1854, %v1853
  %v1908 = vpack.c.bf16 %v1856, %v1855
  %v1909 = vpack.c.bf16 %v1858, %v1857
  %v1910 = vpack.c.bf16 %v1860, %v1859
  %v1911 = vpack.c.bf16 %v1862, %v1861
  %v1912 = vpack.c.bf16 %v1864, %v1863
  %v1913 = vpack.c.bf16 %v1866, %v1865
  %v1914 = vpack.c.bf16 %v1868, %v1867
  %v1915 = vpack.c.bf16 %v1870, %v1869
  %v1916 = vpack.c.bf16 %v1872, %v1871
  %v1917 = vpack.c.bf16 %v1874, %v1873
  %v1918 = vpack.c.bf16 %v1876, %v1875
  %v1919 = vpack.c.bf16 %v1878, %v1877
  %v1920 = vpack.c.bf16 %v1880, %v1879
  %v1921 = vpack.c.bf16 %v1882, %v1881
  %v1922 = vpack.c.bf16 %v1884, %v1883
  %v1923 = vpack.c.bf16 %v1886, %v1885
  %v1924 = vpack.c.bf16 %v1888, %v1887
  %v1925 = vpack.c.bf16 %v1890, %v1889
  %v1926 = vpack.c.bf16 %v1892, %v1891
  %v1927 = vpack.c.bf16 %v1894, %v1893
  %v1928 = vpack.c.bf16 %v1896, %v1895
  %vm1929 = vcmask 1040384
  %vm1930 = vsmask.f32 256
  %vm1931 = vmand %vm1929, %vm1930
  %v1932 = vld [vmem:[#allocation2] sm:$0x1]
  %v1933 = vsel %vm1931, 0, %v1932
  %1934 = vst [vmem:[#allocation2] sm:$0x1] %v1933
  %v1935 = vld [vmem:[#allocation2 + $0xc] sm:$0x1]
  %v1936 = vsel %vm1931, 0, %v1935
  %1937 = vst [vmem:[#allocation2 + $0xc] sm:$0x1] %v1936
  %v1938 = vld [vmem:[#allocation2 + $0x18] sm:$0x1]
  %v1939 = vsel %vm1931, 0, %v1938
  %1940 = vst [vmem:[#allocation2 + $0x18] sm:$0x1] %v1939
  %v1941 = vld [vmem:[#allocation2 + $0x24] sm:$0x1]
  %v1942 = vsel %vm1931, 0, %v1941
  %1943 = vst [vmem:[#allocation2 + $0x24] sm:$0x1] %v1942
  %v1944 = vld [vmem:[#allocation2 + $0x30] sm:$0x1]
  %v1945 = vsel %vm1931, 0, %v1944
  %1946 = vst [vmem:[#allocation2 + $0x30] sm:$0x1] %v1945
  %v1947 = vld [vmem:[#allocation2 + $0x3c] sm:$0x1]
  %v1948 = vsel %vm1931, 0, %v1947
  %1949 = vst [vmem:[#allocation2 + $0x3c] sm:$0x1] %v1948
  %v1950 = vld [vmem:[#allocation2 + $0x48] sm:$0x1]
  %v1951 = vsel %vm1931, 0, %v1950
  %1952 = vst [vmem:[#allocation2 + $0x48] sm:$0x1] %v1951
  %v1953 = vld [vmem:[#allocation2 + $0x54] sm:$0x1]
  %v1954 = vsel %vm1931, 0, %v1953
  %1955 = vst [vmem:[#allocation2 + $0x54] sm:$0x1] %v1954
  %v1956 = vld [vmem:[#allocation2 + $0x60] sm:$0x1]
  %v1957 = vsel %vm1931, 0, %v1956
  %1958 = vst [vmem:[#allocation2 + $0x60] sm:$0x1] %v1957
  %v1959 = vld [vmem:[#allocation2 + $0x6c] sm:$0x1]
  %v1960 = vsel %vm1931, 0, %v1959
  %1961 = vst [vmem:[#allocation2 + $0x6c] sm:$0x1] %v1960
  %v1962 = vld [vmem:[#allocation2 + $0x78] sm:$0x1]
  %v1963 = vsel %vm1931, 0, %v1962
  %1964 = vst [vmem:[#allocation2 + $0x78] sm:$0x1] %v1963
  %v1965 = vld [vmem:[#allocation2 + $0x84] sm:$0x1]
  %v1966 = vsel %vm1931, 0, %v1965
  %1967 = vst [vmem:[#allocation2 + $0x84] sm:$0x1] %v1966
  %v1968 = vld [vmem:[#allocation2 + $0x90] sm:$0x1]
  %v1969 = vsel %vm1931, 0, %v1968
  %1970 = vst [vmem:[#allocation2 + $0x90] sm:$0x1] %v1969
  %v1971 = vld [vmem:[#allocation2 + $0x9c] sm:$0x1]
  %v1972 = vsel %vm1931, 0, %v1971
  %1973 = vst [vmem:[#allocation2 + $0x9c] sm:$0x1] %v1972
  %v1974 = vld [vmem:[#allocation2 + $0xa8] sm:$0x1]
  %v1975 = vsel %vm1931, 0, %v1974
  %1976 = vst [vmem:[#allocation2 + $0xa8] sm:$0x1] %v1975
  %v1977 = vld [vmem:[#allocation2 + $0xb4] sm:$0x1]
  %v1978 = vsel %vm1931, 0, %v1977
  %1979 = vst [vmem:[#allocation2 + $0xb4] sm:$0x1] %v1978
  %v1980 = vld [vmem:[#allocation2 + $0xc0] sm:$0x1]
  %v1981 = vsel %vm1931, 0, %v1980
  %1982 = vst [vmem:[#allocation2 + $0xc0] sm:$0x1] %v1981
  %v1983 = vld [vmem:[#allocation2 + $0xcc] sm:$0x1]
  %v1984 = vsel %vm1931, 0, %v1983
  %1985 = vst [vmem:[#allocation2 + $0xcc] sm:$0x1] %v1984
  %v1986 = vld [vmem:[#allocation2 + $0xd8] sm:$0x1]
  %v1987 = vsel %vm1931, 0, %v1986
  %1988 = vst [vmem:[#allocation2 + $0xd8] sm:$0x1] %v1987
  %v1989 = vld [vmem:[#allocation2 + $0xe4] sm:$0x1]
  %v1990 = vsel %vm1931, 0, %v1989
  %1991 = vst [vmem:[#allocation2 + $0xe4] sm:$0x1] %v1990
  %v1992 = vld [vmem:[#allocation2 + $0xf0] sm:$0x1]
  %v1993 = vsel %vm1931, 0, %v1992
  %1994 = vst [vmem:[#allocation2 + $0xf0] sm:$0x1] %v1993
  %v1995 = vld [vmem:[#allocation2 + $0xfc] sm:$0x1]
  %v1996 = vsel %vm1931, 0, %v1995
  %1997 = vst [vmem:[#allocation2 + $0xfc] sm:$0x1] %v1996
  %v1998 = vld [vmem:[#allocation2 + $0x108] sm:$0x1]
  %v1999 = vsel %vm1931, 0, %v1998
  %2000 = vst [vmem:[#allocation2 + $0x108] sm:$0x1] %v1999
  %v2001 = vld [vmem:[#allocation2 + $0x114] sm:$0x1]
  %v2002 = vsel %vm1931, 0, %v2001
  %2003 = vst [vmem:[#allocation2 + $0x114] sm:$0x1] %v2002
  %v2004 = vld [vmem:[#allocation2 + $0x120] sm:$0x1]
  %v2005 = vsel %vm1931, 0, %v2004
  %2006 = vst [vmem:[#allocation2 + $0x120] sm:$0x1] %v2005
  %v2007 = vld [vmem:[#allocation2 + $0x12c] sm:$0x1]
  %v2008 = vsel %vm1931, 0, %v2007
  %2009 = vst [vmem:[#allocation2 + $0x12c] sm:$0x1] %v2008
  %v2010 = vld [vmem:[#allocation2 + $0x138] sm:$0x1]
  %v2011 = vsel %vm1931, 0, %v2010
  %2012 = vst [vmem:[#allocation2 + $0x138] sm:$0x1] %v2011
  %v2013 = vld [vmem:[#allocation2 + $0x144] sm:$0x1]
  %v2014 = vsel %vm1931, 0, %v2013
  %2015 = vst [vmem:[#allocation2 + $0x144] sm:$0x1] %v2014
  %v2016 = vld [vmem:[#allocation2 + $0x150] sm:$0x1]
  %v2017 = vsel %vm1931, 0, %v2016
  %2018 = vst [vmem:[#allocation2 + $0x150] sm:$0x1] %v2017
  %v2019 = vld [vmem:[#allocation2 + $0x15c] sm:$0x1]
  %v2020 = vsel %vm1931, 0, %v2019
  %2021 = vst [vmem:[#allocation2 + $0x15c] sm:$0x1] %v2020
  %v2022 = vld [vmem:[#allocation2 + $0x168] sm:$0x1]
  %v2023 = vsel %vm1931, 0, %v2022
  %2024 = vst [vmem:[#allocation2 + $0x168] sm:$0x1] %v2023
  %v2025 = vld [vmem:[#allocation2 + $0x174] sm:$0x1]
  %v2026 = vsel %vm1931, 0, %v2025
  %2027 = vst [vmem:[#allocation2 + $0x174] sm:$0x1] %v2026
  %vm2028 = vsmask.f32 7938
  %vm2029 = vmand %vm1929, %vm2028
  %v2030 = vld [vmem:[#allocation2 + $0x8] sm:$0x1]
  %v2031 = vsel %vm2029, 0, %v2030
  %2032 = vst [vmem:[#allocation2 + $0x8] sm:$0x1] %v2031
  %v2033 = vld [vmem:[#allocation2 + $0x14] sm:$0x1]
  %v2034 = vsel %vm2029, 0, %v2033
  %2035 = vst [vmem:[#allocation2 + $0x14] sm:$0x1] %v2034
  %v2036 = vld [vmem:[#allocation2 + $0x20] sm:$0x1]
  %v2037 = vsel %vm2029, 0, %v2036
  %2038 = vst [vmem:[#allocation2 + $0x20] sm:$0x1] %v2037
  %v2039 = vld [vmem:[#allocation2 + $0x2c] sm:$0x1]
  %v2040 = vsel %vm2029, 0, %v2039
  %2041 = vst [vmem:[#allocation2 + $0x2c] sm:$0x1] %v2040
  %v2042 = vld [vmem:[#allocation2 + $0x38] sm:$0x1]
  %v2043 = vsel %vm2029, 0, %v2042
  %2044 = vst [vmem:[#allocation2 + $0x38] sm:$0x1] %v2043
  %v2045 = vld [vmem:[#allocation2 + $0x44] sm:$0x1]
  %v2046 = vsel %vm2029, 0, %v2045
  %2047 = vst [vmem:[#allocation2 + $0x44] sm:$0x1] %v2046
  %v2048 = vld [vmem:[#allocation2 + $0x50] sm:$0x1]
  %v2049 = vsel %vm2029, 0, %v2048
  %2050 = vst [vmem:[#allocation2 + $0x50] sm:$0x1] %v2049
  %v2051 = vld [vmem:[#allocation2 + $0x5c] sm:$0x1]
  %v2052 = vsel %vm2029, 0, %v2051
  %2053 = vst [vmem:[#allocation2 + $0x5c] sm:$0x1] %v2052
  %v2054 = vld [vmem:[#allocation2 + $0x68] sm:$0x1]
  %v2055 = vsel %vm2029, 0, %v2054
  %2056 = vst [vmem:[#allocation2 + $0x68] sm:$0x1] %v2055
  %v2057 = vld [vmem:[#allocation2 + $0x74] sm:$0x1]
  %v2058 = vsel %vm2029, 0, %v2057
  %2059 = vst [vmem:[#allocation2 + $0x74] sm:$0x1] %v2058
  %v2060 = vld [vmem:[#allocation2 + $0x80] sm:$0x1]
  %v2061 = vsel %vm2029, 0, %v2060
  %2062 = vst [vmem:[#allocation2 + $0x80] sm:$0x1] %v2061
  %v2063 = vld [vmem:[#allocation2 + $0x8c] sm:$0x1]
  %v2064 = vsel %vm2029, 0, %v2063
  %2065 = vst [vmem:[#allocation2 + $0x8c] sm:$0x1] %v2064
  %v2066 = vld [vmem:[#allocation2 + $0x98] sm:$0x1]
  %v2067 = vsel %vm2029, 0, %v2066
  %2068 = vst [vmem:[#allocation2 + $0x98] sm:$0x1] %v2067
  %v2069 = vld [vmem:[#allocation2 + $0xa4] sm:$0x1]
  %v2070 = vsel %vm2029, 0, %v2069
  %2071 = vst [vmem:[#allocation2 + $0xa4] sm:$0x1] %v2070
  %v2072 = vld [vmem:[#allocation2 + $0xb0] sm:$0x1]
  %v2073 = vsel %vm2029, 0, %v2072
  %2074 = vst [vmem:[#allocation2 + $0xb0] sm:$0x1] %v2073
  %v2075 = vld [vmem:[#allocation2 + $0xbc] sm:$0x1]
  %v2076 = vsel %vm2029, 0, %v2075
  %2077 = vst [vmem:[#allocation2 + $0xbc] sm:$0x1] %v2076
  %v2078 = vld [vmem:[#allocation2 + $0xc8] sm:$0x1]
  %v2079 = vsel %vm2029, 0, %v2078
  %2080 = vst [vmem:[#allocation2 + $0xc8] sm:$0x1] %v2079
  %v2081 = vld [vmem:[#allocation2 + $0xd4] sm:$0x1]
  %v2082 = vsel %vm2029, 0, %v2081
  %2083 = vst [vmem:[#allocation2 + $0xd4] sm:$0x1] %v2082
  %v2084 = vld [vmem:[#allocation2 + $0xe0] sm:$0x1]
  %v2085 = vsel %vm2029, 0, %v2084
  %2086 = vst [vmem:[#allocation2 + $0xe0] sm:$0x1] %v2085
  %v2087 = vld [vmem:[#allocation2 + $0xec] sm:$0x1]
  %v2088 = vsel %vm2029, 0, %v2087
  %2089 = vst [vmem:[#allocation2 + $0xec] sm:$0x1] %v2088
  %v2090 = vld [vmem:[#allocation2 + $0xf8] sm:$0x1]
  %v2091 = vsel %vm2029, 0, %v2090
  %2092 = vst [vmem:[#allocation2 + $0xf8] sm:$0x1] %v2091
  %v2093 = vld [vmem:[#allocation2 + $0x104] sm:$0x1]
  %v2094 = vsel %vm2029, 0, %v2093
  %2095 = vst [vmem:[#allocation2 + $0x104] sm:$0x1] %v2094
  %v2096 = vld [vmem:[#allocation2 + $0x110] sm:$0x1]
  %v2097 = vsel %vm2029, 0, %v2096
  %2098 = vst [vmem:[#allocation2 + $0x110] sm:$0x1] %v2097
  %v2099 = vld [vmem:[#allocation2 + $0x11c] sm:$0x1]
  %v2100 = vsel %vm2029, 0, %v2099
  %2101 = vst [vmem:[#allocation2 + $0x11c] sm:$0x1] %v2100
  %v2102 = vld [vmem:[#allocation2 + $0x128] sm:$0x1]
  %v2103 = vsel %vm2029, 0, %v2102
  %2104 = vst [vmem:[#allocation2 + $0x128] sm:$0x1] %v2103
  %v2105 = vld [vmem:[#allocation2 + $0x134] sm:$0x1]
  %v2106 = vsel %vm2029, 0, %v2105
  %2107 = vst [vmem:[#allocation2 + $0x134] sm:$0x1] %v2106
  %v2108 = vld [vmem:[#allocation2 + $0x140] sm:$0x1]
  %v2109 = vsel %vm2029, 0, %v2108
  %2110 = vst [vmem:[#allocation2 + $0x140] sm:$0x1] %v2109
  %v2111 = vld [vmem:[#allocation2 + $0x14c] sm:$0x1]
  %v2112 = vsel %vm2029, 0, %v2111
  %2113 = vst [vmem:[#allocation2 + $0x14c] sm:$0x1] %v2112
  %v2114 = vld [vmem:[#allocation2 + $0x158] sm:$0x1]
  %v2115 = vsel %vm2029, 0, %v2114
  %2116 = vst [vmem:[#allocation2 + $0x158] sm:$0x1] %v2115
  %v2117 = vld [vmem:[#allocation2 + $0x164] sm:$0x1]
  %v2118 = vsel %vm2029, 0, %v2117
  %2119 = vst [vmem:[#allocation2 + $0x164] sm:$0x1] %v2118
  %v2120 = vld [vmem:[#allocation2 + $0x170] sm:$0x1]
  %v2121 = vsel %vm2029, 0, %v2120
  %2122 = vst [vmem:[#allocation2 + $0x170] sm:$0x1] %v2121
  %v2123 = vld [vmem:[#allocation2 + $0x17c] sm:$0x1]
  %v2124 = vsel %vm2029, 0, %v2123
  %2125 = vst [vmem:[#allocation2 + $0x17c] sm:$0x1] %v2124
  %v2158 = vunpack.c.l.b16 %v1897
  %v2159 = vunpack.c.h.b16 %v1897
  %v2160 = vunpack.c.l.b16 %v1898
  %v2161 = vunpack.c.h.b16 %v1898
  %v2162 = vunpack.c.l.b16 %v1899
  %v2163 = vunpack.c.h.b16 %v1899
  %v2164 = vunpack.c.l.b16 %v1900
  %v2165 = vunpack.c.h.b16 %v1900
  %v2166 = vunpack.c.l.b16 %v1901
  %v2167 = vunpack.c.h.b16 %v1901
  %v2168 = vunpack.c.l.b16 %v1902
  %v2169 = vunpack.c.h.b16 %v1902
  %v2170 = vunpack.c.l.b16 %v1903
  %v2171 = vunpack.c.h.b16 %v1903
  %v2172 = vunpack.c.l.b16 %v1904
  %v2173 = vunpack.c.h.b16 %v1904
  %v2174 = vunpack.c.l.b16 %v1905
  %v2175 = vunpack.c.h.b16 %v1905
  %v2176 = vunpack.c.l.b16 %v1906
  %v2177 = vunpack.c.h.b16 %v1906
  %v2178 = vunpack.c.l.b16 %v1907
  %v2179 = vunpack.c.h.b16 %v1907
  %v2180 = vunpack.c.l.b16 %v1908
  %v2181 = vunpack.c.h.b16 %v1908
  %v2182 = vunpack.c.l.b16 %v1909
  %v2183 = vunpack.c.h.b16 %v1909
  %v2184 = vunpack.c.l.b16 %v1910
  %v2185 = vunpack.c.h.b16 %v1910
  %v2186 = vunpack.c.l.b16 %v1911
  %v2187 = vunpack.c.h.b16 %v1911
  %v2188 = vunpack.c.l.b16 %v1912
  %v2189 = vunpack.c.h.b16 %v1912
  %v2190 = vunpack.c.l.b16 %v1913
  %v2191 = vunpack.c.h.b16 %v1913
  %v2192 = vunpack.c.l.b16 %v1914
  %v2193 = vunpack.c.h.b16 %v1914
  %v2194 = vunpack.c.l.b16 %v1915
  %v2195 = vunpack.c.h.b16 %v1915
  %v2196 = vunpack.c.l.b16 %v1916
  %v2197 = vunpack.c.h.b16 %v1916
  %v2198 = vunpack.c.l.b16 %v1917
  %v2199 = vunpack.c.h.b16 %v1917
  %v2200 = vunpack.c.l.b16 %v1918
  %v2201 = vunpack.c.h.b16 %v1918
  %v2202 = vunpack.c.l.b16 %v1919
  %v2203 = vunpack.c.h.b16 %v1919
  %v2204 = vunpack.c.l.b16 %v1920
  %v2205 = vunpack.c.h.b16 %v1920
  %v2206 = vunpack.c.l.b16 %v1921
  %v2207 = vunpack.c.h.b16 %v1921
  %v2208 = vunpack.c.l.b16 %v1922
  %v2209 = vunpack.c.h.b16 %v1922
  %v2210 = vunpack.c.l.b16 %v1923
  %v2211 = vunpack.c.h.b16 %v1923
  %v2212 = vunpack.c.l.b16 %v1924
  %v2213 = vunpack.c.h.b16 %v1924
  %v2214 = vunpack.c.l.b16 %v1925
  %v2215 = vunpack.c.h.b16 %v1925
  %v2216 = vunpack.c.l.b16 %v1926
  %v2217 = vunpack.c.h.b16 %v1926
  %v2218 = vunpack.c.l.b16 %v1927
  %v2219 = vunpack.c.h.b16 %v1927
  %v2220 = vunpack.c.l.b16 %v1928
  %v2221 = vunpack.c.h.b16 %v1928
  %v2222 = vpack.c.b16 %v2158, %v2158
  %v2223 = vpack.c.b16 %v2159, %v2159
  %v2224 = vpack.c.b16 %v2160, %v2160
  %v2225 = vpack.c.b16 %v2161, %v2161
  %v2226 = vpack.c.b16 %v2162, %v2162
  %v2227 = vpack.c.b16 %v2163, %v2163
  %v2228 = vpack.c.b16 %v2164, %v2164
  %v2229 = vpack.c.b16 %v2165, %v2165
  %v2230 = vpack.c.b16 %v2166, %v2166
  %v2231 = vpack.c.b16 %v2167, %v2167
  %v2232 = vpack.c.b16 %v2168, %v2168
  %v2233 = vpack.c.b16 %v2169, %v2169
  %v2234 = vpack.c.b16 %v2170, %v2170
  %v2235 = vpack.c.b16 %v2171, %v2171
  %v2236 = vpack.c.b16 %v2172, %v2172
  %v2237 = vpack.c.b16 %v2173, %v2173
  %v2238 = vpack.c.b16 %v2174, %v2174
  %v2239 = vpack.c.b16 %v2175, %v2175
  %v2240 = vpack.c.b16 %v2176, %v2176
  %v2241 = vpack.c.b16 %v2177, %v2177
  %v2242 = vpack.c.b16 %v2178, %v2178
  %v2243 = vpack.c.b16 %v2179, %v2179
  %v2244 = vpack.c.b16 %v2180, %v2180
  %v2245 = vpack.c.b16 %v2181, %v2181
  %v2246 = vpack.c.b16 %v2182, %v2182
  %v2247 = vpack.c.b16 %v2183, %v2183
  %v2248 = vpack.c.b16 %v2184, %v2184
  %v2249 = vpack.c.b16 %v2185, %v2185
  %v2250 = vpack.c.b16 %v2186, %v2186
  %v2251 = vpack.c.b16 %v2187, %v2187
  %v2252 = vpack.c.b16 %v2188, %v2188
  %v2253 = vpack.c.b16 %v2189, %v2189
  %v2254 = vpack.c.b16 %v2190, %v2190
  %v2255 = vpack.c.b16 %v2191, %v2191
  %v2256 = vpack.c.b16 %v2192, %v2192
  %v2257 = vpack.c.b16 %v2193, %v2193
  %v2258 = vpack.c.b16 %v2194, %v2194
  %v2259 = vpack.c.b16 %v2195, %v2195
  %v2260 = vpack.c.b16 %v2196, %v2196
  %v2261 = vpack.c.b16 %v2197, %v2197
  %v2262 = vpack.c.b16 %v2198, %v2198
  %v2263 = vpack.c.b16 %v2199, %v2199
  %v2264 = vpack.c.b16 %v2200, %v2200
  %v2265 = vpack.c.b16 %v2201, %v2201
  %v2266 = vpack.c.b16 %v2202, %v2202
  %v2267 = vpack.c.b16 %v2203, %v2203
  %v2268 = vpack.c.b16 %v2204, %v2204
  %v2269 = vpack.c.b16 %v2205, %v2205
  %v2270 = vpack.c.b16 %v2206, %v2206
  %v2271 = vpack.c.b16 %v2207, %v2207
  %v2272 = vpack.c.b16 %v2208, %v2208
  %v2273 = vpack.c.b16 %v2209, %v2209
  %v2274 = vpack.c.b16 %v2210, %v2210
  %v2275 = vpack.c.b16 %v2211, %v2211
  %v2276 = vpack.c.b16 %v2212, %v2212
  %v2277 = vpack.c.b16 %v2213, %v2213
  %v2278 = vpack.c.b16 %v2214, %v2214
  %v2279 = vpack.c.b16 %v2215, %v2215
  %v2280 = vpack.c.b16 %v2216, %v2216
  %v2281 = vpack.c.b16 %v2217, %v2217
  %v2282 = vpack.c.b16 %v2218, %v2218
  %v2283 = vpack.c.b16 %v2219, %v2219
  %v2284 = vpack.c.b16 %v2220, %v2220
  %v2285 = vpack.c.b16 %v2221, %v2221
  %vm2286 = vsmask.f32 4368
  %vm2287 = vmor %vm1930, %vm2286
  %v2289 = vshrl.u32 %v2222, 16
  %v2291 = vrot.slane %v2289, 7
  %v2292 = vshll.u32 %v2222, 16
  %v2294 = vor.u32 %v2291, %v2292
  %v2295 = vrot.slane %v2291, 4
  %v2297 = vshrl.u32 %v2223, 16
  %v2299 = vrot.slane %v2297, 7
  %v2300 = vshll.u32 %v2223, 16
  %v2302 = vor.u32 %v2299, %v2300
  %v2303 = vsel %vm2287, %v2295, %v2302
  %v2304 = vrot.slane %v2299, 4
  %v2306 = vshrl.u32 %v2224, 16
  %v2308 = vrot.slane %v2306, 7
  %v2309 = vshll.u32 %v2224, 16
  %v2311 = vor.u32 %v2308, %v2309
  %v2312 = vrot.slane %v2308, 4
  %v2314 = vshrl.u32 %v2225, 16
  %v2316 = vrot.slane %v2314, 7
  %v2317 = vshll.u32 %v2225, 16
  %v2319 = vor.u32 %v2316, %v2317
  %v2320 = vsel %vm2287, %v2312, %v2319
  %v2321 = vrot.slane %v2316, 4
  %v2323 = vshrl.u32 %v2226, 16
  %v2325 = vrot.slane %v2323, 7
  %v2326 = vshll.u32 %v2226, 16
  %v2328 = vor.u32 %v2325, %v2326
  %v2329 = vrot.slane %v2325, 4
  %v2331 = vshrl.u32 %v2227, 16
  %v2333 = vrot.slane %v2331, 7
  %v2334 = vshll.u32 %v2227, 16
  %v2336 = vor.u32 %v2333, %v2334
  %v2337 = vsel %vm2287, %v2329, %v2336
  %v2338 = vrot.slane %v2333, 4
  %v2340 = vshrl.u32 %v2228, 16
  %v2342 = vrot.slane %v2340, 7
  %v2343 = vshll.u32 %v2228, 16
  %v2345 = vor.u32 %v2342, %v2343
  %v2346 = vrot.slane %v2342, 4
  %v2348 = vshrl.u32 %v2229, 16
  %v2350 = vrot.slane %v2348, 7
  %v2351 = vshll.u32 %v2229, 16
  %v2353 = vor.u32 %v2350, %v2351
  %v2354 = vsel %vm2287, %v2346, %v2353
  %v2355 = vrot.slane %v2350, 4
  %v2357 = vshrl.u32 %v2230, 16
  %v2359 = vrot.slane %v2357, 7
  %v2360 = vshll.u32 %v2230, 16
  %v2362 = vor.u32 %v2359, %v2360
  %v2363 = vrot.slane %v2359, 4
  %v2365 = vshrl.u32 %v2231, 16
  %v2367 = vrot.slane %v2365, 7
  %v2368 = vshll.u32 %v2231, 16
  %v2370 = vor.u32 %v2367, %v2368
  %v2371 = vsel %vm2287, %v2363, %v2370
  %v2372 = vrot.slane %v2367, 4
  %v2374 = vshrl.u32 %v2232, 16
  %v2376 = vrot.slane %v2374, 7
  %v2377 = vshll.u32 %v2232, 16
  %v2379 = vor.u32 %v2376, %v2377
  %v2380 = vrot.slane %v2376, 4
  %v2382 = vshrl.u32 %v2233, 16
  %v2384 = vrot.slane %v2382, 7
  %v2385 = vshll.u32 %v2233, 16
  %v2387 = vor.u32 %v2384, %v2385
  %v2388 = vsel %vm2287, %v2380, %v2387
  %v2389 = vrot.slane %v2384, 4
  %v2391 = vshrl.u32 %v2234, 16
  %v2393 = vrot.slane %v2391, 7
  %v2394 = vshll.u32 %v2234, 16
  %v2396 = vor.u32 %v2393, %v2394
  %v2397 = vrot.slane %v2393, 4
  %v2399 = vshrl.u32 %v2235, 16
  %v2401 = vrot.slane %v2399, 7
  %v2402 = vshll.u32 %v2235, 16
  %v2404 = vor.u32 %v2401, %v2402
  %v2405 = vsel %vm2287, %v2397, %v2404
  %v2406 = vrot.slane %v2401, 4
  %v2408 = vshrl.u32 %v2236, 16
  %v2410 = vrot.slane %v2408, 7
  %v2411 = vshll.u32 %v2236, 16
  %v2413 = vor.u32 %v2410, %v2411
  %v2414 = vrot.slane %v2410, 4
  %v2416 = vshrl.u32 %v2237, 16
  %v2418 = vrot.slane %v2416, 7
  %v2419 = vshll.u32 %v2237, 16
  %v2421 = vor.u32 %v2418, %v2419
  %v2422 = vsel %vm2287, %v2414, %v2421
  %v2423 = vrot.slane %v2418, 4
  %v2425 = vshrl.u32 %v2238, 16
  %v2427 = vrot.slane %v2425, 7
  %v2428 = vshll.u32 %v2238, 16
  %v2430 = vor.u32 %v2427, %v2428
  %v2431 = vrot.slane %v2427, 4
  %v2433 = vshrl.u32 %v2239, 16
  %v2435 = vrot.slane %v2433, 7
  %v2436 = vshll.u32 %v2239, 16
  %v2438 = vor.u32 %v2435, %v2436
  %v2439 = vsel %vm2287, %v2431, %v2438
  %v2440 = vrot.slane %v2435, 4
  %v2442 = vshrl.u32 %v2240, 16
  %v2444 = vrot.slane %v2442, 7
  %v2445 = vshll.u32 %v2240, 16
  %v2447 = vor.u32 %v2444, %v2445
  %v2448 = vrot.slane %v2444, 4
  %v2450 = vshrl.u32 %v2241, 16
  %v2452 = vrot.slane %v2450, 7
  %v2453 = vshll.u32 %v2241, 16
  %v2455 = vor.u32 %v2452, %v2453
  %v2456 = vsel %vm2287, %v2448, %v2455
  %v2457 = vrot.slane %v2452, 4
  %v2459 = vshrl.u32 %v2242, 16
  %v2461 = vrot.slane %v2459, 7
  %v2462 = vshll.u32 %v2242, 16
  %v2464 = vor.u32 %v2461, %v2462
  %v2465 = vrot.slane %v2461, 4
  %v2467 = vshrl.u32 %v2243, 16
  %v2469 = vrot.slane %v2467, 7
  %v2470 = vshll.u32 %v2243, 16
  %v2472 = vor.u32 %v2469, %v2470
  %v2473 = vsel %vm2287, %v2465, %v2472
  %v2474 = vrot.slane %v2469, 4
  %v2476 = vshrl.u32 %v2244, 16
  %v2478 = vrot.slane %v2476, 7
  %v2479 = vshll.u32 %v2244, 16
  %v2481 = vor.u32 %v2478, %v2479
  %v2482 = vrot.slane %v2478, 4
  %v2484 = vshrl.u32 %v2245, 16
  %v2486 = vrot.slane %v2484, 7
  %v2487 = vshll.u32 %v2245, 16
  %v2489 = vor.u32 %v2486, %v2487
  %v2490 = vsel %vm2287, %v2482, %v2489
  %v2491 = vrot.slane %v2486, 4
  %v2493 = vshrl.u32 %v2246, 16
  %v2495 = vrot.slane %v2493, 7
  %v2496 = vshll.u32 %v2246, 16
  %v2498 = vor.u32 %v2495, %v2496
  %v2499 = vrot.slane %v2495, 4
  %v2501 = vshrl.u32 %v2247, 16
  %v2503 = vrot.slane %v2501, 7
  %v2504 = vshll.u32 %v2247, 16
  %v2506 = vor.u32 %v2503, %v2504
  %v2507 = vsel %vm2287, %v2499, %v2506
  %v2508 = vrot.slane %v2503, 4
  %v2510 = vshrl.u32 %v2248, 16
  %v2512 = vrot.slane %v2510, 7
  %v2513 = vshll.u32 %v2248, 16
  %v2515 = vor.u32 %v2512, %v2513
  %v2516 = vrot.slane %v2512, 4
  %v2518 = vshrl.u32 %v2249, 16
  %v2520 = vrot.slane %v2518, 7
  %v2521 = vshll.u32 %v2249, 16
  %v2523 = vor.u32 %v2520, %v2521
  %v2524 = vsel %vm2287, %v2516, %v2523
  %v2525 = vrot.slane %v2520, 4
  %v2527 = vshrl.u32 %v2250, 16
  %v2529 = vrot.slane %v2527, 7
  %v2530 = vshll.u32 %v2250, 16
  %v2532 = vor.u32 %v2529, %v2530
  %v2533 = vrot.slane %v2529, 4
  %v2535 = vshrl.u32 %v2251, 16
  %v2537 = vrot.slane %v2535, 7
  %v2538 = vshll.u32 %v2251, 16
  %v2540 = vor.u32 %v2537, %v2538
  %v2541 = vsel %vm2287, %v2533, %v2540
  %v2542 = vrot.slane %v2537, 4
  %v2544 = vshrl.u32 %v2252, 16
  %v2546 = vrot.slane %v2544, 7
  %v2547 = vshll.u32 %v2252, 16
  %v2549 = vor.u32 %v2546, %v2547
  %v2550 = vrot.slane %v2546, 4
  %v2552 = vshrl.u32 %v2253, 16
  %v2554 = vrot.slane %v2552, 7
  %v2555 = vshll.u32 %v2253, 16
  %v2557 = vor.u32 %v2554, %v2555
  %v2558 = vsel %vm2287, %v2550, %v2557
  %v2559 = vrot.slane %v2554, 4
  %v2561 = vshrl.u32 %v2254, 16
  %v2563 = vrot.slane %v2561, 7
  %v2564 = vshll.u32 %v2254, 16
  %v2566 = vor.u32 %v2563, %v2564
  %v2567 = vrot.slane %v2563, 4
  %v2569 = vshrl.u32 %v2255, 16
  %v2571 = vrot.slane %v2569, 7
  %v2572 = vshll.u32 %v2255, 16
  %v2574 = vor.u32 %v2571, %v2572
  %v2575 = vsel %vm2287, %v2567, %v2574
  %v2576 = vrot.slane %v2571, 4
  %v2578 = vshrl.u32 %v2256, 16
  %v2580 = vrot.slane %v2578, 7
  %v2581 = vshll.u32 %v2256, 16
  %v2583 = vor.u32 %v2580, %v2581
  %v2584 = vrot.slane %v2580, 4
  %v2586 = vshrl.u32 %v2257, 16
  %v2588 = vrot.slane %v2586, 7
  %v2589 = vshll.u32 %v2257, 16
  %v2591 = vor.u32 %v2588, %v2589
  %v2592 = vsel %vm2287, %v2584, %v2591
  %v2593 = vrot.slane %v2588, 4
  %v2595 = vshrl.u32 %v2258, 16
  %v2597 = vrot.slane %v2595, 7
  %v2598 = vshll.u32 %v2258, 16
  %v2600 = vor.u32 %v2597, %v2598
  %v2601 = vrot.slane %v2597, 4
  %v2603 = vshrl.u32 %v2259, 16
  %v2605 = vrot.slane %v2603, 7
  %v2606 = vshll.u32 %v2259, 16
  %v2608 = vor.u32 %v2605, %v2606
  %v2609 = vsel %vm2287, %v2601, %v2608
  %v2610 = vrot.slane %v2605, 4
  %v2612 = vshrl.u32 %v2260, 16
  %v2614 = vrot.slane %v2612, 7
  %v2615 = vshll.u32 %v2260, 16
  %v2617 = vor.u32 %v2614, %v2615
  %v2618 = vrot.slane %v2614, 4
  %v2620 = vshrl.u32 %v2261, 16
  %v2622 = vrot.slane %v2620, 7
  %v2623 = vshll.u32 %v2261, 16
  %v2625 = vor.u32 %v2622, %v2623
  %v2626 = vsel %vm2287, %v2618, %v2625
  %v2627 = vrot.slane %v2622, 4
  %v2629 = vshrl.u32 %v2262, 16
  %v2631 = vrot.slane %v2629, 7
  %v2632 = vshll.u32 %v2262, 16
  %v2634 = vor.u32 %v2631, %v2632
  %v2635 = vrot.slane %v2631, 4
  %v2637 = vshrl.u32 %v2263, 16
  %v2639 = vrot.slane %v2637, 7
  %v2640 = vshll.u32 %v2263, 16
  %v2642 = vor.u32 %v2639, %v2640
  %v2643 = vsel %vm2287, %v2635, %v2642
  %v2644 = vrot.slane %v2639, 4
  %v2646 = vshrl.u32 %v2264, 16
  %v2648 = vrot.slane %v2646, 7
  %v2649 = vshll.u32 %v2264, 16
  %v2651 = vor.u32 %v2648, %v2649
  %v2652 = vrot.slane %v2648, 4
  %v2654 = vshrl.u32 %v2265, 16
  %v2656 = vrot.slane %v2654, 7
  %v2657 = vshll.u32 %v2265, 16
  %v2659 = vor.u32 %v2656, %v2657
  %v2660 = vsel %vm2287, %v2652, %v2659
  %v2661 = vrot.slane %v2656, 4
  %v2663 = vshrl.u32 %v2266, 16
  %v2665 = vrot.slane %v2663, 7
  %v2666 = vshll.u32 %v2266, 16
  %v2668 = vor.u32 %v2665, %v2666
  %v2669 = vrot.slane %v2665, 4
  %v2671 = vshrl.u32 %v2267, 16
  %v2673 = vrot.slane %v2671, 7
  %v2674 = vshll.u32 %v2267, 16
  %v2676 = vor.u32 %v2673, %v2674
  %v2677 = vsel %vm2287, %v2669, %v2676
  %v2678 = vrot.slane %v2673, 4
  %v2680 = vshrl.u32 %v2268, 16
  %v2682 = vrot.slane %v2680, 7
  %v2683 = vshll.u32 %v2268, 16
  %v2685 = vor.u32 %v2682, %v2683
  %v2686 = vrot.slane %v2682, 4
  %v2688 = vshrl.u32 %v2269, 16
  %v2690 = vrot.slane %v2688, 7
  %v2691 = vshll.u32 %v2269, 16
  %v2693 = vor.u32 %v2690, %v2691
  %v2694 = vsel %vm2287, %v2686, %v2693
  %v2695 = vrot.slane %v2690, 4
  %v2697 = vshrl.u32 %v2270, 16
  %v2699 = vrot.slane %v2697, 7
  %v2700 = vshll.u32 %v2270, 16
  %v2702 = vor.u32 %v2699, %v2700
  %v2703 = vrot.slane %v2699, 4
  %v2705 = vshrl.u32 %v2271, 16
  %v2707 = vrot.slane %v2705, 7
  %v2708 = vshll.u32 %v2271, 16
  %v2710 = vor.u32 %v2707, %v2708
  %v2711 = vsel %vm2287, %v2703, %v2710
  %v2712 = vrot.slane %v2707, 4
  %v2714 = vshrl.u32 %v2272, 16
  %v2716 = vrot.slane %v2714, 7
  %v2717 = vshll.u32 %v2272, 16
  %v2719 = vor.u32 %v2716, %v2717
  %v2720 = vrot.slane %v2716, 4
  %v2722 = vshrl.u32 %v2273, 16
  %v2724 = vrot.slane %v2722, 7
  %v2725 = vshll.u32 %v2273, 16
  %v2727 = vor.u32 %v2724, %v2725
  %v2728 = vsel %vm2287, %v2720, %v2727
  %v2729 = vrot.slane %v2724, 4
  %v2731 = vshrl.u32 %v2274, 16
  %v2733 = vrot.slane %v2731, 7
  %v2734 = vshll.u32 %v2274, 16
  %v2736 = vor.u32 %v2733, %v2734
  %v2737 = vrot.slane %v2733, 4
  %v2739 = vshrl.u32 %v2275, 16
  %v2741 = vrot.slane %v2739, 7
  %v2742 = vshll.u32 %v2275, 16
  %v2744 = vor.u32 %v2741, %v2742
  %v2745 = vsel %vm2287, %v2737, %v2744
  %v2746 = vrot.slane %v2741, 4
  %v2748 = vshrl.u32 %v2276, 16
  %v2750 = vrot.slane %v2748, 7
  %v2751 = vshll.u32 %v2276, 16
  %v2753 = vor.u32 %v2750, %v2751
  %v2754 = vrot.slane %v2750, 4
  %v2756 = vshrl.u32 %v2277, 16
  %v2758 = vrot.slane %v2756, 7
  %v2759 = vshll.u32 %v2277, 16
  %v2761 = vor.u32 %v2758, %v2759
  %v2762 = vsel %vm2287, %v2754, %v2761
  %v2763 = vrot.slane %v2758, 4
  %v2765 = vshrl.u32 %v2278, 16
  %v2767 = vrot.slane %v2765, 7
  %v2768 = vshll.u32 %v2278, 16
  %v2770 = vor.u32 %v2767, %v2768
  %v2771 = vrot.slane %v2767, 4
  %v2773 = vshrl.u32 %v2279, 16
  %v2775 = vrot.slane %v2773, 7
  %v2776 = vshll.u32 %v2279, 16
  %v2778 = vor.u32 %v2775, %v2776
  %v2779 = vsel %vm2287, %v2771, %v2778
  %v2780 = vrot.slane %v2775, 4
  %v2782 = vshrl.u32 %v2280, 16
  %v2784 = vrot.slane %v2782, 7
  %v2785 = vshll.u32 %v2280, 16
  %v2787 = vor.u32 %v2784, %v2785
  %v2788 = vrot.slane %v2784, 4
  %v2790 = vshrl.u32 %v2281, 16
  %v2792 = vrot.slane %v2790, 7
  %v2793 = vshll.u32 %v2281, 16
  %v2795 = vor.u32 %v2792, %v2793
  %v2796 = vsel %vm2287, %v2788, %v2795
  %v2797 = vrot.slane %v2792, 4
  %v2799 = vshrl.u32 %v2282, 16
  %v2801 = vrot.slane %v2799, 7
  %v2802 = vshll.u32 %v2282, 16
  %v2804 = vor.u32 %v2801, %v2802
  %v2805 = vrot.slane %v2801, 4
  %v2807 = vshrl.u32 %v2283, 16
  %v2809 = vrot.slane %v2807, 7
  %v2810 = vshll.u32 %v2283, 16
  %v2812 = vor.u32 %v2809, %v2810
  %v2813 = vsel %vm2287, %v2805, %v2812
  %v2814 = vrot.slane %v2809, 4
  %v2816 = vshrl.u32 %v2284, 16
  %v2818 = vrot.slane %v2816, 7
  %v2819 = vshll.u32 %v2284, 16
  %v2821 = vor.u32 %v2818, %v2819
  %v2822 = vrot.slane %v2818, 4
  %v2824 = vshrl.u32 %v2285, 16
  %v2826 = vrot.slane %v2824, 7
  %v2827 = vshll.u32 %v2285, 16
  %v2829 = vor.u32 %v2826, %v2827
  %v2830 = vsel %vm2287, %v2822, %v2829
  %v2831 = vrot.slane %v2826, 4
  %vm2928 = vcmask 1043456
  %vm2929 = vmand %vm2928, %vm2028
  %v2930 = vld [vmem:[#allocation2] sm:$0xf]
  %v2931 = vsel %vm2929, %v2294, %v2930
  %2932 = vst [vmem:[#allocation2] sm:$0xf] %v2931
  %2933 = vst [vmem:[#allocation2 + $0x4] sm:$0xf] %v2303
  %v2934 = vld [vmem:[#allocation2 + $0x8] sm:$0x1]
  %v2935 = vsel %vm1931, %v2304, %v2934
  %2936 = vst [vmem:[#allocation2 + $0x8] sm:$0x1] %v2935
  %v2937 = vld [vmem:[#allocation2 + $0xc] sm:$0xf]
  %v2938 = vsel %vm2929, %v2311, %v2937
  %2939 = vst [vmem:[#allocation2 + $0xc] sm:$0xf] %v2938
  %2940 = vst [vmem:[#allocation2 + $0x10] sm:$0xf] %v2320
  %v2941 = vld [vmem:[#allocation2 + $0x14] sm:$0x1]
  %v2942 = vsel %vm1931, %v2321, %v2941
  %2943 = vst [vmem:[#allocation2 + $0x14] sm:$0x1] %v2942
  %v2944 = vld [vmem:[#allocation2 + $0x18] sm:$0xf]
  %v2945 = vsel %vm2929, %v2328, %v2944
  %2946 = vst [vmem:[#allocation2 + $0x18] sm:$0xf] %v2945
  %2947 = vst [vmem:[#allocation2 + $0x1c] sm:$0xf] %v2337
  %v2948 = vld [vmem:[#allocation2 + $0x20] sm:$0x1]
  %v2949 = vsel %vm1931, %v2338, %v2948
  %2950 = vst [vmem:[#allocation2 + $0x20] sm:$0x1] %v2949
  %v2951 = vld [vmem:[#allocation2 + $0x24] sm:$0xf]
  %v2952 = vsel %vm2929, %v2345, %v2951
  %2953 = vst [vmem:[#allocation2 + $0x24] sm:$0xf] %v2952
  %2954 = vst [vmem:[#allocation2 + $0x28] sm:$0xf] %v2354
  %v2955 = vld [vmem:[#allocation2 + $0x2c] sm:$0x1]
  %v2956 = vsel %vm1931, %v2355, %v2955
  %2957 = vst [vmem:[#allocation2 + $0x2c] sm:$0x1] %v2956
  %v2958 = vld [vmem:[#allocation2 + $0x30] sm:$0xf]
  %v2959 = vsel %vm2929, %v2362, %v2958
  %2960 = vst [vmem:[#allocation2 + $0x30] sm:$0xf] %v2959
  %2961 = vst [vmem:[#allocation2 + $0x34] sm:$0xf] %v2371
  %v2962 = vld [vmem:[#allocation2 + $0x38] sm:$0x1]
  %v2963 = vsel %vm1931, %v2372, %v2962
  %2964 = vst [vmem:[#allocation2 + $0x38] sm:$0x1] %v2963
  %v2965 = vld [vmem:[#allocation2 + $0x3c] sm:$0xf]
  %v2966 = vsel %vm2929, %v2379, %v2965
  %2967 = vst [vmem:[#allocation2 + $0x3c] sm:$0xf] %v2966
  %2968 = vst [vmem:[#allocation2 + $0x40] sm:$0xf] %v2388
  %v2969 = vld [vmem:[#allocation2 + $0x44] sm:$0x1]
  %v2970 = vsel %vm1931, %v2389, %v2969
  %2971 = vst [vmem:[#allocation2 + $0x44] sm:$0x1] %v2970
  %v2972 = vld [vmem:[#allocation2 + $0x48] sm:$0xf]
  %v2973 = vsel %vm2929, %v2396, %v2972
  %2974 = vst [vmem:[#allocation2 + $0x48] sm:$0xf] %v2973
  %2975 = vst [vmem:[#allocation2 + $0x4c] sm:$0xf] %v2405
  %v2976 = vld [vmem:[#allocation2 + $0x50] sm:$0x1]
  %v2977 = vsel %vm1931, %v2406, %v2976
  %2978 = vst [vmem:[#allocation2 + $0x50] sm:$0x1] %v2977
  %v2979 = vld [vmem:[#allocation2 + $0x54] sm:$0xf]
  %v2980 = vsel %vm2929, %v2413, %v2979
  %2981 = vst [vmem:[#allocation2 + $0x54] sm:$0xf] %v2980
  %2982 = vst [vmem:[#allocation2 + $0x58] sm:$0xf] %v2422
  %v2983 = vld [vmem:[#allocation2 + $0x5c] sm:$0x1]
  %v2984 = vsel %vm1931, %v2423, %v2983
  %2985 = vst [vmem:[#allocation2 + $0x5c] sm:$0x1] %v2984
  %v2986 = vld [vmem:[#allocation2 + $0x60] sm:$0xf]
  %v2987 = vsel %vm2929, %v2430, %v2986
  %2988 = vst [vmem:[#allocation2 + $0x60] sm:$0xf] %v2987
  %2989 = vst [vmem:[#allocation2 + $0x64] sm:$0xf] %v2439
  %v2990 = vld [vmem:[#allocation2 + $0x68] sm:$0x1]
  %v2991 = vsel %vm1931, %v2440, %v2990
  %2992 = vst [vmem:[#allocation2 + $0x68] sm:$0x1] %v2991
  %v2993 = vld [vmem:[#allocation2 + $0x6c] sm:$0xf]
  %v2994 = vsel %vm2929, %v2447, %v2993
  %2995 = vst [vmem:[#allocation2 + $0x6c] sm:$0xf] %v2994
  %2996 = vst [vmem:[#allocation2 + $0x70] sm:$0xf] %v2456
  %v2997 = vld [vmem:[#allocation2 + $0x74] sm:$0x1]
  %v2998 = vsel %vm1931, %v2457, %v2997
  %2999 = vst [vmem:[#allocation2 + $0x74] sm:$0x1] %v2998
  %v3000 = vld [vmem:[#allocation2 + $0x78] sm:$0xf]
  %v3001 = vsel %vm2929, %v2464, %v3000
  %3002 = vst [vmem:[#allocation2 + $0x78] sm:$0xf] %v3001
  %3003 = vst [vmem:[#allocation2 + $0x7c] sm:$0xf] %v2473
  %v3004 = vld [vmem:[#allocation2 + $0x80] sm:$0x1]
  %v3005 = vsel %vm1931, %v2474, %v3004
  %3006 = vst [vmem:[#allocation2 + $0x80] sm:$0x1] %v3005
  %v3007 = vld [vmem:[#allocation2 + $0x84] sm:$0xf]
  %v3008 = vsel %vm2929, %v2481, %v3007
  %3009 = vst [vmem:[#allocation2 + $0x84] sm:$0xf] %v3008
  %3010 = vst [vmem:[#allocation2 + $0x88] sm:$0xf] %v2490
  %v3011 = vld [vmem:[#allocation2 + $0x8c] sm:$0x1]
  %v3012 = vsel %vm1931, %v2491, %v3011
  %3013 = vst [vmem:[#allocation2 + $0x8c] sm:$0x1] %v3012
  %v3014 = vld [vmem:[#allocation2 + $0x90] sm:$0xf]
  %v3015 = vsel %vm2929, %v2498, %v3014
  %3016 = vst [vmem:[#allocation2 + $0x90] sm:$0xf] %v3015
  %3017 = vst [vmem:[#allocation2 + $0x94] sm:$0xf] %v2507
  %v3018 = vld [vmem:[#allocation2 + $0x98] sm:$0x1]
  %v3019 = vsel %vm1931, %v2508, %v3018
  %3020 = vst [vmem:[#allocation2 + $0x98] sm:$0x1] %v3019
  %v3021 = vld [vmem:[#allocation2 + $0x9c] sm:$0xf]
  %v3022 = vsel %vm2929, %v2515, %v3021
  %3023 = vst [vmem:[#allocation2 + $0x9c] sm:$0xf] %v3022
  %3024 = vst [vmem:[#allocation2 + $0xa0] sm:$0xf] %v2524
  %v3025 = vld [vmem:[#allocation2 + $0xa4] sm:$0x1]
  %v3026 = vsel %vm1931, %v2525, %v3025
  %3027 = vst [vmem:[#allocation2 + $0xa4] sm:$0x1] %v3026
  %v3028 = vld [vmem:[#allocation2 + $0xa8] sm:$0xf]
  %v3029 = vsel %vm2929, %v2532, %v3028
  %3030 = vst [vmem:[#allocation2 + $0xa8] sm:$0xf] %v3029
  %3031 = vst [vmem:[#allocation2 + $0xac] sm:$0xf] %v2541
  %v3032 = vld [vmem:[#allocation2 + $0xb0] sm:$0x1]
  %v3033 = vsel %vm1931, %v2542, %v3032
  %3034 = vst [vmem:[#allocation2 + $0xb0] sm:$0x1] %v3033
  %v3035 = vld [vmem:[#allocation2 + $0xb4] sm:$0xf]
  %v3036 = vsel %vm2929, %v2549, %v3035
  %3037 = vst [vmem:[#allocation2 + $0xb4] sm:$0xf] %v3036
  %3038 = vst [vmem:[#allocation2 + $0xb8] sm:$0xf] %v2558
  %v3039 = vld [vmem:[#allocation2 + $0xbc] sm:$0x1]
  %v3040 = vsel %vm1931, %v2559, %v3039
  %3041 = vst [vmem:[#allocation2 + $0xbc] sm:$0x1] %v3040
  %v3042 = vld [vmem:[#allocation2 + $0xc0] sm:$0xf]
  %v3043 = vsel %vm2929, %v2566, %v3042
  %3044 = vst [vmem:[#allocation2 + $0xc0] sm:$0xf] %v3043
  %3045 = vst [vmem:[#allocation2 + $0xc4] sm:$0xf] %v2575
  %v3046 = vld [vmem:[#allocation2 + $0xc8] sm:$0x1]
  %v3047 = vsel %vm1931, %v2576, %v3046
  %3048 = vst [vmem:[#allocation2 + $0xc8] sm:$0x1] %v3047
  %v3049 = vld [vmem:[#allocation2 + $0xcc] sm:$0xf]
  %v3050 = vsel %vm2929, %v2583, %v3049
  %3051 = vst [vmem:[#allocation2 + $0xcc] sm:$0xf] %v3050
  %3052 = vst [vmem:[#allocation2 + $0xd0] sm:$0xf] %v2592
  %v3053 = vld [vmem:[#allocation2 + $0xd4] sm:$0x1]
  %v3054 = vsel %vm1931, %v2593, %v3053
  %3055 = vst [vmem:[#allocation2 + $0xd4] sm:$0x1] %v3054
  %v3056 = vld [vmem:[#allocation2 + $0xd8] sm:$0xf]
  %v3057 = vsel %vm2929, %v2600, %v3056
  %3058 = vst [vmem:[#allocation2 + $0xd8] sm:$0xf] %v3057
  %3059 = vst [vmem:[#allocation2 + $0xdc] sm:$0xf] %v2609
  %v3060 = vld [vmem:[#allocation2 + $0xe0] sm:$0x1]
  %v3061 = vsel %vm1931, %v2610, %v3060
  %3062 = vst [vmem:[#allocation2 + $0xe0] sm:$0x1] %v3061
  %v3063 = vld [vmem:[#allocation2 + $0xe4] sm:$0xf]
  %v3064 = vsel %vm2929, %v2617, %v3063
  %3065 = vst [vmem:[#allocation2 + $0xe4] sm:$0xf] %v3064
  %3066 = vst [vmem:[#allocation2 + $0xe8] sm:$0xf] %v2626
  %v3067 = vld [vmem:[#allocation2 + $0xec] sm:$0x1]
  %v3068 = vsel %vm1931, %v2627, %v3067
  %3069 = vst [vmem:[#allocation2 + $0xec] sm:$0x1] %v3068
  %v3070 = vld [vmem:[#allocation2 + $0xf0] sm:$0xf]
  %v3071 = vsel %vm2929, %v2634, %v3070
  %3072 = vst [vmem:[#allocation2 + $0xf0] sm:$0xf] %v3071
  %3073 = vst [vmem:[#allocation2 + $0xf4] sm:$0xf] %v2643
  %v3074 = vld [vmem:[#allocation2 + $0xf8] sm:$0x1]
  %v3075 = vsel %vm1931, %v2644, %v3074
  %3076 = vst [vmem:[#allocation2 + $0xf8] sm:$0x1] %v3075
  %v3077 = vld [vmem:[#allocation2 + $0xfc] sm:$0xf]
  %v3078 = vsel %vm2929, %v2651, %v3077
  %3079 = vst [vmem:[#allocation2 + $0xfc] sm:$0xf] %v3078
  %3080 = vst [vmem:[#allocation2 + $0x100] sm:$0xf] %v2660
  %v3081 = vld [vmem:[#allocation2 + $0x104] sm:$0x1]
  %v3082 = vsel %vm1931, %v2661, %v3081
  %3083 = vst [vmem:[#allocation2 + $0x104] sm:$0x1] %v3082
  %v3084 = vld [vmem:[#allocation2 + $0x108] sm:$0xf]
  %v3085 = vsel %vm2929, %v2668, %v3084
  %3086 = vst [vmem:[#allocation2 + $0x108] sm:$0xf] %v3085
  %3087 = vst [vmem:[#allocation2 + $0x10c] sm:$0xf] %v2677
  %v3088 = vld [vmem:[#allocation2 + $0x110] sm:$0x1]
  %v3089 = vsel %vm1931, %v2678, %v3088
  %3090 = vst [vmem:[#allocation2 + $0x110] sm:$0x1] %v3089
  %v3091 = vld [vmem:[#allocation2 + $0x114] sm:$0xf]
  %v3092 = vsel %vm2929, %v2685, %v3091
  %3093 = vst [vmem:[#allocation2 + $0x114] sm:$0xf] %v3092
  %3094 = vst [vmem:[#allocation2 + $0x118] sm:$0xf] %v2694
  %v3095 = vld [vmem:[#allocation2 + $0x11c] sm:$0x1]
  %v3096 = vsel %vm1931, %v2695, %v3095
  %3097 = vst [vmem:[#allocation2 + $0x11c] sm:$0x1] %v3096
  %v3098 = vld [vmem:[#allocation2 + $0x120] sm:$0xf]
  %v3099 = vsel %vm2929, %v2702, %v3098
  %3100 = vst [vmem:[#allocation2 + $0x120] sm:$0xf] %v3099
  %3101 = vst [vmem:[#allocation2 + $0x124] sm:$0xf] %v2711
  %v3102 = vld [vmem:[#allocation2 + $0x128] sm:$0x1]
  %v3103 = vsel %vm1931, %v2712, %v3102
  %3104 = vst [vmem:[#allocation2 + $0x128] sm:$0x1] %v3103
  %v3105 = vld [vmem:[#allocation2 + $0x12c] sm:$0xf]
  %v3106 = vsel %vm2929, %v2719, %v3105
  %3107 = vst [vmem:[#allocation2 + $0x12c] sm:$0xf] %v3106
  %3108 = vst [vmem:[#allocation2 + $0x130] sm:$0xf] %v2728
  %v3109 = vld [vmem:[#allocation2 + $0x134] sm:$0x1]
  %v3110 = vsel %vm1931, %v2729, %v3109
  %3111 = vst [vmem:[#allocation2 + $0x134] sm:$0x1] %v3110
  %v3112 = vld [vmem:[#allocation2 + $0x138] sm:$0xf]
  %v3113 = vsel %vm2929, %v2736, %v3112
  %3114 = vst [vmem:[#allocation2 + $0x138] sm:$0xf] %v3113
  %3115 = vst [vmem:[#allocation2 + $0x13c] sm:$0xf] %v2745
  %v3116 = vld [vmem:[#allocation2 + $0x140] sm:$0x1]
  %v3117 = vsel %vm1931, %v2746, %v3116
  %3118 = vst [vmem:[#allocation2 + $0x140] sm:$0x1] %v3117
  %v3119 = vld [vmem:[#allocation2 + $0x144] sm:$0xf]
  %v3120 = vsel %vm2929, %v2753, %v3119
  %3121 = vst [vmem:[#allocation2 + $0x144] sm:$0xf] %v3120
  %3122 = vst [vmem:[#allocation2 + $0x148] sm:$0xf] %v2762
  %v3123 = vld [vmem:[#allocation2 + $0x14c] sm:$0x1]
  %v3124 = vsel %vm1931, %v2763, %v3123
  %3125 = vst [vmem:[#allocation2 + $0x14c] sm:$0x1] %v3124
  %v3126 = vld [vmem:[#allocation2 + $0x150] sm:$0xf]
  %v3127 = vsel %vm2929, %v2770, %v3126
  %3128 = vst [vmem:[#allocation2 + $0x150] sm:$0xf] %v3127
  %3129 = vst [vmem:[#allocation2 + $0x154] sm:$0xf] %v2779
  %v3130 = vld [vmem:[#allocation2 + $0x158] sm:$0x1]
  %v3131 = vsel %vm1931, %v2780, %v3130
  %3132 = vst [vmem:[#allocation2 + $0x158] sm:$0x1] %v3131
  %v3133 = vld [vmem:[#allocation2 + $0x15c] sm:$0xf]
  %v3134 = vsel %vm2929, %v2787, %v3133
  %3135 = vst [vmem:[#allocation2 + $0x15c] sm:$0xf] %v3134
  %3136 = vst [vmem:[#allocation2 + $0x160] sm:$0xf] %v2796
  %v3137 = vld [vmem:[#allocation2 + $0x164] sm:$0x1]
  %v3138 = vsel %vm1931, %v2797, %v3137
  %3139 = vst [vmem:[#allocation2 + $0x164] sm:$0x1] %v3138
  %v3140 = vld [vmem:[#allocation2 + $0x168] sm:$0xf]
  %v3141 = vsel %vm2929, %v2804, %v3140
  %3142 = vst [vmem:[#allocation2 + $0x168] sm:$0xf] %v3141
  %3143 = vst [vmem:[#allocation2 + $0x16c] sm:$0xf] %v2813
  %v3144 = vld [vmem:[#allocation2 + $0x170] sm:$0x1]
  %v3145 = vsel %vm1931, %v2814, %v3144
  %3146 = vst [vmem:[#allocation2 + $0x170] sm:$0x1] %v3145
  %v3147 = vld [vmem:[#allocation2 + $0x174] sm:$0xf]
  %v3148 = vsel %vm2929, %v2821, %v3147
  %3149 = vst [vmem:[#allocation2 + $0x174] sm:$0xf] %v3148
  %3150 = vst [vmem:[#allocation2 + $0x178] sm:$0xf] %v2830
  %v3151 = vld [vmem:[#allocation2 + $0x17c] sm:$0x1]
  %v3152 = vsel %vm1931, %v2831, %v3151
  %3153 = vst [vmem:[#allocation2 + $0x17c] sm:$0x1] %v3152
  %v3154 = vld [vmem:[#allocation2] sm:$0xf]
  %v3155 = vld [vmem:[#allocation2 + $0x4] sm:$0xf]
  %v3156 = vld [vmem:[#allocation2 + $0x8] sm:$0x1]
  %v3157 = vld [vmem:[#allocation2 + $0xc] sm:$0xf]
  %v3158 = vld [vmem:[#allocation2 + $0x10] sm:$0xf]
  %v3159 = vld [vmem:[#allocation2 + $0x14] sm:$0x1]
  %v3160 = vld [vmem:[#allocation2 + $0x18] sm:$0xf]
  %v3161 = vld [vmem:[#allocation2 + $0x1c] sm:$0xf]
  %v3162 = vld [vmem:[#allocation2 + $0x20] sm:$0x1]
  %v3163 = vld [vmem:[#allocation2 + $0x24] sm:$0xf]
  %v3164 = vld [vmem:[#allocation2 + $0x28] sm:$0xf]
  %v3165 = vld [vmem:[#allocation2 + $0x2c] sm:$0x1]
  %v3166 = vld [vmem:[#allocation2 + $0x30] sm:$0xf]
  %v3167 = vld [vmem:[#allocation2 + $0x34] sm:$0xf]
  %v3168 = vld [vmem:[#allocation2 + $0x38] sm:$0x1]
  %v3169 = vld [vmem:[#allocation2 + $0x3c] sm:$0xf]
  %v3170 = vld [vmem:[#allocation2 + $0x40] sm:$0xf]
  %v3171 = vld [vmem:[#allocation2 + $0x44] sm:$0x1]
  %v3172 = vld [vmem:[#allocation2 + $0x48] sm:$0xf]
  %v3173 = vld [vmem:[#allocation2 + $0x4c] sm:$0xf]
  %v3174 = vld [vmem:[#allocation2 + $0x50] sm:$0x1]
  %v3175 = vld [vmem:[#allocation2 + $0x54] sm:$0xf]
  %v3176 = vld [vmem:[#allocation2 + $0x58] sm:$0xf]
  %v3177 = vld [vmem:[#allocation2 + $0x5c] sm:$0x1]
  %v3178 = vld [vmem:[#allocation2 + $0x60] sm:$0xf]
  %v3179 = vld [vmem:[#allocation2 + $0x64] sm:$0xf]
  %v3180 = vld [vmem:[#allocation2 + $0x68] sm:$0x1]
  %v3181 = vld [vmem:[#allocation2 + $0x6c] sm:$0xf]
  %v3182 = vld [vmem:[#allocation2 + $0x70] sm:$0xf]
  %v3183 = vld [vmem:[#allocation2 + $0x74] sm:$0x1]
  %v3184 = vld [vmem:[#allocation2 + $0x78] sm:$0xf]
  %v3185 = vld [vmem:[#allocation2 + $0x7c] sm:$0xf]
  %v3186 = vld [vmem:[#allocation2 + $0x80] sm:$0x1]
  %v3187 = vld [vmem:[#allocation2 + $0x84] sm:$0xf]
  %v3188 = vld [vmem:[#allocation2 + $0x88] sm:$0xf]
  %v3189 = vld [vmem:[#allocation2 + $0x8c] sm:$0x1]
  %v3190 = vld [vmem:[#allocation2 + $0x90] sm:$0xf]
  %v3191 = vld [vmem:[#allocation2 + $0x94] sm:$0xf]
  %v3192 = vld [vmem:[#allocation2 + $0x98] sm:$0x1]
  %v3193 = vld [vmem:[#allocation2 + $0x9c] sm:$0xf]
  %v3194 = vld [vmem:[#allocation2 + $0xa0] sm:$0xf]
  %v3195 = vld [vmem:[#allocation2 + $0xa4] sm:$0x1]
  %v3196 = vld [vmem:[#allocation2 + $0xa8] sm:$0xf]
  %v3197 = vld [vmem:[#allocation2 + $0xac] sm:$0xf]
  %v3198 = vld [vmem:[#allocation2 + $0xb0] sm:$0x1]
  %v3199 = vld [vmem:[#allocation2 + $0xb4] sm:$0xf]
  %v3200 = vld [vmem:[#allocation2 + $0xb8] sm:$0xf]
  %v3201 = vld [vmem:[#allocation2 + $0xbc] sm:$0x1]
  %v3202 = vld [vmem:[#allocation2 + $0xc0] sm:$0xf]
  %v3203 = vld [vmem:[#allocation2 + $0xc4] sm:$0xf]
  %v3204 = vld [vmem:[#allocation2 + $0xc8] sm:$0x1]
  %v3205 = vld [vmem:[#allocation2 + $0xcc] sm:$0xf]
  %v3206 = vld [vmem:[#allocation2 + $0xd0] sm:$0xf]
  %v3207 = vld [vmem:[#allocation2 + $0xd4] sm:$0x1]
  %v3208 = vld [vmem:[#allocation2 + $0xd8] sm:$0xf]
  %v3209 = vld [vmem:[#allocation2 + $0xdc] sm:$0xf]
  %v3210 = vld [vmem:[#allocation2 + $0xe0] sm:$0x1]
  %v3211 = vld [vmem:[#allocation2 + $0xe4] sm:$0xf]
  %v3212 = vld [vmem:[#allocation2 + $0xe8] sm:$0xf]
  %v3213 = vld [vmem:[#allocation2 + $0xec] sm:$0x1]
  %v3214 = vld [vmem:[#allocation2 + $0xf0] sm:$0xf]
  %v3215 = vld [vmem:[#allocation2 + $0xf4] sm:$0xf]
  %v3216 = vld [vmem:[#allocation2 + $0xf8] sm:$0x1]
  %v3217 = vld [vmem:[#allocation2 + $0xfc] sm:$0xf]
  %v3218 = vld [vmem:[#allocation2 + $0x100] sm:$0xf]
  %v3219 = vld [vmem:[#allocation2 + $0x104] sm:$0x1]
  %v3220 = vld [vmem:[#allocation2 + $0x108] sm:$0xf]
  %v3221 = vld [vmem:[#allocation2 + $0x10c] sm:$0xf]
  %v3222 = vld [vmem:[#allocation2 + $0x110] sm:$0x1]
  %v3223 = vld [vmem:[#allocation2 + $0x114] sm:$0xf]
  %v3224 = vld [vmem:[#allocation2 + $0x118] sm:$0xf]
  %v3225 = vld [vmem:[#allocation2 + $0x11c] sm:$0x1]
  %v3226 = vld [vmem:[#allocation2 + $0x120] sm:$0xf]
  %v3227 = vld [vmem:[#allocation2 + $0x124] sm:$0xf]
  %v3228 = vld [vmem:[#allocation2 + $0x128] sm:$0x1]
  %v3229 = vld [vmem:[#allocation2 + $0x12c] sm:$0xf]
  %v3230 = vld [vmem:[#allocation2 + $0x130] sm:$0xf]
  %v3231 = vld [vmem:[#allocation2 + $0x134] sm:$0x1]
  %v3232 = vld [vmem:[#allocation2 + $0x138] sm:$0xf]
  %v3233 = vld [vmem:[#allocation2 + $0x13c] sm:$0xf]
  %v3234 = vld [vmem:[#allocation2 + $0x140] sm:$0x1]
  %v3235 = vld [vmem:[#allocation2 + $0x144] sm:$0xf]
  %v3236 = vld [vmem:[#allocation2 + $0x148] sm:$0xf]
  %v3237 = vld [vmem:[#allocation2 + $0x14c] sm:$0x1]
  %v3238 = vld [vmem:[#allocation2 + $0x150] sm:$0xf]
  %v3239 = vld [vmem:[#allocation2 + $0x154] sm:$0xf]
  %v3240 = vld [vmem:[#allocation2 + $0x158] sm:$0x1]
  %v3241 = vld [vmem:[#allocation2 + $0x15c] sm:$0xf]
  %v3242 = vld [vmem:[#allocation2 + $0x160] sm:$0xf]
  %v3243 = vld [vmem:[#allocation2 + $0x164] sm:$0x1]
  %v3244 = vld [vmem:[#allocation2 + $0x168] sm:$0xf]
  %v3245 = vld [vmem:[#allocation2 + $0x16c] sm:$0xf]
  %v3246 = vld [vmem:[#allocation2 + $0x170] sm:$0x1]
  %v3247 = vld [vmem:[#allocation2 + $0x174] sm:$0xf]
  %v3248 = vld [vmem:[#allocation2 + $0x178] sm:$0xf]
  %v3249 = vld [vmem:[#allocation2 + $0x17c] sm:$0x1]
  %v3250 = vld [vmem:[%s5] sm:$0xf]
  %v3251 = vld [vmem:[%s5 + $0x4] sm:$0xf]
  %v3252 = vld [vmem:[%s5 + $0x8] sm:$0xf]
  %v3253 = vld [vmem:[%s5 + $0xc] sm:$0xf]
  %v3254 = vld [vmem:[%s5 + $0x10] sm:$0xf]
  %v3255 = vld [vmem:[%s5 + $0x14] sm:$0xf]
  %v3256 = vld [vmem:[%s5 + $0x18] sm:$0xf]
  %v3257 = vld [vmem:[%s5 + $0x1c] sm:$0xf]
  %v3258 = vld [vmem:[%s5 + $0x20] sm:$0xf]
  %v3259 = vld [vmem:[%s5 + $0x24] sm:$0xf]
  %v3260 = vld [vmem:[%s5 + $0x28] sm:$0xf]
  %v3261 = vld [vmem:[%s5 + $0x2c] sm:$0xf]
  %v3262 = vld [vmem:[%s5 + $0x30] sm:$0xf]
  %v3263 = vld [vmem:[%s5 + $0x34] sm:$0xf]
  %v3264 = vld [vmem:[%s5 + $0x38] sm:$0xf]
  %v3265 = vld [vmem:[%s5 + $0x3c] sm:$0xf]
  %vm3266 = vsmask.f32 3328
  %vm3267 = vsmask.f32 7440
  %vm3268 = vmor %vm3266, %vm3267
  %v3270 = vshrl.u32 %v3154, 16
  %v3272 = vrot.slane %v3270, 4
  %v3273 = vshll.u32 %v3154, 16
  %v3275 = vrot.slane %v3273, 5
  %v3276 = vor.u32 %v3272, %v3275
  %v3277 = vrot.slane %v3276, 4
  %v3279 = vshll.u32 %v3155, 16
  %v3281 = vrot.slane %v3279, 5
  %v3282 = vsel %vm3268, %v3277, %v3281
  %v3283 = vshrl.u32 %v3155, 16
  %v3285 = vrot.slane %v3283, 4
  %v3286 = vor.u32 %v3285, %v3281
  %v3287 = vrot.slane %v3286, 4
  %v3289 = vshll.u32 %v3156, 16
  %v3291 = vrot.slane %v3289, 5
  %v3292 = vsel %vm3268, %v3287, %v3291
  %v3294 = vshrl.u32 %v3157, 16
  %v3296 = vrot.slane %v3294, 4
  %v3297 = vshll.u32 %v3157, 16
  %v3299 = vrot.slane %v3297, 5
  %v3300 = vor.u32 %v3296, %v3299
  %v3301 = vrot.slane %v3300, 4
  %v3303 = vshll.u32 %v3158, 16
  %v3305 = vrot.slane %v3303, 5
  %v3306 = vsel %vm3268, %v3301, %v3305
  %v3307 = vshrl.u32 %v3158, 16
  %v3309 = vrot.slane %v3307, 4
  %v3310 = vor.u32 %v3309, %v3305
  %v3311 = vrot.slane %v3310, 4
  %v3313 = vshll.u32 %v3159, 16
  %v3315 = vrot.slane %v3313, 5
  %v3316 = vsel %vm3268, %v3311, %v3315
  %v3318 = vshrl.u32 %v3160, 16
  %v3320 = vrot.slane %v3318, 4
  %v3321 = vshll.u32 %v3160, 16
  %v3323 = vrot.slane %v3321, 5
  %v3324 = vor.u32 %v3320, %v3323
  %v3325 = vrot.slane %v3324, 4
  %v3327 = vshll.u32 %v3161, 16
  %v3329 = vrot.slane %v3327, 5
  %v3330 = vsel %vm3268, %v3325, %v3329
  %v3331 = vshrl.u32 %v3161, 16
  %v3333 = vrot.slane %v3331, 4
  %v3334 = vor.u32 %v3333, %v3329
  %v3335 = vrot.slane %v3334, 4
  %v3337 = vshll.u32 %v3162, 16
  %v3339 = vrot.slane %v3337, 5
  %v3340 = vsel %vm3268, %v3335, %v3339
  %v3342 = vshrl.u32 %v3163, 16
  %v3344 = vrot.slane %v3342, 4
  %v3345 = vshll.u32 %v3163, 16
  %v3347 = vrot.slane %v3345, 5
  %v3348 = vor.u32 %v3344, %v3347
  %v3349 = vrot.slane %v3348, 4
  %v3351 = vshll.u32 %v3164, 16
  %v3353 = vrot.slane %v3351, 5
  %v3354 = vsel %vm3268, %v3349, %v3353
  %v3355 = vshrl.u32 %v3164, 16
  %v3357 = vrot.slane %v3355, 4
  %v3358 = vor.u32 %v3357, %v3353
  %v3359 = vrot.slane %v3358, 4
  %v3361 = vshll.u32 %v3165, 16
  %v3363 = vrot.slane %v3361, 5
  %v3364 = vsel %vm3268, %v3359, %v3363
  %v3366 = vshrl.u32 %v3166, 16
  %v3368 = vrot.slane %v3366, 4
  %v3369 = vshll.u32 %v3166, 16
  %v3371 = vrot.slane %v3369, 5
  %v3372 = vor.u32 %v3368, %v3371
  %v3373 = vrot.slane %v3372, 4
  %v3375 = vshll.u32 %v3167, 16
  %v3377 = vrot.slane %v3375, 5
  %v3378 = vsel %vm3268, %v3373, %v3377
  %v3379 = vshrl.u32 %v3167, 16
  %v3381 = vrot.slane %v3379, 4
  %v3382 = vor.u32 %v3381, %v3377
  %v3383 = vrot.slane %v3382, 4
  %v3385 = vshll.u32 %v3168, 16
  %v3387 = vrot.slane %v3385, 5
  %v3388 = vsel %vm3268, %v3383, %v3387
  %v3390 = vshrl.u32 %v3169, 16
  %v3392 = vrot.slane %v3390, 4
  %v3393 = vshll.u32 %v3169, 16
  %v3395 = vrot.slane %v3393, 5
  %v3396 = vor.u32 %v3392, %v3395
  %v3397 = vrot.slane %v3396, 4
  %v3399 = vshll.u32 %v3170, 16
  %v3401 = vrot.slane %v3399, 5
  %v3402 = vsel %vm3268, %v3397, %v3401
  %v3403 = vshrl.u32 %v3170, 16
  %v3405 = vrot.slane %v3403, 4
  %v3406 = vor.u32 %v3405, %v3401
  %v3407 = vrot.slane %v3406, 4
  %v3409 = vshll.u32 %v3171, 16
  %v3411 = vrot.slane %v3409, 5
  %v3412 = vsel %vm3268, %v3407, %v3411
  %v3414 = vshrl.u32 %v3172, 16
  %v3416 = vrot.slane %v3414, 4
  %v3417 = vshll.u32 %v3172, 16
  %v3419 = vrot.slane %v3417, 5
  %v3420 = vor.u32 %v3416, %v3419
  %v3421 = vrot.slane %v3420, 4
  %v3423 = vshll.u32 %v3173, 16
  %v3425 = vrot.slane %v3423, 5
  %v3426 = vsel %vm3268, %v3421, %v3425
  %v3427 = vshrl.u32 %v3173, 16
  %v3429 = vrot.slane %v3427, 4
  %v3430 = vor.u32 %v3429, %v3425
  %v3431 = vrot.slane %v3430, 4
  %v3433 = vshll.u32 %v3174, 16
  %v3435 = vrot.slane %v3433, 5
  %v3436 = vsel %vm3268, %v3431, %v3435
  %v3438 = vshrl.u32 %v3175, 16
  %v3440 = vrot.slane %v3438, 4
  %v3441 = vshll.u32 %v3175, 16
  %v3443 = vrot.slane %v3441, 5
  %v3444 = vor.u32 %v3440, %v3443
  %v3445 = vrot.slane %v3444, 4
  %v3447 = vshll.u32 %v3176, 16
  %v3449 = vrot.slane %v3447, 5
  %v3450 = vsel %vm3268, %v3445, %v3449
  %v3451 = vshrl.u32 %v3176, 16
  %v3453 = vrot.slane %v3451, 4
  %v3454 = vor.u32 %v3453, %v3449
  %v3455 = vrot.slane %v3454, 4
  %v3457 = vshll.u32 %v3177, 16
  %v3459 = vrot.slane %v3457, 5
  %v3460 = vsel %vm3268, %v3455, %v3459
  %v3462 = vshrl.u32 %v3178, 16
  %v3464 = vrot.slane %v3462, 4
  %v3465 = vshll.u32 %v3178, 16
  %v3467 = vrot.slane %v3465, 5
  %v3468 = vor.u32 %v3464, %v3467
  %v3469 = vrot.slane %v3468, 4
  %v3471 = vshll.u32 %v3179, 16
  %v3473 = vrot.slane %v3471, 5
  %v3474 = vsel %vm3268, %v3469, %v3473
  %v3475 = vshrl.u32 %v3179, 16
  %v3477 = vrot.slane %v3475, 4
  %v3478 = vor.u32 %v3477, %v3473
  %v3479 = vrot.slane %v3478, 4
  %v3481 = vshll.u32 %v3180, 16
  %v3483 = vrot.slane %v3481, 5
  %v3484 = vsel %vm3268, %v3479, %v3483
  %v3486 = vshrl.u32 %v3181, 16
  %v3488 = vrot.slane %v3486, 4
  %v3489 = vshll.u32 %v3181, 16
  %v3491 = vrot.slane %v3489, 5
  %v3492 = vor.u32 %v3488, %v3491
  %v3493 = vrot.slane %v3492, 4
  %v3495 = vshll.u32 %v3182, 16
  %v3497 = vrot.slane %v3495, 5
  %v3498 = vsel %vm3268, %v3493, %v3497
  %v3499 = vshrl.u32 %v3182, 16
  %v3501 = vrot.slane %v3499, 4
  %v3502 = vor.u32 %v3501, %v3497
  %v3503 = vrot.slane %v3502, 4
  %v3505 = vshll.u32 %v3183, 16
  %v3507 = vrot.slane %v3505, 5
  %v3508 = vsel %vm3268, %v3503, %v3507
  %v3510 = vshrl.u32 %v3184, 16
  %v3512 = vrot.slane %v3510, 4
  %v3513 = vshll.u32 %v3184, 16
  %v3515 = vrot.slane %v3513, 5
  %v3516 = vor.u32 %v3512, %v3515
  %v3517 = vrot.slane %v3516, 4
  %v3519 = vshll.u32 %v3185, 16
  %v3521 = vrot.slane %v3519, 5
  %v3522 = vsel %vm3268, %v3517, %v3521
  %v3523 = vshrl.u32 %v3185, 16
  %v3525 = vrot.slane %v3523, 4
  %v3526 = vor.u32 %v3525, %v3521
  %v3527 = vrot.slane %v3526, 4
  %v3529 = vshll.u32 %v3186, 16
  %v3531 = vrot.slane %v3529, 5
  %v3532 = vsel %vm3268, %v3527, %v3531
  %v3534 = vshrl.u32 %v3187, 16
  %v3536 = vrot.slane %v3534, 4
  %v3537 = vshll.u32 %v3187, 16
  %v3539 = vrot.slane %v3537, 5
  %v3540 = vor.u32 %v3536, %v3539
  %v3541 = vrot.slane %v3540, 4
  %v3543 = vshll.u32 %v3188, 16
  %v3545 = vrot.slane %v3543, 5
  %v3546 = vsel %vm3268, %v3541, %v3545
  %v3547 = vshrl.u32 %v3188, 16
  %v3549 = vrot.slane %v3547, 4
  %v3550 = vor.u32 %v3549, %v3545
  %v3551 = vrot.slane %v3550, 4
  %v3553 = vshll.u32 %v3189, 16
  %v3555 = vrot.slane %v3553, 5
  %v3556 = vsel %vm3268, %v3551, %v3555
  %v3558 = vshrl.u32 %v3190, 16
  %v3560 = vrot.slane %v3558, 4
  %v3561 = vshll.u32 %v3190, 16
  %v3563 = vrot.slane %v3561, 5
  %v3564 = vor.u32 %v3560, %v3563
  %v3565 = vrot.slane %v3564, 4
  %v3567 = vshll.u32 %v3191, 16
  %v3569 = vrot.slane %v3567, 5
  %v3570 = vsel %vm3268, %v3565, %v3569
  %v3571 = vshrl.u32 %v3191, 16
  %v3573 = vrot.slane %v3571, 4
  %v3574 = vor.u32 %v3573, %v3569
  %v3575 = vrot.slane %v3574, 4
  %v3577 = vshll.u32 %v3192, 16
  %v3579 = vrot.slane %v3577, 5
  %v3580 = vsel %vm3268, %v3575, %v3579
  %v3582 = vshrl.u32 %v3193, 16
  %v3584 = vrot.slane %v3582, 4
  %v3585 = vshll.u32 %v3193, 16
  %v3587 = vrot.slane %v3585, 5
  %v3588 = vor.u32 %v3584, %v3587
  %v3589 = vrot.slane %v3588, 4
  %v3591 = vshll.u32 %v3194, 16
  %v3593 = vrot.slane %v3591, 5
  %v3594 = vsel %vm3268, %v3589, %v3593
  %v3595 = vshrl.u32 %v3194, 16
  %v3597 = vrot.slane %v3595, 4
  %v3598 = vor.u32 %v3597, %v3593
  %v3599 = vrot.slane %v3598, 4
  %v3601 = vshll.u32 %v3195, 16
  %v3603 = vrot.slane %v3601, 5
  %v3604 = vsel %vm3268, %v3599, %v3603
  %v3606 = vshrl.u32 %v3196, 16
  %v3608 = vrot.slane %v3606, 4
  %v3609 = vshll.u32 %v3196, 16
  %v3611 = vrot.slane %v3609, 5
  %v3612 = vor.u32 %v3608, %v3611
  %v3613 = vrot.slane %v3612, 4
  %v3615 = vshll.u32 %v3197, 16
  %v3617 = vrot.slane %v3615, 5
  %v3618 = vsel %vm3268, %v3613, %v3617
  %v3619 = vshrl.u32 %v3197, 16
  %v3621 = vrot.slane %v3619, 4
  %v3622 = vor.u32 %v3621, %v3617
  %v3623 = vrot.slane %v3622, 4
  %v3625 = vshll.u32 %v3198, 16
  %v3627 = vrot.slane %v3625, 5
  %v3628 = vsel %vm3268, %v3623, %v3627
  %v3630 = vshrl.u32 %v3199, 16
  %v3632 = vrot.slane %v3630, 4
  %v3633 = vshll.u32 %v3199, 16
  %v3635 = vrot.slane %v3633, 5
  %v3636 = vor.u32 %v3632, %v3635
  %v3637 = vrot.slane %v3636, 4
  %v3639 = vshll.u32 %v3200, 16
  %v3641 = vrot.slane %v3639, 5
  %v3642 = vsel %vm3268, %v3637, %v3641
  %v3643 = vshrl.u32 %v3200, 16
  %v3645 = vrot.slane %v3643, 4
  %v3646 = vor.u32 %v3645, %v3641
  %v3647 = vrot.slane %v3646, 4
  %v3649 = vshll.u32 %v3201, 16
  %v3651 = vrot.slane %v3649, 5
  %v3652 = vsel %vm3268, %v3647, %v3651
  %v3654 = vshrl.u32 %v3202, 16
  %v3656 = vrot.slane %v3654, 4
  %v3657 = vshll.u32 %v3202, 16
  %v3659 = vrot.slane %v3657, 5
  %v3660 = vor.u32 %v3656, %v3659
  %v3661 = vrot.slane %v3660, 4
  %v3663 = vshll.u32 %v3203, 16
  %v3665 = vrot.slane %v3663, 5
  %v3666 = vsel %vm3268, %v3661, %v3665
  %v3667 = vshrl.u32 %v3203, 16
  %v3669 = vrot.slane %v3667, 4
  %v3670 = vor.u32 %v3669, %v3665
  %v3671 = vrot.slane %v3670, 4
  %v3673 = vshll.u32 %v3204, 16
  %v3675 = vrot.slane %v3673, 5
  %v3676 = vsel %vm3268, %v3671, %v3675
  %v3678 = vshrl.u32 %v3205, 16
  %v3680 = vrot.slane %v3678, 4
  %v3681 = vshll.u32 %v3205, 16
  %v3683 = vrot.slane %v3681, 5
  %v3684 = vor.u32 %v3680, %v3683
  %v3685 = vrot.slane %v3684, 4
  %v3687 = vshll.u32 %v3206, 16
  %v3689 = vrot.slane %v3687, 5
  %v3690 = vsel %vm3268, %v3685, %v3689
  %v3691 = vshrl.u32 %v3206, 16
  %v3693 = vrot.slane %v3691, 4
  %v3694 = vor.u32 %v3693, %v3689
  %v3695 = vrot.slane %v3694, 4
  %v3697 = vshll.u32 %v3207, 16
  %v3699 = vrot.slane %v3697, 5
  %v3700 = vsel %vm3268, %v3695, %v3699
  %v3702 = vshrl.u32 %v3208, 16
  %v3704 = vrot.slane %v3702, 4
  %v3705 = vshll.u32 %v3208, 16
  %v3707 = vrot.slane %v3705, 5
  %v3708 = vor.u32 %v3704, %v3707
  %v3709 = vrot.slane %v3708, 4
  %v3711 = vshll.u32 %v3209, 16
  %v3713 = vrot.slane %v3711, 5
  %v3714 = vsel %vm3268, %v3709, %v3713
  %v3715 = vshrl.u32 %v3209, 16
  %v3717 = vrot.slane %v3715, 4
  %v3718 = vor.u32 %v3717, %v3713
  %v3719 = vrot.slane %v3718, 4
  %v3721 = vshll.u32 %v3210, 16
  %v3723 = vrot.slane %v3721, 5
  %v3724 = vsel %vm3268, %v3719, %v3723
  %v3726 = vshrl.u32 %v3211, 16
  %v3728 = vrot.slane %v3726, 4
  %v3729 = vshll.u32 %v3211, 16
  %v3731 = vrot.slane %v3729, 5
  %v3732 = vor.u32 %v3728, %v3731
  %v3733 = vrot.slane %v3732, 4
  %v3735 = vshll.u32 %v3212, 16
  %v3737 = vrot.slane %v3735, 5
  %v3738 = vsel %vm3268, %v3733, %v3737
  %v3739 = vshrl.u32 %v3212, 16
  %v3741 = vrot.slane %v3739, 4
  %v3742 = vor.u32 %v3741, %v3737
  %v3743 = vrot.slane %v3742, 4
  %v3745 = vshll.u32 %v3213, 16
  %v3747 = vrot.slane %v3745, 5
  %v3748 = vsel %vm3268, %v3743, %v3747
  %v3750 = vshrl.u32 %v3214, 16
  %v3752 = vrot.slane %v3750, 4
  %v3753 = vshll.u32 %v3214, 16
  %v3755 = vrot.slane %v3753, 5
  %v3756 = vor.u32 %v3752, %v3755
  %v3757 = vrot.slane %v3756, 4
  %v3759 = vshll.u32 %v3215, 16
  %v3761 = vrot.slane %v3759, 5
  %v3762 = vsel %vm3268, %v3757, %v3761
  %v3763 = vshrl.u32 %v3215, 16
  %v3765 = vrot.slane %v3763, 4
  %v3766 = vor.u32 %v3765, %v3761
  %v3767 = vrot.slane %v3766, 4
  %v3769 = vshll.u32 %v3216, 16
  %v3771 = vrot.slane %v3769, 5
  %v3772 = vsel %vm3268, %v3767, %v3771
  %v3774 = vshrl.u32 %v3217, 16
  %v3776 = vrot.slane %v3774, 4
  %v3777 = vshll.u32 %v3217, 16
  %v3779 = vrot.slane %v3777, 5
  %v3780 = vor.u32 %v3776, %v3779
  %v3781 = vrot.slane %v3780, 4
  %v3783 = vshll.u32 %v3218, 16
  %v3785 = vrot.slane %v3783, 5
  %v3786 = vsel %vm3268, %v3781, %v3785
  %v3787 = vshrl.u32 %v3218, 16
  %v3789 = vrot.slane %v3787, 4
  %v3790 = vor.u32 %v3789, %v3785
  %v3791 = vrot.slane %v3790, 4
  %v3793 = vshll.u32 %v3219, 16
  %v3795 = vrot.slane %v3793, 5
  %v3796 = vsel %vm3268, %v3791, %v3795
  %v3798 = vshrl.u32 %v3220, 16
  %v3800 = vrot.slane %v3798, 4
  %v3801 = vshll.u32 %v3220, 16
  %v3803 = vrot.slane %v3801, 5
  %v3804 = vor.u32 %v3800, %v3803
  %v3805 = vrot.slane %v3804, 4
  %v3807 = vshll.u32 %v3221, 16
  %v3809 = vrot.slane %v3807, 5
  %v3810 = vsel %vm3268, %v3805, %v3809
  %v3811 = vshrl.u32 %v3221, 16
  %v3813 = vrot.slane %v3811, 4
  %v3814 = vor.u32 %v3813, %v3809
  %v3815 = vrot.slane %v3814, 4
  %v3817 = vshll.u32 %v3222, 16
  %v3819 = vrot.slane %v3817, 5
  %v3820 = vsel %vm3268, %v3815, %v3819
  %v3822 = vshrl.u32 %v3223, 16
  %v3824 = vrot.slane %v3822, 4
  %v3825 = vshll.u32 %v3223, 16
  %v3827 = vrot.slane %v3825, 5
  %v3828 = vor.u32 %v3824, %v3827
  %v3829 = vrot.slane %v3828, 4
  %v3831 = vshll.u32 %v3224, 16
  %v3833 = vrot.slane %v3831, 5
  %v3834 = vsel %vm3268, %v3829, %v3833
  %v3835 = vshrl.u32 %v3224, 16
  %v3837 = vrot.slane %v3835, 4
  %v3838 = vor.u32 %v3837, %v3833
  %v3839 = vrot.slane %v3838, 4
  %v3841 = vshll.u32 %v3225, 16
  %v3843 = vrot.slane %v3841, 5
  %v3844 = vsel %vm3268, %v3839, %v3843
  %v3846 = vshrl.u32 %v3226, 16
  %v3848 = vrot.slane %v3846, 4
  %v3849 = vshll.u32 %v3226, 16
  %v3851 = vrot.slane %v3849, 5
  %v3852 = vor.u32 %v3848, %v3851
  %v3853 = vrot.slane %v3852, 4
  %v3855 = vshll.u32 %v3227, 16
  %v3857 = vrot.slane %v3855, 5
  %v3858 = vsel %vm3268, %v3853, %v3857
  %v3859 = vshrl.u32 %v3227, 16
  %v3861 = vrot.slane %v3859, 4
  %v3862 = vor.u32 %v3861, %v3857
  %v3863 = vrot.slane %v3862, 4
  %v3865 = vshll.u32 %v3228, 16
  %v3867 = vrot.slane %v3865, 5
  %v3868 = vsel %vm3268, %v3863, %v3867
  %v3870 = vshrl.u32 %v3229, 16
  %v3872 = vrot.slane %v3870, 4
  %v3873 = vshll.u32 %v3229, 16
  %v3875 = vrot.slane %v3873, 5
  %v3876 = vor.u32 %v3872, %v3875
  %v3877 = vrot.slane %v3876, 4
  %v3879 = vshll.u32 %v3230, 16
  %v3881 = vrot.slane %v3879, 5
  %v3882 = vsel %vm3268, %v3877, %v3881
  %v3883 = vshrl.u32 %v3230, 16
  %v3885 = vrot.slane %v3883, 4
  %v3886 = vor.u32 %v3885, %v3881
  %v3887 = vrot.slane %v3886, 4
  %v3889 = vshll.u32 %v3231, 16
  %v3891 = vrot.slane %v3889, 5
  %v3892 = vsel %vm3268, %v3887, %v3891
  %v3894 = vshrl.u32 %v3232, 16
  %v3896 = vrot.slane %v3894, 4
  %v3897 = vshll.u32 %v3232, 16
  %v3899 = vrot.slane %v3897, 5
  %v3900 = vor.u32 %v3896, %v3899
  %v3901 = vrot.slane %v3900, 4
  %v3903 = vshll.u32 %v3233, 16
  %v3905 = vrot.slane %v3903, 5
  %v3906 = vsel %vm3268, %v3901, %v3905
  %v3907 = vshrl.u32 %v3233, 16
  %v3909 = vrot.slane %v3907, 4
  %v3910 = vor.u32 %v3909, %v3905
  %v3911 = vrot.slane %v3910, 4
  %v3913 = vshll.u32 %v3234, 16
  %v3915 = vrot.slane %v3913, 5
  %v3916 = vsel %vm3268, %v3911, %v3915
  %v3918 = vshrl.u32 %v3235, 16
  %v3920 = vrot.slane %v3918, 4
  %v3921 = vshll.u32 %v3235, 16
  %v3923 = vrot.slane %v3921, 5
  %v3924 = vor.u32 %v3920, %v3923
  %v3925 = vrot.slane %v3924, 4
  %v3927 = vshll.u32 %v3236, 16
  %v3929 = vrot.slane %v3927, 5
  %v3930 = vsel %vm3268, %v3925, %v3929
  %v3931 = vshrl.u32 %v3236, 16
  %v3933 = vrot.slane %v3931, 4
  %v3934 = vor.u32 %v3933, %v3929
  %v3935 = vrot.slane %v3934, 4
  %v3937 = vshll.u32 %v3237, 16
  %v3939 = vrot.slane %v3937, 5
  %v3940 = vsel %vm3268, %v3935, %v3939
  %v3942 = vshrl.u32 %v3238, 16
  %v3944 = vrot.slane %v3942, 4
  %v3945 = vshll.u32 %v3238, 16
  %v3947 = vrot.slane %v3945, 5
  %v3948 = vor.u32 %v3944, %v3947
  %v3949 = vrot.slane %v3948, 4
  %v3951 = vshll.u32 %v3239, 16
  %v3953 = vrot.slane %v3951, 5
  %v3954 = vsel %vm3268, %v3949, %v3953
  %v3955 = vshrl.u32 %v3239, 16
  %v3957 = vrot.slane %v3955, 4
  %v3958 = vor.u32 %v3957, %v3953
  %v3959 = vrot.slane %v3958, 4
  %v3961 = vshll.u32 %v3240, 16
  %v3963 = vrot.slane %v3961, 5
  %v3964 = vsel %vm3268, %v3959, %v3963
  %v3966 = vshrl.u32 %v3241, 16
  %v3968 = vrot.slane %v3966, 4
  %v3969 = vshll.u32 %v3241, 16
  %v3971 = vrot.slane %v3969, 5
  %v3972 = vor.u32 %v3968, %v3971
  %v3973 = vrot.slane %v3972, 4
  %v3975 = vshll.u32 %v3242, 16
  %v3977 = vrot.slane %v3975, 5
  %v3978 = vsel %vm3268, %v3973, %v3977
  %v3979 = vshrl.u32 %v3242, 16
  %v3981 = vrot.slane %v3979, 4
  %v3982 = vor.u32 %v3981, %v3977
  %v3983 = vrot.slane %v3982, 4
  %v3985 = vshll.u32 %v3243, 16
  %v3987 = vrot.slane %v3985, 5
  %v3988 = vsel %vm3268, %v3983, %v3987
  %v3990 = vshrl.u32 %v3244, 16
  %v3992 = vrot.slane %v3990, 4
  %v3993 = vshll.u32 %v3244, 16
  %v3995 = vrot.slane %v3993, 5
  %v3996 = vor.u32 %v3992, %v3995
  %v3997 = vrot.slane %v3996, 4
  %v3999 = vshll.u32 %v3245, 16
  %v4001 = vrot.slane %v3999, 5
  %v4002 = vsel %vm3268, %v3997, %v4001
  %v4003 = vshrl.u32 %v3245, 16
  %v4005 = vrot.slane %v4003, 4
  %v4006 = vor.u32 %v4005, %v4001
  %v4007 = vrot.slane %v4006, 4
  %v4009 = vshll.u32 %v3246, 16
  %v4011 = vrot.slane %v4009, 5
  %v4012 = vsel %vm3268, %v4007, %v4011
  %v4014 = vshrl.u32 %v3247, 16
  %v4016 = vrot.slane %v4014, 4
  %v4017 = vshll.u32 %v3247, 16
  %v4019 = vrot.slane %v4017, 5
  %v4020 = vor.u32 %v4016, %v4019
  %v4021 = vrot.slane %v4020, 4
  %v4023 = vshll.u32 %v3248, 16
  %v4025 = vrot.slane %v4023, 5
  %v4026 = vsel %vm3268, %v4021, %v4025
  %v4027 = vshrl.u32 %v3248, 16
  %v4029 = vrot.slane %v4027, 4
  %v4030 = vor.u32 %v4029, %v4025
  %v4031 = vrot.slane %v4030, 4
  %v4033 = vshll.u32 %v3249, 16
  %v4035 = vrot.slane %v4033, 5
  %v4036 = vsel %vm3268, %v4031, %v4035
  %s4037 = scalar_lea.vmem %s5, 64
  %v4038 = vld [vmem:[%s4037] sm:$0xf]
  %v4039 = vld [vmem:[%s4037 + $0x4] sm:$0xf]
  %v4040 = vld [vmem:[%s4037 + $0x8] sm:$0xf]
  %v4041 = vld [vmem:[%s4037 + $0xc] sm:$0xf]
  %v4042 = vld [vmem:[%s4037 + $0x10] sm:$0xf]
  %v4043 = vld [vmem:[%s4037 + $0x14] sm:$0xf]
  %v4044 = vld [vmem:[%s4037 + $0x18] sm:$0xf]
  %v4045 = vld [vmem:[%s4037 + $0x1c] sm:$0xf]
  %v4046 = vld [vmem:[%s4037 + $0x20] sm:$0xf]
  %v4047 = vld [vmem:[%s4037 + $0x24] sm:$0xf]
  %v4048 = vld [vmem:[%s4037 + $0x28] sm:$0xf]
  %v4049 = vld [vmem:[%s4037 + $0x2c] sm:$0xf]
  %v4050 = vld [vmem:[%s4037 + $0x30] sm:$0xf]
  %v4051 = vld [vmem:[%s4037 + $0x34] sm:$0xf]
  %v4052 = vld [vmem:[%s4037 + $0x38] sm:$0xf]
  %v4053 = vld [vmem:[%s4037 + $0x3c] sm:$0xf]
  %v4054 = vunpack.c.l.b16 %v3282
  %v4055 = vunpack.c.l.b16 %v3292
  %v4056 = vunpack.c.l.b16 %v3306
  %v4057 = vunpack.c.l.b16 %v3316
  %v4058 = vunpack.c.l.b16 %v3330
  %v4059 = vunpack.c.l.b16 %v3340
  %v4060 = vunpack.c.l.b16 %v3354
  %v4061 = vunpack.c.l.b16 %v3364
  %v4062 = vunpack.c.l.b16 %v3378
  %v4063 = vunpack.c.l.b16 %v3388
  %v4064 = vunpack.c.l.b16 %v3402
  %v4065 = vunpack.c.l.b16 %v3412
  %v4066 = vunpack.c.l.b16 %v3426
  %v4067 = vunpack.c.l.b16 %v3436
  %v4068 = vunpack.c.l.b16 %v3450
  %v4069 = vunpack.c.l.b16 %v3460
  %v4070 = vunpack.c.l.b16 %v3474
  %v4071 = vunpack.c.l.b16 %v3484
  %v4072 = vunpack.c.l.b16 %v3498
  %v4073 = vunpack.c.l.b16 %v3508
  %v4074 = vunpack.c.l.b16 %v3522
  %v4075 = vunpack.c.l.b16 %v3532
  %v4076 = vunpack.c.l.b16 %v3546
  %v4077 = vunpack.c.l.b16 %v3556
  %v4078 = vunpack.c.l.b16 %v3570
  %v4079 = vunpack.c.l.b16 %v3580
  %v4080 = vunpack.c.l.b16 %v3594
  %v4081 = vunpack.c.l.b16 %v3604
  %v4082 = vunpack.c.l.b16 %v3618
  %v4083 = vunpack.c.l.b16 %v3628
  %v4084 = vunpack.c.l.b16 %v3642
  %v4085 = vunpack.c.l.b16 %v3652
  %v4086 = vunpack.c.l.b16 %v3666
  %v4087 = vunpack.c.l.b16 %v3676
  %v4088 = vunpack.c.l.b16 %v3690
  %v4089 = vunpack.c.l.b16 %v3700
  %v4090 = vunpack.c.l.b16 %v3714
  %v4091 = vunpack.c.l.b16 %v3724
  %v4092 = vunpack.c.l.b16 %v3738
  %v4093 = vunpack.c.l.b16 %v3748
  %v4094 = vunpack.c.l.b16 %v3762
  %v4095 = vunpack.c.l.b16 %v3772
  %v4096 = vunpack.c.l.b16 %v3786
  %v4097 = vunpack.c.l.b16 %v3796
  %v4098 = vunpack.c.l.b16 %v3810
  %v4099 = vunpack.c.l.b16 %v3820
  %v4100 = vunpack.c.l.b16 %v3834
  %v4101 = vunpack.c.l.b16 %v3844
  %v4102 = vunpack.c.l.b16 %v3858
  %v4103 = vunpack.c.l.b16 %v3868
  %v4104 = vunpack.c.l.b16 %v3882
  %v4105 = vunpack.c.l.b16 %v3892
  %v4106 = vunpack.c.l.b16 %v3906
  %v4107 = vunpack.c.l.b16 %v3916
  %v4108 = vunpack.c.l.b16 %v3930
  %v4109 = vunpack.c.l.b16 %v3940
  %v4110 = vunpack.c.l.b16 %v3954
  %v4111 = vunpack.c.l.b16 %v3964
  %v4112 = vunpack.c.l.b16 %v3978
  %v4113 = vunpack.c.l.b16 %v3988
  %v4114 = vunpack.c.l.b16 %v4002
  %v4115 = vunpack.c.l.b16 %v4012
  %v4116 = vunpack.c.l.b16 %v4026
  %v4117 = vunpack.c.l.b16 %v4036
  %v4118 = vpack.c.b16 %v4055, %v4054
  %v4119 = vpack.c.b16 %v4057, %v4056
  %v4120 = vpack.c.b16 %v4059, %v4058
  %v4121 = vpack.c.b16 %v4061, %v4060
  %v4122 = vpack.c.b16 %v4063, %v4062
  %v4123 = vpack.c.b16 %v4065, %v4064
  %v4124 = vpack.c.b16 %v4067, %v4066
  %v4125 = vpack.c.b16 %v4069, %v4068
  %v4126 = vpack.c.b16 %v4071, %v4070
  %v4127 = vpack.c.b16 %v4073, %v4072
  %v4128 = vpack.c.b16 %v4075, %v4074
  %v4129 = vpack.c.b16 %v4077, %v4076
  %v4130 = vpack.c.b16 %v4079, %v4078
  %v4131 = vpack.c.b16 %v4081, %v4080
  %v4132 = vpack.c.b16 %v4083, %v4082
  %v4133 = vpack.c.b16 %v4085, %v4084
  %v4134 = vpack.c.b16 %v4087, %v4086
  %v4135 = vpack.c.b16 %v4089, %v4088
  %v4136 = vpack.c.b16 %v4091, %v4090
  %v4137 = vpack.c.b16 %v4093, %v4092
  %v4138 = vpack.c.b16 %v4095, %v4094
  %v4139 = vpack.c.b16 %v4097, %v4096
  %v4140 = vpack.c.b16 %v4099, %v4098
  %v4141 = vpack.c.b16 %v4101, %v4100
  %v4142 = vpack.c.b16 %v4103, %v4102
  %v4143 = vpack.c.b16 %v4105, %v4104
  %v4144 = vpack.c.b16 %v4107, %v4106
  %v4145 = vpack.c.b16 %v4109, %v4108
  %v4146 = vpack.c.b16 %v4111, %v4110
  %v4147 = vpack.c.b16 %v4113, %v4112
  %v4148 = vpack.c.b16 %v4115, %v4114
  %v4149 = vpack.c.b16 %v4117, %v4116
  %v4198 = vunpack.c.l.b16 %v4038
  %v4199 = vunpack.c.l.b16 %v4039
  %v4200 = vunpack.c.l.b16 %v4040
  %v4201 = vunpack.c.l.b16 %v4041
  %v4202 = vunpack.c.l.b16 %v4042
  %v4203 = vunpack.c.l.b16 %v4043
  %v4204 = vunpack.c.l.b16 %v4044
  %v4205 = vunpack.c.l.b16 %v4045
  %v4206 = vunpack.c.l.b16 %v4046
  %v4207 = vunpack.c.l.b16 %v4047
  %v4208 = vunpack.c.l.b16 %v4048
  %v4209 = vunpack.c.l.b16 %v4049
  %v4210 = vunpack.c.l.b16 %v4050
  %v4211 = vunpack.c.l.b16 %v4051
  %v4212 = vunpack.c.l.b16 %v4052
  %v4213 = vunpack.c.l.b16 %v4053
  %v4214 = vpack.c.b16 %v4199, %v4198
  %v4215 = vpack.c.b16 %v4201, %v4200
  %v4216 = vpack.c.b16 %v4203, %v4202
  %v4217 = vpack.c.b16 %v4205, %v4204
  %v4218 = vpack.c.b16 %v4207, %v4206
  %v4219 = vpack.c.b16 %v4209, %v4208
  %v4220 = vpack.c.b16 %v4211, %v4210
  %v4221 = vpack.c.b16 %v4213, %v4212
  %4230 = vmatprep.subr.bf16.mxu0 0
  %4231 = vmatpush1.bf16.msra.mxu0 %v4214
  %4232 = vmatprep.subr.bf16.mxu0 0
  %4233 = vmatpush1.bf16.msra.mxu0 %v4215
  %4234 = vmatprep.subr.bf16.mxu0 0
  %4235 = vmatpush1.bf16.msra.mxu0 %v4216
  %4236 = vmatprep.subr.bf16.mxu0 0
  %4237 = vmatpush1.bf16.msra.mxu0 %v4217
  %4238 = vmatprep.subr.bf16.mxu0 0
  %4239 = vmatpush1.bf16.msra.mxu0 %v4218
  %4240 = vmatprep.subr.bf16.mxu0 0
  %4241 = vmatpush1.bf16.msra.mxu0 %v4219
  %4242 = vmatprep.subr.bf16.mxu0 0
  %4243 = vmatpush1.bf16.msra.mxu0 %v4220
  %4244 = vmatprep.subr.bf16.mxu0 0
  %4245 = vmatpush1.bf16.msra.mxu0 %v4221
  %4246 = vmatprep.subr.bf16.mxu0 0
  %4247 = vmatpush1.bf16.msra.mxu0 0
  %4248 = vmatprep.subr.bf16.mxu0 0
  %4249 = vmatpush1.bf16.msra.mxu0 0
  %4250 = vmatprep.subr.bf16.mxu0 0
  %4251 = vmatpush1.bf16.msra.mxu0 0
  %4252 = vmatprep.subr.bf16.mxu0 0
  %4253 = vmatpush1.bf16.msra.mxu0 0
  %4254 = vmatprep.subr.bf16.mxu0 0
  %4255 = vmatpush1.bf16.msra.mxu0 0
  %4256 = vmatprep.subr.bf16.mxu0 0
  %4257 = vmatpush1.bf16.msra.mxu0 0
  %4258 = vmatprep.subr.bf16.mxu0 0
  %4259 = vmatpush1.bf16.msra.mxu0 0
  %4260 = vmatprep.subr.bf16.mxu0 0
  %4261 = vmatpush1.bf16.msra.mxu0 0
  %4262 = vmatprep.mubr.bf16.mxu0 0
  %4263 = vmatmul.mubr.bf16.gmra.mrb[0].mxu0 %v4118
  %v4264 = vpop.f32.mrb[0].mxu0
  %v4265 = vadd.f32 0.0, %v4264
  %v4266 = vpop.f32.mrb[0].mxu0
  %v4267 = vpop.f32.mrb[0].mxu0
  %v4268 = vadd.f32 0.0, %v4267
  %v4269 = vpop.f32.mrb[0].mxu0
  %4270 = vmatprep.mubr.bf16.mxu0 0
  %4271 = vmatmul.mubr.bf16.gmra.mrb[0].mxu0 %v4119
  %v4272 = vpop.f32.mrb[0].mxu0
  %v4273 = vadd.f32 0.0, %v4272
  %v4274 = vpop.f32.mrb[0].mxu0
  %v4275 = vpop.f32.mrb[0].mxu0
  %v4276 = vadd.f32 0.0, %v4275
  %v4277 = vpop.f32.mrb[0].mxu0
  %4278 = vmatprep.mubr.bf16.mxu0 0
  %4279 = vmatmul.mubr.bf16.gmra.mrb[0].mxu0 %v4120
  %v4280 = vpop.f32.mrb[0].mxu0
  %v4281 = vadd.f32 0.0, %v4280
  %v4282 = vpop.f32.mrb[0].mxu0
  %v4283 = vpop.f32.mrb[0].mxu0
  %v4284 = vadd.f32 0.0, %v4283
  %v4285 = vpop.f32.mrb[0].mxu0
  %4286 = vmatprep.mubr.bf16.mxu0 0
  %4287 = vmatmul.mubr.bf16.gmra.mrb[0].mxu0 %v4121
  %v4288 = vpop.f32.mrb[0].mxu0
  %v4289 = vadd.f32 0.0, %v4288
  %v4290 = vpop.f32.mrb[0].mxu0
  %v4291 = vpop.f32.mrb[0].mxu0
  %v4292 = vadd.f32 0.0, %v4291
  %v4293 = vpop.f32.mrb[0].mxu0
  %4294 = vmatprep.mubr.bf16.mxu0 0
  %4295 = vmatmul.mubr.bf16.gmra.mrb[0].mxu0 %v4122
  %v4296 = vpop.f32.mrb[0].mxu0
  %v4297 = vadd.f32 0.0, %v4296
  %v4298 = vpop.f32.mrb[0].mxu0
  %v4299 = vpop.f32.mrb[0].mxu0
  %v4300 = vadd.f32 0.0, %v4299
  %v4301 = vpop.f32.mrb[0].mxu0
  %4302 = vmatprep.mubr.bf16.mxu0 0
  %4303 = vmatmul.mubr.bf16.gmra.mrb[0].mxu0 %v4123
  %v4304 = vpop.f32.mrb[0].mxu0
  %v4305 = vadd.f32 0.0, %v4304
  %v4306 = vpop.f32.mrb[0].mxu0
  %v4307 = vpop.f32.mrb[0].mxu0
  %v4308 = vadd.f32 0.0, %v4307
  %v4309 = vpop.f32.mrb[0].mxu0
  %4310 = vmatprep.mubr.bf16.mxu0 0
  %4311 = vmatmul.mubr.bf16.gmra.mrb[0].mxu0 %v4124
  %v4312 = vpop.f32.mrb[0].mxu0
  %v4313 = vadd.f32 0.0, %v4312
  %v4314 = vpop.f32.mrb[0].mxu0
  %v4315 = vpop.f32.mrb[0].mxu0
  %v4316 = vadd.f32 0.0, %v4315
  %v4317 = vpop.f32.mrb[0].mxu0
  %4318 = vmatprep.mubr.bf16.mxu0 0
  %4319 = vmatmul.mubr.bf16.gmra.mrb[0].mxu0 %v4125
  %v4320 = vpop.f32.mrb[0].mxu0
  %v4321 = vadd.f32 0.0, %v4320
  %v4322 = vpop.f32.mrb[0].mxu0
  %v4323 = vpop.f32.mrb[0].mxu0
  %v4324 = vadd.f32 0.0, %v4323
  %v4325 = vpop.f32.mrb[0].mxu0
  %4326 = vmatprep.mubr.bf16.mxu0 0
  %4327 = vmatmul.mubr.bf16.gmra.mrb[0].mxu0 %v4126
  %v4328 = vpop.f32.mrb[0].mxu0
  %v4329 = vadd.f32 0.0, %v4328
  %v4330 = vpop.f32.mrb[0].mxu0
  %v4331 = vpop.f32.mrb[0].mxu0
  %v4332 = vadd.f32 0.0, %v4331
  %v4333 = vpop.f32.mrb[0].mxu0
  %4334 = vmatprep.mubr.bf16.mxu0 0
  %4335 = vmatmul.mubr.bf16.gmra.mrb[0].mxu0 %v4127
  %v4336 = vpop.f32.mrb[0].mxu0
  %v4337 = vadd.f32 0.0, %v4336
  %v4338 = vpop.f32.mrb[0].mxu0
  %v4339 = vpop.f32.mrb[0].mxu0
  %v4340 = vadd.f32 0.0, %v4339
  %v4341 = vpop.f32.mrb[0].mxu0
  %4342 = vmatprep.mubr.bf16.mxu0 0
  %4343 = vmatmul.mubr.bf16.gmra.mrb[0].mxu0 %v4128
  %v4344 = vpop.f32.mrb[0].mxu0
  %v4345 = vadd.f32 0.0, %v4344
  %v4346 = vpop.f32.mrb[0].mxu0
  %v4347 = vpop.f32.mrb[0].mxu0
  %v4348 = vadd.f32 0.0, %v4347
  %v4349 = vpop.f32.mrb[0].mxu0
  %4350 = vmatprep.mubr.bf16.mxu0 0
  %4351 = vmatmul.mubr.bf16.gmra.mrb[0].mxu0 %v4129
  %v4352 = vpop.f32.mrb[0].mxu0
  %v4353 = vadd.f32 0.0, %v4352
  %v4354 = vpop.f32.mrb[0].mxu0
  %v4355 = vpop.f32.mrb[0].mxu0
  %v4356 = vadd.f32 0.0, %v4355
  %v4357 = vpop.f32.mrb[0].mxu0
  %4358 = vmatprep.mubr.bf16.mxu0 0
  %4359 = vmatmul.mubr.bf16.gmra.mrb[0].mxu0 %v4130
  %v4360 = vpop.f32.mrb[0].mxu0
  %v4361 = vadd.f32 0.0, %v4360
  %v4362 = vpop.f32.mrb[0].mxu0
  %v4363 = vpop.f32.mrb[0].mxu0
  %v4364 = vadd.f32 0.0, %v4363
  %v4365 = vpop.f32.mrb[0].mxu0
  %4366 = vmatprep.mubr.bf16.mxu0 0
  %4367 = vmatmul.mubr.bf16.gmra.mrb[0].mxu0 %v4131
  %v4368 = vpop.f32.mrb[0].mxu0
  %v4369 = vadd.f32 0.0, %v4368
  %v4370 = vpop.f32.mrb[0].mxu0
  %v4371 = vpop.f32.mrb[0].mxu0
  %v4372 = vadd.f32 0.0, %v4371
  %v4373 = vpop.f32.mrb[0].mxu0
  %4374 = vmatprep.mubr.bf16.mxu0 0
  %4375 = vmatmul.mubr.bf16.gmra.mrb[0].mxu0 %v4132
  %v4376 = vpop.f32.mrb[0].mxu0
  %v4377 = vadd.f32 0.0, %v4376
  %v4378 = vpop.f32.mrb[0].mxu0
  %v4379 = vpop.f32.mrb[0].mxu0
  %v4380 = vadd.f32 0.0, %v4379
  %v4381 = vpop.f32.mrb[0].mxu0
  %4382 = vmatprep.mubr.bf16.mxu0 0
  %4383 = vmatmul.mubr.bf16.gmra.mrb[0].mxu0 %v4133
  %v4384 = vpop.f32.mrb[0].mxu0
  %v4385 = vadd.f32 0.0, %v4384
  %v4386 = vpop.f32.mrb[0].mxu0
  %v4387 = vpop.f32.mrb[0].mxu0
  %v4388 = vadd.f32 0.0, %v4387
  %v4389 = vpop.f32.mrb[0].mxu0
  %4390 = vmatprep.mubr.bf16.mxu0 0
  %4391 = vmatmul.mubr.bf16.gmra.mrb[0].mxu0 %v4134
  %v4392 = vpop.f32.mrb[0].mxu0
  %v4393 = vadd.f32 0.0, %v4392
  %v4394 = vpop.f32.mrb[0].mxu0
  %v4395 = vpop.f32.mrb[0].mxu0
  %v4396 = vadd.f32 0.0, %v4395
  %v4397 = vpop.f32.mrb[0].mxu0
  %4398 = vmatprep.mubr.bf16.mxu0 0
  %4399 = vmatmul.mubr.bf16.gmra.mrb[0].mxu0 %v4135
  %v4400 = vpop.f32.mrb[0].mxu0
  %v4401 = vadd.f32 0.0, %v4400
  %v4402 = vpop.f32.mrb[0].mxu0
  %v4403 = vpop.f32.mrb[0].mxu0
  %v4404 = vadd.f32 0.0, %v4403
  %v4405 = vpop.f32.mrb[0].mxu0
  %4406 = vmatprep.mubr.bf16.mxu0 0
  %4407 = vmatmul.mubr.bf16.gmra.mrb[0].mxu0 %v4136
  %v4408 = vpop.f32.mrb[0].mxu0
  %v4409 = vadd.f32 0.0, %v4408
  %v4410 = vpop.f32.mrb[0].mxu0
  %v4411 = vpop.f32.mrb[0].mxu0
  %v4412 = vadd.f32 0.0, %v4411
  %v4413 = vpop.f32.mrb[0].mxu0
  %4414 = vmatprep.mubr.bf16.mxu0 0
  %4415 = vmatmul.mubr.bf16.gmra.mrb[0].mxu0 %v4137
  %v4416 = vpop.f32.mrb[0].mxu0
  %v4417 = vadd.f32 0.0, %v4416
  %v4418 = vpop.f32.mrb[0].mxu0
  %v4419 = vpop.f32.mrb[0].mxu0
  %v4420 = vadd.f32 0.0, %v4419
  %v4421 = vpop.f32.mrb[0].mxu0
  %4422 = vmatprep.mubr.bf16.mxu0 0
  %4423 = vmatmul.mubr.bf16.gmra.mrb[0].mxu0 %v4138
  %v4424 = vpop.f32.mrb[0].mxu0
  %v4425 = vadd.f32 0.0, %v4424
  %v4426 = vpop.f32.mrb[0].mxu0
  %v4427 = vpop.f32.mrb[0].mxu0
  %v4428 = vadd.f32 0.0, %v4427
  %v4429 = vpop.f32.mrb[0].mxu0
  %4430 = vmatprep.mubr.bf16.mxu0 0
  %4431 = vmatmul.mubr.bf16.gmra.mrb[0].mxu0 %v4139
  %v4432 = vpop.f32.mrb[0].mxu0
  %v4433 = vadd.f32 0.0, %v4432
  %v4434 = vpop.f32.mrb[0].mxu0
  %v4435 = vpop.f32.mrb[0].mxu0
  %v4436 = vadd.f32 0.0, %v4435
  %v4437 = vpop.f32.mrb[0].mxu0
  %4438 = vmatprep.mubr.bf16.mxu0 0
  %4439 = vmatmul.mubr.bf16.gmra.mrb[0].mxu0 %v4140
  %v4440 = vpop.f32.mrb[0].mxu0
  %v4441 = vadd.f32 0.0, %v4440
  %v4442 = vpop.f32.mrb[0].mxu0
  %v4443 = vpop.f32.mrb[0].mxu0
  %v4444 = vadd.f32 0.0, %v4443
  %v4445 = vpop.f32.mrb[0].mxu0
  %4446 = vmatprep.mubr.bf16.mxu0 0
  %4447 = vmatmul.mubr.bf16.gmra.mrb[0].mxu0 %v4141
  %v4448 = vpop.f32.mrb[0].mxu0
  %v4449 = vadd.f32 0.0, %v4448
  %v4450 = vpop.f32.mrb[0].mxu0
  %v4451 = vpop.f32.mrb[0].mxu0
  %v4452 = vadd.f32 0.0, %v4451
  %v4453 = vpop.f32.mrb[0].mxu0
  %4454 = vmatprep.mubr.bf16.mxu0 0
  %4455 = vmatmul.mubr.bf16.gmra.mrb[0].mxu0 %v4142
  %v4456 = vpop.f32.mrb[0].mxu0
  %v4457 = vadd.f32 0.0, %v4456
  %v4458 = vpop.f32.mrb[0].mxu0
  %v4459 = vpop.f32.mrb[0].mxu0
  %v4460 = vadd.f32 0.0, %v4459
  %v4461 = vpop.f32.mrb[0].mxu0
  %4462 = vmatprep.mubr.bf16.mxu0 0
  %4463 = vmatmul.mubr.bf16.gmra.mrb[0].mxu0 %v4143
  %v4464 = vpop.f32.mrb[0].mxu0
  %v4465 = vadd.f32 0.0, %v4464
  %v4466 = vpop.f32.mrb[0].mxu0
  %v4467 = vpop.f32.mrb[0].mxu0
  %v4468 = vadd.f32 0.0, %v4467
  %v4469 = vpop.f32.mrb[0].mxu0
  %4470 = vmatprep.mubr.bf16.mxu0 0
  %4471 = vmatmul.mubr.bf16.gmra.mrb[0].mxu0 %v4144
  %v4472 = vpop.f32.mrb[0].mxu0
  %v4473 = vadd.f32 0.0, %v4472
  %v4474 = vpop.f32.mrb[0].mxu0
  %v4475 = vpop.f32.mrb[0].mxu0
  %v4476 = vadd.f32 0.0, %v4475
  %v4477 = vpop.f32.mrb[0].mxu0
  %4478 = vmatprep.mubr.bf16.mxu0 0
  %4479 = vmatmul.mubr.bf16.gmra.mrb[0].mxu0 %v4145
  %v4480 = vpop.f32.mrb[0].mxu0
  %v4481 = vadd.f32 0.0, %v4480
  %v4482 = vpop.f32.mrb[0].mxu0
  %v4483 = vpop.f32.mrb[0].mxu0
  %v4484 = vadd.f32 0.0, %v4483
  %v4485 = vpop.f32.mrb[0].mxu0
  %4486 = vmatprep.mubr.bf16.mxu0 0
  %4487 = vmatmul.mubr.bf16.gmra.mrb[0].mxu0 %v4146
  %v4488 = vpop.f32.mrb[0].mxu0
  %v4489 = vadd.f32 0.0, %v4488
  %v4490 = vpop.f32.mrb[0].mxu0
  %v4491 = vpop.f32.mrb[0].mxu0
  %v4492 = vadd.f32 0.0, %v4491
  %v4493 = vpop.f32.mrb[0].mxu0
  %4494 = vmatprep.mubr.bf16.mxu0 0
  %4495 = vmatmul.mubr.bf16.gmra.mrb[0].mxu0 %v4147
  %v4496 = vpop.f32.mrb[0].mxu0
  %v4497 = vadd.f32 0.0, %v4496
  %v4498 = vpop.f32.mrb[0].mxu0
  %v4499 = vpop.f32.mrb[0].mxu0
  %v4500 = vadd.f32 0.0, %v4499
  %v4501 = vpop.f32.mrb[0].mxu0
  %4502 = vmatprep.mubr.bf16.mxu0 0
  %4503 = vmatmul.mubr.bf16.gmra.mrb[0].mxu0 %v4148
  %v4504 = vpop.f32.mrb[0].mxu0
  %v4505 = vadd.f32 0.0, %v4504
  %v4506 = vpop.f32.mrb[0].mxu0
  %v4507 = vpop.f32.mrb[0].mxu0
  %v4508 = vadd.f32 0.0, %v4507
  %v4509 = vpop.f32.mrb[0].mxu0
  %4510 = vmatprep.mubr.bf16.mxu0 0
  %4511 = vmatmul.mubr.bf16.gmra.mrb[0].mxu0 %v4149
  %v4512 = vpop.f32.mrb[0].mxu0
  %v4513 = vadd.f32 0.0, %v4512
  %v4514 = vpop.f32.mrb[0].mxu0
  %v4515 = vpop.f32.mrb[0].mxu0
  %v4516 = vadd.f32 0.0, %v4515
  %v4517 = vpop.f32.mrb[0].mxu0
  %4518 = vdwg.mxu0
  %v4583 = vunpack.c.l.b16 %v3154
  %v4584 = vunpack.c.l.b16 %v3155
  %v4585 = vunpack.c.l.b16 %v3157
  %v4586 = vunpack.c.l.b16 %v3158
  %v4587 = vunpack.c.l.b16 %v3160
  %v4588 = vunpack.c.l.b16 %v3161
  %v4589 = vunpack.c.l.b16 %v3163
  %v4590 = vunpack.c.l.b16 %v3164
  %v4591 = vunpack.c.l.b16 %v3166
  %v4592 = vunpack.c.l.b16 %v3167
  %v4593 = vunpack.c.l.b16 %v3169
  %v4594 = vunpack.c.l.b16 %v3170
  %v4595 = vunpack.c.l.b16 %v3172
  %v4596 = vunpack.c.l.b16 %v3173
  %v4597 = vunpack.c.l.b16 %v3175
  %v4598 = vunpack.c.l.b16 %v3176
  %v4599 = vunpack.c.l.b16 %v3178
  %v4600 = vunpack.c.l.b16 %v3179
  %v4601 = vunpack.c.l.b16 %v3181
  %v4602 = vunpack.c.l.b16 %v3182
  %v4603 = vunpack.c.l.b16 %v3184
  %v4604 = vunpack.c.l.b16 %v3185
  %v4605 = vunpack.c.l.b16 %v3187
  %v4606 = vunpack.c.l.b16 %v3188
  %v4607 = vunpack.c.l.b16 %v3190
  %v4608 = vunpack.c.l.b16 %v3191
  %v4609 = vunpack.c.l.b16 %v3193
  %v4610 = vunpack.c.l.b16 %v3194
  %v4611 = vunpack.c.l.b16 %v3196
  %v4612 = vunpack.c.l.b16 %v3197
  %v4613 = vunpack.c.l.b16 %v3199
  %v4614 = vunpack.c.l.b16 %v3200
  %v4615 = vunpack.c.l.b16 %v3202
  %v4616 = vunpack.c.l.b16 %v3203
  %v4617 = vunpack.c.l.b16 %v3205
  %v4618 = vunpack.c.l.b16 %v3206
  %v4619 = vunpack.c.l.b16 %v3208
  %v4620 = vunpack.c.l.b16 %v3209
  %v4621 = vunpack.c.l.b16 %v3211
  %v4622 = vunpack.c.l.b16 %v3212
  %v4623 = vunpack.c.l.b16 %v3214
  %v4624 = vunpack.c.l.b16 %v3215
  %v4625 = vunpack.c.l.b16 %v3217
  %v4626 = vunpack.c.l.b16 %v3218
  %v4627 = vunpack.c.l.b16 %v3220
  %v4628 = vunpack.c.l.b16 %v3221
  %v4629 = vunpack.c.l.b16 %v3223
  %v4630 = vunpack.c.l.b16 %v3224
  %v4631 = vunpack.c.l.b16 %v3226
  %v4632 = vunpack.c.l.b16 %v3227
  %v4633 = vunpack.c.l.b16 %v3229
  %v4634 = vunpack.c.l.b16 %v3230
  %v4635 = vunpack.c.l.b16 %v3232
  %v4636 = vunpack.c.l.b16 %v3233
  %v4637 = vunpack.c.l.b16 %v3235
  %v4638 = vunpack.c.l.b16 %v3236
  %v4639 = vunpack.c.l.b16 %v3238
  %v4640 = vunpack.c.l.b16 %v3239
  %v4641 = vunpack.c.l.b16 %v3241
  %v4642 = vunpack.c.l.b16 %v3242
  %v4643 = vunpack.c.l.b16 %v3244
  %v4644 = vunpack.c.l.b16 %v3245
  %v4645 = vunpack.c.l.b16 %v3247
  %v4646 = vunpack.c.l.b16 %v3248
  %v4647 = vpack.c.b16 %v4584, %v4583
  %v4648 = vpack.c.b16 %v4586, %v4585
  %v4649 = vpack.c.b16 %v4588, %v4587
  %v4650 = vpack.c.b16 %v4590, %v4589
  %v4651 = vpack.c.b16 %v4592, %v4591
  %v4652 = vpack.c.b16 %v4594, %v4593
  %v4653 = vpack.c.b16 %v4596, %v4595
  %v4654 = vpack.c.b16 %v4598, %v4597
  %v4655 = vpack.c.b16 %v4600, %v4599
  %v4656 = vpack.c.b16 %v4602, %v4601
  %v4657 = vpack.c.b16 %v4604, %v4603
  %v4658 = vpack.c.b16 %v4606, %v4605
  %v4659 = vpack.c.b16 %v4608, %v4607
  %v4660 = vpack.c.b16 %v4610, %v4609
  %v4661 = vpack.c.b16 %v4612, %v4611
  %v4662 = vpack.c.b16 %v4614, %v4613
  %v4663 = vpack.c.b16 %v4616, %v4615
  %v4664 = vpack.c.b16 %v4618, %v4617
  %v4665 = vpack.c.b16 %v4620, %v4619
  %v4666 = vpack.c.b16 %v4622, %v4621
  %v4667 = vpack.c.b16 %v4624, %v4623
  %v4668 = vpack.c.b16 %v4626, %v4625
  %v4669 = vpack.c.b16 %v4628, %v4627
  %v4670 = vpack.c.b16 %v4630, %v4629
  %v4671 = vpack.c.b16 %v4632, %v4631
  %v4672 = vpack.c.b16 %v4634, %v4633
  %v4673 = vpack.c.b16 %v4636, %v4635
  %v4674 = vpack.c.b16 %v4638, %v4637
  %v4675 = vpack.c.b16 %v4640, %v4639
  %v4676 = vpack.c.b16 %v4642, %v4641
  %v4677 = vpack.c.b16 %v4644, %v4643
  %v4678 = vpack.c.b16 %v4646, %v4645
  %v4727 = vunpack.c.l.b16 %v3250
  %v4728 = vunpack.c.l.b16 %v3251
  %v4729 = vunpack.c.l.b16 %v3252
  %v4730 = vunpack.c.l.b16 %v3253
  %v4731 = vunpack.c.l.b16 %v3254
  %v4732 = vunpack.c.l.b16 %v3255
  %v4733 = vunpack.c.l.b16 %v3256
  %v4734 = vunpack.c.l.b16 %v3257
  %v4735 = vunpack.c.l.b16 %v3258
  %v4736 = vunpack.c.l.b16 %v3259
  %v4737 = vunpack.c.l.b16 %v3260
  %v4738 = vunpack.c.l.b16 %v3261
  %v4739 = vunpack.c.l.b16 %v3262
  %v4740 = vunpack.c.l.b16 %v3263
  %v4741 = vunpack.c.l.b16 %v3264
  %v4742 = vunpack.c.l.b16 %v3265
  %v4743 = vpack.c.b16 %v4728, %v4727
  %v4744 = vpack.c.b16 %v4730, %v4729
  %v4745 = vpack.c.b16 %v4732, %v4731
  %v4746 = vpack.c.b16 %v4734, %v4733
  %v4747 = vpack.c.b16 %v4736, %v4735
  %v4748 = vpack.c.b16 %v4738, %v4737
  %v4749 = vpack.c.b16 %v4740, %v4739
  %v4750 = vpack.c.b16 %v4742, %v4741
  %4759 = vmatprep.subr.bf16.mxu0 0
  %4760 = vmatpush1.bf16.msra.mxu0 %v4743
  %4761 = vmatprep.subr.bf16.mxu0 0
  %4762 = vmatpush1.bf16.msra.mxu0 %v4744
  %4763 = vmatprep.subr.bf16.mxu0 0
  %4764 = vmatpush1.bf16.msra.mxu0 %v4745
  %4765 = vmatprep.subr.bf16.mxu0 0
  %4766 = vmatpush1.bf16.msra.mxu0 %v4746
  %4767 = vmatprep.subr.bf16.mxu0 0
  %4768 = vmatpush1.bf16.msra.mxu0 %v4747
  %4769 = vmatprep.subr.bf16.mxu0 0
  %4770 = vmatpush1.bf16.msra.mxu0 %v4748
  %4771 = vmatprep.subr.bf16.mxu0 0
  %4772 = vmatpush1.bf16.msra.mxu0 %v4749
  %4773 = vmatprep.subr.bf16.mxu0 0
  %4774 = vmatpush1.bf16.msra.mxu0 %v4750
  %4775 = vmatprep.subr.bf16.mxu0 0
  %4776 = vmatpush1.bf16.msra.mxu0 0
  %4777 = vmatprep.subr.bf16.mxu0 0
  %4778 = vmatpush1.bf16.msra.mxu0 0
  %4779 = vmatprep.subr.bf16.mxu0 0
  %4780 = vmatpush1.bf16.msra.mxu0 0
  %4781 = vmatprep.subr.bf16.mxu0 0
  %4782 = vmatpush1.bf16.msra.mxu0 0
  %4783 = vmatprep.subr.bf16.mxu0 0
  %4784 = vmatpush1.bf16.msra.mxu0 0
  %4785 = vmatprep.subr.bf16.mxu0 0
  %4786 = vmatpush1.bf16.msra.mxu0 0
  %4787 = vmatprep.subr.bf16.mxu0 0
  %4788 = vmatpush1.bf16.msra.mxu0 0
  %4789 = vmatprep.subr.bf16.mxu0 0
  %4790 = vmatpush1.bf16.msra.mxu0 0
  %4791 = vmatprep.mubr.bf16.mxu0 0
  %4792 = vmatmul.mubr.bf16.gmra.mrb[0].mxu0 %v4647
  %v4793 = vpop.f32.mrb[0].mxu0
  %v4794 = vadd.f32 %v4265, %v4793
  %v4795 = vpop.f32.mrb[0].mxu0
  %v4796 = vpop.f32.mrb[0].mxu0
  %v4797 = vadd.f32 %v4268, %v4796
  %v4798 = vpop.f32.mrb[0].mxu0
  %4799 = vmatprep.mubr.bf16.mxu0 0
  %4800 = vmatmul.mubr.bf16.gmra.mrb[0].mxu0 %v4648
  %v4801 = vpop.f32.mrb[0].mxu0
  %v4802 = vadd.f32 %v4273, %v4801
  %v4803 = vpop.f32.mrb[0].mxu0
  %v4804 = vpop.f32.mrb[0].mxu0
  %v4805 = vadd.f32 %v4276, %v4804
  %v4806 = vpop.f32.mrb[0].mxu0
  %4807 = vmatprep.mubr.bf16.mxu0 0
  %4808 = vmatmul.mubr.bf16.gmra.mrb[0].mxu0 %v4649
  %v4809 = vpop.f32.mrb[0].mxu0
  %v4810 = vadd.f32 %v4281, %v4809
  %v4811 = vpop.f32.mrb[0].mxu0
  %v4812 = vpop.f32.mrb[0].mxu0
  %v4813 = vadd.f32 %v4284, %v4812
  %v4814 = vpop.f32.mrb[0].mxu0
  %4815 = vmatprep.mubr.bf16.mxu0 0
  %4816 = vmatmul.mubr.bf16.gmra.mrb[0].mxu0 %v4650
  %v4817 = vpop.f32.mrb[0].mxu0
  %v4818 = vadd.f32 %v4289, %v4817
  %v4819 = vpop.f32.mrb[0].mxu0
  %v4820 = vpop.f32.mrb[0].mxu0
  %v4821 = vadd.f32 %v4292, %v4820
  %v4822 = vpop.f32.mrb[0].mxu0
  %4823 = vmatprep.mubr.bf16.mxu0 0
  %4824 = vmatmul.mubr.bf16.gmra.mrb[0].mxu0 %v4651
  %v4825 = vpop.f32.mrb[0].mxu0
  %v4826 = vadd.f32 %v4297, %v4825
  %v4827 = vpop.f32.mrb[0].mxu0
  %v4828 = vpop.f32.mrb[0].mxu0
  %v4829 = vadd.f32 %v4300, %v4828
  %v4830 = vpop.f32.mrb[0].mxu0
  %4831 = vmatprep.mubr.bf16.mxu0 0
  %4832 = vmatmul.mubr.bf16.gmra.mrb[0].mxu0 %v4652
  %v4833 = vpop.f32.mrb[0].mxu0
  %v4834 = vadd.f32 %v4305, %v4833
  %v4835 = vpop.f32.mrb[0].mxu0
  %v4836 = vpop.f32.mrb[0].mxu0
  %v4837 = vadd.f32 %v4308, %v4836
  %v4838 = vpop.f32.mrb[0].mxu0
  %4839 = vmatprep.mubr.bf16.mxu0 0
  %4840 = vmatmul.mubr.bf16.gmra.mrb[0].mxu0 %v4653
  %v4841 = vpop.f32.mrb[0].mxu0
  %v4842 = vadd.f32 %v4313, %v4841
  %v4843 = vpop.f32.mrb[0].mxu0
  %v4844 = vpop.f32.mrb[0].mxu0
  %v4845 = vadd.f32 %v4316, %v4844
  %v4846 = vpop.f32.mrb[0].mxu0
  %4847 = vmatprep.mubr.bf16.mxu0 0
  %4848 = vmatmul.mubr.bf16.gmra.mrb[0].mxu0 %v4654
  %v4849 = vpop.f32.mrb[0].mxu0
  %v4850 = vadd.f32 %v4321, %v4849
  %v4851 = vpop.f32.mrb[0].mxu0
  %v4852 = vpop.f32.mrb[0].mxu0
  %v4853 = vadd.f32 %v4324, %v4852
  %v4854 = vpop.f32.mrb[0].mxu0
  %4855 = vmatprep.mubr.bf16.mxu0 0
  %4856 = vmatmul.mubr.bf16.gmra.mrb[0].mxu0 %v4655
  %v4857 = vpop.f32.mrb[0].mxu0
  %v4858 = vadd.f32 %v4329, %v4857
  %v4859 = vpop.f32.mrb[0].mxu0
  %v4860 = vpop.f32.mrb[0].mxu0
  %v4861 = vadd.f32 %v4332, %v4860
  %v4862 = vpop.f32.mrb[0].mxu0
  %4863 = vmatprep.mubr.bf16.mxu0 0
  %4864 = vmatmul.mubr.bf16.gmra.mrb[0].mxu0 %v4656
  %v4865 = vpop.f32.mrb[0].mxu0
  %v4866 = vadd.f32 %v4337, %v4865
  %v4867 = vpop.f32.mrb[0].mxu0
  %v4868 = vpop.f32.mrb[0].mxu0
  %v4869 = vadd.f32 %v4340, %v4868
  %v4870 = vpop.f32.mrb[0].mxu0
  %4871 = vmatprep.mubr.bf16.mxu0 0
  %4872 = vmatmul.mubr.bf16.gmra.mrb[0].mxu0 %v4657
  %v4873 = vpop.f32.mrb[0].mxu0
  %v4874 = vadd.f32 %v4345, %v4873
  %v4875 = vpop.f32.mrb[0].mxu0
  %v4876 = vpop.f32.mrb[0].mxu0
  %v4877 = vadd.f32 %v4348, %v4876
  %v4878 = vpop.f32.mrb[0].mxu0
  %4879 = vmatprep.mubr.bf16.mxu0 0
  %4880 = vmatmul.mubr.bf16.gmra.mrb[0].mxu0 %v4658
  %v4881 = vpop.f32.mrb[0].mxu0
  %v4882 = vadd.f32 %v4353, %v4881
  %v4883 = vpop.f32.mrb[0].mxu0
  %v4884 = vpop.f32.mrb[0].mxu0
  %v4885 = vadd.f32 %v4356, %v4884
  %v4886 = vpop.f32.mrb[0].mxu0
  %4887 = vmatprep.mubr.bf16.mxu0 0
  %4888 = vmatmul.mubr.bf16.gmra.mrb[0].mxu0 %v4659
  %v4889 = vpop.f32.mrb[0].mxu0
  %v4890 = vadd.f32 %v4361, %v4889
  %v4891 = vpop.f32.mrb[0].mxu0
  %v4892 = vpop.f32.mrb[0].mxu0
  %v4893 = vadd.f32 %v4364, %v4892
  %v4894 = vpop.f32.mrb[0].mxu0
  %4895 = vmatprep.mubr.bf16.mxu0 0
  %4896 = vmatmul.mubr.bf16.gmra.mrb[0].mxu0 %v4660
  %v4897 = vpop.f32.mrb[0].mxu0
  %v4898 = vadd.f32 %v4369, %v4897
  %v4899 = vpop.f32.mrb[0].mxu0
  %v4900 = vpop.f32.mrb[0].mxu0
  %v4901 = vadd.f32 %v4372, %v4900
  %v4902 = vpop.f32.mrb[0].mxu0
  %4903 = vmatprep.mubr.bf16.mxu0 0
  %4904 = vmatmul.mubr.bf16.gmra.mrb[0].mxu0 %v4661
  %v4905 = vpop.f32.mrb[0].mxu0
  %v4906 = vadd.f32 %v4377, %v4905
  %v4907 = vpop.f32.mrb[0].mxu0
  %v4908 = vpop.f32.mrb[0].mxu0
  %v4909 = vadd.f32 %v4380, %v4908
  %v4910 = vpop.f32.mrb[0].mxu0
  %4911 = vmatprep.mubr.bf16.mxu0 0
  %4912 = vmatmul.mubr.bf16.gmra.mrb[0].mxu0 %v4662
  %v4913 = vpop.f32.mrb[0].mxu0
  %v4914 = vadd.f32 %v4385, %v4913
  %v4915 = vpop.f32.mrb[0].mxu0
  %v4916 = vpop.f32.mrb[0].mxu0
  %v4917 = vadd.f32 %v4388, %v4916
  %v4918 = vpop.f32.mrb[0].mxu0
  %4919 = vmatprep.mubr.bf16.mxu0 0
  %4920 = vmatmul.mubr.bf16.gmra.mrb[0].mxu0 %v4663
  %v4921 = vpop.f32.mrb[0].mxu0
  %v4922 = vadd.f32 %v4393, %v4921
  %v4923 = vpop.f32.mrb[0].mxu0
  %v4924 = vpop.f32.mrb[0].mxu0
  %v4925 = vadd.f32 %v4396, %v4924
  %v4926 = vpop.f32.mrb[0].mxu0
  %4927 = vmatprep.mubr.bf16.mxu0 0
  %4928 = vmatmul.mubr.bf16.gmra.mrb[0].mxu0 %v4664
  %v4929 = vpop.f32.mrb[0].mxu0
  %v4930 = vadd.f32 %v4401, %v4929
  %v4931 = vpop.f32.mrb[0].mxu0
  %v4932 = vpop.f32.mrb[0].mxu0
  %v4933 = vadd.f32 %v4404, %v4932
  %v4934 = vpop.f32.mrb[0].mxu0
  %4935 = vmatprep.mubr.bf16.mxu0 0
  %4936 = vmatmul.mubr.bf16.gmra.mrb[0].mxu0 %v4665
  %v4937 = vpop.f32.mrb[0].mxu0
  %v4938 = vadd.f32 %v4409, %v4937
  %v4939 = vpop.f32.mrb[0].mxu0
  %v4940 = vpop.f32.mrb[0].mxu0
  %v4941 = vadd.f32 %v4412, %v4940
  %v4942 = vpop.f32.mrb[0].mxu0
  %4943 = vmatprep.mubr.bf16.mxu0 0
  %4944 = vmatmul.mubr.bf16.gmra.mrb[0].mxu0 %v4666
  %v4945 = vpop.f32.mrb[0].mxu0
  %v4946 = vadd.f32 %v4417, %v4945
  %v4947 = vpop.f32.mrb[0].mxu0
  %v4948 = vpop.f32.mrb[0].mxu0
  %v4949 = vadd.f32 %v4420, %v4948
  %v4950 = vpop.f32.mrb[0].mxu0
  %4951 = vmatprep.mubr.bf16.mxu0 0
  %4952 = vmatmul.mubr.bf16.gmra.mrb[0].mxu0 %v4667
  %v4953 = vpop.f32.mrb[0].mxu0
  %v4954 = vadd.f32 %v4425, %v4953
  %v4955 = vpop.f32.mrb[0].mxu0
  %v4956 = vpop.f32.mrb[0].mxu0
  %v4957 = vadd.f32 %v4428, %v4956
  %v4958 = vpop.f32.mrb[0].mxu0
  %4959 = vmatprep.mubr.bf16.mxu0 0
  %4960 = vmatmul.mubr.bf16.gmra.mrb[0].mxu0 %v4668
  %v4961 = vpop.f32.mrb[0].mxu0
  %v4962 = vadd.f32 %v4433, %v4961
  %v4963 = vpop.f32.mrb[0].mxu0
  %v4964 = vpop.f32.mrb[0].mxu0
  %v4965 = vadd.f32 %v4436, %v4964
  %v4966 = vpop.f32.mrb[0].mxu0
  %4967 = vmatprep.mubr.bf16.mxu0 0
  %4968 = vmatmul.mubr.bf16.gmra.mrb[0].mxu0 %v4669
  %v4969 = vpop.f32.mrb[0].mxu0
  %v4970 = vadd.f32 %v4441, %v4969
  %v4971 = vpop.f32.mrb[0].mxu0
  %v4972 = vpop.f32.mrb[0].mxu0
  %v4973 = vadd.f32 %v4444, %v4972
  %v4974 = vpop.f32.mrb[0].mxu0
  %4975 = vmatprep.mubr.bf16.mxu0 0
  %4976 = vmatmul.mubr.bf16.gmra.mrb[0].mxu0 %v4670
  %v4977 = vpop.f32.mrb[0].mxu0
  %v4978 = vadd.f32 %v4449, %v4977
  %v4979 = vpop.f32.mrb[0].mxu0
  %v4980 = vpop.f32.mrb[0].mxu0
  %v4981 = vadd.f32 %v4452, %v4980
  %v4982 = vpop.f32.mrb[0].mxu0
  %4983 = vmatprep.mubr.bf16.mxu0 0
  %4984 = vmatmul.mubr.bf16.gmra.mrb[0].mxu0 %v4671
  %v4985 = vpop.f32.mrb[0].mxu0
  %v4986 = vadd.f32 %v4457, %v4985
  %v4987 = vpop.f32.mrb[0].mxu0
  %v4988 = vpop.f32.mrb[0].mxu0
  %v4989 = vadd.f32 %v4460, %v4988
  %v4990 = vpop.f32.mrb[0].mxu0
  %4991 = vmatprep.mubr.bf16.mxu0 0
  %4992 = vmatmul.mubr.bf16.gmra.mrb[0].mxu0 %v4672
  %v4993 = vpop.f32.mrb[0].mxu0
  %v4994 = vadd.f32 %v4465, %v4993
  %v4995 = vpop.f32.mrb[0].mxu0
  %v4996 = vpop.f32.mrb[0].mxu0
  %v4997 = vadd.f32 %v4468, %v4996
  %v4998 = vpop.f32.mrb[0].mxu0
  %4999 = vmatprep.mubr.bf16.mxu0 0
  %5000 = vmatmul.mubr.bf16.gmra.mrb[0].mxu0 %v4673
  %v5001 = vpop.f32.mrb[0].mxu0
  %v5002 = vadd.f32 %v4473, %v5001
  %v5003 = vpop.f32.mrb[0].mxu0
  %v5004 = vpop.f32.mrb[0].mxu0
  %v5005 = vadd.f32 %v4476, %v5004
  %v5006 = vpop.f32.mrb[0].mxu0
  %5007 = vmatprep.mubr.bf16.mxu0 0
  %5008 = vmatmul.mubr.bf16.gmra.mrb[0].mxu0 %v4674
  %v5009 = vpop.f32.mrb[0].mxu0
  %v5010 = vadd.f32 %v4481, %v5009
  %v5011 = vpop.f32.mrb[0].mxu0
  %v5012 = vpop.f32.mrb[0].mxu0
  %v5013 = vadd.f32 %v4484, %v5012
  %v5014 = vpop.f32.mrb[0].mxu0
  %5015 = vmatprep.mubr.bf16.mxu0 0
  %5016 = vmatmul.mubr.bf16.gmra.mrb[0].mxu0 %v4675
  %v5017 = vpop.f32.mrb[0].mxu0
  %v5018 = vadd.f32 %v4489, %v5017
  %v5019 = vpop.f32.mrb[0].mxu0
  %v5020 = vpop.f32.mrb[0].mxu0
  %v5021 = vadd.f32 %v4492, %v5020
  %v5022 = vpop.f32.mrb[0].mxu0
  %5023 = vmatprep.mubr.bf16.mxu0 0
  %5024 = vmatmul.mubr.bf16.gmra.mrb[0].mxu0 %v4676
  %v5025 = vpop.f32.mrb[0].mxu0
  %v5026 = vadd.f32 %v4497, %v5025
  %v5027 = vpop.f32.mrb[0].mxu0
  %v5028 = vpop.f32.mrb[0].mxu0
  %v5029 = vadd.f32 %v4500, %v5028
  %v5030 = vpop.f32.mrb[0].mxu0
  %5031 = vmatprep.mubr.bf16.mxu0 0
  %5032 = vmatmul.mubr.bf16.gmra.mrb[0].mxu0 %v4677
  %v5033 = vpop.f32.mrb[0].mxu0
  %v5034 = vadd.f32 %v4505, %v5033
  %v5035 = vpop.f32.mrb[0].mxu0
  %v5036 = vpop.f32.mrb[0].mxu0
  %v5037 = vadd.f32 %v4508, %v5036
  %v5038 = vpop.f32.mrb[0].mxu0
  %5039 = vmatprep.mubr.bf16.mxu0 0
  %5040 = vmatmul.mubr.bf16.gmra.mrb[0].mxu0 %v4678
  %v5041 = vpop.f32.mrb[0].mxu0
  %v5042 = vadd.f32 %v4513, %v5041
  %v5043 = vpop.f32.mrb[0].mxu0
  %v5044 = vpop.f32.mrb[0].mxu0
  %v5045 = vadd.f32 %v4516, %v5044
  %v5046 = vpop.f32.mrb[0].mxu0
  %5047 = vdwg.mxu0
  %vm5080 = vcmask 1042432
  %vm5081 = vcmask 1046532
  %vm5082 = vmor %vm5080, %vm5081
  %v5083 = vrot.slane %v3154, 5
  %v5084 = vrot.slane %v5083, 4
  %v5085 = vrot.slane %v3155, 5
  %v5086 = vsel %vm5082, %v5084, %v5085
  %v5087 = vrot.slane %v5085, 4
  %v5088 = vrot.slane %v3156, 5
  %v5089 = vsel %vm5082, %v5087, %v5088
  %v5090 = vrot.slane %v3157, 5
  %v5091 = vrot.slane %v5090, 4
  %v5092 = vrot.slane %v3158, 5
  %v5093 = vsel %vm5082, %v5091, %v5092
  %v5094 = vrot.slane %v5092, 4
  %v5095 = vrot.slane %v3159, 5
  %v5096 = vsel %vm5082, %v5094, %v5095
  %v5097 = vrot.slane %v3160, 5
  %v5098 = vrot.slane %v5097, 4
  %v5099 = vrot.slane %v3161, 5
  %v5100 = vsel %vm5082, %v5098, %v5099
  %v5101 = vrot.slane %v5099, 4
  %v5102 = vrot.slane %v3162, 5
  %v5103 = vsel %vm5082, %v5101, %v5102
  %v5104 = vrot.slane %v3163, 5
  %v5105 = vrot.slane %v5104, 4
  %v5106 = vrot.slane %v3164, 5
  %v5107 = vsel %vm5082, %v5105, %v5106
  %v5108 = vrot.slane %v5106, 4
  %v5109 = vrot.slane %v3165, 5
  %v5110 = vsel %vm5082, %v5108, %v5109
  %v5111 = vrot.slane %v3166, 5
  %v5112 = vrot.slane %v5111, 4
  %v5113 = vrot.slane %v3167, 5
  %v5114 = vsel %vm5082, %v5112, %v5113
  %v5115 = vrot.slane %v5113, 4
  %v5116 = vrot.slane %v3168, 5
  %v5117 = vsel %vm5082, %v5115, %v5116
  %v5118 = vrot.slane %v3169, 5
  %v5119 = vrot.slane %v5118, 4
  %v5120 = vrot.slane %v3170, 5
  %v5121 = vsel %vm5082, %v5119, %v5120
  %v5122 = vrot.slane %v5120, 4
  %v5123 = vrot.slane %v3171, 5
  %v5124 = vsel %vm5082, %v5122, %v5123
  %v5125 = vrot.slane %v3172, 5
  %v5126 = vrot.slane %v5125, 4
  %v5127 = vrot.slane %v3173, 5
  %v5128 = vsel %vm5082, %v5126, %v5127
  %v5129 = vrot.slane %v5127, 4
  %v5130 = vrot.slane %v3174, 5
  %v5131 = vsel %vm5082, %v5129, %v5130
  %v5132 = vrot.slane %v3175, 5
  %v5133 = vrot.slane %v5132, 4
  %v5134 = vrot.slane %v3176, 5
  %v5135 = vsel %vm5082, %v5133, %v5134
  %v5136 = vrot.slane %v5134, 4
  %v5137 = vrot.slane %v3177, 5
  %v5138 = vsel %vm5082, %v5136, %v5137
  %v5139 = vrot.slane %v3178, 5
  %v5140 = vrot.slane %v5139, 4
  %v5141 = vrot.slane %v3179, 5
  %v5142 = vsel %vm5082, %v5140, %v5141
  %v5143 = vrot.slane %v5141, 4
  %v5144 = vrot.slane %v3180, 5
  %v5145 = vsel %vm5082, %v5143, %v5144
  %v5146 = vrot.slane %v3181, 5
  %v5147 = vrot.slane %v5146, 4
  %v5148 = vrot.slane %v3182, 5
  %v5149 = vsel %vm5082, %v5147, %v5148
  %v5150 = vrot.slane %v5148, 4
  %v5151 = vrot.slane %v3183, 5
  %v5152 = vsel %vm5082, %v5150, %v5151
  %v5153 = vrot.slane %v3184, 5
  %v5154 = vrot.slane %v5153, 4
  %v5155 = vrot.slane %v3185, 5
  %v5156 = vsel %vm5082, %v5154, %v5155
  %v5157 = vrot.slane %v5155, 4
  %v5158 = vrot.slane %v3186, 5
  %v5159 = vsel %vm5082, %v5157, %v5158
  %v5160 = vrot.slane %v3187, 5
  %v5161 = vrot.slane %v5160, 4
  %v5162 = vrot.slane %v3188, 5
  %v5163 = vsel %vm5082, %v5161, %v5162
  %v5164 = vrot.slane %v5162, 4
  %v5165 = vrot.slane %v3189, 5
  %v5166 = vsel %vm5082, %v5164, %v5165
  %v5167 = vrot.slane %v3190, 5
  %v5168 = vrot.slane %v5167, 4
  %v5169 = vrot.slane %v3191, 5
  %v5170 = vsel %vm5082, %v5168, %v5169
  %v5171 = vrot.slane %v5169, 4
  %v5172 = vrot.slane %v3192, 5
  %v5173 = vsel %vm5082, %v5171, %v5172
  %v5174 = vrot.slane %v3193, 5
  %v5175 = vrot.slane %v5174, 4
  %v5176 = vrot.slane %v3194, 5
  %v5177 = vsel %vm5082, %v5175, %v5176
  %v5178 = vrot.slane %v5176, 4
  %v5179 = vrot.slane %v3195, 5
  %v5180 = vsel %vm5082, %v5178, %v5179
  %v5181 = vrot.slane %v3196, 5
  %v5182 = vrot.slane %v5181, 4
  %v5183 = vrot.slane %v3197, 5
  %v5184 = vsel %vm5082, %v5182, %v5183
  %v5185 = vrot.slane %v5183, 4
  %v5186 = vrot.slane %v3198, 5
  %v5187 = vsel %vm5082, %v5185, %v5186
  %v5188 = vrot.slane %v3199, 5
  %v5189 = vrot.slane %v5188, 4
  %v5190 = vrot.slane %v3200, 5
  %v5191 = vsel %vm5082, %v5189, %v5190
  %v5192 = vrot.slane %v5190, 4
  %v5193 = vrot.slane %v3201, 5
  %v5194 = vsel %vm5082, %v5192, %v5193
  %v5195 = vrot.slane %v3202, 5
  %v5196 = vrot.slane %v5195, 4
  %v5197 = vrot.slane %v3203, 5
  %v5198 = vsel %vm5082, %v5196, %v5197
  %v5199 = vrot.slane %v5197, 4
  %v5200 = vrot.slane %v3204, 5
  %v5201 = vsel %vm5082, %v5199, %v5200
  %v5202 = vrot.slane %v3205, 5
  %v5203 = vrot.slane %v5202, 4
  %v5204 = vrot.slane %v3206, 5
  %v5205 = vsel %vm5082, %v5203, %v5204
  %v5206 = vrot.slane %v5204, 4
  %v5207 = vrot.slane %v3207, 5
  %v5208 = vsel %vm5082, %v5206, %v5207
  %v5209 = vrot.slane %v3208, 5
  %v5210 = vrot.slane %v5209, 4
  %v5211 = vrot.slane %v3209, 5
  %v5212 = vsel %vm5082, %v5210, %v5211
  %v5213 = vrot.slane %v5211, 4
  %v5214 = vrot.slane %v3210, 5
  %v5215 = vsel %vm5082, %v5213, %v5214
  %v5216 = vrot.slane %v3211, 5
  %v5217 = vrot.slane %v5216, 4
  %v5218 = vrot.slane %v3212, 5
  %v5219 = vsel %vm5082, %v5217, %v5218
  %v5220 = vrot.slane %v5218, 4
  %v5221 = vrot.slane %v3213, 5
  %v5222 = vsel %vm5082, %v5220, %v5221
  %v5223 = vrot.slane %v3214, 5
  %v5224 = vrot.slane %v5223, 4
  %v5225 = vrot.slane %v3215, 5
  %v5226 = vsel %vm5082, %v5224, %v5225
  %v5227 = vrot.slane %v5225, 4
  %v5228 = vrot.slane %v3216, 5
  %v5229 = vsel %vm5082, %v5227, %v5228
  %v5230 = vrot.slane %v3217, 5
  %v5231 = vrot.slane %v5230, 4
  %v5232 = vrot.slane %v3218, 5
  %v5233 = vsel %vm5082, %v5231, %v5232
  %v5234 = vrot.slane %v5232, 4
  %v5235 = vrot.slane %v3219, 5
  %v5236 = vsel %vm5082, %v5234, %v5235
  %v5237 = vrot.slane %v3220, 5
  %v5238 = vrot.slane %v5237, 4
  %v5239 = vrot.slane %v3221, 5
  %v5240 = vsel %vm5082, %v5238, %v5239
  %v5241 = vrot.slane %v5239, 4
  %v5242 = vrot.slane %v3222, 5
  %v5243 = vsel %vm5082, %v5241, %v5242
  %v5244 = vrot.slane %v3223, 5
  %v5245 = vrot.slane %v5244, 4
  %v5246 = vrot.slane %v3224, 5
  %v5247 = vsel %vm5082, %v5245, %v5246
  %v5248 = vrot.slane %v5246, 4
  %v5249 = vrot.slane %v3225, 5
  %v5250 = vsel %vm5082, %v5248, %v5249
  %v5251 = vrot.slane %v3226, 5
  %v5252 = vrot.slane %v5251, 4
  %v5253 = vrot.slane %v3227, 5
  %v5254 = vsel %vm5082, %v5252, %v5253
  %v5255 = vrot.slane %v5253, 4
  %v5256 = vrot.slane %v3228, 5
  %v5257 = vsel %vm5082, %v5255, %v5256
  %v5258 = vrot.slane %v3229, 5
  %v5259 = vrot.slane %v5258, 4
  %v5260 = vrot.slane %v3230, 5
  %v5261 = vsel %vm5082, %v5259, %v5260
  %v5262 = vrot.slane %v5260, 4
  %v5263 = vrot.slane %v3231, 5
  %v5264 = vsel %vm5082, %v5262, %v5263
  %v5265 = vrot.slane %v3232, 5
  %v5266 = vrot.slane %v5265, 4
  %v5267 = vrot.slane %v3233, 5
  %v5268 = vsel %vm5082, %v5266, %v5267
  %v5269 = vrot.slane %v5267, 4
  %v5270 = vrot.slane %v3234, 5
  %v5271 = vsel %vm5082, %v5269, %v5270
  %v5272 = vrot.slane %v3235, 5
  %v5273 = vrot.slane %v5272, 4
  %v5274 = vrot.slane %v3236, 5
  %v5275 = vsel %vm5082, %v5273, %v5274
  %v5276 = vrot.slane %v5274, 4
  %v5277 = vrot.slane %v3237, 5
  %v5278 = vsel %vm5082, %v5276, %v5277
  %v5279 = vrot.slane %v3238, 5
  %v5280 = vrot.slane %v5279, 4
  %v5281 = vrot.slane %v3239, 5
  %v5282 = vsel %vm5082, %v5280, %v5281
  %v5283 = vrot.slane %v5281, 4
  %v5284 = vrot.slane %v3240, 5
  %v5285 = vsel %vm5082, %v5283, %v5284
  %v5286 = vrot.slane %v3241, 5
  %v5287 = vrot.slane %v5286, 4
  %v5288 = vrot.slane %v3242, 5
  %v5289 = vsel %vm5082, %v5287, %v5288
  %v5290 = vrot.slane %v5288, 4
  %v5291 = vrot.slane %v3243, 5
  %v5292 = vsel %vm5082, %v5290, %v5291
  %v5293 = vrot.slane %v3244, 5
  %v5294 = vrot.slane %v5293, 4
  %v5295 = vrot.slane %v3245, 5
  %v5296 = vsel %vm5082, %v5294, %v5295
  %v5297 = vrot.slane %v5295, 4
  %v5298 = vrot.slane %v3246, 5
  %v5299 = vsel %vm5082, %v5297, %v5298
  %v5300 = vrot.slane %v3247, 5
  %v5301 = vrot.slane %v5300, 4
  %v5302 = vrot.slane %v3248, 5
  %v5303 = vsel %vm5082, %v5301, %v5302
  %v5304 = vrot.slane %v5302, 4
  %v5305 = vrot.slane %v3249, 5
  %v5306 = vsel %vm5082, %v5304, %v5305
  %s5307 = scalar_lea.vmem %s5, 128
  %v5308 = vld [vmem:[%s5307] sm:$0xf]
  %v5309 = vld [vmem:[%s5307 + $0x4] sm:$0xf]
  %v5310 = vld [vmem:[%s5307 + $0x8] sm:$0xf]
  %v5311 = vld [vmem:[%s5307 + $0xc] sm:$0xf]
  %v5312 = vld [vmem:[%s5307 + $0x10] sm:$0xf]
  %v5313 = vld [vmem:[%s5307 + $0x14] sm:$0xf]
  %v5314 = vld [vmem:[%s5307 + $0x18] sm:$0xf]
  %v5315 = vld [vmem:[%s5307 + $0x1c] sm:$0xf]
  %v5316 = vld [vmem:[%s5307 + $0x20] sm:$0xf]
  %v5317 = vld [vmem:[%s5307 + $0x24] sm:$0xf]
  %v5318 = vld [vmem:[%s5307 + $0x28] sm:$0xf]
  %v5319 = vld [vmem:[%s5307 + $0x2c] sm:$0xf]
  %v5320 = vld [vmem:[%s5307 + $0x30] sm:$0xf]
  %v5321 = vld [vmem:[%s5307 + $0x34] sm:$0xf]
  %v5322 = vld [vmem:[%s5307 + $0x38] sm:$0xf]
  %v5323 = vld [vmem:[%s5307 + $0x3c] sm:$0xf]
  %v5324 = vunpack.c.l.b16 %v5086
  %v5325 = vunpack.c.l.b16 %v5089
  %v5326 = vunpack.c.l.b16 %v5093
  %v5327 = vunpack.c.l.b16 %v5096
  %v5328 = vunpack.c.l.b16 %v5100
  %v5329 = vunpack.c.l.b16 %v5103
  %v5330 = vunpack.c.l.b16 %v5107
  %v5331 = vunpack.c.l.b16 %v5110
  %v5332 = vunpack.c.l.b16 %v5114
  %v5333 = vunpack.c.l.b16 %v5117
  %v5334 = vunpack.c.l.b16 %v5121
  %v5335 = vunpack.c.l.b16 %v5124
  %v5336 = vunpack.c.l.b16 %v5128
  %v5337 = vunpack.c.l.b16 %v5131
  %v5338 = vunpack.c.l.b16 %v5135
  %v5339 = vunpack.c.l.b16 %v5138
  %v5340 = vunpack.c.l.b16 %v5142
  %v5341 = vunpack.c.l.b16 %v5145
  %v5342 = vunpack.c.l.b16 %v5149
  %v5343 = vunpack.c.l.b16 %v5152
  %v5344 = vunpack.c.l.b16 %v5156
  %v5345 = vunpack.c.l.b16 %v5159
  %v5346 = vunpack.c.l.b16 %v5163
  %v5347 = vunpack.c.l.b16 %v5166
  %v5348 = vunpack.c.l.b16 %v5170
  %v5349 = vunpack.c.l.b16 %v5173
  %v5350 = vunpack.c.l.b16 %v5177
  %v5351 = vunpack.c.l.b16 %v5180
  %v5352 = vunpack.c.l.b16 %v5184
  %v5353 = vunpack.c.l.b16 %v5187
  %v5354 = vunpack.c.l.b16 %v5191
  %v5355 = vunpack.c.l.b16 %v5194
  %v5356 = vunpack.c.l.b16 %v5198
  %v5357 = vunpack.c.l.b16 %v5201
  %v5358 = vunpack.c.l.b16 %v5205
  %v5359 = vunpack.c.l.b16 %v5208
  %v5360 = vunpack.c.l.b16 %v5212
  %v5361 = vunpack.c.l.b16 %v5215
  %v5362 = vunpack.c.l.b16 %v5219
  %v5363 = vunpack.c.l.b16 %v5222
  %v5364 = vunpack.c.l.b16 %v5226
  %v5365 = vunpack.c.l.b16 %v5229
  %v5366 = vunpack.c.l.b16 %v5233
  %v5367 = vunpack.c.l.b16 %v5236
  %v5368 = vunpack.c.l.b16 %v5240
  %v5369 = vunpack.c.l.b16 %v5243
  %v5370 = vunpack.c.l.b16 %v5247
  %v5371 = vunpack.c.l.b16 %v5250
  %v5372 = vunpack.c.l.b16 %v5254
  %v5373 = vunpack.c.l.b16 %v5257
  %v5374 = vunpack.c.l.b16 %v5261
  %v5375 = vunpack.c.l.b16 %v5264
  %v5376 = vunpack.c.l.b16 %v5268
  %v5377 = vunpack.c.l.b16 %v5271
  %v5378 = vunpack.c.l.b16 %v5275
  %v5379 = vunpack.c.l.b16 %v5278
  %v5380 = vunpack.c.l.b16 %v5282
  %v5381 = vunpack.c.l.b16 %v5285
  %v5382 = vunpack.c.l.b16 %v5289
  %v5383 = vunpack.c.l.b16 %v5292
  %v5384 = vunpack.c.l.b16 %v5296
  %v5385 = vunpack.c.l.b16 %v5299
  %v5386 = vunpack.c.l.b16 %v5303
  %v5387 = vunpack.c.l.b16 %v5306
  %v5388 = vpack.c.b16 %v5325, %v5324
  %v5389 = vpack.c.b16 %v5327, %v5326
  %v5390 = vpack.c.b16 %v5329, %v5328
  %v5391 = vpack.c.b16 %v5331, %v5330
  %v5392 = vpack.c.b16 %v5333, %v5332
  %v5393 = vpack.c.b16 %v5335, %v5334
  %v5394 = vpack.c.b16 %v5337, %v5336
  %v5395 = vpack.c.b16 %v5339, %v5338
  %v5396 = vpack.c.b16 %v5341, %v5340
  %v5397 = vpack.c.b16 %v5343, %v5342
  %v5398 = vpack.c.b16 %v5345, %v5344
  %v5399 = vpack.c.b16 %v5347, %v5346
  %v5400 = vpack.c.b16 %v5349, %v5348
  %v5401 = vpack.c.b16 %v5351, %v5350
  %v5402 = vpack.c.b16 %v5353, %v5352
  %v5403 = vpack.c.b16 %v5355, %v5354
  %v5404 = vpack.c.b16 %v5357, %v5356
  %v5405 = vpack.c.b16 %v5359, %v5358
  %v5406 = vpack.c.b16 %v5361, %v5360
  %v5407 = vpack.c.b16 %v5363, %v5362
  %v5408 = vpack.c.b16 %v5365, %v5364
  %v5409 = vpack.c.b16 %v5367, %v5366
  %v5410 = vpack.c.b16 %v5369, %v5368
  %v5411 = vpack.c.b16 %v5371, %v5370
  %v5412 = vpack.c.b16 %v5373, %v5372
  %v5413 = vpack.c.b16 %v5375, %v5374
  %v5414 = vpack.c.b16 %v5377, %v5376
  %v5415 = vpack.c.b16 %v5379, %v5378
  %v5416 = vpack.c.b16 %v5381, %v5380
  %v5417 = vpack.c.b16 %v5383, %v5382
  %v5418 = vpack.c.b16 %v5385, %v5384
  %v5419 = vpack.c.b16 %v5387, %v5386
  %v5468 = vunpack.c.l.b16 %v5308
  %v5469 = vunpack.c.l.b16 %v5309
  %v5470 = vunpack.c.l.b16 %v5310
  %v5471 = vunpack.c.l.b16 %v5311
  %v5472 = vunpack.c.l.b16 %v5312
  %v5473 = vunpack.c.l.b16 %v5313
  %v5474 = vunpack.c.l.b16 %v5314
  %v5475 = vunpack.c.l.b16 %v5315
  %v5476 = vunpack.c.l.b16 %v5316
  %v5477 = vunpack.c.l.b16 %v5317
  %v5478 = vunpack.c.l.b16 %v5318
  %v5479 = vunpack.c.l.b16 %v5319
  %v5480 = vunpack.c.l.b16 %v5320
  %v5481 = vunpack.c.l.b16 %v5321
  %v5482 = vunpack.c.l.b16 %v5322
  %v5483 = vunpack.c.l.b16 %v5323
  %v5484 = vpack.c.b16 %v5469, %v5468
  %v5485 = vpack.c.b16 %v5471, %v5470
  %v5486 = vpack.c.b16 %v5473, %v5472
  %v5487 = vpack.c.b16 %v5475, %v5474
  %v5488 = vpack.c.b16 %v5477, %v5476
  %v5489 = vpack.c.b16 %v5479, %v5478
  %v5490 = vpack.c.b16 %v5481, %v5480
  %v5491 = vpack.c.b16 %v5483, %v5482
  %5500 = vmatprep.subr.bf16.mxu0 0
  %5501 = vmatpush1.bf16.msra.mxu0 %v5484
  %5502 = vmatprep.subr.bf16.mxu0 0
  %5503 = vmatpush1.bf16.msra.mxu0 %v5485
  %5504 = vmatprep.subr.bf16.mxu0 0
  %5505 = vmatpush1.bf16.msra.mxu0 %v5486
  %5506 = vmatprep.subr.bf16.mxu0 0
  %5507 = vmatpush1.bf16.msra.mxu0 %v5487
  %5508 = vmatprep.subr.bf16.mxu0 0
  %5509 = vmatpush1.bf16.msra.mxu0 %v5488
  %5510 = vmatprep.subr.bf16.mxu0 0
  %5511 = vmatpush1.bf16.msra.mxu0 %v5489
  %5512 = vmatprep.subr.bf16.mxu0 0
  %5513 = vmatpush1.bf16.msra.mxu0 %v5490
  %5514 = vmatprep.subr.bf16.mxu0 0
  %5515 = vmatpush1.bf16.msra.mxu0 %v5491
  %5516 = vmatprep.subr.bf16.mxu0 0
  %5517 = vmatpush1.bf16.msra.mxu0 0
  %5518 = vmatprep.subr.bf16.mxu0 0
  %5519 = vmatpush1.bf16.msra.mxu0 0
  %5520 = vmatprep.subr.bf16.mxu0 0
  %5521 = vmatpush1.bf16.msra.mxu0 0
  %5522 = vmatprep.subr.bf16.mxu0 0
  %5523 = vmatpush1.bf16.msra.mxu0 0
  %5524 = vmatprep.subr.bf16.mxu0 0
  %5525 = vmatpush1.bf16.msra.mxu0 0
  %5526 = vmatprep.subr.bf16.mxu0 0
  %5527 = vmatpush1.bf16.msra.mxu0 0
  %5528 = vmatprep.subr.bf16.mxu0 0
  %5529 = vmatpush1.bf16.msra.mxu0 0
  %5530 = vmatprep.subr.bf16.mxu0 0
  %5531 = vmatpush1.bf16.msra.mxu0 0
  %5532 = vmatprep.mubr.bf16.mxu0 0
  %5533 = vmatmul.mubr.bf16.gmra.mrb[0].mxu0 %v5388
  %v5534 = vpop.f32.mrb[0].mxu0
  %v5535 = vadd.f32 0.0, %v5534
  %v5536 = vpop.f32.mrb[0].mxu0
  %v5537 = vpop.f32.mrb[0].mxu0
  %v5538 = vadd.f32 0.0, %v5537
  %v5539 = vpop.f32.mrb[0].mxu0
  %5540 = vmatprep.mubr.bf16.mxu0 0
  %5541 = vmatmul.mubr.bf16.gmra.mrb[0].mxu0 %v5389
  %v5542 = vpop.f32.mrb[0].mxu0
  %v5543 = vadd.f32 0.0, %v5542
  %v5544 = vpop.f32.mrb[0].mxu0
  %v5545 = vpop.f32.mrb[0].mxu0
  %v5546 = vadd.f32 0.0, %v5545
  %v5547 = vpop.f32.mrb[0].mxu0
  %5548 = vmatprep.mubr.bf16.mxu0 0
  %5549 = vmatmul.mubr.bf16.gmra.mrb[0].mxu0 %v5390
  %v5550 = vpop.f32.mrb[0].mxu0
  %v5551 = vadd.f32 0.0, %v5550
  %v5552 = vpop.f32.mrb[0].mxu0
  %v5553 = vpop.f32.mrb[0].mxu0
  %v5554 = vadd.f32 0.0, %v5553
  %v5555 = vpop.f32.mrb[0].mxu0
  %5556 = vmatprep.mubr.bf16.mxu0 0
  %5557 = vmatmul.mubr.bf16.gmra.mrb[0].mxu0 %v5391
  %v5558 = vpop.f32.mrb[0].mxu0
  %v5559 = vadd.f32 0.0, %v5558
  %v5560 = vpop.f32.mrb[0].mxu0
  %v5561 = vpop.f32.mrb[0].mxu0
  %v5562 = vadd.f32 0.0, %v5561
  %v5563 = vpop.f32.mrb[0].mxu0
  %5564 = vmatprep.mubr.bf16.mxu0 0
  %5565 = vmatmul.mubr.bf16.gmra.mrb[0].mxu0 %v5392
  %v5566 = vpop.f32.mrb[0].mxu0
  %v5567 = vadd.f32 0.0, %v5566
  %v5568 = vpop.f32.mrb[0].mxu0
  %v5569 = vpop.f32.mrb[0].mxu0
  %v5570 = vadd.f32 0.0, %v5569
  %v5571 = vpop.f32.mrb[0].mxu0
  %5572 = vmatprep.mubr.bf16.mxu0 0
  %5573 = vmatmul.mubr.bf16.gmra.mrb[0].mxu0 %v5393
  %v5574 = vpop.f32.mrb[0].mxu0
  %v5575 = vadd.f32 0.0, %v5574
  %v5576 = vpop.f32.mrb[0].mxu0
  %v5577 = vpop.f32.mrb[0].mxu0
  %v5578 = vadd.f32 0.0, %v5577
  %v5579 = vpop.f32.mrb[0].mxu0
  %5580 = vmatprep.mubr.bf16.mxu0 0
  %5581 = vmatmul.mubr.bf16.gmra.mrb[0].mxu0 %v5394
  %v5582 = vpop.f32.mrb[0].mxu0
  %v5583 = vadd.f32 0.0, %v5582
  %v5584 = vpop.f32.mrb[0].mxu0
  %v5585 = vpop.f32.mrb[0].mxu0
  %v5586 = vadd.f32 0.0, %v5585
  %v5587 = vpop.f32.mrb[0].mxu0
  %5588 = vmatprep.mubr.bf16.mxu0 0
  %5589 = vmatmul.mubr.bf16.gmra.mrb[0].mxu0 %v5395
  %v5590 = vpop.f32.mrb[0].mxu0
  %v5591 = vadd.f32 0.0, %v5590
  %v5592 = vpop.f32.mrb[0].mxu0
  %v5593 = vpop.f32.mrb[0].mxu0
  %v5594 = vadd.f32 0.0, %v5593
  %v5595 = vpop.f32.mrb[0].mxu0
  %5596 = vmatprep.mubr.bf16.mxu0 0
  %5597 = vmatmul.mubr.bf16.gmra.mrb[0].mxu0 %v5396
  %v5598 = vpop.f32.mrb[0].mxu0
  %v5599 = vadd.f32 0.0, %v5598
  %v5600 = vpop.f32.mrb[0].mxu0
  %v5601 = vpop.f32.mrb[0].mxu0
  %v5602 = vadd.f32 0.0, %v5601
  %v5603 = vpop.f32.mrb[0].mxu0
  %5604 = vmatprep.mubr.bf16.mxu0 0
  %5605 = vmatmul.mubr.bf16.gmra.mrb[0].mxu0 %v5397
  %v5606 = vpop.f32.mrb[0].mxu0
  %v5607 = vadd.f32 0.0, %v5606
  %v5608 = vpop.f32.mrb[0].mxu0
  %v5609 = vpop.f32.mrb[0].mxu0
  %v5610 = vadd.f32 0.0, %v5609
  %v5611 = vpop.f32.mrb[0].mxu0
  %5612 = vmatprep.mubr.bf16.mxu0 0
  %5613 = vmatmul.mubr.bf16.gmra.mrb[0].mxu0 %v5398
  %v5614 = vpop.f32.mrb[0].mxu0
  %v5615 = vadd.f32 0.0, %v5614
  %v5616 = vpop.f32.mrb[0].mxu0
  %v5617 = vpop.f32.mrb[0].mxu0
  %v5618 = vadd.f32 0.0, %v5617
  %v5619 = vpop.f32.mrb[0].mxu0
  %5620 = vmatprep.mubr.bf16.mxu0 0
  %5621 = vmatmul.mubr.bf16.gmra.mrb[0].mxu0 %v5399
  %v5622 = vpop.f32.mrb[0].mxu0
  %v5623 = vadd.f32 0.0, %v5622
  %v5624 = vpop.f32.mrb[0].mxu0
  %v5625 = vpop.f32.mrb[0].mxu0
  %v5626 = vadd.f32 0.0, %v5625
  %v5627 = vpop.f32.mrb[0].mxu0
  %5628 = vmatprep.mubr.bf16.mxu0 0
  %5629 = vmatmul.mubr.bf16.gmra.mrb[0].mxu0 %v5400
  %v5630 = vpop.f32.mrb[0].mxu0
  %v5631 = vadd.f32 0.0, %v5630
  %v5632 = vpop.f32.mrb[0].mxu0
  %v5633 = vpop.f32.mrb[0].mxu0
  %v5634 = vadd.f32 0.0, %v5633
  %v5635 = vpop.f32.mrb[0].mxu0
  %5636 = vmatprep.mubr.bf16.mxu0 0
  %5637 = vmatmul.mubr.bf16.gmra.mrb[0].mxu0 %v5401
  %v5638 = vpop.f32.mrb[0].mxu0
  %v5639 = vadd.f32 0.0, %v5638
  %v5640 = vpop.f32.mrb[0].mxu0
  %v5641 = vpop.f32.mrb[0].mxu0
  %v5642 = vadd.f32 0.0, %v5641
  %v5643 = vpop.f32.mrb[0].mxu0
  %5644 = vmatprep.mubr.bf16.mxu0 0
  %5645 = vmatmul.mubr.bf16.gmra.mrb[0].mxu0 %v5402
  %v5646 = vpop.f32.mrb[0].mxu0
  %v5647 = vadd.f32 0.0, %v5646
  %v5648 = vpop.f32.mrb[0].mxu0
  %v5649 = vpop.f32.mrb[0].mxu0
  %v5650 = vadd.f32 0.0, %v5649
  %v5651 = vpop.f32.mrb[0].mxu0
  %5652 = vmatprep.mubr.bf16.mxu0 0
  %5653 = vmatmul.mubr.bf16.gmra.mrb[0].mxu0 %v5403
  %v5654 = vpop.f32.mrb[0].mxu0
  %v5655 = vadd.f32 0.0, %v5654
  %v5656 = vpop.f32.mrb[0].mxu0
  %v5657 = vpop.f32.mrb[0].mxu0
  %v5658 = vadd.f32 0.0, %v5657
  %v5659 = vpop.f32.mrb[0].mxu0
  %5660 = vmatprep.mubr.bf16.mxu0 0
  %5661 = vmatmul.mubr.bf16.gmra.mrb[0].mxu0 %v5404
  %v5662 = vpop.f32.mrb[0].mxu0
  %v5663 = vadd.f32 0.0, %v5662
  %v5664 = vpop.f32.mrb[0].mxu0
  %v5665 = vpop.f32.mrb[0].mxu0
  %v5666 = vadd.f32 0.0, %v5665
  %v5667 = vpop.f32.mrb[0].mxu0
  %5668 = vmatprep.mubr.bf16.mxu0 0
  %5669 = vmatmul.mubr.bf16.gmra.mrb[0].mxu0 %v5405
  %v5670 = vpop.f32.mrb[0].mxu0
  %v5671 = vadd.f32 0.0, %v5670
  %v5672 = vpop.f32.mrb[0].mxu0
  %v5673 = vpop.f32.mrb[0].mxu0
  %v5674 = vadd.f32 0.0, %v5673
  %v5675 = vpop.f32.mrb[0].mxu0
  %5676 = vmatprep.mubr.bf16.mxu0 0
  %5677 = vmatmul.mubr.bf16.gmra.mrb[0].mxu0 %v5406
  %v5678 = vpop.f32.mrb[0].mxu0
  %v5679 = vadd.f32 0.0, %v5678
  %v5680 = vpop.f32.mrb[0].mxu0
  %v5681 = vpop.f32.mrb[0].mxu0
  %v5682 = vadd.f32 0.0, %v5681
  %v5683 = vpop.f32.mrb[0].mxu0
  %5684 = vmatprep.mubr.bf16.mxu0 0
  %5685 = vmatmul.mubr.bf16.gmra.mrb[0].mxu0 %v5407
  %v5686 = vpop.f32.mrb[0].mxu0
  %v5687 = vadd.f32 0.0, %v5686
  %v5688 = vpop.f32.mrb[0].mxu0
  %v5689 = vpop.f32.mrb[0].mxu0
  %v5690 = vadd.f32 0.0, %v5689
  %v5691 = vpop.f32.mrb[0].mxu0
  %5692 = vmatprep.mubr.bf16.mxu0 0
  %5693 = vmatmul.mubr.bf16.gmra.mrb[0].mxu0 %v5408
  %v5694 = vpop.f32.mrb[0].mxu0
  %v5695 = vadd.f32 0.0, %v5694
  %v5696 = vpop.f32.mrb[0].mxu0
  %v5697 = vpop.f32.mrb[0].mxu0
  %v5698 = vadd.f32 0.0, %v5697
  %v5699 = vpop.f32.mrb[0].mxu0
  %5700 = vmatprep.mubr.bf16.mxu0 0
  %5701 = vmatmul.mubr.bf16.gmra.mrb[0].mxu0 %v5409
  %v5702 = vpop.f32.mrb[0].mxu0
  %v5703 = vadd.f32 0.0, %v5702
  %v5704 = vpop.f32.mrb[0].mxu0
  %v5705 = vpop.f32.mrb[0].mxu0
  %v5706 = vadd.f32 0.0, %v5705
  %v5707 = vpop.f32.mrb[0].mxu0
  %5708 = vmatprep.mubr.bf16.mxu0 0
  %5709 = vmatmul.mubr.bf16.gmra.mrb[0].mxu0 %v5410
  %v5710 = vpop.f32.mrb[0].mxu0
  %v5711 = vadd.f32 0.0, %v5710
  %v5712 = vpop.f32.mrb[0].mxu0
  %v5713 = vpop.f32.mrb[0].mxu0
  %v5714 = vadd.f32 0.0, %v5713
  %v5715 = vpop.f32.mrb[0].mxu0
  %5716 = vmatprep.mubr.bf16.mxu0 0
  %5717 = vmatmul.mubr.bf16.gmra.mrb[0].mxu0 %v5411
  %v5718 = vpop.f32.mrb[0].mxu0
  %v5719 = vadd.f32 0.0, %v5718
  %v5720 = vpop.f32.mrb[0].mxu0
  %v5721 = vpop.f32.mrb[0].mxu0
  %v5722 = vadd.f32 0.0, %v5721
  %v5723 = vpop.f32.mrb[0].mxu0
  %5724 = vmatprep.mubr.bf16.mxu0 0
  %5725 = vmatmul.mubr.bf16.gmra.mrb[0].mxu0 %v5412
  %v5726 = vpop.f32.mrb[0].mxu0
  %v5727 = vadd.f32 0.0, %v5726
  %v5728 = vpop.f32.mrb[0].mxu0
  %v5729 = vpop.f32.mrb[0].mxu0
  %v5730 = vadd.f32 0.0, %v5729
  %v5731 = vpop.f32.mrb[0].mxu0
  %5732 = vmatprep.mubr.bf16.mxu0 0
  %5733 = vmatmul.mubr.bf16.gmra.mrb[0].mxu0 %v5413
  %v5734 = vpop.f32.mrb[0].mxu0
  %v5735 = vadd.f32 0.0, %v5734
  %v5736 = vpop.f32.mrb[0].mxu0
  %v5737 = vpop.f32.mrb[0].mxu0
  %v5738 = vadd.f32 0.0, %v5737
  %v5739 = vpop.f32.mrb[0].mxu0
  %5740 = vmatprep.mubr.bf16.mxu0 0
  %5741 = vmatmul.mubr.bf16.gmra.mrb[0].mxu0 %v5414
  %v5742 = vpop.f32.mrb[0].mxu0
  %v5743 = vadd.f32 0.0, %v5742
  %v5744 = vpop.f32.mrb[0].mxu0
  %v5745 = vpop.f32.mrb[0].mxu0
  %v5746 = vadd.f32 0.0, %v5745
  %v5747 = vpop.f32.mrb[0].mxu0
  %5748 = vmatprep.mubr.bf16.mxu0 0
  %5749 = vmatmul.mubr.bf16.gmra.mrb[0].mxu0 %v5415
  %v5750 = vpop.f32.mrb[0].mxu0
  %v5751 = vadd.f32 0.0, %v5750
  %v5752 = vpop.f32.mrb[0].mxu0
  %v5753 = vpop.f32.mrb[0].mxu0
  %v5754 = vadd.f32 0.0, %v5753
  %v5755 = vpop.f32.mrb[0].mxu0
  %5756 = vmatprep.mubr.bf16.mxu0 0
  %5757 = vmatmul.mubr.bf16.gmra.mrb[0].mxu0 %v5416
  %v5758 = vpop.f32.mrb[0].mxu0
  %v5759 = vadd.f32 0.0, %v5758
  %v5760 = vpop.f32.mrb[0].mxu0
  %v5761 = vpop.f32.mrb[0].mxu0
  %v5762 = vadd.f32 0.0, %v5761
  %v5763 = vpop.f32.mrb[0].mxu0
  %5764 = vmatprep.mubr.bf16.mxu0 0
  %5765 = vmatmul.mubr.bf16.gmra.mrb[0].mxu0 %v5417
  %v5766 = vpop.f32.mrb[0].mxu0
  %v5767 = vadd.f32 0.0, %v5766
  %v5768 = vpop.f32.mrb[0].mxu0
  %v5769 = vpop.f32.mrb[0].mxu0
  %v5770 = vadd.f32 0.0, %v5769
  %v5771 = vpop.f32.mrb[0].mxu0
  %5772 = vmatprep.mubr.bf16.mxu0 0
  %5773 = vmatmul.mubr.bf16.gmra.mrb[0].mxu0 %v5418
  %v5774 = vpop.f32.mrb[0].mxu0
  %v5775 = vadd.f32 0.0, %v5774
  %v5776 = vpop.f32.mrb[0].mxu0
  %v5777 = vpop.f32.mrb[0].mxu0
  %v5778 = vadd.f32 0.0, %v5777
  %v5779 = vpop.f32.mrb[0].mxu0
  %5780 = vmatprep.mubr.bf16.mxu0 0
  %5781 = vmatmul.mubr.bf16.gmra.mrb[0].mxu0 %v5419
  %v5782 = vpop.f32.mrb[0].mxu0
  %v5783 = vadd.f32 0.0, %v5782
  %v5784 = vpop.f32.mrb[0].mxu0
  %v5785 = vpop.f32.mrb[0].mxu0
  %v5786 = vadd.f32 0.0, %v5785
  %v5787 = vpop.f32.mrb[0].mxu0
  %5788 = vdwg.mxu0
  %v5789 = vadd.f32 %v4794, %v5535
  %v5790 = vadd.f32 %v4797, %v5538
  %v5791 = vadd.f32 %v4802, %v5543
  %v5792 = vadd.f32 %v4805, %v5546
  %v5793 = vadd.f32 %v4810, %v5551
  %v5794 = vadd.f32 %v4813, %v5554
  %v5795 = vadd.f32 %v4818, %v5559
  %v5796 = vadd.f32 %v4821, %v5562
  %v5797 = vadd.f32 %v4826, %v5567
  %v5798 = vadd.f32 %v4829, %v5570
  %v5799 = vadd.f32 %v4834, %v5575
  %v5800 = vadd.f32 %v4837, %v5578
  %v5801 = vadd.f32 %v4842, %v5583
  %v5802 = vadd.f32 %v4845, %v5586
  %v5803 = vadd.f32 %v4850, %v5591
  %v5804 = vadd.f32 %v4853, %v5594
  %v5805 = vadd.f32 %v4858, %v5599
  %v5806 = vadd.f32 %v4861, %v5602
  %v5807 = vadd.f32 %v4866, %v5607
  %v5808 = vadd.f32 %v4869, %v5610
  %v5809 = vadd.f32 %v4874, %v5615
  %v5810 = vadd.f32 %v4877, %v5618
  %v5811 = vadd.f32 %v4882, %v5623
  %v5812 = vadd.f32 %v4885, %v5626
  %v5813 = vadd.f32 %v4890, %v5631
  %v5814 = vadd.f32 %v4893, %v5634
  %v5815 = vadd.f32 %v4898, %v5639
  %v5816 = vadd.f32 %v4901, %v5642
  %v5817 = vadd.f32 %v4906, %v5647
  %v5818 = vadd.f32 %v4909, %v5650
  %v5819 = vadd.f32 %v4914, %v5655
  %v5820 = vadd.f32 %v4917, %v5658
  %v5821 = vadd.f32 %v4922, %v5663
  %v5822 = vadd.f32 %v4925, %v5666
  %v5823 = vadd.f32 %v4930, %v5671
  %v5824 = vadd.f32 %v4933, %v5674
  %v5825 = vadd.f32 %v4938, %v5679
  %v5826 = vadd.f32 %v4941, %v5682
  %v5827 = vadd.f32 %v4946, %v5687
  %v5828 = vadd.f32 %v4949, %v5690
  %v5829 = vadd.f32 %v4954, %v5695
  %v5830 = vadd.f32 %v4957, %v5698
  %v5831 = vadd.f32 %v4962, %v5703
  %v5832 = vadd.f32 %v4965, %v5706
  %v5833 = vadd.f32 %v4970, %v5711
  %v5834 = vadd.f32 %v4973, %v5714
  %v5835 = vadd.f32 %v4978, %v5719
  %v5836 = vadd.f32 %v4981, %v5722
  %v5837 = vadd.f32 %v4986, %v5727
  %v5838 = vadd.f32 %v4989, %v5730
  %v5839 = vadd.f32 %v4994, %v5735
  %v5840 = vadd.f32 %v4997, %v5738
  %v5841 = vadd.f32 %v5002, %v5743
  %v5842 = vadd.f32 %v5005, %v5746
  %v5843 = vadd.f32 %v5010, %v5751
  %v5844 = vadd.f32 %v5013, %v5754
  %v5845 = vadd.f32 %v5018, %v5759
  %v5846 = vadd.f32 %v5021, %v5762
  %v5847 = vadd.f32 %v5026, %v5767
  %v5848 = vadd.f32 %v5029, %v5770
  %v5849 = vadd.f32 %v5034, %v5775
  %v5850 = vadd.f32 %v5037, %v5778
  %v5851 = vadd.f32 %v5042, %v5783
  %v5852 = vadd.f32 %v5045, %v5786
  %v5853 = vld [vmem:[%s6] sm:$0x1]
  %v5855 = vlaneseq
  %v5856 = vshrl.u32 %v5855, 7
  %v5857 = vsub.s32 0, %v5856
  %v5858 = vrot.slane %v5853, %v5857
  %v5860 = vadd.f32 %v5789, %v5858
  %v5861 = vadd.f32 %v5790, %v5858
  %v5862 = vadd.f32 %v5791, %v5858
  %v5863 = vadd.f32 %v5792, %v5858
  %v5864 = vadd.f32 %v5793, %v5858
  %v5865 = vadd.f32 %v5794, %v5858
  %v5866 = vadd.f32 %v5795, %v5858
  %v5867 = vadd.f32 %v5796, %v5858
  %v5868 = vadd.f32 %v5797, %v5858
  %v5869 = vadd.f32 %v5798, %v5858
  %v5870 = vadd.f32 %v5799, %v5858
  %v5871 = vadd.f32 %v5800, %v5858
  %v5872 = vadd.f32 %v5801, %v5858
  %v5873 = vadd.f32 %v5802, %v5858
  %v5874 = vadd.f32 %v5803, %v5858
  %v5875 = vadd.f32 %v5804, %v5858
  %v5876 = vadd.f32 %v5805, %v5858
  %v5877 = vadd.f32 %v5806, %v5858
  %v5878 = vadd.f32 %v5807, %v5858
  %v5879 = vadd.f32 %v5808, %v5858
  %v5880 = vadd.f32 %v5809, %v5858
  %v5881 = vadd.f32 %v5810, %v5858
  %v5882 = vadd.f32 %v5811, %v5858
  %v5883 = vadd.f32 %v5812, %v5858
  %v5884 = vadd.f32 %v5813, %v5858
  %v5885 = vadd.f32 %v5814, %v5858
  %v5886 = vadd.f32 %v5815, %v5858
  %v5887 = vadd.f32 %v5816, %v5858
  %v5888 = vadd.f32 %v5817, %v5858
  %v5889 = vadd.f32 %v5818, %v5858
  %v5890 = vadd.f32 %v5819, %v5858
  %v5891 = vadd.f32 %v5820, %v5858
  %v5892 = vadd.f32 %v5821, %v5858
  %v5893 = vadd.f32 %v5822, %v5858
  %v5894 = vadd.f32 %v5823, %v5858
  %v5895 = vadd.f32 %v5824, %v5858
  %v5896 = vadd.f32 %v5825, %v5858
  %v5897 = vadd.f32 %v5826, %v5858
  %v5898 = vadd.f32 %v5827, %v5858
  %v5899 = vadd.f32 %v5828, %v5858
  %v5900 = vadd.f32 %v5829, %v5858
  %v5901 = vadd.f32 %v5830, %v5858
  %v5902 = vadd.f32 %v5831, %v5858
  %v5903 = vadd.f32 %v5832, %v5858
  %v5904 = vadd.f32 %v5833, %v5858
  %v5905 = vadd.f32 %v5834, %v5858
  %v5906 = vadd.f32 %v5835, %v5858
  %v5907 = vadd.f32 %v5836, %v5858
  %v5908 = vadd.f32 %v5837, %v5858
  %v5909 = vadd.f32 %v5838, %v5858
  %v5910 = vadd.f32 %v5839, %v5858
  %v5911 = vadd.f32 %v5840, %v5858
  %v5912 = vadd.f32 %v5841, %v5858
  %v5913 = vadd.f32 %v5842, %v5858
  %v5914 = vadd.f32 %v5843, %v5858
  %v5915 = vadd.f32 %v5844, %v5858
  %v5916 = vadd.f32 %v5845, %v5858
  %v5917 = vadd.f32 %v5846, %v5858
  %v5918 = vadd.f32 %v5847, %v5858
  %v5919 = vadd.f32 %v5848, %v5858
  %v5920 = vadd.f32 %v5849, %v5858
  %v5921 = vadd.f32 %v5850, %v5858
  %v5922 = vadd.f32 %v5851, %v5858
  %v5923 = vadd.f32 %v5852, %v5858
  %v5924 = vld [vmem:[%s7] sm:$0x1]
  %v5925 = vld [vmem:[%s8] sm:$0x1]
  %v5926 = vadd.f32 %v5860, %v5861
  %v5927 = vadd.f32 %v5926, %v5862
  %v5928 = vadd.f32 %v5927, %v5863
  %v5929 = vadd.f32 %v5928, %v5864
  %v5930 = vadd.f32 %v5929, %v5865
  %v5931 = vadd.f32 %v5930, %v5866
  %v5932 = vadd.f32 %v5931, %v5867
  %v5933 = vadd.f32 %v5932, %v5868
  %v5934 = vadd.f32 %v5933, %v5869
  %v5935 = vadd.f32 %v5934, %v5870
  %v5936 = vadd.f32 %v5935, %v5871
  %v5937 = vadd.f32 %v5936, %v5872
  %v5938 = vadd.f32 %v5937, %v5873
  %v5939 = vadd.f32 %v5938, %v5874
  %v5940 = vadd.f32 %v5939, %v5875
  %v5941 = vadd.f32 %v5940, %v5876
  %v5942 = vadd.f32 %v5941, %v5877
  %v5943 = vadd.f32 %v5942, %v5878
  %v5944 = vadd.f32 %v5943, %v5879
  %v5945 = vadd.f32 %v5944, %v5880
  %v5946 = vadd.f32 %v5945, %v5881
  %v5947 = vadd.f32 %v5946, %v5882
  %v5948 = vadd.f32 %v5947, %v5883
  %v5949 = vadd.f32 %v5948, %v5884
  %v5950 = vadd.f32 %v5949, %v5885
  %v5951 = vadd.f32 %v5950, %v5886
  %v5952 = vadd.f32 %v5951, %v5887
  %v5953 = vadd.f32 %v5952, %v5888
  %v5954 = vadd.f32 %v5953, %v5889
  %v5955 = vadd.f32 %v5954, %v5890
  %v5956 = vadd.f32 %v5955, %v5891
  %v5957 = vadd.f32 %v5956, %v5892
  %v5958 = vadd.f32 %v5957, %v5893
  %v5959 = vadd.f32 %v5958, %v5894
  %v5960 = vadd.f32 %v5959, %v5895
  %v5961 = vadd.f32 %v5960, %v5896
  %v5962 = vadd.f32 %v5961, %v5897
  %v5963 = vadd.f32 %v5962, %v5898
  %v5964 = vadd.f32 %v5963, %v5899
  %v5965 = vadd.f32 %v5964, %v5900
  %v5966 = vadd.f32 %v5965, %v5901
  %v5967 = vadd.f32 %v5966, %v5902
  %v5968 = vadd.f32 %v5967, %v5903
  %v5969 = vadd.f32 %v5968, %v5904
  %v5970 = vadd.f32 %v5969, %v5905
  %v5971 = vadd.f32 %v5970, %v5906
  %v5972 = vadd.f32 %v5971, %v5907
  %v5973 = vadd.f32 %v5972, %v5908
  %v5974 = vadd.f32 %v5973, %v5909
  %v5975 = vadd.f32 %v5974, %v5910
  %v5976 = vadd.f32 %v5975, %v5911
  %v5977 = vadd.f32 %v5976, %v5912
  %v5978 = vadd.f32 %v5977, %v5913
  %v5979 = vadd.f32 %v5978, %v5914
  %v5980 = vadd.f32 %v5979, %v5915
  %v5981 = vadd.f32 %v5980, %v5916
  %v5982 = vadd.f32 %v5981, %v5917
  %v5983 = vadd.f32 %v5982, %v5918
  %v5984 = vadd.f32 %v5983, %v5919
  %v5985 = vadd.f32 %v5984, %v5920
  %v5986 = vadd.f32 %v5985, %v5921
  %v5987 = vadd.f32 %v5986, %v5922
  %v5988 = vadd.f32 %v5987, %v5923
  %v5989 = vrot.slane %v5988, 4
  %v5990 = vadd.f32 %v5988, %v5989
  %v5991 = vrot.slane %v5990, 2
  %v5992 = vadd.f32 %v5990, %v5991
  %v5993 = vrot.slane %v5992, 1
  %v5994 = vadd.f32 %v5992, %v5993
  %v5995 = vmul.f32 %v5994, %v1488
  %v5996 = vsub.f32 %v5860, %v5995
  %v5997 = vsub.f32 %v5861, %v5995
  %v5998 = vsub.f32 %v5862, %v5995
  %v5999 = vsub.f32 %v5863, %v5995
  %v6000 = vsub.f32 %v5864, %v5995
  %v6001 = vsub.f32 %v5865, %v5995
  %v6002 = vsub.f32 %v5866, %v5995
  %v6003 = vsub.f32 %v5867, %v5995
  %v6004 = vsub.f32 %v5868, %v5995
  %v6005 = vsub.f32 %v5869, %v5995
  %v6006 = vsub.f32 %v5870, %v5995
  %v6007 = vsub.f32 %v5871, %v5995
  %v6008 = vsub.f32 %v5872, %v5995
  %v6009 = vsub.f32 %v5873, %v5995
  %v6010 = vsub.f32 %v5874, %v5995
  %v6011 = vsub.f32 %v5875, %v5995
  %v6012 = vsub.f32 %v5876, %v5995
  %v6013 = vsub.f32 %v5877, %v5995
  %v6014 = vsub.f32 %v5878, %v5995
  %v6015 = vsub.f32 %v5879, %v5995
  %v6016 = vsub.f32 %v5880, %v5995
  %v6017 = vsub.f32 %v5881, %v5995
  %v6018 = vsub.f32 %v5882, %v5995
  %v6019 = vsub.f32 %v5883, %v5995
  %v6020 = vsub.f32 %v5884, %v5995
  %v6021 = vsub.f32 %v5885, %v5995
  %v6022 = vsub.f32 %v5886, %v5995
  %v6023 = vsub.f32 %v5887, %v5995
  %v6024 = vsub.f32 %v5888, %v5995
  %v6025 = vsub.f32 %v5889, %v5995
  %v6026 = vsub.f32 %v5890, %v5995
  %v6027 = vsub.f32 %v5891, %v5995
  %v6028 = vsub.f32 %v5892, %v5995
  %v6029 = vsub.f32 %v5893, %v5995
  %v6030 = vsub.f32 %v5894, %v5995
  %v6031 = vsub.f32 %v5895, %v5995
  %v6032 = vsub.f32 %v5896, %v5995
  %v6033 = vsub.f32 %v5897, %v5995
  %v6034 = vsub.f32 %v5898, %v5995
  %v6035 = vsub.f32 %v5899, %v5995
  %v6036 = vsub.f32 %v5900, %v5995
  %v6037 = vsub.f32 %v5901, %v5995
  %v6038 = vsub.f32 %v5902, %v5995
  %v6039 = vsub.f32 %v5903, %v5995
  %v6040 = vsub.f32 %v5904, %v5995
  %v6041 = vsub.f32 %v5905, %v5995
  %v6042 = vsub.f32 %v5906, %v5995
  %v6043 = vsub.f32 %v5907, %v5995
  %v6044 = vsub.f32 %v5908, %v5995
  %v6045 = vsub.f32 %v5909, %v5995
  %v6046 = vsub.f32 %v5910, %v5995
  %v6047 = vsub.f32 %v5911, %v5995
  %v6048 = vsub.f32 %v5912, %v5995
  %v6049 = vsub.f32 %v5913, %v5995
  %v6050 = vsub.f32 %v5914, %v5995
  %v6051 = vsub.f32 %v5915, %v5995
  %v6052 = vsub.f32 %v5916, %v5995
  %v6053 = vsub.f32 %v5917, %v5995
  %v6054 = vsub.f32 %v5918, %v5995
  %v6055 = vsub.f32 %v5919, %v5995
  %v6056 = vsub.f32 %v5920, %v5995
  %v6057 = vsub.f32 %v5921, %v5995
  %v6058 = vsub.f32 %v5922, %v5995
  %v6059 = vsub.f32 %v5923, %v5995
  %v6060 = vmul.f32 %v5996, %v5996
  %v6061 = vmul.f32 %v5997, %v5997
  %v6062 = vmul.f32 %v5998, %v5998
  %v6063 = vmul.f32 %v5999, %v5999
  %v6064 = vmul.f32 %v6000, %v6000
  %v6065 = vmul.f32 %v6001, %v6001
  %v6066 = vmul.f32 %v6002, %v6002
  %v6067 = vmul.f32 %v6003, %v6003
  %v6068 = vmul.f32 %v6004, %v6004
  %v6069 = vmul.f32 %v6005, %v6005
  %v6070 = vmul.f32 %v6006, %v6006
  %v6071 = vmul.f32 %v6007, %v6007
  %v6072 = vmul.f32 %v6008, %v6008
  %v6073 = vmul.f32 %v6009, %v6009
  %v6074 = vmul.f32 %v6010, %v6010
  %v6075 = vmul.f32 %v6011, %v6011
  %v6076 = vmul.f32 %v6012, %v6012
  %v6077 = vmul.f32 %v6013, %v6013
  %v6078 = vmul.f32 %v6014, %v6014
  %v6079 = vmul.f32 %v6015, %v6015
  %v6080 = vmul.f32 %v6016, %v6016
  %v6081 = vmul.f32 %v6017, %v6017
  %v6082 = vmul.f32 %v6018, %v6018
  %v6083 = vmul.f32 %v6019, %v6019
  %v6084 = vmul.f32 %v6020, %v6020
  %v6085 = vmul.f32 %v6021, %v6021
  %v6086 = vmul.f32 %v6022, %v6022
  %v6087 = vmul.f32 %v6023, %v6023
  %v6088 = vmul.f32 %v6024, %v6024
  %v6089 = vmul.f32 %v6025, %v6025
  %v6090 = vmul.f32 %v6026, %v6026
  %v6091 = vmul.f32 %v6027, %v6027
  %v6092 = vmul.f32 %v6028, %v6028
  %v6093 = vmul.f32 %v6029, %v6029
  %v6094 = vmul.f32 %v6030, %v6030
  %v6095 = vmul.f32 %v6031, %v6031
  %v6096 = vmul.f32 %v6032, %v6032
  %v6097 = vmul.f32 %v6033, %v6033
  %v6098 = vmul.f32 %v6034, %v6034
  %v6099 = vmul.f32 %v6035, %v6035
  %v6100 = vmul.f32 %v6036, %v6036
  %v6101 = vmul.f32 %v6037, %v6037
  %v6102 = vmul.f32 %v6038, %v6038
  %v6103 = vmul.f32 %v6039, %v6039
  %v6104 = vmul.f32 %v6040, %v6040
  %v6105 = vmul.f32 %v6041, %v6041
  %v6106 = vmul.f32 %v6042, %v6042
  %v6107 = vmul.f32 %v6043, %v6043
  %v6108 = vmul.f32 %v6044, %v6044
  %v6109 = vmul.f32 %v6045, %v6045
  %v6110 = vmul.f32 %v6046, %v6046
  %v6111 = vmul.f32 %v6047, %v6047
  %v6112 = vmul.f32 %v6048, %v6048
  %v6113 = vmul.f32 %v6049, %v6049
  %v6114 = vmul.f32 %v6050, %v6050
  %v6115 = vmul.f32 %v6051, %v6051
  %v6116 = vmul.f32 %v6052, %v6052
  %v6117 = vmul.f32 %v6053, %v6053
  %v6118 = vmul.f32 %v6054, %v6054
  %v6119 = vmul.f32 %v6055, %v6055
  %v6120 = vmul.f32 %v6056, %v6056
  %v6121 = vmul.f32 %v6057, %v6057
  %v6122 = vmul.f32 %v6058, %v6058
  %v6123 = vmul.f32 %v6059, %v6059
  %v6124 = vadd.f32 %v6060, %v6061
  %v6125 = vadd.f32 %v6124, %v6062
  %v6126 = vadd.f32 %v6125, %v6063
  %v6127 = vadd.f32 %v6126, %v6064
  %v6128 = vadd.f32 %v6127, %v6065
  %v6129 = vadd.f32 %v6128, %v6066
  %v6130 = vadd.f32 %v6129, %v6067
  %v6131 = vadd.f32 %v6130, %v6068
  %v6132 = vadd.f32 %v6131, %v6069
  %v6133 = vadd.f32 %v6132, %v6070
  %v6134 = vadd.f32 %v6133, %v6071
  %v6135 = vadd.f32 %v6134, %v6072
  %v6136 = vadd.f32 %v6135, %v6073
  %v6137 = vadd.f32 %v6136, %v6074
  %v6138 = vadd.f32 %v6137, %v6075
  %v6139 = vadd.f32 %v6138, %v6076
  %v6140 = vadd.f32 %v6139, %v6077
  %v6141 = vadd.f32 %v6140, %v6078
  %v6142 = vadd.f32 %v6141, %v6079
  %v6143 = vadd.f32 %v6142, %v6080
  %v6144 = vadd.f32 %v6143, %v6081
  %v6145 = vadd.f32 %v6144, %v6082
  %v6146 = vadd.f32 %v6145, %v6083
  %v6147 = vadd.f32 %v6146, %v6084
  %v6148 = vadd.f32 %v6147, %v6085
  %v6149 = vadd.f32 %v6148, %v6086
  %v6150 = vadd.f32 %v6149, %v6087
  %v6151 = vadd.f32 %v6150, %v6088
  %v6152 = vadd.f32 %v6151, %v6089
  %v6153 = vadd.f32 %v6152, %v6090
  %v6154 = vadd.f32 %v6153, %v6091
  %v6155 = vadd.f32 %v6154, %v6092
  %v6156 = vadd.f32 %v6155, %v6093
  %v6157 = vadd.f32 %v6156, %v6094
  %v6158 = vadd.f32 %v6157, %v6095
  %v6159 = vadd.f32 %v6158, %v6096
  %v6160 = vadd.f32 %v6159, %v6097
  %v6161 = vadd.f32 %v6160, %v6098
  %v6162 = vadd.f32 %v6161, %v6099
  %v6163 = vadd.f32 %v6162, %v6100
  %v6164 = vadd.f32 %v6163, %v6101
  %v6165 = vadd.f32 %v6164, %v6102
  %v6166 = vadd.f32 %v6165, %v6103
  %v6167 = vadd.f32 %v6166, %v6104
  %v6168 = vadd.f32 %v6167, %v6105
  %v6169 = vadd.f32 %v6168, %v6106
  %v6170 = vadd.f32 %v6169, %v6107
  %v6171 = vadd.f32 %v6170, %v6108
  %v6172 = vadd.f32 %v6171, %v6109
  %v6173 = vadd.f32 %v6172, %v6110
  %v6174 = vadd.f32 %v6173, %v6111
  %v6175 = vadd.f32 %v6174, %v6112
  %v6176 = vadd.f32 %v6175, %v6113
  %v6177 = vadd.f32 %v6176, %v6114
  %v6178 = vadd.f32 %v6177, %v6115
  %v6179 = vadd.f32 %v6178, %v6116
  %v6180 = vadd.f32 %v6179, %v6117
  %v6181 = vadd.f32 %v6180, %v6118
  %v6182 = vadd.f32 %v6181, %v6119
  %v6183 = vadd.f32 %v6182, %v6120
  %v6184 = vadd.f32 %v6183, %v6121
  %v6185 = vadd.f32 %v6184, %v6122
  %v6186 = vadd.f32 %v6185, %v6123
  %v6187 = vrot.slane %v6186, 4
  %v6188 = vadd.f32 %v6186, %v6187
  %v6189 = vrot.slane %v6188, 2
  %v6190 = vadd.f32 %v6188, %v6189
  %v6191 = vrot.slane %v6190, 1
  %v6192 = vadd.f32 %v6190, %v6191
  %v6193 = vmul.f32 %v6192, %v1488
  %v6194 = vadd.f32 %v6193, 1e-05
  %v6195 = vrsqrt.pop %v6194
  %v6196 = vmul.f32 %v5924, %v6195
  %v6198 = vlaneseq
  %v6199 = vshrl.u32 %v6198, 7
  %v6200 = vsub.s32 0, %v6199
  %v6201 = vrot.slane %v6196, %v6200
  %v6203 = vmul.f32 %v5860, %v6201
  %v6204 = vmul.f32 %v5861, %v6201
  %v6205 = vmul.f32 %v5862, %v6201
  %v6206 = vmul.f32 %v5863, %v6201
  %v6207 = vmul.f32 %v5864, %v6201
  %v6208 = vmul.f32 %v5865, %v6201
  %v6209 = vmul.f32 %v5866, %v6201
  %v6210 = vmul.f32 %v5867, %v6201
  %v6211 = vmul.f32 %v5868, %v6201
  %v6212 = vmul.f32 %v5869, %v6201
  %v6213 = vmul.f32 %v5870, %v6201
  %v6214 = vmul.f32 %v5871, %v6201
  %v6215 = vmul.f32 %v5872, %v6201
  %v6216 = vmul.f32 %v5873, %v6201
  %v6217 = vmul.f32 %v5874, %v6201
  %v6218 = vmul.f32 %v5875, %v6201
  %v6219 = vmul.f32 %v5876, %v6201
  %v6220 = vmul.f32 %v5877, %v6201
  %v6221 = vmul.f32 %v5878, %v6201
  %v6222 = vmul.f32 %v5879, %v6201
  %v6223 = vmul.f32 %v5880, %v6201
  %v6224 = vmul.f32 %v5881, %v6201
  %v6225 = vmul.f32 %v5882, %v6201
  %v6226 = vmul.f32 %v5883, %v6201
  %v6227 = vmul.f32 %v5884, %v6201
  %v6228 = vmul.f32 %v5885, %v6201
  %v6229 = vmul.f32 %v5886, %v6201
  %v6230 = vmul.f32 %v5887, %v6201
  %v6231 = vmul.f32 %v5888, %v6201
  %v6232 = vmul.f32 %v5889, %v6201
  %v6233 = vmul.f32 %v5890, %v6201
  %v6234 = vmul.f32 %v5891, %v6201
  %v6235 = vmul.f32 %v5892, %v6201
  %v6236 = vmul.f32 %v5893, %v6201
  %v6237 = vmul.f32 %v5894, %v6201
  %v6238 = vmul.f32 %v5895, %v6201
  %v6239 = vmul.f32 %v5896, %v6201
  %v6240 = vmul.f32 %v5897, %v6201
  %v6241 = vmul.f32 %v5898, %v6201
  %v6242 = vmul.f32 %v5899, %v6201
  %v6243 = vmul.f32 %v5900, %v6201
  %v6244 = vmul.f32 %v5901, %v6201
  %v6245 = vmul.f32 %v5902, %v6201
  %v6246 = vmul.f32 %v5903, %v6201
  %v6247 = vmul.f32 %v5904, %v6201
  %v6248 = vmul.f32 %v5905, %v6201
  %v6249 = vmul.f32 %v5906, %v6201
  %v6250 = vmul.f32 %v5907, %v6201
  %v6251 = vmul.f32 %v5908, %v6201
  %v6252 = vmul.f32 %v5909, %v6201
  %v6253 = vmul.f32 %v5910, %v6201
  %v6254 = vmul.f32 %v5911, %v6201
  %v6255 = vmul.f32 %v5912, %v6201
  %v6256 = vmul.f32 %v5913, %v6201
  %v6257 = vmul.f32 %v5914, %v6201
  %v6258 = vmul.f32 %v5915, %v6201
  %v6259 = vmul.f32 %v5916, %v6201
  %v6260 = vmul.f32 %v5917, %v6201
  %v6261 = vmul.f32 %v5918, %v6201
  %v6262 = vmul.f32 %v5919, %v6201
  %v6263 = vmul.f32 %v5920, %v6201
  %v6264 = vmul.f32 %v5921, %v6201
  %v6265 = vmul.f32 %v5922, %v6201
  %v6266 = vmul.f32 %v5923, %v6201
  %v6267 = vmul.f32 %v6196, %v5995
  %v6268 = vsub.f32 %v5925, %v6267
  %v6270 = vlaneseq
  %v6271 = vshrl.u32 %v6270, 7
  %v6272 = vsub.s32 0, %v6271
  %v6273 = vrot.slane %v6268, %v6272
  %v6275 = vadd.f32 %v6203, %v6273
  %v6276 = vadd.f32 %v6204, %v6273
  %v6277 = vadd.f32 %v6205, %v6273
  %v6278 = vadd.f32 %v6206, %v6273
  %v6279 = vadd.f32 %v6207, %v6273
  %v6280 = vadd.f32 %v6208, %v6273
  %v6281 = vadd.f32 %v6209, %v6273
  %v6282 = vadd.f32 %v6210, %v6273
  %v6283 = vadd.f32 %v6211, %v6273
  %v6284 = vadd.f32 %v6212, %v6273
  %v6285 = vadd.f32 %v6213, %v6273
  %v6286 = vadd.f32 %v6214, %v6273
  %v6287 = vadd.f32 %v6215, %v6273
  %v6288 = vadd.f32 %v6216, %v6273
  %v6289 = vadd.f32 %v6217, %v6273
  %v6290 = vadd.f32 %v6218, %v6273
  %v6291 = vadd.f32 %v6219, %v6273
  %v6292 = vadd.f32 %v6220, %v6273
  %v6293 = vadd.f32 %v6221, %v6273
  %v6294 = vadd.f32 %v6222, %v6273
  %v6295 = vadd.f32 %v6223, %v6273
  %v6296 = vadd.f32 %v6224, %v6273
  %v6297 = vadd.f32 %v6225, %v6273
  %v6298 = vadd.f32 %v6226, %v6273
  %v6299 = vadd.f32 %v6227, %v6273
  %v6300 = vadd.f32 %v6228, %v6273
  %v6301 = vadd.f32 %v6229, %v6273
  %v6302 = vadd.f32 %v6230, %v6273
  %v6303 = vadd.f32 %v6231, %v6273
  %v6304 = vadd.f32 %v6232, %v6273
  %v6305 = vadd.f32 %v6233, %v6273
  %v6306 = vadd.f32 %v6234, %v6273
  %v6307 = vadd.f32 %v6235, %v6273
  %v6308 = vadd.f32 %v6236, %v6273
  %v6309 = vadd.f32 %v6237, %v6273
  %v6310 = vadd.f32 %v6238, %v6273
  %v6311 = vadd.f32 %v6239, %v6273
  %v6312 = vadd.f32 %v6240, %v6273
  %v6313 = vadd.f32 %v6241, %v6273
  %v6314 = vadd.f32 %v6242, %v6273
  %v6315 = vadd.f32 %v6243, %v6273
  %v6316 = vadd.f32 %v6244, %v6273
  %v6317 = vadd.f32 %v6245, %v6273
  %v6318 = vadd.f32 %v6246, %v6273
  %v6319 = vadd.f32 %v6247, %v6273
  %v6320 = vadd.f32 %v6248, %v6273
  %v6321 = vadd.f32 %v6249, %v6273
  %v6322 = vadd.f32 %v6250, %v6273
  %v6323 = vadd.f32 %v6251, %v6273
  %v6324 = vadd.f32 %v6252, %v6273
  %v6325 = vadd.f32 %v6253, %v6273
  %v6326 = vadd.f32 %v6254, %v6273
  %v6327 = vadd.f32 %v6255, %v6273
  %v6328 = vadd.f32 %v6256, %v6273
  %v6329 = vadd.f32 %v6257, %v6273
  %v6330 = vadd.f32 %v6258, %v6273
  %v6331 = vadd.f32 %v6259, %v6273
  %v6332 = vadd.f32 %v6260, %v6273
  %v6333 = vadd.f32 %v6261, %v6273
  %v6334 = vadd.f32 %v6262, %v6273
  %v6335 = vadd.f32 %v6263, %v6273
  %v6336 = vadd.f32 %v6264, %v6273
  %v6337 = vadd.f32 %v6265, %v6273
  %v6338 = vadd.f32 %v6266, %v6273
  %v6339 = vmax.f32 %v6275, 0.0
  %v6340 = vmax.f32 %v6276, 0.0
  %v6341 = vmax.f32 %v6277, 0.0
  %v6342 = vmax.f32 %v6278, 0.0
  %v6343 = vmax.f32 %v6279, 0.0
  %v6344 = vmax.f32 %v6280, 0.0
  %v6345 = vmax.f32 %v6281, 0.0
  %v6346 = vmax.f32 %v6282, 0.0
  %v6347 = vmax.f32 %v6283, 0.0
  %v6348 = vmax.f32 %v6284, 0.0
  %v6349 = vmax.f32 %v6285, 0.0
  %v6350 = vmax.f32 %v6286, 0.0
  %v6351 = vmax.f32 %v6287, 0.0
  %v6352 = vmax.f32 %v6288, 0.0
  %v6353 = vmax.f32 %v6289, 0.0
  %v6354 = vmax.f32 %v6290, 0.0
  %v6355 = vmax.f32 %v6291, 0.0
  %v6356 = vmax.f32 %v6292, 0.0
  %v6357 = vmax.f32 %v6293, 0.0
  %v6358 = vmax.f32 %v6294, 0.0
  %v6359 = vmax.f32 %v6295, 0.0
  %v6360 = vmax.f32 %v6296, 0.0
  %v6361 = vmax.f32 %v6297, 0.0
  %v6362 = vmax.f32 %v6298, 0.0
  %v6363 = vmax.f32 %v6299, 0.0
  %v6364 = vmax.f32 %v6300, 0.0
  %v6365 = vmax.f32 %v6301, 0.0
  %v6366 = vmax.f32 %v6302, 0.0
  %v6367 = vmax.f32 %v6303, 0.0
  %v6368 = vmax.f32 %v6304, 0.0
  %v6369 = vmax.f32 %v6305, 0.0
  %v6370 = vmax.f32 %v6306, 0.0
  %v6371 = vmax.f32 %v6307, 0.0
  %v6372 = vmax.f32 %v6308, 0.0
  %v6373 = vmax.f32 %v6309, 0.0
  %v6374 = vmax.f32 %v6310, 0.0
  %v6375 = vmax.f32 %v6311, 0.0
  %v6376 = vmax.f32 %v6312, 0.0
  %v6377 = vmax.f32 %v6313, 0.0
  %v6378 = vmax.f32 %v6314, 0.0
  %v6379 = vmax.f32 %v6315, 0.0
  %v6380 = vmax.f32 %v6316, 0.0
  %v6381 = vmax.f32 %v6317, 0.0
  %v6382 = vmax.f32 %v6318, 0.0
  %v6383 = vmax.f32 %v6319, 0.0
  %v6384 = vmax.f32 %v6320, 0.0
  %v6385 = vmax.f32 %v6321, 0.0
  %v6386 = vmax.f32 %v6322, 0.0
  %v6387 = vmax.f32 %v6323, 0.0
  %v6388 = vmax.f32 %v6324, 0.0
  %v6389 = vmax.f32 %v6325, 0.0
  %v6390 = vmax.f32 %v6326, 0.0
  %v6391 = vmax.f32 %v6327, 0.0
  %v6392 = vmax.f32 %v6328, 0.0
  %v6393 = vmax.f32 %v6329, 0.0
  %v6394 = vmax.f32 %v6330, 0.0
  %v6395 = vmax.f32 %v6331, 0.0
  %v6396 = vmax.f32 %v6332, 0.0
  %v6397 = vmax.f32 %v6333, 0.0
  %v6398 = vmax.f32 %v6334, 0.0
  %v6399 = vmax.f32 %v6335, 0.0
  %v6400 = vmax.f32 %v6336, 0.0
  %v6401 = vmax.f32 %v6337, 0.0
  %v6402 = vmax.f32 %v6338, 0.0
  %v6403 = vld [vmem:[%s9] sm:$0x1]
  %v6404 = vld [vmem:[%s10] sm:$0x1]
  %v6405 = vadd.f32 %v6339, %v6340
  %v6406 = vadd.f32 %v6405, %v6341
  %v6407 = vadd.f32 %v6406, %v6342
  %v6408 = vadd.f32 %v6407, %v6343
  %v6409 = vadd.f32 %v6408, %v6344
  %v6410 = vadd.f32 %v6409, %v6345
  %v6411 = vadd.f32 %v6410, %v6346
  %v6412 = vadd.f32 %v6411, %v6347
  %v6413 = vadd.f32 %v6412, %v6348
  %v6414 = vadd.f32 %v6413, %v6349
  %v6415 = vadd.f32 %v6414, %v6350
  %v6416 = vadd.f32 %v6415, %v6351
  %v6417 = vadd.f32 %v6416, %v6352
  %v6418 = vadd.f32 %v6417, %v6353
  %v6419 = vadd.f32 %v6418, %v6354
  %v6420 = vadd.f32 %v6419, %v6355
  %v6421 = vadd.f32 %v6420, %v6356
  %v6422 = vadd.f32 %v6421, %v6357
  %v6423 = vadd.f32 %v6422, %v6358
  %v6424 = vadd.f32 %v6423, %v6359
  %v6425 = vadd.f32 %v6424, %v6360
  %v6426 = vadd.f32 %v6425, %v6361
  %v6427 = vadd.f32 %v6426, %v6362
  %v6428 = vadd.f32 %v6427, %v6363
  %v6429 = vadd.f32 %v6428, %v6364
  %v6430 = vadd.f32 %v6429, %v6365
  %v6431 = vadd.f32 %v6430, %v6366
  %v6432 = vadd.f32 %v6431, %v6367
  %v6433 = vadd.f32 %v6432, %v6368
  %v6434 = vadd.f32 %v6433, %v6369
  %v6435 = vadd.f32 %v6434, %v6370
  %v6436 = vadd.f32 %v6435, %v6371
  %v6437 = vadd.f32 %v6436, %v6372
  %v6438 = vadd.f32 %v6437, %v6373
  %v6439 = vadd.f32 %v6438, %v6374
  %v6440 = vadd.f32 %v6439, %v6375
  %v6441 = vadd.f32 %v6440, %v6376
  %v6442 = vadd.f32 %v6441, %v6377
  %v6443 = vadd.f32 %v6442, %v6378
  %v6444 = vadd.f32 %v6443, %v6379
  %v6445 = vadd.f32 %v6444, %v6380
  %v6446 = vadd.f32 %v6445, %v6381
  %v6447 = vadd.f32 %v6446, %v6382
  %v6448 = vadd.f32 %v6447, %v6383
  %v6449 = vadd.f32 %v6448, %v6384
  %v6450 = vadd.f32 %v6449, %v6385
  %v6451 = vadd.f32 %v6450, %v6386
  %v6452 = vadd.f32 %v6451, %v6387
  %v6453 = vadd.f32 %v6452, %v6388
  %v6454 = vadd.f32 %v6453, %v6389
  %v6455 = vadd.f32 %v6454, %v6390
  %v6456 = vadd.f32 %v6455, %v6391
  %v6457 = vadd.f32 %v6456, %v6392
  %v6458 = vadd.f32 %v6457, %v6393
  %v6459 = vadd.f32 %v6458, %v6394
  %v6460 = vadd.f32 %v6459, %v6395
  %v6461 = vadd.f32 %v6460, %v6396
  %v6462 = vadd.f32 %v6461, %v6397
  %v6463 = vadd.f32 %v6462, %v6398
  %v6464 = vadd.f32 %v6463, %v6399
  %v6465 = vadd.f32 %v6464, %v6400
  %v6466 = vadd.f32 %v6465, %v6401
  %v6467 = vadd.f32 %v6466, %v6402
  %v6468 = vrot.slane %v6467, 4
  %v6469 = vadd.f32 %v6467, %v6468
  %v6470 = vrot.slane %v6469, 2
  %v6471 = vadd.f32 %v6469, %v6470
  %v6472 = vrot.slane %v6471, 1
  %v6473 = vadd.f32 %v6471, %v6472
  %v6474 = vmul.f32 %v6473, %v1488
  %v6475 = vsub.f32 %v6339, %v6474
  %v6476 = vsub.f32 %v6340, %v6474
  %v6477 = vsub.f32 %v6341, %v6474
  %v6478 = vsub.f32 %v6342, %v6474
  %v6479 = vsub.f32 %v6343, %v6474
  %v6480 = vsub.f32 %v6344, %v6474
  %v6481 = vsub.f32 %v6345, %v6474
  %v6482 = vsub.f32 %v6346, %v6474
  %v6483 = vsub.f32 %v6347, %v6474
  %v6484 = vsub.f32 %v6348, %v6474
  %v6485 = vsub.f32 %v6349, %v6474
  %v6486 = vsub.f32 %v6350, %v6474
  %v6487 = vsub.f32 %v6351, %v6474
  %v6488 = vsub.f32 %v6352, %v6474
  %v6489 = vsub.f32 %v6353, %v6474
  %v6490 = vsub.f32 %v6354, %v6474
  %v6491 = vsub.f32 %v6355, %v6474
  %v6492 = vsub.f32 %v6356, %v6474
  %v6493 = vsub.f32 %v6357, %v6474
  %v6494 = vsub.f32 %v6358, %v6474
  %v6495 = vsub.f32 %v6359, %v6474
  %v6496 = vsub.f32 %v6360, %v6474
  %v6497 = vsub.f32 %v6361, %v6474
  %v6498 = vsub.f32 %v6362, %v6474
  %v6499 = vsub.f32 %v6363, %v6474
  %v6500 = vsub.f32 %v6364, %v6474
  %v6501 = vsub.f32 %v6365, %v6474
  %v6502 = vsub.f32 %v6366, %v6474
  %v6503 = vsub.f32 %v6367, %v6474
  %v6504 = vsub.f32 %v6368, %v6474
  %v6505 = vsub.f32 %v6369, %v6474
  %v6506 = vsub.f32 %v6370, %v6474
  %v6507 = vsub.f32 %v6371, %v6474
  %v6508 = vsub.f32 %v6372, %v6474
  %v6509 = vsub.f32 %v6373, %v6474
  %v6510 = vsub.f32 %v6374, %v6474
  %v6511 = vsub.f32 %v6375, %v6474
  %v6512 = vsub.f32 %v6376, %v6474
  %v6513 = vsub.f32 %v6377, %v6474
  %v6514 = vsub.f32 %v6378, %v6474
  %v6515 = vsub.f32 %v6379, %v6474
  %v6516 = vsub.f32 %v6380, %v6474
  %v6517 = vsub.f32 %v6381, %v6474
  %v6518 = vsub.f32 %v6382, %v6474
  %v6519 = vsub.f32 %v6383, %v6474
  %v6520 = vsub.f32 %v6384, %v6474
  %v6521 = vsub.f32 %v6385, %v6474
  %v6522 = vsub.f32 %v6386, %v6474
  %v6523 = vsub.f32 %v6387, %v6474
  %v6524 = vsub.f32 %v6388, %v6474
  %v6525 = vsub.f32 %v6389, %v6474
  %v6526 = vsub.f32 %v6390, %v6474
  %v6527 = vsub.f32 %v6391, %v6474
  %v6528 = vsub.f32 %v6392, %v6474
  %v6529 = vsub.f32 %v6393, %v6474
  %v6530 = vsub.f32 %v6394, %v6474
  %v6531 = vsub.f32 %v6395, %v6474
  %v6532 = vsub.f32 %v6396, %v6474
  %v6533 = vsub.f32 %v6397, %v6474
  %v6534 = vsub.f32 %v6398, %v6474
  %v6535 = vsub.f32 %v6399, %v6474
  %v6536 = vsub.f32 %v6400, %v6474
  %v6537 = vsub.f32 %v6401, %v6474
  %v6538 = vsub.f32 %v6402, %v6474
  %v6539 = vmul.f32 %v6475, %v6475
  %v6540 = vmul.f32 %v6476, %v6476
  %v6541 = vmul.f32 %v6477, %v6477
  %v6542 = vmul.f32 %v6478, %v6478
  %v6543 = vmul.f32 %v6479, %v6479
  %v6544 = vmul.f32 %v6480, %v6480
  %v6545 = vmul.f32 %v6481, %v6481
  %v6546 = vmul.f32 %v6482, %v6482
  %v6547 = vmul.f32 %v6483, %v6483
  %v6548 = vmul.f32 %v6484, %v6484
  %v6549 = vmul.f32 %v6485, %v6485
  %v6550 = vmul.f32 %v6486, %v6486
  %v6551 = vmul.f32 %v6487, %v6487
  %v6552 = vmul.f32 %v6488, %v6488
  %v6553 = vmul.f32 %v6489, %v6489
  %v6554 = vmul.f32 %v6490, %v6490
  %v6555 = vmul.f32 %v6491, %v6491
  %v6556 = vmul.f32 %v6492, %v6492
  %v6557 = vmul.f32 %v6493, %v6493
  %v6558 = vmul.f32 %v6494, %v6494
  %v6559 = vmul.f32 %v6495, %v6495
  %v6560 = vmul.f32 %v6496, %v6496
  %v6561 = vmul.f32 %v6497, %v6497
  %v6562 = vmul.f32 %v6498, %v6498
  %v6563 = vmul.f32 %v6499, %v6499
  %v6564 = vmul.f32 %v6500, %v6500
  %v6565 = vmul.f32 %v6501, %v6501
  %v6566 = vmul.f32 %v6502, %v6502
  %v6567 = vmul.f32 %v6503, %v6503
  %v6568 = vmul.f32 %v6504, %v6504
  %v6569 = vmul.f32 %v6505, %v6505
  %v6570 = vmul.f32 %v6506, %v6506
  %v6571 = vmul.f32 %v6507, %v6507
  %v6572 = vmul.f32 %v6508, %v6508
  %v6573 = vmul.f32 %v6509, %v6509
  %v6574 = vmul.f32 %v6510, %v6510
  %v6575 = vmul.f32 %v6511, %v6511
  %v6576 = vmul.f32 %v6512, %v6512
  %v6577 = vmul.f32 %v6513, %v6513
  %v6578 = vmul.f32 %v6514, %v6514
  %v6579 = vmul.f32 %v6515, %v6515
  %v6580 = vmul.f32 %v6516, %v6516
  %v6581 = vmul.f32 %v6517, %v6517
  %v6582 = vmul.f32 %v6518, %v6518
  %v6583 = vmul.f32 %v6519, %v6519
  %v6584 = vmul.f32 %v6520, %v6520
  %v6585 = vmul.f32 %v6521, %v6521
  %v6586 = vmul.f32 %v6522, %v6522
  %v6587 = vmul.f32 %v6523, %v6523
  %v6588 = vmul.f32 %v6524, %v6524
  %v6589 = vmul.f32 %v6525, %v6525
  %v6590 = vmul.f32 %v6526, %v6526
  %v6591 = vmul.f32 %v6527, %v6527
  %v6592 = vmul.f32 %v6528, %v6528
  %v6593 = vmul.f32 %v6529, %v6529
  %v6594 = vmul.f32 %v6530, %v6530
  %v6595 = vmul.f32 %v6531, %v6531
  %v6596 = vmul.f32 %v6532, %v6532
  %v6597 = vmul.f32 %v6533, %v6533
  %v6598 = vmul.f32 %v6534, %v6534
  %v6599 = vmul.f32 %v6535, %v6535
  %v6600 = vmul.f32 %v6536, %v6536
  %v6601 = vmul.f32 %v6537, %v6537
  %v6602 = vmul.f32 %v6538, %v6538
  %v6603 = vadd.f32 %v6539, %v6540
  %v6604 = vadd.f32 %v6603, %v6541
  %v6605 = vadd.f32 %v6604, %v6542
  %v6606 = vadd.f32 %v6605, %v6543
  %v6607 = vadd.f32 %v6606, %v6544
  %v6608 = vadd.f32 %v6607, %v6545
  %v6609 = vadd.f32 %v6608, %v6546
  %v6610 = vadd.f32 %v6609, %v6547
  %v6611 = vadd.f32 %v6610, %v6548
  %v6612 = vadd.f32 %v6611, %v6549
  %v6613 = vadd.f32 %v6612, %v6550
  %v6614 = vadd.f32 %v6613, %v6551
  %v6615 = vadd.f32 %v6614, %v6552
  %v6616 = vadd.f32 %v6615, %v6553
  %v6617 = vadd.f32 %v6616, %v6554
  %v6618 = vadd.f32 %v6617, %v6555
  %v6619 = vadd.f32 %v6618, %v6556
  %v6620 = vadd.f32 %v6619, %v6557
  %v6621 = vadd.f32 %v6620, %v6558
  %v6622 = vadd.f32 %v6621, %v6559
  %v6623 = vadd.f32 %v6622, %v6560
  %v6624 = vadd.f32 %v6623, %v6561
  %v6625 = vadd.f32 %v6624, %v6562
  %v6626 = vadd.f32 %v6625, %v6563
  %v6627 = vadd.f32 %v6626, %v6564
  %v6628 = vadd.f32 %v6627, %v6565
  %v6629 = vadd.f32 %v6628, %v6566
  %v6630 = vadd.f32 %v6629, %v6567
  %v6631 = vadd.f32 %v6630, %v6568
  %v6632 = vadd.f32 %v6631, %v6569
  %v6633 = vadd.f32 %v6632, %v6570
  %v6634 = vadd.f32 %v6633, %v6571
  %v6635 = vadd.f32 %v6634, %v6572
  %v6636 = vadd.f32 %v6635, %v6573
  %v6637 = vadd.f32 %v6636, %v6574
  %v6638 = vadd.f32 %v6637, %v6575
  %v6639 = vadd.f32 %v6638, %v6576
  %v6640 = vadd.f32 %v6639, %v6577
  %v6641 = vadd.f32 %v6640, %v6578
  %v6642 = vadd.f32 %v6641, %v6579
  %v6643 = vadd.f32 %v6642, %v6580
  %v6644 = vadd.f32 %v6643, %v6581
  %v6645 = vadd.f32 %v6644, %v6582
  %v6646 = vadd.f32 %v6645, %v6583
  %v6647 = vadd.f32 %v6646, %v6584
  %v6648 = vadd.f32 %v6647, %v6585
  %v6649 = vadd.f32 %v6648, %v6586
  %v6650 = vadd.f32 %v6649, %v6587
  %v6651 = vadd.f32 %v6650, %v6588
  %v6652 = vadd.f32 %v6651, %v6589
  %v6653 = vadd.f32 %v6652, %v6590
  %v6654 = vadd.f32 %v6653, %v6591
  %v6655 = vadd.f32 %v6654, %v6592
  %v6656 = vadd.f32 %v6655, %v6593
  %v6657 = vadd.f32 %v6656, %v6594
  %v6658 = vadd.f32 %v6657, %v6595
  %v6659 = vadd.f32 %v6658, %v6596
  %v6660 = vadd.f32 %v6659, %v6597
  %v6661 = vadd.f32 %v6660, %v6598
  %v6662 = vadd.f32 %v6661, %v6599
  %v6663 = vadd.f32 %v6662, %v6600
  %v6664 = vadd.f32 %v6663, %v6601
  %v6665 = vadd.f32 %v6664, %v6602
  %v6666 = vrot.slane %v6665, 4
  %v6667 = vadd.f32 %v6665, %v6666
  %v6668 = vrot.slane %v6667, 2
  %v6669 = vadd.f32 %v6667, %v6668
  %v6670 = vrot.slane %v6669, 1
  %v6671 = vadd.f32 %v6669, %v6670
  %v6672 = vmul.f32 %v6671, %v1488
  %v6673 = vadd.f32 %v6672, 1e-05
  %v6674 = vrsqrt.pop %v6673
  %v6675 = vmul.f32 %v6403, %v6674
  %v6677 = vlaneseq
  %v6678 = vshrl.u32 %v6677, 7
  %v6679 = vsub.s32 0, %v6678
  %v6680 = vrot.slane %v6675, %v6679
  %v6682 = vmul.f32 %v6339, %v6680
  %v6683 = vmul.f32 %v6340, %v6680
  %v6684 = vmul.f32 %v6341, %v6680
  %v6685 = vmul.f32 %v6342, %v6680
  %v6686 = vmul.f32 %v6343, %v6680
  %v6687 = vmul.f32 %v6344, %v6680
  %v6688 = vmul.f32 %v6345, %v6680
  %v6689 = vmul.f32 %v6346, %v6680
  %v6690 = vmul.f32 %v6347, %v6680
  %v6691 = vmul.f32 %v6348, %v6680
  %v6692 = vmul.f32 %v6349, %v6680
  %v6693 = vmul.f32 %v6350, %v6680
  %v6694 = vmul.f32 %v6351, %v6680
  %v6695 = vmul.f32 %v6352, %v6680
  %v6696 = vmul.f32 %v6353, %v6680
  %v6697 = vmul.f32 %v6354, %v6680
  %v6698 = vmul.f32 %v6355, %v6680
  %v6699 = vmul.f32 %v6356, %v6680
  %v6700 = vmul.f32 %v6357, %v6680
  %v6701 = vmul.f32 %v6358, %v6680
  %v6702 = vmul.f32 %v6359, %v6680
  %v6703 = vmul.f32 %v6360, %v6680
  %v6704 = vmul.f32 %v6361, %v6680
  %v6705 = vmul.f32 %v6362, %v6680
  %v6706 = vmul.f32 %v6363, %v6680
  %v6707 = vmul.f32 %v6364, %v6680
  %v6708 = vmul.f32 %v6365, %v6680
  %v6709 = vmul.f32 %v6366, %v6680
  %v6710 = vmul.f32 %v6367, %v6680
  %v6711 = vmul.f32 %v6368, %v6680
  %v6712 = vmul.f32 %v6369, %v6680
  %v6713 = vmul.f32 %v6370, %v6680
  %v6714 = vmul.f32 %v6371, %v6680
  %v6715 = vmul.f32 %v6372, %v6680
  %v6716 = vmul.f32 %v6373, %v6680
  %v6717 = vmul.f32 %v6374, %v6680
  %v6718 = vmul.f32 %v6375, %v6680
  %v6719 = vmul.f32 %v6376, %v6680
  %v6720 = vmul.f32 %v6377, %v6680
  %v6721 = vmul.f32 %v6378, %v6680
  %v6722 = vmul.f32 %v6379, %v6680
  %v6723 = vmul.f32 %v6380, %v6680
  %v6724 = vmul.f32 %v6381, %v6680
  %v6725 = vmul.f32 %v6382, %v6680
  %v6726 = vmul.f32 %v6383, %v6680
  %v6727 = vmul.f32 %v6384, %v6680
  %v6728 = vmul.f32 %v6385, %v6680
  %v6729 = vmul.f32 %v6386, %v6680
  %v6730 = vmul.f32 %v6387, %v6680
  %v6731 = vmul.f32 %v6388, %v6680
  %v6732 = vmul.f32 %v6389, %v6680
  %v6733 = vmul.f32 %v6390, %v6680
  %v6734 = vmul.f32 %v6391, %v6680
  %v6735 = vmul.f32 %v6392, %v6680
  %v6736 = vmul.f32 %v6393, %v6680
  %v6737 = vmul.f32 %v6394, %v6680
  %v6738 = vmul.f32 %v6395, %v6680
  %v6739 = vmul.f32 %v6396, %v6680
  %v6740 = vmul.f32 %v6397, %v6680
  %v6741 = vmul.f32 %v6398, %v6680
  %v6742 = vmul.f32 %v6399, %v6680
  %v6743 = vmul.f32 %v6400, %v6680
  %v6744 = vmul.f32 %v6401, %v6680
  %v6745 = vmul.f32 %v6402, %v6680
  %v6746 = vmul.f32 %v6675, %v6474
  %v6747 = vsub.f32 %v6404, %v6746
  %v6749 = vlaneseq
  %v6750 = vshrl.u32 %v6749, 7
  %v6751 = vsub.s32 0, %v6750
  %v6752 = vrot.slane %v6747, %v6751
  %v6754 = vadd.f32 %v6682, %v6752
  %v6755 = vadd.f32 %v6683, %v6752
  %v6756 = vadd.f32 %v6684, %v6752
  %v6757 = vadd.f32 %v6685, %v6752
  %v6758 = vadd.f32 %v6686, %v6752
  %v6759 = vadd.f32 %v6687, %v6752
  %v6760 = vadd.f32 %v6688, %v6752
  %v6761 = vadd.f32 %v6689, %v6752
  %v6762 = vadd.f32 %v6690, %v6752
  %v6763 = vadd.f32 %v6691, %v6752
  %v6764 = vadd.f32 %v6692, %v6752
  %v6765 = vadd.f32 %v6693, %v6752
  %v6766 = vadd.f32 %v6694, %v6752
  %v6767 = vadd.f32 %v6695, %v6752
  %v6768 = vadd.f32 %v6696, %v6752
  %v6769 = vadd.f32 %v6697, %v6752
  %v6770 = vadd.f32 %v6698, %v6752
  %v6771 = vadd.f32 %v6699, %v6752
  %v6772 = vadd.f32 %v6700, %v6752
  %v6773 = vadd.f32 %v6701, %v6752
  %v6774 = vadd.f32 %v6702, %v6752
  %v6775 = vadd.f32 %v6703, %v6752
  %v6776 = vadd.f32 %v6704, %v6752
  %v6777 = vadd.f32 %v6705, %v6752
  %v6778 = vadd.f32 %v6706, %v6752
  %v6779 = vadd.f32 %v6707, %v6752
  %v6780 = vadd.f32 %v6708, %v6752
  %v6781 = vadd.f32 %v6709, %v6752
  %v6782 = vadd.f32 %v6710, %v6752
  %v6783 = vadd.f32 %v6711, %v6752
  %v6784 = vadd.f32 %v6712, %v6752
  %v6785 = vadd.f32 %v6713, %v6752
  %v6786 = vadd.f32 %v6714, %v6752
  %v6787 = vadd.f32 %v6715, %v6752
  %v6788 = vadd.f32 %v6716, %v6752
  %v6789 = vadd.f32 %v6717, %v6752
  %v6790 = vadd.f32 %v6718, %v6752
  %v6791 = vadd.f32 %v6719, %v6752
  %v6792 = vadd.f32 %v6720, %v6752
  %v6793 = vadd.f32 %v6721, %v6752
  %v6794 = vadd.f32 %v6722, %v6752
  %v6795 = vadd.f32 %v6723, %v6752
  %v6796 = vadd.f32 %v6724, %v6752
  %v6797 = vadd.f32 %v6725, %v6752
  %v6798 = vadd.f32 %v6726, %v6752
  %v6799 = vadd.f32 %v6727, %v6752
  %v6800 = vadd.f32 %v6728, %v6752
  %v6801 = vadd.f32 %v6729, %v6752
  %v6802 = vadd.f32 %v6730, %v6752
  %v6803 = vadd.f32 %v6731, %v6752
  %v6804 = vadd.f32 %v6732, %v6752
  %v6805 = vadd.f32 %v6733, %v6752
  %v6806 = vadd.f32 %v6734, %v6752
  %v6807 = vadd.f32 %v6735, %v6752
  %v6808 = vadd.f32 %v6736, %v6752
  %v6809 = vadd.f32 %v6737, %v6752
  %v6810 = vadd.f32 %v6738, %v6752
  %v6811 = vadd.f32 %v6739, %v6752
  %v6812 = vadd.f32 %v6740, %v6752
  %v6813 = vadd.f32 %v6741, %v6752
  %v6814 = vadd.f32 %v6742, %v6752
  %v6815 = vadd.f32 %v6743, %v6752
  %v6816 = vadd.f32 %v6744, %v6752
  %v6817 = vadd.f32 %v6745, %v6752
  %v6818 = vmax.f32 %v6754, 0.0
  %v6819 = vmax.f32 %v6755, 0.0
  %v6820 = vmax.f32 %v6756, 0.0
  %v6821 = vmax.f32 %v6757, 0.0
  %v6822 = vmax.f32 %v6758, 0.0
  %v6823 = vmax.f32 %v6759, 0.0
  %v6824 = vmax.f32 %v6760, 0.0
  %v6825 = vmax.f32 %v6761, 0.0
  %v6826 = vmax.f32 %v6762, 0.0
  %v6827 = vmax.f32 %v6763, 0.0
  %v6828 = vmax.f32 %v6764, 0.0
  %v6829 = vmax.f32 %v6765, 0.0
  %v6830 = vmax.f32 %v6766, 0.0
  %v6831 = vmax.f32 %v6767, 0.0
  %v6832 = vmax.f32 %v6768, 0.0
  %v6833 = vmax.f32 %v6769, 0.0
  %v6834 = vmax.f32 %v6770, 0.0
  %v6835 = vmax.f32 %v6771, 0.0
  %v6836 = vmax.f32 %v6772, 0.0
  %v6837 = vmax.f32 %v6773, 0.0
  %v6838 = vmax.f32 %v6774, 0.0
  %v6839 = vmax.f32 %v6775, 0.0
  %v6840 = vmax.f32 %v6776, 0.0
  %v6841 = vmax.f32 %v6777, 0.0
  %v6842 = vmax.f32 %v6778, 0.0
  %v6843 = vmax.f32 %v6779, 0.0
  %v6844 = vmax.f32 %v6780, 0.0
  %v6845 = vmax.f32 %v6781, 0.0
  %v6846 = vmax.f32 %v6782, 0.0
  %v6847 = vmax.f32 %v6783, 0.0
  %v6848 = vmax.f32 %v6784, 0.0
  %v6849 = vmax.f32 %v6785, 0.0
  %v6850 = vmax.f32 %v6786, 0.0
  %v6851 = vmax.f32 %v6787, 0.0
  %v6852 = vmax.f32 %v6788, 0.0
  %v6853 = vmax.f32 %v6789, 0.0
  %v6854 = vmax.f32 %v6790, 0.0
  %v6855 = vmax.f32 %v6791, 0.0
  %v6856 = vmax.f32 %v6792, 0.0
  %v6857 = vmax.f32 %v6793, 0.0
  %v6858 = vmax.f32 %v6794, 0.0
  %v6859 = vmax.f32 %v6795, 0.0
  %v6860 = vmax.f32 %v6796, 0.0
  %v6861 = vmax.f32 %v6797, 0.0
  %v6862 = vmax.f32 %v6798, 0.0
  %v6863 = vmax.f32 %v6799, 0.0
  %v6864 = vmax.f32 %v6800, 0.0
  %v6865 = vmax.f32 %v6801, 0.0
  %v6866 = vmax.f32 %v6802, 0.0
  %v6867 = vmax.f32 %v6803, 0.0
  %v6868 = vmax.f32 %v6804, 0.0
  %v6869 = vmax.f32 %v6805, 0.0
  %v6870 = vmax.f32 %v6806, 0.0
  %v6871 = vmax.f32 %v6807, 0.0
  %v6872 = vmax.f32 %v6808, 0.0
  %v6873 = vmax.f32 %v6809, 0.0
  %v6874 = vmax.f32 %v6810, 0.0
  %v6875 = vmax.f32 %v6811, 0.0
  %v6876 = vmax.f32 %v6812, 0.0
  %v6877 = vmax.f32 %v6813, 0.0
  %v6878 = vmax.f32 %v6814, 0.0
  %v6879 = vmax.f32 %v6815, 0.0
  %v6880 = vmax.f32 %v6816, 0.0
  %v6881 = vmax.f32 %v6817, 0.0
  %6882 = vst [vmem:[%s11] sm:$0xff] %v6818
  %6883 = vst [vmem:[%s11 + $0x8] sm:$0xff] %v6819
  %6884 = vst [vmem:[%s11 + $0x10] sm:$0xff] %v6820
  %6885 = vst [vmem:[%s11 + $0x18] sm:$0xff] %v6821
  %6886 = vst [vmem:[%s11 + $0x20] sm:$0xff] %v6822
  %6887 = vst [vmem:[%s11 + $0x28] sm:$0xff] %v6823
  %6888 = vst [vmem:[%s11 + $0x30] sm:$0xff] %v6824
  %6889 = vst [vmem:[%s11 + $0x38] sm:$0xff] %v6825
  %6890 = vst [vmem:[%s11 + $0x40] sm:$0xff] %v6826
  %6891 = vst [vmem:[%s11 + $0x48] sm:$0xff] %v6827
  %6892 = vst [vmem:[%s11 + $0x50] sm:$0xff] %v6828
  %6893 = vst [vmem:[%s11 + $0x58] sm:$0xff] %v6829
  %6894 = vst [vmem:[%s11 + $0x60] sm:$0xff] %v6830
  %6895 = vst [vmem:[%s11 + $0x68] sm:$0xff] %v6831
  %6896 = vst [vmem:[%s11 + $0x70] sm:$0xff] %v6832
  %6897 = vst [vmem:[%s11 + $0x78] sm:$0xff] %v6833
  %6898 = vst [vmem:[%s11 + $0x80] sm:$0xff] %v6834
  %6899 = vst [vmem:[%s11 + $0x88] sm:$0xff] %v6835
  %6900 = vst [vmem:[%s11 + $0x90] sm:$0xff] %v6836
  %6901 = vst [vmem:[%s11 + $0x98] sm:$0xff] %v6837
  %6902 = vst [vmem:[%s11 + $0xa0] sm:$0xff] %v6838
  %6903 = vst [vmem:[%s11 + $0xa8] sm:$0xff] %v6839
  %6904 = vst [vmem:[%s11 + $0xb0] sm:$0xff] %v6840
  %6905 = vst [vmem:[%s11 + $0xb8] sm:$0xff] %v6841
  %6906 = vst [vmem:[%s11 + $0xc0] sm:$0xff] %v6842
  %6907 = vst [vmem:[%s11 + $0xc8] sm:$0xff] %v6843
  %6908 = vst [vmem:[%s11 + $0xd0] sm:$0xff] %v6844
  %6909 = vst [vmem:[%s11 + $0xd8] sm:$0xff] %v6845
  %6910 = vst [vmem:[%s11 + $0xe0] sm:$0xff] %v6846
  %6911 = vst [vmem:[%s11 + $0xe8] sm:$0xff] %v6847
  %6912 = vst [vmem:[%s11 + $0xf0] sm:$0xff] %v6848
  %6913 = vst [vmem:[%s11 + $0xf8] sm:$0xff] %v6849
  %6914 = vst [vmem:[%s11 + $0x100] sm:$0xff] %v6850
  %6915 = vst [vmem:[%s11 + $0x108] sm:$0xff] %v6851
  %6916 = vst [vmem:[%s11 + $0x110] sm:$0xff] %v6852
  %6917 = vst [vmem:[%s11 + $0x118] sm:$0xff] %v6853
  %6918 = vst [vmem:[%s11 + $0x120] sm:$0xff] %v6854
  %6919 = vst [vmem:[%s11 + $0x128] sm:$0xff] %v6855
  %6920 = vst [vmem:[%s11 + $0x130] sm:$0xff] %v6856
  %6921 = vst [vmem:[%s11 + $0x138] sm:$0xff] %v6857
  %6922 = vst [vmem:[%s11 + $0x140] sm:$0xff] %v6858
  %6923 = vst [vmem:[%s11 + $0x148] sm:$0xff] %v6859
  %6924 = vst [vmem:[%s11 + $0x150] sm:$0xff] %v6860
  %6925 = vst [vmem:[%s11 + $0x158] sm:$0xff] %v6861
  %6926 = vst [vmem:[%s11 + $0x160] sm:$0xff] %v6862
  %6927 = vst [vmem:[%s11 + $0x168] sm:$0xff] %v6863
  %6928 = vst [vmem:[%s11 + $0x170] sm:$0xff] %v6864
  %6929 = vst [vmem:[%s11 + $0x178] sm:$0xff] %v6865
  %6930 = vst [vmem:[%s11 + $0x180] sm:$0xff] %v6866
  %6931 = vst [vmem:[%s11 + $0x188] sm:$0xff] %v6867
  %6932 = vst [vmem:[%s11 + $0x190] sm:$0xff] %v6868
  %6933 = vst [vmem:[%s11 + $0x198] sm:$0xff] %v6869
  %6934 = vst [vmem:[%s11 + $0x1a0] sm:$0xff] %v6870
  %6935 = vst [vmem:[%s11 + $0x1a8] sm:$0xff] %v6871
  %6936 = vst [vmem:[%s11 + $0x1b0] sm:$0xff] %v6872
  %6937 = vst [vmem:[%s11 + $0x1b8] sm:$0xff] %v6873
  %6938 = vst [vmem:[%s11 + $0x1c0] sm:$0xff] %v6874
  %6939 = vst [vmem:[%s11 + $0x1c8] sm:$0xff] %v6875
  %6940 = vst [vmem:[%s11 + $0x1d0] sm:$0xff] %v6876
  %6941 = vst [vmem:[%s11 + $0x1d8] sm:$0xff] %v6877
  %6942 = vst [vmem:[%s11 + $0x1e0] sm:$0xff] %v6878
  %6943 = vst [vmem:[%s11 + $0x1e8] sm:$0xff] %v6879
  %6944 = vst [vmem:[%s11 + $0x1f0] sm:$0xff] %v6880
  %6945 = vst [vmem:[%s11 + $0x1f8] sm:$0xff] %v6881
  // Predicated region
  $region46: #{asymmetric_conv_block.1} parent=0 // pred_check
    _
  $region47: #{asymmetric_conv_block.1} parent=0 // pred_check_branch
    %6947 = sbr.rel (0) target = $region49
  $region48: #{asymmetric_conv_block.1} parent=0 // pred_region
    _
  $region49: #{asymmetric_conv_block.1} parent=0 // pred_fallthru
    _
  // Predicated region
  $region50: #{asymmetric_conv_block.1} parent=0 // pred_check
    _
  $region51: #{asymmetric_conv_block.1} parent=0 // pred_check_branch
    %6949 = sbr.rel (0) target = $region53
  $region52: #{asymmetric_conv_block.1} parent=0 // pred_region
    _
  $region53: #{asymmetric_conv_block.1} parent=0 // pred_fallthru
    _

</llo_original>
